<compile_context>
chip_gen: v5e
topology: v5e:2x2
jax: 0.10.0
libtpu: 0.0.40
codegen_flags: <defaults>
</compile_context>

<pallas_src>
import functools

import jax
import jax.numpy as jnp
from jax.experimental import pallas as pl
from jax.experimental.pallas import tpu as pltpu

_VMEM_LIMIT = 32 * 1024 * 1024


def _round_up(x, m):
    return (x + m - 1) // m * m


# ----------------------------- tiled linear ----------------------------------

def _matmul_kernel(x_ref, w_ref, b_ref, o_ref, acc_ref, *, n_k, act):
    @pl.when(pl.program_id(2) == 0)
    def _init():
        acc_ref[...] = jnp.zeros_like(acc_ref)

    acc_ref[...] += jnp.dot(x_ref[...], w_ref[...],
                            preferred_element_type=jnp.float32)

    @pl.when(pl.program_id(2) == n_k - 1)
    def _finalize():
        y = acc_ref[...] + b_ref[...]          # bias add in f32 epilogue
        if act == "relu":
            y = jnp.maximum(y, 0.0)
        elif act == "tanh":
            y = jnp.tanh(y)
        o_ref[...] = y.astype(o_ref.dtype)


def pallas_linear(x, w, b, act="none", out_dtype=jnp.float32,
                  tm=128, tk=256, tn=256):
    """y = act(x @ w + b), tiled/pipelined, bf16 MXU operands, f32 accumulate."""
    M, K = x.shape
    K2, N = w.shape
    assert K == K2
    b = b.reshape(1, N).astype(jnp.float32)

    tm = min(tm, _round_up(M, 8))
    tk = min(tk, _round_up(K, 128))
    tn = min(tn, _round_up(N, 128))
    Mp, Kp, Np = _round_up(M, tm), _round_up(K, tk), _round_up(N, tn)

    xb = x.astype(jnp.bfloat16)
    wb = w.astype(jnp.bfloat16)
    if (Mp, Kp) != (M, K):
        xb = jnp.pad(xb, ((0, Mp - M), (0, Kp - K)))
    if (Kp, Np) != (K, N):
        wb = jnp.pad(wb, ((0, Kp - K), (0, Np - N)))
    if Np != N:
        b = jnp.pad(b, ((0, 0), (0, Np - N)))

    grid = (Mp // tm, Np // tn, Kp // tk)
    out = pl.pallas_call(
        functools.partial(_matmul_kernel, n_k=grid[2], act=act),
        out_shape=jax.ShapeDtypeStruct((Mp, Np), out_dtype),
        grid=grid,
        in_specs=[pl.BlockSpec((tm, tk), lambda i, j, kk: (i, kk)),
                  pl.BlockSpec((tk, tn), lambda i, j, kk: (kk, j)),
                  pl.BlockSpec((1, tn), lambda i, j, kk: (0, j))],
        out_specs=pl.BlockSpec((tm, tn), lambda i, j, kk: (i, j)),
        scratch_shapes=[pltpu.VMEM((tm, tn), jnp.float32)],
        compiler_params=pltpu.CompilerParams(
            dimension_semantics=("parallel", "parallel", "arbitrary"),
            vmem_limit_bytes=_VMEM_LIMIT),
    )(xb, wb, b)
    if (Mp, Np) != (M, N):
        out = out[:M, :N]
    return out


# ------------------------- head-blocked SDPA ----------------------------------

def _sdpa_kernel(q_ref, k_ref, v_ref, o_ref, *, scale):
    q = q_ref[...]                                           # (Hb, Lq, Dh) bf16
    k = k_ref[...]                                           # (Hb, Lk, Dh) bf16
    v = v_ref[...]                                           # (Hb, Lk, Dh) bf16
    s = jnp.einsum("hqd,hkd->hqk", q, k,
                   preferred_element_type=jnp.float32) * scale
    m = jnp.max(s, axis=-1, keepdims=True)
    p = jnp.exp(s - m)                                       # f32 softmax math
    denom = jnp.sum(p, axis=-1, keepdims=True)
    p = p * pl.reciprocal(denom, approx=True)                # EUP, free slot
    o = jnp.einsum("hqk,hkd->hqd", p.astype(v.dtype), v,
                   preferred_element_type=jnp.float32)
    o_ref[...] = o.astype(o_ref.dtype)


def pallas_sdpa(q, k, v):
    """Scaled dot-product attention, a block of heads per grid step.

    q: (BH, Lq, Dh), k/v: (BH, Lk, Dh) -> (BH, Lq, Dh) bf16.
    """
    BH, Lq, Dh = q.shape
    Lk = k.shape[1]
    scale = 1.0 / (Dh ** 0.5)

    hb = 1
    for cand in (8, 4, 2, 1):                # keep grid > 1 when BH > 1 (megacore)
        if BH % cand == 0 and cand * Lq * Lk * 4 <= 4 * 1024 * 1024:
            hb = cand
            break

    return pl.pallas_call(
        functools.partial(_sdpa_kernel, scale=scale),
        out_shape=jax.ShapeDtypeStruct((BH, Lq, Dh), jnp.bfloat16),
        grid=(BH // hb,),
        in_specs=[pl.BlockSpec((hb, Lq, Dh), lambda i: (i, 0, 0)),
                  pl.BlockSpec((hb, Lk, Dh), lambda i: (i, 0, 0)),
                  pl.BlockSpec((hb, Lk, Dh), lambda i: (i, 0, 0))],
        out_specs=pl.BlockSpec((hb, Lq, Dh), lambda i: (i, 0, 0)),
        compiler_params=pltpu.CompilerParams(
            dimension_semantics=("parallel",),
            vmem_limit_bytes=_VMEM_LIMIT),
    )(q.astype(jnp.bfloat16), k.astype(jnp.bfloat16), v.astype(jnp.bfloat16))


# ------------------------- MultiHeadAttention module ---------------------------

def multihead_attention(query, key, value, params, num_heads):
    """nn.MultiheadAttention(embed_dim, num_heads, batch_first=True) forward,
    returning only the attention output (module does `[0]`)."""
    B, Lq, E = query.shape
    Lk = key.shape[1]
    Dh = E // num_heads
    w_in, b_in = params["w_in"], params["b_in"]      # (E, 3E), (1, 3E)
    w_out, b_out = params["w_out"], params["b_out"]  # (E, E),  (1, E)

    if (query is key) and (key is value):            # self-attention: fused QKV
        qkv = pallas_linear(query.reshape(B * Lq, E), w_in, b_in,
                            out_dtype=jnp.bfloat16)  # (B*Lq, 3E)
        qp, kp, vp = qkv[:, :E], qkv[:, E:2 * E], qkv[:, 2 * E:]
    else:
        qp = pallas_linear(query.reshape(B * Lq, E), w_in[:, :E],
                           b_in[:, :E], out_dtype=jnp.bfloat16)
        if key is value:                             # fused KV projection
            kv = pallas_linear(key.reshape(B * Lk, E), w_in[:, E:],
                               b_in[:, E:], out_dtype=jnp.bfloat16)
            kp, vp = kv[:, :E], kv[:, E:]
        else:
            kp = pallas_linear(key.reshape(B * Lk, E), w_in[:, E:2 * E],
                               b_in[:, E:2 * E], out_dtype=jnp.bfloat16)
            vp = pallas_linear(value.reshape(B * Lk, E), w_in[:, 2 * E:],
                               b_in[:, 2 * E:], out_dtype=jnp.bfloat16)

    def to_heads(x, L):
        return (x.reshape(B, L, num_heads, Dh)
                 .transpose(0, 2, 1, 3)
                 .reshape(B * num_heads, L, Dh))

    qh, kh, vh = to_heads(qp, Lq), to_heads(kp, Lk), to_heads(vp, Lk)
    oh = pallas_sdpa(qh, kh, vh)                     # (B*H, Lq, Dh) bf16
    o = (oh.reshape(B, num_heads, Lq, Dh)
           .transpose(0, 2, 1, 3)
           .reshape(B * Lq, E))
    out = pallas_linear(o, w_out, b_out, out_dtype=jnp.float32)
    return out.reshape(B, Lq, E)


# ------------------------------ reference -------------------------------------

def mha_reference(x_q, x_k, x_v, params, num_heads):
    """Pure-JAX reference with matching bf16 matmul operands."""
    B, Lq, E = x_q.shape
    Lk = x_k.shape[1]
    Dh = E // num_heads

    def mm(x, w, b):
        return (jnp.dot(x.astype(jnp.bfloat16), w.astype(jnp.bfloat16),
                        preferred_element_type=jnp.float32) + b)

    w_in, b_in = params["w_in"], params["b_in"]
    q = mm(x_q.reshape(B * Lq, E), w_in[:, :E], b_in[:, :E]).astype(jnp.bfloat16)
    k = mm(x_k.reshape(B * Lk, E), w_in[:, E:2 * E], b_in[:, E:2 * E]).astype(jnp.bfloat16)
    v = mm(x_v.reshape(B * Lk, E), w_in[:, 2 * E:], b_in[:, 2 * E:]).astype(jnp.bfloat16)
    qh = q.reshape(B, Lq, num_heads, Dh).transpose(0, 2, 1, 3)
    kh = k.reshape(B, Lk, num_heads, Dh).transpose(0, 2, 1, 3)
    vh = v.reshape(B, Lk, num_heads, Dh).transpose(0, 2, 1, 3)
    s = jnp.einsum("bhqd,bhkd->bhqk", qh, kh,
                   preferred_element_type=jnp.float32) / (Dh ** 0.5)
    p = jax.nn.softmax(s, axis=-1)
    o = jnp.einsum("bhqk,bhkd->bhqd", p.astype(jnp.bfloat16), vh,
                   preferred_element_type=jnp.float32).astype(jnp.bfloat16)
    o = o.transpose(0, 2, 1, 3).reshape(B * Lq, E)
    return mm(o, params["w_out"], params["b_out"]).reshape(B, Lq, E)


# ------------------------------- parameters ------------------------------------

def init_mha_params(key, embed_dim):
    k1, k2 = jax.random.split(key)
    scale = 0.02
    return dict(
        w_in=(scale * jax.random.normal(k1, (embed_dim, 3 * embed_dim))).astype(jnp.float32),
        b_in=jnp.zeros((1, 3 * embed_dim), jnp.float32),
        w_out=(scale * jax.random.normal(k2, (embed_dim, embed_dim))).astype(jnp.float32),
        b_out=jnp.zeros((1, embed_dim), jnp.float32),
    )


# ---------------------------------- main ---------------------------------------

if __name__ == "__main__":
    B, L, E, NUM_HEADS = 2, 128, 256, 8

    key = jax.random.PRNGKey(0)
    kx, kp = jax.random.split(key)
    x = jax.random.normal(kx, (B, L, E), jnp.float32)
    params = init_mha_params(kp, E)

    @jax.jit
    def self_attention(p, xq):
        # same tracer for q/k/v -> fused QKV projection path
        return multihead_attention(xq, xq, xq, p, NUM_HEADS)

    out = self_attention(params, x)
    jax.block_until_ready(out)
    assert out.shape == (B, L, E)

    ref = mha_reference(x, x, x, params, NUM_HEADS)
    assert bool(jnp.all(jnp.isfinite(out)))
    assert bool(jnp.allclose(out, ref, atol=2e-2, rtol=2e-2)), \
        "Pallas MHA output mismatch vs reference"

    print("KERNEL_OK")
</pallas_src>

<mosaic_0001>
module attributes {stable_mosaic.version = 11 : i64} {
  func.func @_matmul_kernel(%arg0: i32, %arg1: i32, %arg2: i32, %arg3: memref<128x256xbf16, #tpu.memory_space<vmem>>, %arg4: memref<256x256xbf16, #tpu.memory_space<vmem>>, %arg5: memref<1x256xf32, #tpu.memory_space<vmem>>, %arg6: memref<128x256xbf16, #tpu.memory_space<vmem>>, %arg7: memref<128x256xf32, #tpu.memory_space<vmem>>) attributes {dimension_semantics = [#tpu.dimension_semantics<parallel>, #tpu.dimension_semantics<parallel>, #tpu.dimension_semantics<arbitrary>], iteration_bounds = array<i64: 2, 3, 1>, scalar_prefetch = 0 : i64, scratch_operands = 1 : i64, tpu.core_type = #tpu.core_type<tc>, window_params = [{transform_indices = @transform_0, window_bounds = array<i64: 128, 256>}, {transform_indices = @transform_1, window_bounds = array<i64: 256, 256>}, {transform_indices = @transform_2, window_bounds = array<i64: 1, 256>}, {transform_indices = @transform_3, window_bounds = array<i64: 128, 256>}]} {
    %c0_i32 = arith.constant 0 : i32
    %0 = arith.cmpi eq, %arg2, %c0_i32 : i32
    %1 = arith.extui %0 : i1 to i32
    %c0_i32_0 = arith.constant 0 : i32
    %2 = arith.cmpi ne, %1, %c0_i32_0 : i32
    scf.if %2 {
      %cst_10 = arith.constant 0.000000e+00 : f32
      %12 = vector.broadcast %cst_10 : f32 to vector<128x256xf32>
      %c0_11 = arith.constant 0 : index
      %c0_12 = arith.constant 0 : index
      %13 = vector.load %arg7[%c0_11, %c0_12] : memref<128x256xf32, #tpu.memory_space<vmem>>, vector<128x256xf32>
      tpu.vector_store %arg7[%c0_11, %c0_12], %12 {strides = array<i32>} : memref<128x256xf32, #tpu.memory_space<vmem>>, vector<128x256xf32>,
    } else {
    }
    %c0 = arith.constant 0 : index
    %c0_1 = arith.constant 0 : index
    %3 = vector.load %arg7[%c0, %c0_1] : memref<128x256xf32, #tpu.memory_space<vmem>>, vector<128x256xf32>
    %c0_2 = arith.constant 0 : index
    %c0_3 = arith.constant 0 : index
    %4 = vector.load %arg3[%c0_2, %c0_3] : memref<128x256xbf16, #tpu.memory_space<vmem>>, vector<128x256xbf16>
    %c0_4 = arith.constant 0 : index
    %c0_5 = arith.constant 0 : index
    %5 = vector.load %arg4[%c0_4, %c0_5] : memref<256x256xbf16, #tpu.memory_space<vmem>>, vector<256x256xbf16>
    %cst = arith.constant dense<0.000000e+00> : vector<128x256xf32>
    %6 = tpu.matmul %4, %5, %cst {dimension_numbers = #tpu.dot_dimension_numbers<[1], [0], [0], [1], [0, 0, 1, 1], [], []>} : vector<128x256xbf16>, vector<256x256xbf16>, vector<128x256xf32> -> vector<128x256xf32>
    %7 = arith.addf %3, %6 : vector<128x256xf32>
    %c0_6 = arith.constant 0 : index
    %c0_7 = arith.constant 0 : index
    %8 = vector.load %arg7[%c0_6, %c0_7] : memref<128x256xf32, #tpu.memory_space<vmem>>, vector<128x256xf32>
    tpu.vector_store %arg7[%c0_6, %c0_7], %7 {strides = array<i32>} : memref<128x256xf32, #tpu.memory_space<vmem>>, vector<128x256xf32>,
    %c0_i32_8 = arith.constant 0 : i32
    %9 = arith.cmpi eq, %arg2, %c0_i32_8 : i32
    %10 = arith.extui %9 : i1 to i32
    %c0_i32_9 = arith.constant 0 : i32
    %11 = arith.cmpi ne, %10, %c0_i32_9 : i32
    scf.if %11 {
      %c0_10 = arith.constant 0 : index
      %c0_11 = arith.constant 0 : index
      %12 = vector.load %arg7[%c0_10, %c0_11] : memref<128x256xf32, #tpu.memory_space<vmem>>, vector<128x256xf32>
      %c0_12 = arith.constant 0 : index
      %c0_13 = arith.constant 0 : index
      %13 = vector.load %arg5[%c0_12, %c0_13] : memref<1x256xf32, #tpu.memory_space<vmem>>, vector<1x256xf32>
      %14 = vector.broadcast %13 : vector<1x256xf32> to vector<128x256xf32>
      %15 = arith.addf %12, %14 : vector<128x256xf32>
      %16 = arith.truncf %15 : vector<128x256xf32> to vector<128x256xbf16>
      %c0_14 = arith.constant 0 : index
      %c0_15 = arith.constant 0 : index
      %17 = vector.load %arg6[%c0_14, %c0_15] : memref<128x256xbf16, #tpu.memory_space<vmem>>, vector<128x256xbf16>
      tpu.vector_store %arg6[%c0_14, %c0_15], %16 {strides = array<i32>} : memref<128x256xbf16, #tpu.memory_space<vmem>>, vector<128x256xbf16>,
    } else {
    }
    return
  }
  func.func @transform_0(%arg0: i32, %arg1: i32, %arg2: i32) -> (i32, i32) {
    %c0_i32 = arith.constant 0 : i32
    return %arg0, %arg2 : i32, i32
  }
  func.func @transform_1(%arg0: i32, %arg1: i32, %arg2: i32) -> (i32, i32) {
    %c0_i32 = arith.constant 0 : i32
    return %arg2, %arg1 : i32, i32
  }
  func.func @transform_2(%arg0: i32, %arg1: i32, %arg2: i32) -> (i32, i32) {
    %c0_i32 = arith.constant 0 : i32
    %c0_i32_0 = arith.constant 0 : i32
    return %c0_i32, %arg1 : i32, i32
  }
  func.func @transform_3(%arg0: i32, %arg1: i32, %arg2: i32) -> (i32, i32) {
    %c0_i32 = arith.constant 0 : i32
    return %arg0, %arg1 : i32, i32
  }
}

module attributes {stable_mosaic.version = 11 : i64} {
  func.func @_sdpa_kernel(%arg0: i32, %arg1: memref<8x128x32xbf16, #tpu.memory_space<vmem>>, %arg2: memref<8x128x32xbf16, #tpu.memory_space<vmem>>, %arg3: memref<8x128x32xbf16, #tpu.memory_space<vmem>>, %arg4: memref<8x128x32xbf16, #tpu.memory_space<vmem>>) attributes {dimension_semantics = [#tpu.dimension_semantics<parallel>], iteration_bounds = array<i64: 2>, scalar_prefetch = 0 : i64, scratch_operands = 0 : i64, tpu.core_type = #tpu.core_type<tc>, window_params = [{transform_indices = @transform_0, window_bounds = array<i64: 8, 128, 32>}, {transform_indices = @transform_1, window_bounds = array<i64: 8, 128, 32>}, {transform_indices = @transform_2, window_bounds = array<i64: 8, 128, 32>}, {transform_indices = @transform_3, window_bounds = array<i64: 8, 128, 32>}]} {
    %c0 = arith.constant 0 : index
    %c0_0 = arith.constant 0 : index
    %c0_1 = arith.constant 0 : index
    %0 = vector.load %arg1[%c0, %c0_0, %c0_1] : memref<8x128x32xbf16, #tpu.memory_space<vmem>>, vector<8x128x32xbf16>
    %c0_2 = arith.constant 0 : index
    %c0_3 = arith.constant 0 : index
    %c0_4 = arith.constant 0 : index
    %1 = vector.load %arg2[%c0_2, %c0_3, %c0_4] : memref<8x128x32xbf16, #tpu.memory_space<vmem>>, vector<8x128x32xbf16>
    %c0_5 = arith.constant 0 : index
    %c0_6 = arith.constant 0 : index
    %c0_7 = arith.constant 0 : index
    %2 = vector.load %arg3[%c0_5, %c0_6, %c0_7] : memref<8x128x32xbf16, #tpu.memory_space<vmem>>, vector<8x128x32xbf16>
    "tpu.trace_start"() <{level = 10 : i32, message = "hqd,hkd->hqk"}> : () -> ()
    %cst = arith.constant dense<0.000000e+00> : vector<8x128x128xf32>
    %3 = tpu.matmul %0, %1, %cst {dimension_numbers = #tpu.dot_dimension_numbers<[2], [2], [1], [1], [0, 0, 0, 1, 1, 1], [0], [0]>} : vector<8x128x32xbf16>, vector<8x128x32xbf16>, vector<8x128x128xf32> -> vector<8x128x128xf32>
    "tpu.trace_stop"() : () -> ()
    %cst_8 = arith.constant 0.176776692 : f32
    %4 = vector.broadcast %cst_8 : f32 to vector<8x128x128xf32>
    %5 = arith.mulf %3, %4 : vector<8x128x128xf32>
    %cst_9 = arith.constant dense<0xFF800000> : vector<8x128xf32>
    %6 = vector.multi_reduction <maximumf>, %5, %cst_9 [2] : vector<8x128x128xf32> to vector<8x128xf32>
    %7 = vector.shape_cast %6 : vector<8x128xf32> to vector<8x128x1xf32>
    %8 = vector.broadcast %7 : vector<8x128x1xf32> to vector<8x128x128xf32>
    %9 = arith.subf %5, %8 : vector<8x128x128xf32>
    %10 = math.exp %9 : vector<8x128x128xf32>
    %cst_10 = arith.constant dense<0.000000e+00> : vector<8x128xf32>
    %11 = vector.multi_reduction <add>, %10, %cst_10 [2] : vector<8x128x128xf32> to vector<8x128xf32>
    %12 = vector.shape_cast %11 : vector<8x128xf32> to vector<8x128x1xf32>
    %13 = tpu.reciprocal %12 {approx = true} : vector<8x128x1xf32> -> vector<8x128x1xf32>
    %14 = vector.broadcast %13 : vector<8x128x1xf32> to vector<8x128x128xf32>
    %15 = arith.mulf %10, %14 : vector<8x128x128xf32>
    %16 = arith.truncf %15 : vector<8x128x128xf32> to vector<8x128x128xbf16>
    "tpu.trace_start"() <{level = 10 : i32, message = "hqk,hkd->hqd"}> : () -> ()
    %cst_11 = arith.constant dense<0.000000e+00> : vector<8x128x32xf32>
    %17 = tpu.matmul %16, %2, %cst_11 {dimension_numbers = #tpu.dot_dimension_numbers<[2], [1], [1], [2], [0, 0, 0, 1, 1, 2], [0], [0]>} : vector<8x128x128xbf16>, vector<8x128x32xbf16>, vector<8x128x32xf32> -> vector<8x128x32xf32>
    "tpu.trace_stop"() : () -> ()
    %18 = arith.truncf %17 : vector<8x128x32xf32> to vector<8x128x32xbf16>
    %c0_12 = arith.constant 0 : index
    %c0_13 = arith.constant 0 : index
    %c0_14 = arith.constant 0 : index
    %19 = vector.load %arg4[%c0_12, %c0_13, %c0_14] : memref<8x128x32xbf16, #tpu.memory_space<vmem>>, vector<8x128x32xbf16>
    tpu.vector_store %arg4[%c0_12, %c0_13, %c0_14], %18 {strides = array<i32>} : memref<8x128x32xbf16, #tpu.memory_space<vmem>>, vector<8x128x32xbf16>,
    return
  }
  func.func @transform_0(%arg0: i32) -> (i32, i32, i32) {
    %c0_i32 = arith.constant 0 : i32
    %c0_i32_0 = arith.constant 0 : i32
    %c0_i32_1 = arith.constant 0 : i32
    return %arg0, %c0_i32, %c0_i32_0 : i32, i32, i32
  }
  func.func @transform_1(%arg0: i32) -> (i32, i32, i32) {
    %c0_i32 = arith.constant 0 : i32
    %c0_i32_0 = arith.constant 0 : i32
    %c0_i32_1 = arith.constant 0 : i32
    return %arg0, %c0_i32, %c0_i32_0 : i32, i32, i32
  }
  func.func @transform_2(%arg0: i32) -> (i32, i32, i32) {
    %c0_i32 = arith.constant 0 : i32
    %c0_i32_0 = arith.constant 0 : i32
    %c0_i32_1 = arith.constant 0 : i32
    return %arg0, %c0_i32, %c0_i32_0 : i32, i32, i32
  }
  func.func @transform_3(%arg0: i32) -> (i32, i32, i32) {
    %c0_i32 = arith.constant 0 : i32
    %c0_i32_0 = arith.constant 0 : i32
    %c0_i32_1 = arith.constant 0 : i32
    return %arg0, %c0_i32, %c0_i32_0 : i32, i32, i32
  }
}

module attributes {stable_mosaic.version = 11 : i64} {
  func.func @_matmul_kernel(%arg0: i32, %arg1: i32, %arg2: i32, %arg3: memref<128x256xbf16, #tpu.memory_space<vmem>>, %arg4: memref<256x256xbf16, #tpu.memory_space<vmem>>, %arg5: memref<1x256xf32, #tpu.memory_space<vmem>>, %arg6: memref<128x256xf32, #tpu.memory_space<vmem>>, %arg7: memref<128x256xf32, #tpu.memory_space<vmem>>) attributes {dimension_semantics = [#tpu.dimension_semantics<parallel>, #tpu.dimension_semantics<parallel>, #tpu.dimension_semantics<arbitrary>], iteration_bounds = array<i64: 2, 1, 1>, scalar_prefetch = 0 : i64, scratch_operands = 1 : i64, tpu.core_type = #tpu.core_type<tc>, window_params = [{transform_indices = @transform_0, window_bounds = array<i64: 128, 256>}, {transform_indices = @transform_1, window_bounds = array<i64: 256, 256>}, {transform_indices = @transform_2, window_bounds = array<i64: 1, 256>}, {transform_indices = @transform_3, window_bounds = array<i64: 128, 256>}]} {
    %c0_i32 = arith.constant 0 : i32
    %0 = arith.cmpi eq, %arg2, %c0_i32 : i32
    %1 = arith.extui %0 : i1 to i32
    %c0_i32_0 = arith.constant 0 : i32
    %2 = arith.cmpi ne, %1, %c0_i32_0 : i32
    scf.if %2 {
      %cst_10 = arith.constant 0.000000e+00 : f32
      %12 = vector.broadcast %cst_10 : f32 to vector<128x256xf32>
      %c0_11 = arith.constant 0 : index
      %c0_12 = arith.constant 0 : index
      %13 = vector.load %arg7[%c0_11, %c0_12] : memref<128x256xf32, #tpu.memory_space<vmem>>, vector<128x256xf32>
      tpu.vector_store %arg7[%c0_11, %c0_12], %12 {strides = array<i32>} : memref<128x256xf32, #tpu.memory_space<vmem>>, vector<128x256xf32>,
    } else {
    }
    %c0 = arith.constant 0 : index
    %c0_1 = arith.constant 0 : index
    %3 = vector.load %arg7[%c0, %c0_1] : memref<128x256xf32, #tpu.memory_space<vmem>>, vector<128x256xf32>
    %c0_2 = arith.constant 0 : index
    %c0_3 = arith.constant 0 : index
    %4 = vector.load %arg3[%c0_2, %c0_3] : memref<128x256xbf16, #tpu.memory_space<vmem>>, vector<128x256xbf16>
    %c0_4 = arith.constant 0 : index
    %c0_5 = arith.constant 0 : index
    %5 = vector.load %arg4[%c0_4, %c0_5] : memref<256x256xbf16, #tpu.memory_space<vmem>>, vector<256x256xbf16>
    %cst = arith.constant dense<0.000000e+00> : vector<128x256xf32>
    %6 = tpu.matmul %4, %5, %cst {dimension_numbers = #tpu.dot_dimension_numbers<[1], [0], [0], [1], [0, 0, 1, 1], [], []>} : vector<128x256xbf16>, vector<256x256xbf16>, vector<128x256xf32> -> vector<128x256xf32>
    %7 = arith.addf %3, %6 : vector<128x256xf32>
    %c0_6 = arith.constant 0 : index
    %c0_7 = arith.constant 0 : index
    %8 = vector.load %arg7[%c0_6, %c0_7] : memref<128x256xf32, #tpu.memory_space<vmem>>, vector<128x256xf32>
    tpu.vector_store %arg7[%c0_6, %c0_7], %7 {strides = array<i32>} : memref<128x256xf32, #tpu.memory_space<vmem>>, vector<128x256xf32>,
    %c0_i32_8 = arith.constant 0 : i32
    %9 = arith.cmpi eq, %arg2, %c0_i32_8 : i32
    %10 = arith.extui %9 : i1 to i32
    %c0_i32_9 = arith.constant 0 : i32
    %11 = arith.cmpi ne, %10, %c0_i32_9 : i32
    scf.if %11 {
      %c0_10 = arith.constant 0 : index
      %c0_11 = arith.constant 0 : index
      %12 = vector.load %arg7[%c0_10, %c0_11] : memref<128x256xf32, #tpu.memory_space<vmem>>, vector<128x256xf32>
      %c0_12 = arith.constant 0 : index
      %c0_13 = arith.constant 0 : index
      %13 = vector.load %arg5[%c0_12, %c0_13] : memref<1x256xf32, #tpu.memory_space<vmem>>, vector<1x256xf32>
      %14 = vector.broadcast %13 : vector<1x256xf32> to vector<128x256xf32>
      %15 = arith.addf %12, %14 : vector<128x256xf32>
      %c0_14 = arith.constant 0 : index
      %c0_15 = arith.constant 0 : index
      %16 = vector.load %arg6[%c0_14, %c0_15] : memref<128x256xf32, #tpu.memory_space<vmem>>, vector<128x256xf32>
      tpu.vector_store %arg6[%c0_14, %c0_15], %15 {strides = array<i32>} : memref<128x256xf32, #tpu.memory_space<vmem>>, vector<128x256xf32>,
    } else {
    }
    return
  }
  func.func @transform_0(%arg0: i32, %arg1: i32, %arg2: i32) -> (i32, i32) {
    %c0_i32 = arith.constant 0 : i32
    return %arg0, %arg2 : i32, i32
  }
  func.func @transform_1(%arg0: i32, %arg1: i32, %arg2: i32) -> (i32, i32) {
    %c0_i32 = arith.constant 0 : i32
    return %arg2, %arg1 : i32, i32
  }
  func.func @transform_2(%arg0: i32, %arg1: i32, %arg2: i32) -> (i32, i32) {
    %c0_i32 = arith.constant 0 : i32
    %c0_i32_0 = arith.constant 0 : i32
    return %c0_i32, %arg1 : i32, i32
  }
  func.func @transform_3(%arg0: i32, %arg1: i32, %arg2: i32) -> (i32, i32) {
    %c0_i32 = arith.constant 0 : i32
    return %arg0, %arg1 : i32, i32
  }
}

</mosaic_0001>

<llo_original>
// kernel: self_attention.3
$region0: #{self_attention.3}
  #allocation0 [shape = 'u32[]', space=smem, size = 0x4, offset = 0x4, fixed_abs, tag = 'smem constant byte address 0x4 - core index']
  #allocation1 [shape = 'u32[72,128]{1,0:T(1,128)}', space=vmem, size = 0x9000, scoped, tag = 'internal scratch']
  #allocation2 [shape = 'f32[128,256]{1,0:T(8,128)}', space=vmem, size = 0x20000, scoped, tag = 'scratch operand']
  %s0 = inlined_call_operand.vmem [shape: bf16[256,256], index: 0, kind: input, shape index: {}]
  %s1 = inlined_call_operand.vmem [shape: bf16[256,768], index: 1, kind: input, shape index: {}]
  %s2 = inlined_call_operand.vmem [shape: f32[1,768], index: 2, kind: input, shape index: {}]
  %s3 = inlined_call_operand.vmem [shape: bf16[256,768], index: 3, kind: output, shape index: {}]
  %s4 = sld [smem:[#allocation0]]
  $region125: #{self_attention.3} parent=0
    _
  %s6 = ssub.s32 1, %s4
  %s7 = scalar_select 0, %s6, %s4
  $region1: #{self_attention.3} parent=0
    #allocation3 [shape = 'u8[262144]{0}', space=vmem, size = 0x40000, scoped, tag = 'input window, operand 1']
    #allocation4 [shape = 'u8[131072]{0}', space=vmem, size = 0x20000, scoped, tag = 'output window, operand 0']
    loop: start=0, step=1, limit=8
    $region2: #{self_attention.3} parent=1 // loop_pre_header
      _
    $region3: #{self_attention.3} parent=1 // loop_header
      %s9 = sphi 0, %s13
      %p10 = scmp.ge.s32.totalorder %s9, 8
      %s16 = sphi 0, %s35
      %s17 = sphi 0, %s31
      %s18 = sphi 0, %s27
      %s19 = sphi 0, %s16
      %s20 = sphi 0, %s17
      %s21 = sphi 0, %s18
      %s22 = sphi 0, %s19
      %s23 = sphi 0, %s20
      %s24 = sphi 0, %s21
      %s40 = sphi 0, %s42
      %s43 = sphi 0, %s40
      %s44 = sphi 0, %s43
      %s60 = sphi 0, %s44
      %s68 = sphi 0, %s70
      %s71 = sphi 0, %s68
      %s72 = sphi 0, %s71
      %s88 = sphi 0, %s72
      %s94 = sphi 0, %s96
      %s97 = sphi 0, %s94
      %s98 = sphi 0, %s97
      %s114 = sphi 0, %s98
      %s122 = sphi 0, %s124
      %s125 = sphi 0, %s122
      %s126 = sphi 0, %s125
      %s142 = sphi 0, %s126
    $region4: #{self_attention.3} parent=1 // loop_header_branch
      %12 = sbr.rel (%p10) target = $region8
    $region5: #{self_attention.3} parent=1 // loop_body
      %s14 = ssub.s32 %s9, 1
      %s15 = ssub.s32 %s9, 2
      %s25 = sadd.s32 1, %s18
      %p26 = scmp.ge.s32.totalorder %s25, 1
      %s27 = scalar_select %p26, 0, %s25
      %s28 = sadd.s32 1, %s17
      %s29 = scalar_select %p26, %s28, %s17
      %p30 = scmp.ge.s32.totalorder %s29, 3
      %s31 = scalar_select %p30, 0, %s29
      %s32 = sadd.s32 1, %s16
      %s33 = scalar_select %p30, %s32, %s16
      %p34 = scmp.ge.s32.totalorder %s33, 2
      %s35 = scalar_select %p34, 0, %s33
      %s36 = ssub.s32 %s16, %s35
      %s37 = ssub.s32 %s18, %s27
      %s38 = sor.u32 %s36, %s37
      %p39 = scmp.eq.s32.totalorder %s38, 0
      %s41 = sadd.s32 %s40, 1
      %s42 = scalar_select %p39, %s40, %s41
      %p45 = pneg %p39
      %p46 = scmp.eq.s32.totalorder %s9, 5
      %p47 = por %p45, %p46
      %p48 = scmp.ne.s32.totalorder %s40, %s43
      %p49 = scmp.eq.s32.totalorder %s9, 0
      %p50 = por %p48, %p49
      %p51 = scmp.ne.s32.totalorder %s40, %s43
      %p52 = scmp.eq.s32.totalorder %s14, 5
      %p53 = por %p51, %p52
      %p54 = scmp.ne.s32.totalorder %s43, %s44
      %p55 = scmp.eq.s32.totalorder %s14, 0
      %p56 = por %p54, %p55
      %p57 = scmp.ne.s32.totalorder %s43, %s44
      %p58 = scmp.eq.s32.totalorder %s15, 5
      %p59 = por %p57, %p58
      %p61 = scmp.ne.s32.totalorder %s44, %s60
      %p62 = scmp.eq.s32.totalorder %s15, 0
      %p63 = por %p61, %p62
      %s64 = ssub.s32 %s18, %s27
      %s65 = ssub.s32 %s17, %s31
      %s66 = sor.u32 %s64, %s65
      %p67 = scmp.eq.s32.totalorder %s66, 0
      %s69 = sadd.s32 %s68, 1
      %s70 = scalar_select %p67, %s68, %s69
      %p73 = pneg %p67
      %p74 = scmp.eq.s32.totalorder %s9, 5
      %p75 = por %p73, %p74
      %p76 = scmp.ne.s32.totalorder %s68, %s71
      %p77 = scmp.eq.s32.totalorder %s9, 0
      %p78 = por %p76, %p77
      %p79 = scmp.ne.s32.totalorder %s68, %s71
      %p80 = scmp.eq.s32.totalorder %s14, 5
      %p81 = por %p79, %p80
      %p82 = scmp.ne.s32.totalorder %s71, %s72
      %p83 = scmp.eq.s32.totalorder %s14, 0
      %p84 = por %p82, %p83
      %p85 = scmp.ne.s32.totalorder %s71, %s72
      %p86 = scmp.eq.s32.totalorder %s15, 5
      %p87 = por %p85, %p86
      %p89 = scmp.ne.s32.totalorder %s72, %s88
      %p90 = scmp.eq.s32.totalorder %s15, 0
      %p91 = por %p89, %p90
      %s92 = ssub.s32 %s17, %s31
      %p93 = scmp.eq.s32.totalorder %s92, 0
      %s95 = sadd.s32 %s94, 1
      %s96 = scalar_select %p93, %s94, %s95
      %p99 = pneg %p93
      %p100 = scmp.eq.s32.totalorder %s9, 5
      %p101 = por %p99, %p100
      %p102 = scmp.ne.s32.totalorder %s94, %s97
      %p103 = scmp.eq.s32.totalorder %s9, 0
      %p104 = por %p102, %p103
      %p105 = scmp.ne.s32.totalorder %s94, %s97
      %p106 = scmp.eq.s32.totalorder %s14, 5
      %p107 = por %p105, %p106
      %p108 = scmp.ne.s32.totalorder %s97, %s98
      %p109 = scmp.eq.s32.totalorder %s14, 0
      %p110 = por %p108, %p109
      %p111 = scmp.ne.s32.totalorder %s97, %s98
      %p112 = scmp.eq.s32.totalorder %s15, 5
      %p113 = por %p111, %p112
      %p115 = scmp.ne.s32.totalorder %s98, %s114
      %p116 = scmp.eq.s32.totalorder %s15, 0
      %p117 = por %p115, %p116
      %s118 = ssub.s32 %s16, %s35
      %s119 = ssub.s32 %s17, %s31
      %s120 = sor.u32 %s118, %s119
      %p121 = scmp.eq.s32.totalorder %s120, 0
      %s123 = sadd.s32 %s122, 1
      %s124 = scalar_select %p121, %s122, %s123
      %p127 = pneg %p121
      %p128 = scmp.eq.s32.totalorder %s9, 5
      %p129 = por %p127, %p128
      %p130 = scmp.ne.s32.totalorder %s122, %s125
      %p131 = scmp.eq.s32.totalorder %s9, 0
      %p132 = por %p130, %p131
      %p133 = scmp.ne.s32.totalorder %s122, %s125
      %p134 = scmp.eq.s32.totalorder %s14, 5
      %p135 = por %p133, %p134
      %p136 = scmp.ne.s32.totalorder %s125, %s126
      %p137 = scmp.eq.s32.totalorder %s14, 0
      %p138 = por %p136, %p137
      %p139 = scmp.ne.s32.totalorder %s125, %s126
      %p140 = scmp.eq.s32.totalorder %s15, 5
      %p141 = por %p139, %p140
      %p143 = scmp.ne.s32.totalorder %s126, %s142
      %p144 = scmp.eq.s32.totalorder %s15, 0
      %p145 = por %p143, %p144
      %p146 = scmp.le.s32.totalorder 1, %s9
      %p147 = scmp.lt.s32.totalorder %s9, 7
      %p148 = pnand %p146, %p147
      %p149 = pneg %p148
      // Predicated region
      $region9: #{self_attention.3} parent=5 // pred_check
        _
      $region10: #{self_attention.3} parent=5 // pred_check_branch
        %151 = sbr.rel (%p148) target = $region12
      $region11: #{self_attention.3} parent=5 // pred_region
        %s152 = ssub.s32 %s9, 1
      $region12: #{self_attention.3} parent=5 // pred_fallthru
        _
      %p153 = scmp.lt.s32.totalorder %s9, 6
      // Predicated region
      $region13: #{self_attention.3} parent=5 // pred_check
        %p154 = pneg %p153
      $region14: #{self_attention.3} parent=5 // pred_check_branch
        %156 = sbr.rel (%p154) target = $region16
      $region15: #{self_attention.3} parent=5 // pred_region
        // Predicated region
        $region17: #{self_attention.3} parent=15 // pred_check
          %p157 = pneg %p50
        $region18: #{self_attention.3} parent=15 // pred_check_branch
          %159 = sbr.rel (%p157) target = $region20
        $region19: #{self_attention.3} parent=15 // pred_region
          %s160 = smul.u32 16, %s16
          %s161 = smul.u32 2, %s18
          %p162 = scmp.lt.s32.totalorder %s160, 31
          %s163 = scalar_select %p162, %s160, 31
          %p164 = scmp.lt.s32.totalorder %s161, 1
          %s165 = scalar_select %p164, %s161, 1
          %s166 = smul.addr %s163, 2
          %s167 = sadd.s32 %s165, %s166
          %s168 = smul.addr %s167, 4
          %s169 = scalar_lea.vmem %s0, %s168
          %s170 = smul.u32 16, %s16
          %s171 = smul.u32 2, %s18
        $region20: #{self_attention.3} parent=15 // pred_fallthru
          _
        // Predicated region
        $region21: #{self_attention.3} parent=15 // pred_check
          %p172 = pneg %p78
        $region22: #{self_attention.3} parent=15 // pred_check_branch
          %174 = sbr.rel (%p172) target = $region24
        $region23: #{self_attention.3} parent=15 // pred_region
          %s175 = sand.u32 %s68, 1
          %s176 = sand.u32 %s68, 1
          %s177 = smul.addr %s176, 256
          %s178 = scalar_lea.vmem [#allocation3], %s177
          %s179 = smul.u32 32, %s18
          %s180 = smul.u32 2, %s17
          %s181 = smul.addr %s179, 6
          %s182 = sadd.s32 %s180, %s181
          %s183 = smul.addr %s182, 4
          %s184 = scalar_lea.vmem %s1, %s183
          // Predicated region
          $region25: #{self_attention.3} parent=23 // pred_check
            _
          $region26: #{self_attention.3} parent=23 // pred_check_branch
            %186 = sbr.rel (0) target = $region28
          $region27: #{self_attention.3} parent=23 // pred_region
            // Predicated region
            $region29: #{self_attention.3} parent=27 // pred_check
              _
            $region30: #{self_attention.3} parent=27 // pred_check_branch
              %188 = sbr.rel (0) target = $region32
            $region31: #{self_attention.3} parent=27 // pred_region
              // Predicated region
              $region44: #{self_attention.3} parent=31 // pred_check
                _
              $region45: #{self_attention.3} parent=31 // pred_check_branch
                %266 = sbr.rel (0) target = $region47
              $region46: #{self_attention.3} parent=31 // pred_region
                loop: start=0, step=1, limit=1
                $region48: #{self_attention.3} parent=46 // loop_pre_header
                  _
                $region49: #{self_attention.3} parent=46 // loop_header
                  %s268 = sphi 0, %s272
                  %p269 = scmp.ge.s32.totalorder %s268, 1
                  %s273 = sphi %s184, %s184
                  %s274 = sphi %s178, %s178
                $region50: #{self_attention.3} parent=46 // loop_header_branch
                  %271 = sbr.rel (%p269) target = $region54
                $region51: #{self_attention.3} parent=46 // loop_body
                  %v275 = vld [vmem:[%s273] sm:$0xff]
                  %276 = vst [vmem:[%s274] sm:$0xff] %v275
                  %v277 = vld [vmem:[%s273 + $0x18] sm:$0xff]
                  %278 = vst [vmem:[%s274 + $0x8] sm:$0xff] %v277
                  %v279 = vld [vmem:[%s273 + $0x30] sm:$0xff]
                  %280 = vst [vmem:[%s274 + $0x10] sm:$0xff] %v279
                  %v281 = vld [vmem:[%s273 + $0x48] sm:$0xff]
                  %282 = vst [vmem:[%s274 + $0x18] sm:$0xff] %v281
                  %v283 = vld [vmem:[%s273 + $0x60] sm:$0xff]
                  %284 = vst [vmem:[%s274 + $0x20] sm:$0xff] %v283
                  %v285 = vld [vmem:[%s273 + $0x78] sm:$0xff]
                  %286 = vst [vmem:[%s274 + $0x28] sm:$0xff] %v285
                  %v287 = vld [vmem:[%s273 + $0x90] sm:$0xff]
                  %288 = vst [vmem:[%s274 + $0x30] sm:$0xff] %v287
                  %v289 = vld [vmem:[%s273 + $0xa8] sm:$0xff]
                  %290 = vst [vmem:[%s274 + $0x38] sm:$0xff] %v289
                  %v291 = vld [vmem:[%s273 + $0xc0] sm:$0xff]
                  %292 = vst [vmem:[%s274 + $0x40] sm:$0xff] %v291
                  %v293 = vld [vmem:[%s273 + $0xd8] sm:$0xff]
                  %294 = vst [vmem:[%s274 + $0x48] sm:$0xff] %v293
                  %v295 = vld [vmem:[%s273 + $0xf0] sm:$0xff]
                  %296 = vst [vmem:[%s274 + $0x50] sm:$0xff] %v295
                  %v297 = vld [vmem:[%s273 + $0x108] sm:$0xff]
                  %298 = vst [vmem:[%s274 + $0x58] sm:$0xff] %v297
                  %v299 = vld [vmem:[%s273 + $0x120] sm:$0xff]
                  %300 = vst [vmem:[%s274 + $0x60] sm:$0xff] %v299
                  %v301 = vld [vmem:[%s273 + $0x138] sm:$0xff]
                  %302 = vst [vmem:[%s274 + $0x68] sm:$0xff] %v301
                  %v303 = vld [vmem:[%s273 + $0x150] sm:$0xff]
                  %304 = vst [vmem:[%s274 + $0x70] sm:$0xff] %v303
                  %v305 = vld [vmem:[%s273 + $0x168] sm:$0xff]
                  %306 = vst [vmem:[%s274 + $0x78] sm:$0xff] %v305
                  %v307 = vld [vmem:[%s273 + $0x180] sm:$0xff]
                  %308 = vst [vmem:[%s274 + $0x80] sm:$0xff] %v307
                  %v309 = vld [vmem:[%s273 + $0x198] sm:$0xff]
                  %310 = vst [vmem:[%s274 + $0x88] sm:$0xff] %v309
                  %v311 = vld [vmem:[%s273 + $0x1b0] sm:$0xff]
                  %312 = vst [vmem:[%s274 + $0x90] sm:$0xff] %v311
                  %v313 = vld [vmem:[%s273 + $0x1c8] sm:$0xff]
                  %314 = vst [vmem:[%s274 + $0x98] sm:$0xff] %v313
                  %v315 = vld [vmem:[%s273 + $0x1e0] sm:$0xff]
                  %316 = vst [vmem:[%s274 + $0xa0] sm:$0xff] %v315
                  %v317 = vld [vmem:[%s273 + $0x1f8] sm:$0xff]
                  %318 = vst [vmem:[%s274 + $0xa8] sm:$0xff] %v317
                  %v319 = vld [vmem:[%s273 + $0x210] sm:$0xff]
                  %320 = vst [vmem:[%s274 + $0xb0] sm:$0xff] %v319
                  %v321 = vld [vmem:[%s273 + $0x228] sm:$0xff]
                  %322 = vst [vmem:[%s274 + $0xb8] sm:$0xff] %v321
                  %v323 = vld [vmem:[%s273 + $0x240] sm:$0xff]
                  %324 = vst [vmem:[%s274 + $0xc0] sm:$0xff] %v323
                  %v325 = vld [vmem:[%s273 + $0x258] sm:$0xff]
                  %326 = vst [vmem:[%s274 + $0xc8] sm:$0xff] %v325
                  %v327 = vld [vmem:[%s273 + $0x270] sm:$0xff]
                  %328 = vst [vmem:[%s274 + $0xd0] sm:$0xff] %v327
                  %v329 = vld [vmem:[%s273 + $0x288] sm:$0xff]
                  %330 = vst [vmem:[%s274 + $0xd8] sm:$0xff] %v329
                  %v331 = vld [vmem:[%s273 + $0x2a0] sm:$0xff]
                  %332 = vst [vmem:[%s274 + $0xe0] sm:$0xff] %v331
                  %v333 = vld [vmem:[%s273 + $0x2b8] sm:$0xff]
                  %334 = vst [vmem:[%s274 + $0xe8] sm:$0xff] %v333
                  %v335 = vld [vmem:[%s273 + $0x2d0] sm:$0xff]
                  %336 = vst [vmem:[%s274 + $0xf0] sm:$0xff] %v335
                  %v337 = vld [vmem:[%s273 + $0x2e8] sm:$0xff]
                  %338 = vst [vmem:[%s274 + $0xf8] sm:$0xff] %v337
                $region52: #{self_attention.3} parent=46 // loop_footer
                  %s272 = sadd.s32 1, %s268
                $region53: #{self_attention.3} parent=46 // loop_footer_branch
                  %267 = sbr.rel target = $region49
                $region54: #{self_attention.3} parent=46 // loop_exit
                  _
              $region47: #{self_attention.3} parent=31 // pred_fallthru
                _
              // Predicated region
              $region55: #{self_attention.3} parent=31 // pred_check
                _
              $region56: #{self_attention.3} parent=31 // pred_check_branch
                %340 = sbr.rel target = $region58
              $region57: #{self_attention.3} parent=31 // pred_region
                _
              $region58: #{self_attention.3} parent=31 // pred_fallthru
                _
            $region32: #{self_attention.3} parent=27 // pred_fallthru
              _
            // Predicated region
            $region33: #{self_attention.3} parent=27 // pred_check
              _
            $region34: #{self_attention.3} parent=27 // pred_check_branch
              %190 = sbr.rel target = $region36
            $region35: #{self_attention.3} parent=27 // pred_region
              %s192 = ssub.s32 256, 1
              loop: start=0, step=1, limit=1
              $region37: #{self_attention.3} parent=35 // loop_pre_header
                _
              $region38: #{self_attention.3} parent=35 // loop_header
                %s194 = sphi 0, %s198
                %p195 = scmp.ge.s32.totalorder %s194, 1
                %s199 = sphi %s184, %s184
                %s200 = sphi %s178, %s178
              $region39: #{self_attention.3} parent=35 // loop_header_branch
                %197 = sbr.rel (%p195) target = $region43
              $region40: #{self_attention.3} parent=35 // loop_body
                %v201 = vld [vmem:[%s199] sm:%s192]
                %202 = vst [vmem:[%s200] sm:%s192] %v201
                %v203 = vld [vmem:[%s199 + $0x18] sm:%s192]
                %204 = vst [vmem:[%s200 + $0x8] sm:%s192] %v203
                %v205 = vld [vmem:[%s199 + $0x30] sm:%s192]
                %206 = vst [vmem:[%s200 + $0x10] sm:%s192] %v205
                %v207 = vld [vmem:[%s199 + $0x48] sm:%s192]
                %208 = vst [vmem:[%s200 + $0x18] sm:%s192] %v207
                %v209 = vld [vmem:[%s199 + $0x60] sm:%s192]
                %210 = vst [vmem:[%s200 + $0x20] sm:%s192] %v209
                %v211 = vld [vmem:[%s199 + $0x78] sm:%s192]
                %212 = vst [vmem:[%s200 + $0x28] sm:%s192] %v211
                %v213 = vld [vmem:[%s199 + $0x90] sm:%s192]
                %214 = vst [vmem:[%s200 + $0x30] sm:%s192] %v213
                %v215 = vld [vmem:[%s199 + $0xa8] sm:%s192]
                %216 = vst [vmem:[%s200 + $0x38] sm:%s192] %v215
                %v217 = vld [vmem:[%s199 + $0xc0] sm:%s192]
                %218 = vst [vmem:[%s200 + $0x40] sm:%s192] %v217
                %v219 = vld [vmem:[%s199 + $0xd8] sm:%s192]
                %220 = vst [vmem:[%s200 + $0x48] sm:%s192] %v219
                %v221 = vld [vmem:[%s199 + $0xf0] sm:%s192]
                %222 = vst [vmem:[%s200 + $0x50] sm:%s192] %v221
                %v223 = vld [vmem:[%s199 + $0x108] sm:%s192]
                %224 = vst [vmem:[%s200 + $0x58] sm:%s192] %v223
                %v225 = vld [vmem:[%s199 + $0x120] sm:%s192]
                %226 = vst [vmem:[%s200 + $0x60] sm:%s192] %v225
                %v227 = vld [vmem:[%s199 + $0x138] sm:%s192]
                %228 = vst [vmem:[%s200 + $0x68] sm:%s192] %v227
                %v229 = vld [vmem:[%s199 + $0x150] sm:%s192]
                %230 = vst [vmem:[%s200 + $0x70] sm:%s192] %v229
                %v231 = vld [vmem:[%s199 + $0x168] sm:%s192]
                %232 = vst [vmem:[%s200 + $0x78] sm:%s192] %v231
                %v233 = vld [vmem:[%s199 + $0x180] sm:%s192]
                %234 = vst [vmem:[%s200 + $0x80] sm:%s192] %v233
                %v235 = vld [vmem:[%s199 + $0x198] sm:%s192]
                %236 = vst [vmem:[%s200 + $0x88] sm:%s192] %v235
                %v237 = vld [vmem:[%s199 + $0x1b0] sm:%s192]
                %238 = vst [vmem:[%s200 + $0x90] sm:%s192] %v237
                %v239 = vld [vmem:[%s199 + $0x1c8] sm:%s192]
                %240 = vst [vmem:[%s200 + $0x98] sm:%s192] %v239
                %v241 = vld [vmem:[%s199 + $0x1e0] sm:%s192]
                %242 = vst [vmem:[%s200 + $0xa0] sm:%s192] %v241
                %v243 = vld [vmem:[%s199 + $0x1f8] sm:%s192]
                %244 = vst [vmem:[%s200 + $0xa8] sm:%s192] %v243
                %v245 = vld [vmem:[%s199 + $0x210] sm:%s192]
                %246 = vst [vmem:[%s200 + $0xb0] sm:%s192] %v245
                %v247 = vld [vmem:[%s199 + $0x228] sm:%s192]
                %248 = vst [vmem:[%s200 + $0xb8] sm:%s192] %v247
                %v249 = vld [vmem:[%s199 + $0x240] sm:%s192]
                %250 = vst [vmem:[%s200 + $0xc0] sm:%s192] %v249
                %v251 = vld [vmem:[%s199 + $0x258] sm:%s192]
                %252 = vst [vmem:[%s200 + $0xc8] sm:%s192] %v251
                %v253 = vld [vmem:[%s199 + $0x270] sm:%s192]
                %254 = vst [vmem:[%s200 + $0xd0] sm:%s192] %v253
                %v255 = vld [vmem:[%s199 + $0x288] sm:%s192]
                %256 = vst [vmem:[%s200 + $0xd8] sm:%s192] %v255
                %v257 = vld [vmem:[%s199 + $0x2a0] sm:%s192]
                %258 = vst [vmem:[%s200 + $0xe0] sm:%s192] %v257
                %v259 = vld [vmem:[%s199 + $0x2b8] sm:%s192]
                %260 = vst [vmem:[%s200 + $0xe8] sm:%s192] %v259
                %v261 = vld [vmem:[%s199 + $0x2d0] sm:%s192]
                %262 = vst [vmem:[%s200 + $0xf0] sm:%s192] %v261
                %v263 = vld [vmem:[%s199 + $0x2e8] sm:%s192]
                %264 = vst [vmem:[%s200 + $0xf8] sm:%s192] %v263
              $region41: #{self_attention.3} parent=35 // loop_footer
                %s198 = sadd.s32 1, %s194
              $region42: #{self_attention.3} parent=35 // loop_footer_branch
                %193 = sbr.rel target = $region38
              $region43: #{self_attention.3} parent=35 // loop_exit
                _
            $region36: #{self_attention.3} parent=27 // pred_fallthru
              _
          $region28: #{self_attention.3} parent=23 // pred_fallthru
            _
          %341 = vnop
        $region24: #{self_attention.3} parent=15 // pred_fallthru
          _
        // Predicated region
        $region59: #{self_attention.3} parent=15 // pred_check
          %p342 = pneg %p104
        $region60: #{self_attention.3} parent=15 // pred_check_branch
          %344 = sbr.rel (%p342) target = $region62
        $region61: #{self_attention.3} parent=15 // pred_region
          %s345 = smul.u32 2, %s17
          %p346 = scmp.lt.s32.totalorder %s345, 5
          %s347 = scalar_select %p346, %s345, 5
          %s348 = scalar_lea.vmem %s2, %s347
          %s349 = smul.u32 2, %s17
        $region62: #{self_attention.3} parent=15 // pred_fallthru
          _
      $region16: #{self_attention.3} parent=5 // pred_fallthru
        _
      %p350 = scmp.le.s32.totalorder 1, %s9
      %p351 = scmp.lt.s32.totalorder %s9, 7
      %p352 = pnand %p350, %p351
      %p353 = pneg %p352
      // Predicated region
      $region63: #{self_attention.3} parent=5 // pred_check
        _
      $region64: #{self_attention.3} parent=5 // pred_check_branch
        %355 = sbr.rel (%p352) target = $region66
      $region65: #{self_attention.3} parent=5 // pred_region
        %s356 = ssub.s32 %s9, 1
        %s357 = sand.u32 %s71, 1
        %s358 = sand.u32 %s71, 1
        %s359 = smul.addr %s358, 256
        %s360 = scalar_lea.vmem [#allocation3], %s359
        // Predicated region
        $region67: #{self_attention.3} parent=65 // pred_check
          %p361 = pneg %p84
        $region68: #{self_attention.3} parent=65 // pred_check_branch
          %363 = sbr.rel (%p361) target = $region70
        $region69: #{self_attention.3} parent=65 // pred_region
          _
        $region70: #{self_attention.3} parent=65 // pred_fallthru
          _
        %s364 = smul.u32 16, %s19
        %s365 = smul.u32 2, %s21
        %p366 = scmp.lt.s32.totalorder %s364, 31
        %s367 = scalar_select %p366, %s364, 31
        %p368 = scmp.lt.s32.totalorder %s365, 1
        %s369 = scalar_select %p368, %s365, 1
        %s370 = smul.addr %s367, 2
        %s371 = sadd.s32 %s369, %s370
        %s372 = smul.addr %s371, 4
        %s373 = scalar_lea.vmem %s0, %s372
        %p374 = pneg %p56
        %p375 = pneg %p53
        %s376 = sand.u32 %s71, 1
        %s377 = sand.u32 %s71, 1
        %s378 = smul.addr %s377, 256
        %s379 = scalar_lea.vmem [#allocation3], %s378
        %p380 = pneg %p84
        %p381 = pneg %p81
        %s382 = smul.u32 2, %s20
        %p383 = scmp.lt.s32.totalorder %s382, 5
        %s384 = scalar_select %p383, %s382, 5
        %s385 = scalar_lea.vmem %s2, %s384
        %p386 = pneg %p110
        %p387 = pneg %p107
        %p388 = pneg %p138
        %p389 = pneg %p135
        %s390 = sand.u32 %s125, 1
        %s391 = sand.u32 %s125, 1
        %s392 = smul.addr %s391, 128
        %s393 = scalar_lea.vmem [#allocation4], %s392
        %s394 = smul.u32 16, %s19
        %s395 = smul.u32 2, %s21
        %p396 = scmp.lt.s32.totalorder %s394, 31
        %s397 = scalar_select %p396, %s394, 31
        %p398 = scmp.lt.s32.totalorder %s395, 1
        %s399 = scalar_select %p398, %s395, 1
        %s400 = smul.addr %s397, 2
        %s401 = sadd.s32 %s399, %s400
        %s402 = smul.addr %s401, 4
        %s403 = scalar_lea.vmem %s0, %s402
        %s404 = smul.u32 16, %s19
        %s405 = smul.u32 2, %s21
        %s406 = smul.u32 32, %s21
        %s407 = smul.u32 2, %s20
        %s408 = smul.u32 2, %s20
        %p409 = scmp.lt.s32.totalorder %s408, 5
        %s410 = scalar_select %p409, %s408, 5
        %s411 = scalar_lea.vmem %s2, %s410
        %s412 = smul.u32 2, %s20
        %s413 = smul.u32 16, %s19
        %s414 = smul.u32 2, %s20
        %p415 = scmp.eq.s32.totalorder %s21, 0
        // Predicated region
        $region71: #{self_attention.3} parent=65 // pred_check
          %p416 = pneg %p415
        $region72: #{self_attention.3} parent=65 // pred_check_branch
          %418 = sbr.rel (%p416) target = $region74
        $region73: #{self_attention.3} parent=65 // pred_region
          %419 = vst [vmem:[#allocation2] sm:$0xff] 0.0
          %420 = vst [vmem:[#allocation2 + $0x8] sm:$0xff] 0.0
          %421 = vst [vmem:[#allocation2 + $0x10] sm:$0xff] 0.0
          %422 = vst [vmem:[#allocation2 + $0x18] sm:$0xff] 0.0
          %423 = vst [vmem:[#allocation2 + $0x20] sm:$0xff] 0.0
          %424 = vst [vmem:[#allocation2 + $0x28] sm:$0xff] 0.0
          %425 = vst [vmem:[#allocation2 + $0x30] sm:$0xff] 0.0
          %426 = vst [vmem:[#allocation2 + $0x38] sm:$0xff] 0.0
          %427 = vst [vmem:[#allocation2 + $0x40] sm:$0xff] 0.0
          %428 = vst [vmem:[#allocation2 + $0x48] sm:$0xff] 0.0
          %429 = vst [vmem:[#allocation2 + $0x50] sm:$0xff] 0.0
          %430 = vst [vmem:[#allocation2 + $0x58] sm:$0xff] 0.0
          %431 = vst [vmem:[#allocation2 + $0x60] sm:$0xff] 0.0
          %432 = vst [vmem:[#allocation2 + $0x68] sm:$0xff] 0.0
          %433 = vst [vmem:[#allocation2 + $0x70] sm:$0xff] 0.0
          %434 = vst [vmem:[#allocation2 + $0x78] sm:$0xff] 0.0
          %435 = vst [vmem:[#allocation2 + $0x80] sm:$0xff] 0.0
          %436 = vst [vmem:[#allocation2 + $0x88] sm:$0xff] 0.0
          %437 = vst [vmem:[#allocation2 + $0x90] sm:$0xff] 0.0
          %438 = vst [vmem:[#allocation2 + $0x98] sm:$0xff] 0.0
          %439 = vst [vmem:[#allocation2 + $0xa0] sm:$0xff] 0.0
          %440 = vst [vmem:[#allocation2 + $0xa8] sm:$0xff] 0.0
          %441 = vst [vmem:[#allocation2 + $0xb0] sm:$0xff] 0.0
          %442 = vst [vmem:[#allocation2 + $0xb8] sm:$0xff] 0.0
          %443 = vst [vmem:[#allocation2 + $0xc0] sm:$0xff] 0.0
          %444 = vst [vmem:[#allocation2 + $0xc8] sm:$0xff] 0.0
          %445 = vst [vmem:[#allocation2 + $0xd0] sm:$0xff] 0.0
          %446 = vst [vmem:[#allocation2 + $0xd8] sm:$0xff] 0.0
          %447 = vst [vmem:[#allocation2 + $0xe0] sm:$0xff] 0.0
          %448 = vst [vmem:[#allocation2 + $0xe8] sm:$0xff] 0.0
          %449 = vst [vmem:[#allocation2 + $0xf0] sm:$0xff] 0.0
          %450 = vst [vmem:[#allocation2 + $0xf8] sm:$0xff] 0.0
        $region74: #{self_attention.3} parent=65 // pred_fallthru
          _
        %v451 = vld [vmem:[#allocation2] sm:$0xff]
        %v452 = vld [vmem:[#allocation2 + $0x8] sm:$0xff]
        %v453 = vld [vmem:[#allocation2 + $0x10] sm:$0xff]
        %v454 = vld [vmem:[#allocation2 + $0x18] sm:$0xff]
        %v455 = vld [vmem:[#allocation2 + $0x20] sm:$0xff]
        %v456 = vld [vmem:[#allocation2 + $0x28] sm:$0xff]
        %v457 = vld [vmem:[#allocation2 + $0x30] sm:$0xff]
        %v458 = vld [vmem:[#allocation2 + $0x38] sm:$0xff]
        %v459 = vld [vmem:[#allocation2 + $0x40] sm:$0xff]
        %v460 = vld [vmem:[#allocation2 + $0x48] sm:$0xff]
        %v461 = vld [vmem:[#allocation2 + $0x50] sm:$0xff]
        %v462 = vld [vmem:[#allocation2 + $0x58] sm:$0xff]
        %v463 = vld [vmem:[#allocation2 + $0x60] sm:$0xff]
        %v464 = vld [vmem:[#allocation2 + $0x68] sm:$0xff]
        %v465 = vld [vmem:[#allocation2 + $0x70] sm:$0xff]
        %v466 = vld [vmem:[#allocation2 + $0x78] sm:$0xff]
        %v467 = vld [vmem:[#allocation2 + $0x80] sm:$0xff]
        %v468 = vld [vmem:[#allocation2 + $0x88] sm:$0xff]
        %v469 = vld [vmem:[#allocation2 + $0x90] sm:$0xff]
        %v470 = vld [vmem:[#allocation2 + $0x98] sm:$0xff]
        %v471 = vld [vmem:[#allocation2 + $0xa0] sm:$0xff]
        %v472 = vld [vmem:[#allocation2 + $0xa8] sm:$0xff]
        %v473 = vld [vmem:[#allocation2 + $0xb0] sm:$0xff]
        %v474 = vld [vmem:[#allocation2 + $0xb8] sm:$0xff]
        %v475 = vld [vmem:[#allocation2 + $0xc0] sm:$0xff]
        %v476 = vld [vmem:[#allocation2 + $0xc8] sm:$0xff]
        %v477 = vld [vmem:[#allocation2 + $0xd0] sm:$0xff]
        %v478 = vld [vmem:[#allocation2 + $0xd8] sm:$0xff]
        %v479 = vld [vmem:[#allocation2 + $0xe0] sm:$0xff]
        %v480 = vld [vmem:[#allocation2 + $0xe8] sm:$0xff]
        %v481 = vld [vmem:[#allocation2 + $0xf0] sm:$0xff]
        %v482 = vld [vmem:[#allocation2 + $0xf8] sm:$0xff]
        %v483 = vld [vmem:[%s403] sm:$0xff]
        %v484 = vld [vmem:[%s403 + $0x8] sm:$0xff]
        %v485 = vld [vmem:[%s403 + $0x10] sm:$0xff]
        %v486 = vld [vmem:[%s403 + $0x18] sm:$0xff]
        %v487 = vld [vmem:[%s403 + $0x20] sm:$0xff]
        %v488 = vld [vmem:[%s403 + $0x28] sm:$0xff]
        %v489 = vld [vmem:[%s403 + $0x30] sm:$0xff]
        %v490 = vld [vmem:[%s403 + $0x38] sm:$0xff]
        %v491 = vld [vmem:[%s403 + $0x40] sm:$0xff]
        %v492 = vld [vmem:[%s403 + $0x48] sm:$0xff]
        %v493 = vld [vmem:[%s403 + $0x50] sm:$0xff]
        %v494 = vld [vmem:[%s403 + $0x58] sm:$0xff]
        %v495 = vld [vmem:[%s403 + $0x60] sm:$0xff]
        %v496 = vld [vmem:[%s403 + $0x68] sm:$0xff]
        %v497 = vld [vmem:[%s403 + $0x70] sm:$0xff]
        %v498 = vld [vmem:[%s403 + $0x78] sm:$0xff]
        %v499 = vld [vmem:[%s360] sm:$0xff]
        %v500 = vld [vmem:[%s360 + $0x8] sm:$0xff]
        %v501 = vld [vmem:[%s360 + $0x10] sm:$0xff]
        %v502 = vld [vmem:[%s360 + $0x18] sm:$0xff]
        %v503 = vld [vmem:[%s360 + $0x20] sm:$0xff]
        %v504 = vld [vmem:[%s360 + $0x28] sm:$0xff]
        %v505 = vld [vmem:[%s360 + $0x30] sm:$0xff]
        %v506 = vld [vmem:[%s360 + $0x38] sm:$0xff]
        %v507 = vld [vmem:[%s360 + $0x40] sm:$0xff]
        %v508 = vld [vmem:[%s360 + $0x48] sm:$0xff]
        %v509 = vld [vmem:[%s360 + $0x50] sm:$0xff]
        %v510 = vld [vmem:[%s360 + $0x58] sm:$0xff]
        %v511 = vld [vmem:[%s360 + $0x60] sm:$0xff]
        %v512 = vld [vmem:[%s360 + $0x68] sm:$0xff]
        %v513 = vld [vmem:[%s360 + $0x70] sm:$0xff]
        %v514 = vld [vmem:[%s360 + $0x78] sm:$0xff]
        %v515 = vld [vmem:[%s360 + $0x80] sm:$0xff]
        %v516 = vld [vmem:[%s360 + $0x88] sm:$0xff]
        %v517 = vld [vmem:[%s360 + $0x90] sm:$0xff]
        %v518 = vld [vmem:[%s360 + $0x98] sm:$0xff]
        %v519 = vld [vmem:[%s360 + $0xa0] sm:$0xff]
        %v520 = vld [vmem:[%s360 + $0xa8] sm:$0xff]
        %v521 = vld [vmem:[%s360 + $0xb0] sm:$0xff]
        %v522 = vld [vmem:[%s360 + $0xb8] sm:$0xff]
        %v523 = vld [vmem:[%s360 + $0xc0] sm:$0xff]
        %v524 = vld [vmem:[%s360 + $0xc8] sm:$0xff]
        %v525 = vld [vmem:[%s360 + $0xd0] sm:$0xff]
        %v526 = vld [vmem:[%s360 + $0xd8] sm:$0xff]
        %v527 = vld [vmem:[%s360 + $0xe0] sm:$0xff]
        %v528 = vld [vmem:[%s360 + $0xe8] sm:$0xff]
        %v529 = vld [vmem:[%s360 + $0xf0] sm:$0xff]
        %v530 = vld [vmem:[%s360 + $0xf8] sm:$0xff]
        %v547 = vunpack.c.l.b16 %v483
        %v548 = vunpack.c.h.b16 %v483
        %v549 = vunpack.c.l.b16 %v484
        %v550 = vunpack.c.h.b16 %v484
        %v551 = vunpack.c.l.b16 %v485
        %v552 = vunpack.c.h.b16 %v485
        %v553 = vunpack.c.l.b16 %v486
        %v554 = vunpack.c.h.b16 %v486
        %v555 = vunpack.c.l.b16 %v487
        %v556 = vunpack.c.h.b16 %v487
        %v557 = vunpack.c.l.b16 %v488
        %v558 = vunpack.c.h.b16 %v488
        %v559 = vunpack.c.l.b16 %v489
        %v560 = vunpack.c.h.b16 %v489
        %v561 = vunpack.c.l.b16 %v490
        %v562 = vunpack.c.h.b16 %v490
        %v563 = vunpack.c.l.b16 %v491
        %v564 = vunpack.c.h.b16 %v491
        %v565 = vunpack.c.l.b16 %v492
        %v566 = vunpack.c.h.b16 %v492
        %v567 = vunpack.c.l.b16 %v493
        %v568 = vunpack.c.h.b16 %v493
        %v569 = vunpack.c.l.b16 %v494
        %v570 = vunpack.c.h.b16 %v494
        %v571 = vunpack.c.l.b16 %v495
        %v572 = vunpack.c.h.b16 %v495
        %v573 = vunpack.c.l.b16 %v496
        %v574 = vunpack.c.h.b16 %v496
        %v575 = vunpack.c.l.b16 %v497
        %v576 = vunpack.c.h.b16 %v497
        %v577 = vunpack.c.l.b16 %v498
        %v578 = vunpack.c.h.b16 %v498
        %v579 = vpack.c.b16 %v549, %v547
        %v580 = vpack.c.b16 %v550, %v548
        %v581 = vpack.c.b16 %v553, %v551
        %v582 = vpack.c.b16 %v554, %v552
        %v583 = vpack.c.b16 %v557, %v555
        %v584 = vpack.c.b16 %v558, %v556
        %v585 = vpack.c.b16 %v561, %v559
        %v586 = vpack.c.b16 %v562, %v560
        %v587 = vpack.c.b16 %v565, %v563
        %v588 = vpack.c.b16 %v566, %v564
        %v589 = vpack.c.b16 %v569, %v567
        %v590 = vpack.c.b16 %v570, %v568
        %v591 = vpack.c.b16 %v573, %v571
        %v592 = vpack.c.b16 %v574, %v572
        %v593 = vpack.c.b16 %v577, %v575
        %v594 = vpack.c.b16 %v578, %v576
        %v643 = vunpack.c.l.b16 %v499
        %v644 = vunpack.c.h.b16 %v499
        %v645 = vunpack.c.l.b16 %v500
        %v646 = vunpack.c.h.b16 %v500
        %v647 = vunpack.c.l.b16 %v501
        %v648 = vunpack.c.h.b16 %v501
        %v649 = vunpack.c.l.b16 %v502
        %v650 = vunpack.c.h.b16 %v502
        %v651 = vunpack.c.l.b16 %v503
        %v652 = vunpack.c.h.b16 %v503
        %v653 = vunpack.c.l.b16 %v504
        %v654 = vunpack.c.h.b16 %v504
        %v655 = vunpack.c.l.b16 %v505
        %v656 = vunpack.c.h.b16 %v505
        %v657 = vunpack.c.l.b16 %v506
        %v658 = vunpack.c.h.b16 %v506
        %v659 = vunpack.c.l.b16 %v507
        %v660 = vunpack.c.h.b16 %v507
        %v661 = vunpack.c.l.b16 %v508
        %v662 = vunpack.c.h.b16 %v508
        %v663 = vunpack.c.l.b16 %v509
        %v664 = vunpack.c.h.b16 %v509
        %v665 = vunpack.c.l.b16 %v510
        %v666 = vunpack.c.h.b16 %v510
        %v667 = vunpack.c.l.b16 %v511
        %v668 = vunpack.c.h.b16 %v511
        %v669 = vunpack.c.l.b16 %v512
        %v670 = vunpack.c.h.b16 %v512
        %v671 = vunpack.c.l.b16 %v513
        %v672 = vunpack.c.h.b16 %v513
        %v673 = vunpack.c.l.b16 %v514
        %v674 = vunpack.c.h.b16 %v514
        %v675 = vunpack.c.l.b16 %v515
        %v676 = vunpack.c.h.b16 %v515
        %v677 = vunpack.c.l.b16 %v516
        %v678 = vunpack.c.h.b16 %v516
        %v679 = vunpack.c.l.b16 %v517
        %v680 = vunpack.c.h.b16 %v517
        %v681 = vunpack.c.l.b16 %v518
        %v682 = vunpack.c.h.b16 %v518
        %v683 = vunpack.c.l.b16 %v519
        %v684 = vunpack.c.h.b16 %v519
        %v685 = vunpack.c.l.b16 %v520
        %v686 = vunpack.c.h.b16 %v520
        %v687 = vunpack.c.l.b16 %v521
        %v688 = vunpack.c.h.b16 %v521
        %v689 = vunpack.c.l.b16 %v522
        %v690 = vunpack.c.h.b16 %v522
        %v691 = vunpack.c.l.b16 %v523
        %v692 = vunpack.c.h.b16 %v523
        %v693 = vunpack.c.l.b16 %v524
        %v694 = vunpack.c.h.b16 %v524
        %v695 = vunpack.c.l.b16 %v525
        %v696 = vunpack.c.h.b16 %v525
        %v697 = vunpack.c.l.b16 %v526
        %v698 = vunpack.c.h.b16 %v526
        %v699 = vunpack.c.l.b16 %v527
        %v700 = vunpack.c.h.b16 %v527
        %v701 = vunpack.c.l.b16 %v528
        %v702 = vunpack.c.h.b16 %v528
        %v703 = vunpack.c.l.b16 %v529
        %v704 = vunpack.c.h.b16 %v529
        %v705 = vunpack.c.l.b16 %v530
        %v706 = vunpack.c.h.b16 %v530
        %v707 = vpack.c.b16 %v645, %v643
        %v708 = vpack.c.b16 %v646, %v644
        %v709 = vpack.c.b16 %v649, %v647
        %v710 = vpack.c.b16 %v650, %v648
        %v711 = vpack.c.b16 %v653, %v651
        %v712 = vpack.c.b16 %v654, %v652
        %v713 = vpack.c.b16 %v657, %v655
        %v714 = vpack.c.b16 %v658, %v656
        %v715 = vpack.c.b16 %v661, %v659
        %v716 = vpack.c.b16 %v662, %v660
        %v717 = vpack.c.b16 %v665, %v663
        %v718 = vpack.c.b16 %v666, %v664
        %v719 = vpack.c.b16 %v669, %v667
        %v720 = vpack.c.b16 %v670, %v668
        %v721 = vpack.c.b16 %v673, %v671
        %v722 = vpack.c.b16 %v674, %v672
        %v723 = vpack.c.b16 %v677, %v675
        %v724 = vpack.c.b16 %v678, %v676
        %v725 = vpack.c.b16 %v681, %v679
        %v726 = vpack.c.b16 %v682, %v680
        %v727 = vpack.c.b16 %v685, %v683
        %v728 = vpack.c.b16 %v686, %v684
        %v729 = vpack.c.b16 %v689, %v687
        %v730 = vpack.c.b16 %v690, %v688
        %v731 = vpack.c.b16 %v693, %v691
        %v732 = vpack.c.b16 %v694, %v692
        %v733 = vpack.c.b16 %v697, %v695
        %v734 = vpack.c.b16 %v698, %v696
        %v735 = vpack.c.b16 %v701, %v699
        %v736 = vpack.c.b16 %v702, %v700
        %v737 = vpack.c.b16 %v705, %v703
        %v738 = vpack.c.b16 %v706, %v704
        %771 = vmatpush.bf16.msra.mxu0 %v721
        %772 = vmatpush.bf16.msra.mxu0 %v719
        %773 = vmatpush.bf16.msra.mxu0 %v717
        %774 = vmatpush.bf16.msra.mxu0 %v715
        %775 = vmatpush.bf16.msra.mxu0 %v713
        %776 = vmatpush.bf16.msra.mxu0 %v711
        %777 = vmatpush.bf16.msra.mxu0 %v709
        %778 = vmatpush.bf16.msra.mxu0 %v707
        %779 = vmatmul.bf16.gmra.mxu0 %v579
        %v780 = vpop.f32.mrf.mxu0
        %v781 = vadd.f32 0.0, %v780
        %v782 = vpop.f32.mrf.mxu0
        %v783 = vadd.f32 0.0, %v782
        %784 = vmatmul.bf16.gmra.mxu0 %v581
        %v785 = vpop.f32.mrf.mxu0
        %v786 = vadd.f32 0.0, %v785
        %v787 = vpop.f32.mrf.mxu0
        %v788 = vadd.f32 0.0, %v787
        %789 = vmatmul.bf16.gmra.mxu0 %v583
        %v790 = vpop.f32.mrf.mxu0
        %v791 = vadd.f32 0.0, %v790
        %v792 = vpop.f32.mrf.mxu0
        %v793 = vadd.f32 0.0, %v792
        %794 = vmatmul.bf16.gmra.mxu0 %v585
        %v795 = vpop.f32.mrf.mxu0
        %v796 = vadd.f32 0.0, %v795
        %v797 = vpop.f32.mrf.mxu0
        %v798 = vadd.f32 0.0, %v797
        %799 = vmatmul.bf16.gmra.mxu0 %v587
        %v800 = vpop.f32.mrf.mxu0
        %v801 = vadd.f32 0.0, %v800
        %v802 = vpop.f32.mrf.mxu0
        %v803 = vadd.f32 0.0, %v802
        %804 = vmatmul.bf16.gmra.mxu0 %v589
        %v805 = vpop.f32.mrf.mxu0
        %v806 = vadd.f32 0.0, %v805
        %v807 = vpop.f32.mrf.mxu0
        %v808 = vadd.f32 0.0, %v807
        %809 = vmatmul.bf16.gmra.mxu0 %v591
        %v810 = vpop.f32.mrf.mxu0
        %v811 = vadd.f32 0.0, %v810
        %v812 = vpop.f32.mrf.mxu0
        %v813 = vadd.f32 0.0, %v812
        %814 = vmatmul.bf16.gmra.mxu0 %v593
        %v815 = vpop.f32.mrf.mxu0
        %v816 = vadd.f32 0.0, %v815
        %v817 = vpop.f32.mrf.mxu0
        %v818 = vadd.f32 0.0, %v817
        %819 = vdwg.mxu0
        %820 = vmatpush.bf16.msra.mxu0 %v737
        %821 = vmatpush.bf16.msra.mxu0 %v735
        %822 = vmatpush.bf16.msra.mxu0 %v733
        %823 = vmatpush.bf16.msra.mxu0 %v731
        %824 = vmatpush.bf16.msra.mxu0 %v729
        %825 = vmatpush.bf16.msra.mxu0 %v727
        %826 = vmatpush.bf16.msra.mxu0 %v725
        %827 = vmatpush.bf16.msra.mxu0 %v723
        %828 = vmatmul.bf16.gmra.mxu0 %v580
        %v829 = vpop.f32.mrf.mxu0
        %v830 = vadd.f32 %v781, %v829
        %v831 = vpop.f32.mrf.mxu0
        %v832 = vadd.f32 %v783, %v831
        %833 = vmatmul.bf16.gmra.mxu0 %v582
        %v834 = vpop.f32.mrf.mxu0
        %v835 = vadd.f32 %v786, %v834
        %v836 = vpop.f32.mrf.mxu0
        %v837 = vadd.f32 %v788, %v836
        %838 = vmatmul.bf16.gmra.mxu0 %v584
        %v839 = vpop.f32.mrf.mxu0
        %v840 = vadd.f32 %v791, %v839
        %v841 = vpop.f32.mrf.mxu0
        %v842 = vadd.f32 %v793, %v841
        %843 = vmatmul.bf16.gmra.mxu0 %v586
        %v844 = vpop.f32.mrf.mxu0
        %v845 = vadd.f32 %v796, %v844
        %v846 = vpop.f32.mrf.mxu0
        %v847 = vadd.f32 %v798, %v846
        %848 = vmatmul.bf16.gmra.mxu0 %v588
        %v849 = vpop.f32.mrf.mxu0
        %v850 = vadd.f32 %v801, %v849
        %v851 = vpop.f32.mrf.mxu0
        %v852 = vadd.f32 %v803, %v851
        %853 = vmatmul.bf16.gmra.mxu0 %v590
        %v854 = vpop.f32.mrf.mxu0
        %v855 = vadd.f32 %v806, %v854
        %v856 = vpop.f32.mrf.mxu0
        %v857 = vadd.f32 %v808, %v856
        %858 = vmatmul.bf16.gmra.mxu0 %v592
        %v859 = vpop.f32.mrf.mxu0
        %v860 = vadd.f32 %v811, %v859
        %v861 = vpop.f32.mrf.mxu0
        %v862 = vadd.f32 %v813, %v861
        %863 = vmatmul.bf16.gmra.mxu0 %v594
        %v864 = vpop.f32.mrf.mxu0
        %v865 = vadd.f32 %v816, %v864
        %v866 = vpop.f32.mrf.mxu0
        %v867 = vadd.f32 %v818, %v866
        %868 = vdwg.mxu0
        %869 = vmatpush.bf16.msra.mxu0 %v722
        %870 = vmatpush.bf16.msra.mxu0 %v720
        %871 = vmatpush.bf16.msra.mxu0 %v718
        %872 = vmatpush.bf16.msra.mxu0 %v716
        %873 = vmatpush.bf16.msra.mxu0 %v714
        %874 = vmatpush.bf16.msra.mxu0 %v712
        %875 = vmatpush.bf16.msra.mxu0 %v710
        %876 = vmatpush.bf16.msra.mxu0 %v708
        %877 = vmatmul.bf16.gmra.mxu0 %v579
        %v878 = vpop.f32.mrf.mxu0
        %v879 = vadd.f32 0.0, %v878
        %v880 = vpop.f32.mrf.mxu0
        %v881 = vadd.f32 0.0, %v880
        %882 = vmatmul.bf16.gmra.mxu0 %v581
        %v883 = vpop.f32.mrf.mxu0
        %v884 = vadd.f32 0.0, %v883
        %v885 = vpop.f32.mrf.mxu0
        %v886 = vadd.f32 0.0, %v885
        %887 = vmatmul.bf16.gmra.mxu0 %v583
        %v888 = vpop.f32.mrf.mxu0
        %v889 = vadd.f32 0.0, %v888
        %v890 = vpop.f32.mrf.mxu0
        %v891 = vadd.f32 0.0, %v890
        %892 = vmatmul.bf16.gmra.mxu0 %v585
        %v893 = vpop.f32.mrf.mxu0
        %v894 = vadd.f32 0.0, %v893
        %v895 = vpop.f32.mrf.mxu0
        %v896 = vadd.f32 0.0, %v895
        %897 = vmatmul.bf16.gmra.mxu0 %v587
        %v898 = vpop.f32.mrf.mxu0
        %v899 = vadd.f32 0.0, %v898
        %v900 = vpop.f32.mrf.mxu0
        %v901 = vadd.f32 0.0, %v900
        %902 = vmatmul.bf16.gmra.mxu0 %v589
        %v903 = vpop.f32.mrf.mxu0
        %v904 = vadd.f32 0.0, %v903
        %v905 = vpop.f32.mrf.mxu0
        %v906 = vadd.f32 0.0, %v905
        %907 = vmatmul.bf16.gmra.mxu0 %v591
        %v908 = vpop.f32.mrf.mxu0
        %v909 = vadd.f32 0.0, %v908
        %v910 = vpop.f32.mrf.mxu0
        %v911 = vadd.f32 0.0, %v910
        %912 = vmatmul.bf16.gmra.mxu0 %v593
        %v913 = vpop.f32.mrf.mxu0
        %v914 = vadd.f32 0.0, %v913
        %v915 = vpop.f32.mrf.mxu0
        %v916 = vadd.f32 0.0, %v915
        %917 = vdwg.mxu0
        %918 = vmatpush.bf16.msra.mxu0 %v738
        %919 = vmatpush.bf16.msra.mxu0 %v736
        %920 = vmatpush.bf16.msra.mxu0 %v734
        %921 = vmatpush.bf16.msra.mxu0 %v732
        %922 = vmatpush.bf16.msra.mxu0 %v730
        %923 = vmatpush.bf16.msra.mxu0 %v728
        %924 = vmatpush.bf16.msra.mxu0 %v726
        %925 = vmatpush.bf16.msra.mxu0 %v724
        %926 = vmatmul.bf16.gmra.mxu0 %v580
        %v927 = vpop.f32.mrf.mxu0
        %v928 = vadd.f32 %v879, %v927
        %v929 = vpop.f32.mrf.mxu0
        %v930 = vadd.f32 %v881, %v929
        %931 = vmatmul.bf16.gmra.mxu0 %v582
        %v932 = vpop.f32.mrf.mxu0
        %v933 = vadd.f32 %v884, %v932
        %v934 = vpop.f32.mrf.mxu0
        %v935 = vadd.f32 %v886, %v934
        %936 = vmatmul.bf16.gmra.mxu0 %v584
        %v937 = vpop.f32.mrf.mxu0
        %v938 = vadd.f32 %v889, %v937
        %v939 = vpop.f32.mrf.mxu0
        %v940 = vadd.f32 %v891, %v939
        %941 = vmatmul.bf16.gmra.mxu0 %v586
        %v942 = vpop.f32.mrf.mxu0
        %v943 = vadd.f32 %v894, %v942
        %v944 = vpop.f32.mrf.mxu0
        %v945 = vadd.f32 %v896, %v944
        %946 = vmatmul.bf16.gmra.mxu0 %v588
        %v947 = vpop.f32.mrf.mxu0
        %v948 = vadd.f32 %v899, %v947
        %v949 = vpop.f32.mrf.mxu0
        %v950 = vadd.f32 %v901, %v949
        %951 = vmatmul.bf16.gmra.mxu0 %v590
        %v952 = vpop.f32.mrf.mxu0
        %v953 = vadd.f32 %v904, %v952
        %v954 = vpop.f32.mrf.mxu0
        %v955 = vadd.f32 %v906, %v954
        %956 = vmatmul.bf16.gmra.mxu0 %v592
        %v957 = vpop.f32.mrf.mxu0
        %v958 = vadd.f32 %v909, %v957
        %v959 = vpop.f32.mrf.mxu0
        %v960 = vadd.f32 %v911, %v959
        %961 = vmatmul.bf16.gmra.mxu0 %v594
        %v962 = vpop.f32.mrf.mxu0
        %v963 = vadd.f32 %v914, %v962
        %v964 = vpop.f32.mrf.mxu0
        %v965 = vadd.f32 %v916, %v964
        %966 = vdwg.mxu0
        %v967 = vadd.f32 %v451, %v830
        %v968 = vadd.f32 %v452, %v928
        %v969 = vadd.f32 %v453, %v832
        %v970 = vadd.f32 %v454, %v930
        %v971 = vadd.f32 %v455, %v835
        %v972 = vadd.f32 %v456, %v933
        %v973 = vadd.f32 %v457, %v837
        %v974 = vadd.f32 %v458, %v935
        %v975 = vadd.f32 %v459, %v840
        %v976 = vadd.f32 %v460, %v938
        %v977 = vadd.f32 %v461, %v842
        %v978 = vadd.f32 %v462, %v940
        %v979 = vadd.f32 %v463, %v845
        %v980 = vadd.f32 %v464, %v943
        %v981 = vadd.f32 %v465, %v847
        %v982 = vadd.f32 %v466, %v945
        %v983 = vadd.f32 %v467, %v850
        %v984 = vadd.f32 %v468, %v948
        %v985 = vadd.f32 %v469, %v852
        %v986 = vadd.f32 %v470, %v950
        %v987 = vadd.f32 %v471, %v855
        %v988 = vadd.f32 %v472, %v953
        %v989 = vadd.f32 %v473, %v857
        %v990 = vadd.f32 %v474, %v955
        %v991 = vadd.f32 %v475, %v860
        %v992 = vadd.f32 %v476, %v958
        %v993 = vadd.f32 %v477, %v862
        %v994 = vadd.f32 %v478, %v960
        %v995 = vadd.f32 %v479, %v865
        %v996 = vadd.f32 %v480, %v963
        %v997 = vadd.f32 %v481, %v867
        %v998 = vadd.f32 %v482, %v965
        %999 = vst [vmem:[#allocation2] sm:$0xff] %v967
        %1000 = vst [vmem:[#allocation2 + $0x8] sm:$0xff] %v968
        %1001 = vst [vmem:[#allocation2 + $0x10] sm:$0xff] %v969
        %1002 = vst [vmem:[#allocation2 + $0x18] sm:$0xff] %v970
        %1003 = vst [vmem:[#allocation2 + $0x20] sm:$0xff] %v971
        %1004 = vst [vmem:[#allocation2 + $0x28] sm:$0xff] %v972
        %1005 = vst [vmem:[#allocation2 + $0x30] sm:$0xff] %v973
        %1006 = vst [vmem:[#allocation2 + $0x38] sm:$0xff] %v974
        %1007 = vst [vmem:[#allocation2 + $0x40] sm:$0xff] %v975
        %1008 = vst [vmem:[#allocation2 + $0x48] sm:$0xff] %v976
        %1009 = vst [vmem:[#allocation2 + $0x50] sm:$0xff] %v977
        %1010 = vst [vmem:[#allocation2 + $0x58] sm:$0xff] %v978
        %1011 = vst [vmem:[#allocation2 + $0x60] sm:$0xff] %v979
        %1012 = vst [vmem:[#allocation2 + $0x68] sm:$0xff] %v980
        %1013 = vst [vmem:[#allocation2 + $0x70] sm:$0xff] %v981
        %1014 = vst [vmem:[#allocation2 + $0x78] sm:$0xff] %v982
        %1015 = vst [vmem:[#allocation2 + $0x80] sm:$0xff] %v983
        %1016 = vst [vmem:[#allocation2 + $0x88] sm:$0xff] %v984
        %1017 = vst [vmem:[#allocation2 + $0x90] sm:$0xff] %v985
        %1018 = vst [vmem:[#allocation2 + $0x98] sm:$0xff] %v986
        %1019 = vst [vmem:[#allocation2 + $0xa0] sm:$0xff] %v987
        %1020 = vst [vmem:[#allocation2 + $0xa8] sm:$0xff] %v988
        %1021 = vst [vmem:[#allocation2 + $0xb0] sm:$0xff] %v989
        %1022 = vst [vmem:[#allocation2 + $0xb8] sm:$0xff] %v990
        %1023 = vst [vmem:[#allocation2 + $0xc0] sm:$0xff] %v991
        %1024 = vst [vmem:[#allocation2 + $0xc8] sm:$0xff] %v992
        %1025 = vst [vmem:[#allocation2 + $0xd0] sm:$0xff] %v993
        %1026 = vst [vmem:[#allocation2 + $0xd8] sm:$0xff] %v994
        %1027 = vst [vmem:[#allocation2 + $0xe0] sm:$0xff] %v995
        %1028 = vst [vmem:[#allocation2 + $0xe8] sm:$0xff] %v996
        %1029 = vst [vmem:[#allocation2 + $0xf0] sm:$0xff] %v997
        %1030 = vst [vmem:[#allocation2 + $0xf8] sm:$0xff] %v998
        // Predicated region
        $region75: #{self_attention.3} parent=65 // pred_check
          %p1031 = pneg %p415
        $region76: #{self_attention.3} parent=65 // pred_check_branch
          %1033 = sbr.rel (%p1031) target = $region78
        $region77: #{self_attention.3} parent=65 // pred_region
          %v1034 = vld [vmem:[#allocation2] sm:$0xff]
          %v1035 = vld [vmem:[#allocation2 + $0x8] sm:$0xff]
          %v1036 = vld [vmem:[#allocation2 + $0x10] sm:$0xff]
          %v1037 = vld [vmem:[#allocation2 + $0x18] sm:$0xff]
          %v1038 = vld [vmem:[#allocation2 + $0x20] sm:$0xff]
          %v1039 = vld [vmem:[#allocation2 + $0x28] sm:$0xff]
          %v1040 = vld [vmem:[#allocation2 + $0x30] sm:$0xff]
          %v1041 = vld [vmem:[#allocation2 + $0x38] sm:$0xff]
          %v1042 = vld [vmem:[#allocation2 + $0x40] sm:$0xff]
          %v1043 = vld [vmem:[#allocation2 + $0x48] sm:$0xff]
          %v1044 = vld [vmem:[#allocation2 + $0x50] sm:$0xff]
          %v1045 = vld [vmem:[#allocation2 + $0x58] sm:$0xff]
          %v1046 = vld [vmem:[#allocation2 + $0x60] sm:$0xff]
          %v1047 = vld [vmem:[#allocation2 + $0x68] sm:$0xff]
          %v1048 = vld [vmem:[#allocation2 + $0x70] sm:$0xff]
          %v1049 = vld [vmem:[#allocation2 + $0x78] sm:$0xff]
          %v1050 = vld [vmem:[#allocation2 + $0x80] sm:$0xff]
          %v1051 = vld [vmem:[#allocation2 + $0x88] sm:$0xff]
          %v1052 = vld [vmem:[#allocation2 + $0x90] sm:$0xff]
          %v1053 = vld [vmem:[#allocation2 + $0x98] sm:$0xff]
          %v1054 = vld [vmem:[#allocation2 + $0xa0] sm:$0xff]
          %v1055 = vld [vmem:[#allocation2 + $0xa8] sm:$0xff]
          %v1056 = vld [vmem:[#allocation2 + $0xb0] sm:$0xff]
          %v1057 = vld [vmem:[#allocation2 + $0xb8] sm:$0xff]
          %v1058 = vld [vmem:[#allocation2 + $0xc0] sm:$0xff]
          %v1059 = vld [vmem:[#allocation2 + $0xc8] sm:$0xff]
          %v1060 = vld [vmem:[#allocation2 + $0xd0] sm:$0xff]
          %v1061 = vld [vmem:[#allocation2 + $0xd8] sm:$0xff]
          %v1062 = vld [vmem:[#allocation2 + $0xe0] sm:$0xff]
          %v1063 = vld [vmem:[#allocation2 + $0xe8] sm:$0xff]
          %v1064 = vld [vmem:[#allocation2 + $0xf0] sm:$0xff]
          %v1065 = vld [vmem:[#allocation2 + $0xf8] sm:$0xff]
          %v1066 = vld [vmem:[%s411] sm:$0x3]
          %v1068 = vperm.slane %v1066, 0
          %v1069 = vperm.slane %v1066, 1
          %v1072 = vadd.f32 %v1034, %v1068
          %v1073 = vadd.f32 %v1035, %v1069
          %v1074 = vadd.f32 %v1036, %v1068
          %v1075 = vadd.f32 %v1037, %v1069
          %v1076 = vadd.f32 %v1038, %v1068
          %v1077 = vadd.f32 %v1039, %v1069
          %v1078 = vadd.f32 %v1040, %v1068
          %v1079 = vadd.f32 %v1041, %v1069
          %v1080 = vadd.f32 %v1042, %v1068
          %v1081 = vadd.f32 %v1043, %v1069
          %v1082 = vadd.f32 %v1044, %v1068
          %v1083 = vadd.f32 %v1045, %v1069
          %v1084 = vadd.f32 %v1046, %v1068
          %v1085 = vadd.f32 %v1047, %v1069
          %v1086 = vadd.f32 %v1048, %v1068
          %v1087 = vadd.f32 %v1049, %v1069
          %v1088 = vadd.f32 %v1050, %v1068
          %v1089 = vadd.f32 %v1051, %v1069
          %v1090 = vadd.f32 %v1052, %v1068
          %v1091 = vadd.f32 %v1053, %v1069
          %v1092 = vadd.f32 %v1054, %v1068
          %v1093 = vadd.f32 %v1055, %v1069
          %v1094 = vadd.f32 %v1056, %v1068
          %v1095 = vadd.f32 %v1057, %v1069
          %v1096 = vadd.f32 %v1058, %v1068
          %v1097 = vadd.f32 %v1059, %v1069
          %v1098 = vadd.f32 %v1060, %v1068
          %v1099 = vadd.f32 %v1061, %v1069
          %v1100 = vadd.f32 %v1062, %v1068
          %v1101 = vadd.f32 %v1063, %v1069
          %v1102 = vadd.f32 %v1064, %v1068
          %v1103 = vadd.f32 %v1065, %v1069
          %v1104 = vpack.c.bf16 %v1073, %v1072
          %v1105 = vpack.c.bf16 %v1075, %v1074
          %v1106 = vpack.c.bf16 %v1077, %v1076
          %v1107 = vpack.c.bf16 %v1079, %v1078
          %v1108 = vpack.c.bf16 %v1081, %v1080
          %v1109 = vpack.c.bf16 %v1083, %v1082
          %v1110 = vpack.c.bf16 %v1085, %v1084
          %v1111 = vpack.c.bf16 %v1087, %v1086
          %v1112 = vpack.c.bf16 %v1089, %v1088
          %v1113 = vpack.c.bf16 %v1091, %v1090
          %v1114 = vpack.c.bf16 %v1093, %v1092
          %v1115 = vpack.c.bf16 %v1095, %v1094
          %v1116 = vpack.c.bf16 %v1097, %v1096
          %v1117 = vpack.c.bf16 %v1099, %v1098
          %v1118 = vpack.c.bf16 %v1101, %v1100
          %v1119 = vpack.c.bf16 %v1103, %v1102
          %1120 = vst [vmem:[%s393] sm:$0xff] %v1104
          %1121 = vst [vmem:[%s393 + $0x8] sm:$0xff] %v1105
          %1122 = vst [vmem:[%s393 + $0x10] sm:$0xff] %v1106
          %1123 = vst [vmem:[%s393 + $0x18] sm:$0xff] %v1107
          %1124 = vst [vmem:[%s393 + $0x20] sm:$0xff] %v1108
          %1125 = vst [vmem:[%s393 + $0x28] sm:$0xff] %v1109
          %1126 = vst [vmem:[%s393 + $0x30] sm:$0xff] %v1110
          %1127 = vst [vmem:[%s393 + $0x38] sm:$0xff] %v1111
          %1128 = vst [vmem:[%s393 + $0x40] sm:$0xff] %v1112
          %1129 = vst [vmem:[%s393 + $0x48] sm:$0xff] %v1113
          %1130 = vst [vmem:[%s393 + $0x50] sm:$0xff] %v1114
          %1131 = vst [vmem:[%s393 + $0x58] sm:$0xff] %v1115
          %1132 = vst [vmem:[%s393 + $0x60] sm:$0xff] %v1116
          %1133 = vst [vmem:[%s393 + $0x68] sm:$0xff] %v1117
          %1134 = vst [vmem:[%s393 + $0x70] sm:$0xff] %v1118
          %1135 = vst [vmem:[%s393 + $0x78] sm:$0xff] %v1119
        $region78: #{self_attention.3} parent=65 // pred_fallthru
          _
        %s1136 = sand.u32 %s125, 1
        %s1137 = sand.u32 %s125, 1
        %s1138 = smul.addr %s1137, 128
        %s1139 = scalar_lea.vmem [#allocation4], %s1138
        // Predicated region
        $region79: #{self_attention.3} parent=65 // pred_check
          %p1140 = pneg %p135
        $region80: #{self_attention.3} parent=65 // pred_check_branch
          %1142 = sbr.rel (%p1140) target = $region82
        $region81: #{self_attention.3} parent=65 // pred_region
          %s1143 = smul.u32 16, %s19
          %s1144 = smul.u32 2, %s20
          %s1145 = smul.addr %s1143, 6
          %s1146 = sadd.s32 %s1144, %s1145
          %s1147 = smul.addr %s1146, 4
          %s1148 = scalar_lea.vmem %s3, %s1147
          // Predicated region
          $region83: #{self_attention.3} parent=81 // pred_check
            _
          $region84: #{self_attention.3} parent=81 // pred_check_branch
            %1150 = sbr.rel (0) target = $region86
          $region85: #{self_attention.3} parent=81 // pred_region
            // Predicated region
            $region87: #{self_attention.3} parent=85 // pred_check
              _
            $region88: #{self_attention.3} parent=85 // pred_check_branch
              %1152 = sbr.rel (0) target = $region90
            $region89: #{self_attention.3} parent=85 // pred_region
              // Predicated region
              $region102: #{self_attention.3} parent=89 // pred_check
                _
              $region103: #{self_attention.3} parent=89 // pred_check_branch
                %1198 = sbr.rel (0) target = $region105
              $region104: #{self_attention.3} parent=89 // pred_region
                loop: start=0, step=1, limit=1
                $region106: #{self_attention.3} parent=104 // loop_pre_header
                  _
                $region107: #{self_attention.3} parent=104 // loop_header
                  %s1200 = sphi 0, %s1204
                  %p1201 = scmp.ge.s32.totalorder %s1200, 1
                  %s1205 = sphi %s1139, %s1139
                  %s1206 = sphi %s1148, %s1148
                $region108: #{self_attention.3} parent=104 // loop_header_branch
                  %1203 = sbr.rel (%p1201) target = $region112
                $region109: #{self_attention.3} parent=104 // loop_body
                  %v1207 = vld [vmem:[%s1205] sm:$0xff]
                  %1208 = vst [vmem:[%s1206] sm:$0xff] %v1207
                  %v1209 = vld [vmem:[%s1205 + $0x8] sm:$0xff]
                  %1210 = vst [vmem:[%s1206 + $0x18] sm:$0xff] %v1209
                  %v1211 = vld [vmem:[%s1205 + $0x10] sm:$0xff]
                  %1212 = vst [vmem:[%s1206 + $0x30] sm:$0xff] %v1211
                  %v1213 = vld [vmem:[%s1205 + $0x18] sm:$0xff]
                  %1214 = vst [vmem:[%s1206 + $0x48] sm:$0xff] %v1213
                  %v1215 = vld [vmem:[%s1205 + $0x20] sm:$0xff]
                  %1216 = vst [vmem:[%s1206 + $0x60] sm:$0xff] %v1215
                  %v1217 = vld [vmem:[%s1205 + $0x28] sm:$0xff]
                  %1218 = vst [vmem:[%s1206 + $0x78] sm:$0xff] %v1217
                  %v1219 = vld [vmem:[%s1205 + $0x30] sm:$0xff]
                  %1220 = vst [vmem:[%s1206 + $0x90] sm:$0xff] %v1219
                  %v1221 = vld [vmem:[%s1205 + $0x38] sm:$0xff]
                  %1222 = vst [vmem:[%s1206 + $0xa8] sm:$0xff] %v1221
                  %v1223 = vld [vmem:[%s1205 + $0x40] sm:$0xff]
                  %1224 = vst [vmem:[%s1206 + $0xc0] sm:$0xff] %v1223
                  %v1225 = vld [vmem:[%s1205 + $0x48] sm:$0xff]
                  %1226 = vst [vmem:[%s1206 + $0xd8] sm:$0xff] %v1225
                  %v1227 = vld [vmem:[%s1205 + $0x50] sm:$0xff]
                  %1228 = vst [vmem:[%s1206 + $0xf0] sm:$0xff] %v1227
                  %v1229 = vld [vmem:[%s1205 + $0x58] sm:$0xff]
                  %1230 = vst [vmem:[%s1206 + $0x108] sm:$0xff] %v1229
                  %v1231 = vld [vmem:[%s1205 + $0x60] sm:$0xff]
                  %1232 = vst [vmem:[%s1206 + $0x120] sm:$0xff] %v1231
                  %v1233 = vld [vmem:[%s1205 + $0x68] sm:$0xff]
                  %1234 = vst [vmem:[%s1206 + $0x138] sm:$0xff] %v1233
                  %v1235 = vld [vmem:[%s1205 + $0x70] sm:$0xff]
                  %1236 = vst [vmem:[%s1206 + $0x150] sm:$0xff] %v1235
                  %v1237 = vld [vmem:[%s1205 + $0x78] sm:$0xff]
                  %1238 = vst [vmem:[%s1206 + $0x168] sm:$0xff] %v1237
                $region110: #{self_attention.3} parent=104 // loop_footer
                  %s1204 = sadd.s32 1, %s1200
                $region111: #{self_attention.3} parent=104 // loop_footer_branch
                  %1199 = sbr.rel target = $region107
                $region112: #{self_attention.3} parent=104 // loop_exit
                  _
              $region105: #{self_attention.3} parent=89 // pred_fallthru
                _
              // Predicated region
              $region113: #{self_attention.3} parent=89 // pred_check
                _
              $region114: #{self_attention.3} parent=89 // pred_check_branch
                %1240 = sbr.rel target = $region116
              $region115: #{self_attention.3} parent=89 // pred_region
                _
              $region116: #{self_attention.3} parent=89 // pred_fallthru
                _
            $region90: #{self_attention.3} parent=85 // pred_fallthru
              _
            // Predicated region
            $region91: #{self_attention.3} parent=85 // pred_check
              _
            $region92: #{self_attention.3} parent=85 // pred_check_branch
              %1154 = sbr.rel target = $region94
            $region93: #{self_attention.3} parent=85 // pred_region
              %s1156 = ssub.s32 256, 1
              loop: start=0, step=1, limit=1
              $region95: #{self_attention.3} parent=93 // loop_pre_header
                _
              $region96: #{self_attention.3} parent=93 // loop_header
                %s1158 = sphi 0, %s1162
                %p1159 = scmp.ge.s32.totalorder %s1158, 1
                %s1163 = sphi %s1139, %s1139
                %s1164 = sphi %s1148, %s1148
              $region97: #{self_attention.3} parent=93 // loop_header_branch
                %1161 = sbr.rel (%p1159) target = $region101
              $region98: #{self_attention.3} parent=93 // loop_body
                %v1165 = vld [vmem:[%s1163] sm:%s1156]
                %1166 = vst [vmem:[%s1164] sm:%s1156] %v1165
                %v1167 = vld [vmem:[%s1163 + $0x8] sm:%s1156]
                %1168 = vst [vmem:[%s1164 + $0x18] sm:%s1156] %v1167
                %v1169 = vld [vmem:[%s1163 + $0x10] sm:%s1156]
                %1170 = vst [vmem:[%s1164 + $0x30] sm:%s1156] %v1169
                %v1171 = vld [vmem:[%s1163 + $0x18] sm:%s1156]
                %1172 = vst [vmem:[%s1164 + $0x48] sm:%s1156] %v1171
                %v1173 = vld [vmem:[%s1163 + $0x20] sm:%s1156]
                %1174 = vst [vmem:[%s1164 + $0x60] sm:%s1156] %v1173
                %v1175 = vld [vmem:[%s1163 + $0x28] sm:%s1156]
                %1176 = vst [vmem:[%s1164 + $0x78] sm:%s1156] %v1175
                %v1177 = vld [vmem:[%s1163 + $0x30] sm:%s1156]
                %1178 = vst [vmem:[%s1164 + $0x90] sm:%s1156] %v1177
                %v1179 = vld [vmem:[%s1163 + $0x38] sm:%s1156]
                %1180 = vst [vmem:[%s1164 + $0xa8] sm:%s1156] %v1179
                %v1181 = vld [vmem:[%s1163 + $0x40] sm:%s1156]
                %1182 = vst [vmem:[%s1164 + $0xc0] sm:%s1156] %v1181
                %v1183 = vld [vmem:[%s1163 + $0x48] sm:%s1156]
                %1184 = vst [vmem:[%s1164 + $0xd8] sm:%s1156] %v1183
                %v1185 = vld [vmem:[%s1163 + $0x50] sm:%s1156]
                %1186 = vst [vmem:[%s1164 + $0xf0] sm:%s1156] %v1185
                %v1187 = vld [vmem:[%s1163 + $0x58] sm:%s1156]
                %1188 = vst [vmem:[%s1164 + $0x108] sm:%s1156] %v1187
                %v1189 = vld [vmem:[%s1163 + $0x60] sm:%s1156]
                %1190 = vst [vmem:[%s1164 + $0x120] sm:%s1156] %v1189
                %v1191 = vld [vmem:[%s1163 + $0x68] sm:%s1156]
                %1192 = vst [vmem:[%s1164 + $0x138] sm:%s1156] %v1191
                %v1193 = vld [vmem:[%s1163 + $0x70] sm:%s1156]
                %1194 = vst [vmem:[%s1164 + $0x150] sm:%s1156] %v1193
                %v1195 = vld [vmem:[%s1163 + $0x78] sm:%s1156]
                %1196 = vst [vmem:[%s1164 + $0x168] sm:%s1156] %v1195
              $region99: #{self_attention.3} parent=93 // loop_footer
                %s1162 = sadd.s32 1, %s1158
              $region100: #{self_attention.3} parent=93 // loop_footer_branch
                %1157 = sbr.rel target = $region96
              $region101: #{self_attention.3} parent=93 // loop_exit
                _
            $region94: #{self_attention.3} parent=85 // pred_fallthru
              _
          $region86: #{self_attention.3} parent=81 // pred_fallthru
            _
          %1241 = vnop
        $region82: #{self_attention.3} parent=65 // pred_fallthru
          _
      $region66: #{self_attention.3} parent=5 // pred_fallthru
        _
      %p1242 = scmp.le.s32.totalorder 2, %s9
      // Predicated region
      $region117: #{self_attention.3} parent=5 // pred_check
        %p1243 = pneg %p1242
      $region118: #{self_attention.3} parent=5 // pred_check_branch
        %1245 = sbr.rel (%p1243) target = $region120
      $region119: #{self_attention.3} parent=5 // pred_region
        %s1246 = ssub.s32 %s9, 2
        // Predicated region
        $region121: #{self_attention.3} parent=119 // pred_check
          %p1247 = pneg %p141
        $region122: #{self_attention.3} parent=119 // pred_check_branch
          %1249 = sbr.rel (%p1247) target = $region124
        $region123: #{self_attention.3} parent=119 // pred_region
          %s1250 = sand.u32 %s126, 1
          %s1251 = sand.u32 %s126, 1
          %s1252 = smul.addr %s1251, 128
          %s1253 = scalar_lea.vmem [#allocation4], %s1252
        $region124: #{self_attention.3} parent=119 // pred_fallthru
          _
      $region120: #{self_attention.3} parent=5 // pred_fallthru
        _
    $region6: #{self_attention.3} parent=1 // loop_footer
      %s13 = sadd.s32 1, %s9
    $region7: #{self_attention.3} parent=1 // loop_footer_branch
      %8 = sbr.rel target = $region3
    $region8: #{self_attention.3} parent=1 // loop_exit
      _

// kernel: self_attention.5
$region0: #{self_attention.5}
  #allocation0 [shape = 'u32[]', space=smem, size = 0x4, offset = 0x4, fixed_abs, tag = 'smem constant byte address 0x4 - core index']
  #allocation1 [shape = 'u32[72,128]{1,0:T(1,128)}', space=vmem, size = 0x9000, scoped, tag = 'internal scratch']
  #allocation2 [shape = 'f32[128,256]{1,0:T(8,128)}', space=vmem, size = 0x20000, scoped, tag = 'scratch operand']
  %s0 = inlined_call_operand.vmem [shape: bf16[256,256], index: 0, kind: input, shape index: {}]
  %s1 = inlined_call_operand.vmem [shape: bf16[256,256], index: 1, kind: input, shape index: {}]
  %s2 = inlined_call_operand.vmem [shape: f32[1,256], index: 2, kind: input, shape index: {}]
  %s3 = inlined_call_operand.hbm [shape: f32[256,256], index: 3, kind: output, shape index: {}]
  %s4 = sld [smem:[#allocation0]]
  $region53: #{self_attention.5} parent=0
    _
  %s6 = ssub.s32 1, %s4
  %s7 = scalar_select 0, %s6, %s4
  $region1: #{self_attention.5} parent=0
    #allocation3 [shape = 'u8[262144]{0}', space=vmem, size = 0x40000, scoped, tag = 'output window, operand 0']
    #allocation4 [shape = 's32[2]{0}', space=sflag, size = 0x8, scoped, tag = 'scoped memory for self_attention.5']
    %8 = vsyncpa [#allocation4], 0
    %s9 = scalar_lea.sflag [#allocation4], 1
    %10 = vsyncpa %s9, 0
    loop: start=0, step=1, limit=4
    $region2: #{self_attention.5} parent=1 // loop_pre_header
      _
    $region3: #{self_attention.5} parent=1 // loop_header
      %s12 = sphi 0, %s16
      %p13 = scmp.ge.s32.totalorder %s12, 4
      %s19 = sphi 0, %s38
      %s20 = sphi 0, %s34
      %s21 = sphi 0, %s30
      %s22 = sphi 0, %s19
      %s23 = sphi 0, %s20
      %s24 = sphi 0, %s21
      %s25 = sphi 0, %s22
      %s26 = sphi 0, %s23
      %s27 = sphi 0, %s24
      %s43 = sphi 0, %s45
      %s46 = sphi 0, %s43
      %s47 = sphi 0, %s46
      %s63 = sphi 0, %s47
      %s71 = sphi 0, %s73
      %s74 = sphi 0, %s71
      %s75 = sphi 0, %s74
      %s91 = sphi 0, %s75
      %s97 = sphi 0, %s99
      %s100 = sphi 0, %s97
      %s101 = sphi 0, %s100
      %s117 = sphi 0, %s101
      %s125 = sphi 0, %s127
      %s128 = sphi 0, %s125
      %s129 = sphi 0, %s128
      %s145 = sphi 0, %s129
    $region4: #{self_attention.5} parent=1 // loop_header_branch
      %15 = sbr.rel (%p13) target = $region8
    $region5: #{self_attention.5} parent=1 // loop_body
      %s17 = ssub.s32 %s12, 1
      %s18 = ssub.s32 %s12, 2
      %s28 = sadd.s32 1, %s21
      %p29 = scmp.ge.s32.totalorder %s28, 1
      %s30 = scalar_select %p29, 0, %s28
      %s31 = sadd.s32 1, %s20
      %s32 = scalar_select %p29, %s31, %s20
      %p33 = scmp.ge.s32.totalorder %s32, 1
      %s34 = scalar_select %p33, 0, %s32
      %s35 = sadd.s32 1, %s19
      %s36 = scalar_select %p33, %s35, %s19
      %p37 = scmp.ge.s32.totalorder %s36, 2
      %s38 = scalar_select %p37, 0, %s36
      %s39 = ssub.s32 %s19, %s38
      %s40 = ssub.s32 %s21, %s30
      %s41 = sor.u32 %s39, %s40
      %p42 = scmp.eq.s32.totalorder %s41, 0
      %s44 = sadd.s32 %s43, 1
      %s45 = scalar_select %p42, %s43, %s44
      %p48 = pneg %p42
      %p49 = scmp.eq.s32.totalorder %s12, 1
      %p50 = por %p48, %p49
      %p51 = scmp.ne.s32.totalorder %s43, %s46
      %p52 = scmp.eq.s32.totalorder %s12, 0
      %p53 = por %p51, %p52
      %p54 = scmp.ne.s32.totalorder %s43, %s46
      %p55 = scmp.eq.s32.totalorder %s17, 1
      %p56 = por %p54, %p55
      %p57 = scmp.ne.s32.totalorder %s46, %s47
      %p58 = scmp.eq.s32.totalorder %s17, 0
      %p59 = por %p57, %p58
      %p60 = scmp.ne.s32.totalorder %s46, %s47
      %p61 = scmp.eq.s32.totalorder %s18, 1
      %p62 = por %p60, %p61
      %p64 = scmp.ne.s32.totalorder %s47, %s63
      %p65 = scmp.eq.s32.totalorder %s18, 0
      %p66 = por %p64, %p65
      %s67 = ssub.s32 %s21, %s30
      %s68 = ssub.s32 %s20, %s34
      %s69 = sor.u32 %s67, %s68
      %p70 = scmp.eq.s32.totalorder %s69, 0
      %s72 = sadd.s32 %s71, 1
      %s73 = scalar_select %p70, %s71, %s72
      %p76 = pneg %p70
      %p77 = scmp.eq.s32.totalorder %s12, 1
      %p78 = por %p76, %p77
      %p79 = scmp.ne.s32.totalorder %s71, %s74
      %p80 = scmp.eq.s32.totalorder %s12, 0
      %p81 = por %p79, %p80
      %p82 = scmp.ne.s32.totalorder %s71, %s74
      %p83 = scmp.eq.s32.totalorder %s17, 1
      %p84 = por %p82, %p83
      %p85 = scmp.ne.s32.totalorder %s74, %s75
      %p86 = scmp.eq.s32.totalorder %s17, 0
      %p87 = por %p85, %p86
      %p88 = scmp.ne.s32.totalorder %s74, %s75
      %p89 = scmp.eq.s32.totalorder %s18, 1
      %p90 = por %p88, %p89
      %p92 = scmp.ne.s32.totalorder %s75, %s91
      %p93 = scmp.eq.s32.totalorder %s18, 0
      %p94 = por %p92, %p93
      %s95 = ssub.s32 %s20, %s34
      %p96 = scmp.eq.s32.totalorder %s95, 0
      %s98 = sadd.s32 %s97, 1
      %s99 = scalar_select %p96, %s97, %s98
      %p102 = pneg %p96
      %p103 = scmp.eq.s32.totalorder %s12, 1
      %p104 = por %p102, %p103
      %p105 = scmp.ne.s32.totalorder %s97, %s100
      %p106 = scmp.eq.s32.totalorder %s12, 0
      %p107 = por %p105, %p106
      %p108 = scmp.ne.s32.totalorder %s97, %s100
      %p109 = scmp.eq.s32.totalorder %s17, 1
      %p110 = por %p108, %p109
      %p111 = scmp.ne.s32.totalorder %s100, %s101
      %p112 = scmp.eq.s32.totalorder %s17, 0
      %p113 = por %p111, %p112
      %p114 = scmp.ne.s32.totalorder %s100, %s101
      %p115 = scmp.eq.s32.totalorder %s18, 1
      %p116 = por %p114, %p115
      %p118 = scmp.ne.s32.totalorder %s101, %s117
      %p119 = scmp.eq.s32.totalorder %s18, 0
      %p120 = por %p118, %p119
      %s121 = ssub.s32 %s19, %s38
      %s122 = ssub.s32 %s20, %s34
      %s123 = sor.u32 %s121, %s122
      %p124 = scmp.eq.s32.totalorder %s123, 0
      %s126 = sadd.s32 %s125, 1
      %s127 = scalar_select %p124, %s125, %s126
      %p130 = pneg %p124
      %p131 = scmp.eq.s32.totalorder %s12, 1
      %p132 = por %p130, %p131
      %p133 = scmp.ne.s32.totalorder %s125, %s128
      %p134 = scmp.eq.s32.totalorder %s12, 0
      %p135 = por %p133, %p134
      %p136 = scmp.ne.s32.totalorder %s125, %s128
      %p137 = scmp.eq.s32.totalorder %s17, 1
      %p138 = por %p136, %p137
      %p139 = scmp.ne.s32.totalorder %s128, %s129
      %p140 = scmp.eq.s32.totalorder %s17, 0
      %p141 = por %p139, %p140
      %p142 = scmp.ne.s32.totalorder %s128, %s129
      %p143 = scmp.eq.s32.totalorder %s18, 1
      %p144 = por %p142, %p143
      %p146 = scmp.ne.s32.totalorder %s129, %s145
      %p147 = scmp.eq.s32.totalorder %s18, 0
      %p148 = por %p146, %p147
      %p149 = scmp.le.s32.totalorder 1, %s12
      %p150 = scmp.lt.s32.totalorder %s12, 3
      %p151 = pnand %p149, %p150
      %p152 = pneg %p151
      // Predicated region
      $region9: #{self_attention.5} parent=5 // pred_check
        _
      $region10: #{self_attention.5} parent=5 // pred_check_branch
        %154 = sbr.rel (%p151) target = $region12
      $region11: #{self_attention.5} parent=5 // pred_region
        %s155 = ssub.s32 %s12, 1
        // Predicated region
        $region13: #{self_attention.5} parent=11 // pred_check
          %p156 = pneg %p87
        $region14: #{self_attention.5} parent=11 // pred_check_branch
          %158 = sbr.rel (%p156) target = $region16
        $region15: #{self_attention.5} parent=11 // pred_region
          %s159 = smul.u32 32, %s24
          %s160 = smul.u32 2, %s23
          %p161 = scmp.lt.s32.totalorder %s159, 31
          %s162 = scalar_select %p161, %s159, 31
          %p163 = scmp.lt.s32.totalorder %s160, 1
          %s164 = scalar_select %p163, %s160, 1
          %s165 = smul.addr %s162, 2
          %s166 = sadd.s32 %s164, %s165
          %s167 = smul.addr %s166, 4
          %s168 = scalar_lea.vmem %s1, %s167
          %s169 = smul.u32 32, %s24
          %s170 = smul.u32 2, %s23
        $region16: #{self_attention.5} parent=11 // pred_fallthru
          _
        // Predicated region
        $region17: #{self_attention.5} parent=11 // pred_check
          %p171 = pneg %p113
        $region18: #{self_attention.5} parent=11 // pred_check_branch
          %173 = sbr.rel (%p171) target = $region20
        $region19: #{self_attention.5} parent=11 // pred_region
          %s174 = smul.u32 2, %s23
          %p175 = scmp.lt.s32.totalorder %s174, 1
          %s176 = scalar_select %p175, %s174, 1
          %s177 = scalar_lea.vmem %s2, %s176
          %s178 = smul.u32 2, %s23
        $region20: #{self_attention.5} parent=11 // pred_fallthru
          _
      $region12: #{self_attention.5} parent=5 // pred_fallthru
        _
      %p179 = scmp.lt.s32.totalorder %s12, 2
      // Predicated region
      $region21: #{self_attention.5} parent=5 // pred_check
        %p180 = pneg %p179
      $region22: #{self_attention.5} parent=5 // pred_check_branch
        %182 = sbr.rel (%p180) target = $region24
      $region23: #{self_attention.5} parent=5 // pred_region
        // Predicated region
        $region25: #{self_attention.5} parent=23 // pred_check
          %p183 = pneg %p53
        $region26: #{self_attention.5} parent=23 // pred_check_branch
          %185 = sbr.rel (%p183) target = $region28
        $region27: #{self_attention.5} parent=23 // pred_region
          %s186 = smul.u32 16, %s19
          %s187 = smul.u32 2, %s21
          %p188 = scmp.lt.s32.totalorder %s186, 31
          %s189 = scalar_select %p188, %s186, 31
          %p190 = scmp.lt.s32.totalorder %s187, 1
          %s191 = scalar_select %p190, %s187, 1
          %s192 = smul.addr %s189, 2
          %s193 = sadd.s32 %s191, %s192
          %s194 = smul.addr %s193, 4
          %s195 = scalar_lea.vmem %s0, %s194
          %s196 = smul.u32 16, %s19
          %s197 = smul.u32 2, %s21
        $region28: #{self_attention.5} parent=23 // pred_fallthru
          _
      $region24: #{self_attention.5} parent=5 // pred_fallthru
        _
      %p198 = scmp.le.s32.totalorder 1, %s12
      %p199 = scmp.lt.s32.totalorder %s12, 3
      %p200 = pnand %p198, %p199
      %p201 = pneg %p200
      // Predicated region
      $region29: #{self_attention.5} parent=5 // pred_check
        _
      $region30: #{self_attention.5} parent=5 // pred_check_branch
        %203 = sbr.rel (%p200) target = $region32
      $region31: #{self_attention.5} parent=5 // pred_region
        %s204 = ssub.s32 %s12, 1
        %s205 = smul.u32 16, %s22
        %s206 = smul.u32 2, %s24
        %p207 = scmp.lt.s32.totalorder %s205, 31
        %s208 = scalar_select %p207, %s205, 31
        %p209 = scmp.lt.s32.totalorder %s206, 1
        %s210 = scalar_select %p209, %s206, 1
        %s211 = smul.addr %s208, 2
        %s212 = sadd.s32 %s210, %s211
        %s213 = smul.addr %s212, 4
        %s214 = scalar_lea.vmem %s0, %s213
        %p215 = pneg %p59
        %p216 = pneg %p56
        %s217 = smul.u32 32, %s24
        %s218 = smul.u32 2, %s23
        %p219 = scmp.lt.s32.totalorder %s217, 31
        %s220 = scalar_select %p219, %s217, 31
        %p221 = scmp.lt.s32.totalorder %s218, 1
        %s222 = scalar_select %p221, %s218, 1
        %s223 = smul.addr %s220, 2
        %s224 = sadd.s32 %s222, %s223
        %s225 = smul.addr %s224, 4
        %s226 = scalar_lea.vmem %s1, %s225
        %p227 = pneg %p87
        %p228 = pneg %p84
        %s229 = smul.u32 2, %s23
        %p230 = scmp.lt.s32.totalorder %s229, 1
        %s231 = scalar_select %p230, %s229, 1
        %s232 = scalar_lea.vmem %s2, %s231
        %p233 = pneg %p113
        %p234 = pneg %p110
        %p235 = pneg %p141
        %p236 = pneg %p138
        %s237 = sand.u32 %s128, 1
        %s238 = scalar_lea.sflag [#allocation4], %s237
        %s239 = sand.u32 %s128, 1
        %s240 = smul.addr %s239, 256
        %s241 = scalar_lea.vmem [#allocation3], %s240
        %s242 = smul.u32 16, %s22
        %s243 = smul.u32 2, %s24
        %p244 = scmp.lt.s32.totalorder %s242, 31
        %s245 = scalar_select %p244, %s242, 31
        %p246 = scmp.lt.s32.totalorder %s243, 1
        %s247 = scalar_select %p246, %s243, 1
        %s248 = smul.addr %s245, 2
        %s249 = sadd.s32 %s247, %s248
        %s250 = smul.addr %s249, 4
        %s251 = scalar_lea.vmem %s0, %s250
        %s252 = smul.u32 16, %s22
        %s253 = smul.u32 2, %s24
        %s254 = smul.u32 32, %s24
        %s255 = smul.u32 2, %s23
        %p256 = scmp.lt.s32.totalorder %s254, 31
        %s257 = scalar_select %p256, %s254, 31
        %p258 = scmp.lt.s32.totalorder %s255, 1
        %s259 = scalar_select %p258, %s255, 1
        %s260 = smul.addr %s257, 2
        %s261 = sadd.s32 %s259, %s260
        %s262 = smul.addr %s261, 4
        %s263 = scalar_lea.vmem %s1, %s262
        %s264 = smul.u32 32, %s24
        %s265 = smul.u32 2, %s23
        %s266 = smul.u32 2, %s23
        %p267 = scmp.lt.s32.totalorder %s266, 1
        %s268 = scalar_select %p267, %s266, 1
        %s269 = scalar_lea.vmem %s2, %s268
        %s270 = smul.u32 2, %s23
        %s271 = smul.u32 16, %s22
        %s272 = smul.u32 2, %s23
        %p273 = scmp.eq.s32.totalorder %s24, 0
        // Predicated region
        $region33: #{self_attention.5} parent=31 // pred_check
          %p274 = pneg %p273
        $region34: #{self_attention.5} parent=31 // pred_check_branch
          %276 = sbr.rel (%p274) target = $region36
        $region35: #{self_attention.5} parent=31 // pred_region
          %277 = vst [vmem:[#allocation2] sm:$0xff] 0.0
          %278 = vst [vmem:[#allocation2 + $0x8] sm:$0xff] 0.0
          %279 = vst [vmem:[#allocation2 + $0x10] sm:$0xff] 0.0
          %280 = vst [vmem:[#allocation2 + $0x18] sm:$0xff] 0.0
          %281 = vst [vmem:[#allocation2 + $0x20] sm:$0xff] 0.0
          %282 = vst [vmem:[#allocation2 + $0x28] sm:$0xff] 0.0
          %283 = vst [vmem:[#allocation2 + $0x30] sm:$0xff] 0.0
          %284 = vst [vmem:[#allocation2 + $0x38] sm:$0xff] 0.0
          %285 = vst [vmem:[#allocation2 + $0x40] sm:$0xff] 0.0
          %286 = vst [vmem:[#allocation2 + $0x48] sm:$0xff] 0.0
          %287 = vst [vmem:[#allocation2 + $0x50] sm:$0xff] 0.0
          %288 = vst [vmem:[#allocation2 + $0x58] sm:$0xff] 0.0
          %289 = vst [vmem:[#allocation2 + $0x60] sm:$0xff] 0.0
          %290 = vst [vmem:[#allocation2 + $0x68] sm:$0xff] 0.0
          %291 = vst [vmem:[#allocation2 + $0x70] sm:$0xff] 0.0
          %292 = vst [vmem:[#allocation2 + $0x78] sm:$0xff] 0.0
          %293 = vst [vmem:[#allocation2 + $0x80] sm:$0xff] 0.0
          %294 = vst [vmem:[#allocation2 + $0x88] sm:$0xff] 0.0
          %295 = vst [vmem:[#allocation2 + $0x90] sm:$0xff] 0.0
          %296 = vst [vmem:[#allocation2 + $0x98] sm:$0xff] 0.0
          %297 = vst [vmem:[#allocation2 + $0xa0] sm:$0xff] 0.0
          %298 = vst [vmem:[#allocation2 + $0xa8] sm:$0xff] 0.0
          %299 = vst [vmem:[#allocation2 + $0xb0] sm:$0xff] 0.0
          %300 = vst [vmem:[#allocation2 + $0xb8] sm:$0xff] 0.0
          %301 = vst [vmem:[#allocation2 + $0xc0] sm:$0xff] 0.0
          %302 = vst [vmem:[#allocation2 + $0xc8] sm:$0xff] 0.0
          %303 = vst [vmem:[#allocation2 + $0xd0] sm:$0xff] 0.0
          %304 = vst [vmem:[#allocation2 + $0xd8] sm:$0xff] 0.0
          %305 = vst [vmem:[#allocation2 + $0xe0] sm:$0xff] 0.0
          %306 = vst [vmem:[#allocation2 + $0xe8] sm:$0xff] 0.0
          %307 = vst [vmem:[#allocation2 + $0xf0] sm:$0xff] 0.0
          %308 = vst [vmem:[#allocation2 + $0xf8] sm:$0xff] 0.0
        $region36: #{self_attention.5} parent=31 // pred_fallthru
          _
        %v309 = vld [vmem:[#allocation2] sm:$0xff]
        %v310 = vld [vmem:[#allocation2 + $0x8] sm:$0xff]
        %v311 = vld [vmem:[#allocation2 + $0x10] sm:$0xff]
        %v312 = vld [vmem:[#allocation2 + $0x18] sm:$0xff]
        %v313 = vld [vmem:[#allocation2 + $0x20] sm:$0xff]
        %v314 = vld [vmem:[#allocation2 + $0x28] sm:$0xff]
        %v315 = vld [vmem:[#allocation2 + $0x30] sm:$0xff]
        %v316 = vld [vmem:[#allocation2 + $0x38] sm:$0xff]
        %v317 = vld [vmem:[#allocation2 + $0x40] sm:$0xff]
        %v318 = vld [vmem:[#allocation2 + $0x48] sm:$0xff]
        %v319 = vld [vmem:[#allocation2 + $0x50] sm:$0xff]
        %v320 = vld [vmem:[#allocation2 + $0x58] sm:$0xff]
        %v321 = vld [vmem:[#allocation2 + $0x60] sm:$0xff]
        %v322 = vld [vmem:[#allocation2 + $0x68] sm:$0xff]
        %v323 = vld [vmem:[#allocation2 + $0x70] sm:$0xff]
        %v324 = vld [vmem:[#allocation2 + $0x78] sm:$0xff]
        %v325 = vld [vmem:[#allocation2 + $0x80] sm:$0xff]
        %v326 = vld [vmem:[#allocation2 + $0x88] sm:$0xff]
        %v327 = vld [vmem:[#allocation2 + $0x90] sm:$0xff]
        %v328 = vld [vmem:[#allocation2 + $0x98] sm:$0xff]
        %v329 = vld [vmem:[#allocation2 + $0xa0] sm:$0xff]
        %v330 = vld [vmem:[#allocation2 + $0xa8] sm:$0xff]
        %v331 = vld [vmem:[#allocation2 + $0xb0] sm:$0xff]
        %v332 = vld [vmem:[#allocation2 + $0xb8] sm:$0xff]
        %v333 = vld [vmem:[#allocation2 + $0xc0] sm:$0xff]
        %v334 = vld [vmem:[#allocation2 + $0xc8] sm:$0xff]
        %v335 = vld [vmem:[#allocation2 + $0xd0] sm:$0xff]
        %v336 = vld [vmem:[#allocation2 + $0xd8] sm:$0xff]
        %v337 = vld [vmem:[#allocation2 + $0xe0] sm:$0xff]
        %v338 = vld [vmem:[#allocation2 + $0xe8] sm:$0xff]
        %v339 = vld [vmem:[#allocation2 + $0xf0] sm:$0xff]
        %v340 = vld [vmem:[#allocation2 + $0xf8] sm:$0xff]
        %v341 = vld [vmem:[%s251] sm:$0xff]
        %v342 = vld [vmem:[%s251 + $0x8] sm:$0xff]
        %v343 = vld [vmem:[%s251 + $0x10] sm:$0xff]
        %v344 = vld [vmem:[%s251 + $0x18] sm:$0xff]
        %v345 = vld [vmem:[%s251 + $0x20] sm:$0xff]
        %v346 = vld [vmem:[%s251 + $0x28] sm:$0xff]
        %v347 = vld [vmem:[%s251 + $0x30] sm:$0xff]
        %v348 = vld [vmem:[%s251 + $0x38] sm:$0xff]
        %v349 = vld [vmem:[%s251 + $0x40] sm:$0xff]
        %v350 = vld [vmem:[%s251 + $0x48] sm:$0xff]
        %v351 = vld [vmem:[%s251 + $0x50] sm:$0xff]
        %v352 = vld [vmem:[%s251 + $0x58] sm:$0xff]
        %v353 = vld [vmem:[%s251 + $0x60] sm:$0xff]
        %v354 = vld [vmem:[%s251 + $0x68] sm:$0xff]
        %v355 = vld [vmem:[%s251 + $0x70] sm:$0xff]
        %v356 = vld [vmem:[%s251 + $0x78] sm:$0xff]
        %v357 = vld [vmem:[%s263] sm:$0xff]
        %v358 = vld [vmem:[%s263 + $0x8] sm:$0xff]
        %v359 = vld [vmem:[%s263 + $0x10] sm:$0xff]
        %v360 = vld [vmem:[%s263 + $0x18] sm:$0xff]
        %v361 = vld [vmem:[%s263 + $0x20] sm:$0xff]
        %v362 = vld [vmem:[%s263 + $0x28] sm:$0xff]
        %v363 = vld [vmem:[%s263 + $0x30] sm:$0xff]
        %v364 = vld [vmem:[%s263 + $0x38] sm:$0xff]
        %v365 = vld [vmem:[%s263 + $0x40] sm:$0xff]
        %v366 = vld [vmem:[%s263 + $0x48] sm:$0xff]
        %v367 = vld [vmem:[%s263 + $0x50] sm:$0xff]
        %v368 = vld [vmem:[%s263 + $0x58] sm:$0xff]
        %v369 = vld [vmem:[%s263 + $0x60] sm:$0xff]
        %v370 = vld [vmem:[%s263 + $0x68] sm:$0xff]
        %v371 = vld [vmem:[%s263 + $0x70] sm:$0xff]
        %v372 = vld [vmem:[%s263 + $0x78] sm:$0xff]
        %v373 = vld [vmem:[%s263 + $0x80] sm:$0xff]
        %v374 = vld [vmem:[%s263 + $0x88] sm:$0xff]
        %v375 = vld [vmem:[%s263 + $0x90] sm:$0xff]
        %v376 = vld [vmem:[%s263 + $0x98] sm:$0xff]
        %v377 = vld [vmem:[%s263 + $0xa0] sm:$0xff]
        %v378 = vld [vmem:[%s263 + $0xa8] sm:$0xff]
        %v379 = vld [vmem:[%s263 + $0xb0] sm:$0xff]
        %v380 = vld [vmem:[%s263 + $0xb8] sm:$0xff]
        %v381 = vld [vmem:[%s263 + $0xc0] sm:$0xff]
        %v382 = vld [vmem:[%s263 + $0xc8] sm:$0xff]
        %v383 = vld [vmem:[%s263 + $0xd0] sm:$0xff]
        %v384 = vld [vmem:[%s263 + $0xd8] sm:$0xff]
        %v385 = vld [vmem:[%s263 + $0xe0] sm:$0xff]
        %v386 = vld [vmem:[%s263 + $0xe8] sm:$0xff]
        %v387 = vld [vmem:[%s263 + $0xf0] sm:$0xff]
        %v388 = vld [vmem:[%s263 + $0xf8] sm:$0xff]
        %v405 = vunpack.c.l.b16 %v341
        %v406 = vunpack.c.h.b16 %v341
        %v407 = vunpack.c.l.b16 %v342
        %v408 = vunpack.c.h.b16 %v342
        %v409 = vunpack.c.l.b16 %v343
        %v410 = vunpack.c.h.b16 %v343
        %v411 = vunpack.c.l.b16 %v344
        %v412 = vunpack.c.h.b16 %v344
        %v413 = vunpack.c.l.b16 %v345
        %v414 = vunpack.c.h.b16 %v345
        %v415 = vunpack.c.l.b16 %v346
        %v416 = vunpack.c.h.b16 %v346
        %v417 = vunpack.c.l.b16 %v347
        %v418 = vunpack.c.h.b16 %v347
        %v419 = vunpack.c.l.b16 %v348
        %v420 = vunpack.c.h.b16 %v348
        %v421 = vunpack.c.l.b16 %v349
        %v422 = vunpack.c.h.b16 %v349
        %v423 = vunpack.c.l.b16 %v350
        %v424 = vunpack.c.h.b16 %v350
        %v425 = vunpack.c.l.b16 %v351
        %v426 = vunpack.c.h.b16 %v351
        %v427 = vunpack.c.l.b16 %v352
        %v428 = vunpack.c.h.b16 %v352
        %v429 = vunpack.c.l.b16 %v353
        %v430 = vunpack.c.h.b16 %v353
        %v431 = vunpack.c.l.b16 %v354
        %v432 = vunpack.c.h.b16 %v354
        %v433 = vunpack.c.l.b16 %v355
        %v434 = vunpack.c.h.b16 %v355
        %v435 = vunpack.c.l.b16 %v356
        %v436 = vunpack.c.h.b16 %v356
        %v437 = vpack.c.b16 %v407, %v405
        %v438 = vpack.c.b16 %v408, %v406
        %v439 = vpack.c.b16 %v411, %v409
        %v440 = vpack.c.b16 %v412, %v410
        %v441 = vpack.c.b16 %v415, %v413
        %v442 = vpack.c.b16 %v416, %v414
        %v443 = vpack.c.b16 %v419, %v417
        %v444 = vpack.c.b16 %v420, %v418
        %v445 = vpack.c.b16 %v423, %v421
        %v446 = vpack.c.b16 %v424, %v422
        %v447 = vpack.c.b16 %v427, %v425
        %v448 = vpack.c.b16 %v428, %v426
        %v449 = vpack.c.b16 %v431, %v429
        %v450 = vpack.c.b16 %v432, %v430
        %v451 = vpack.c.b16 %v435, %v433
        %v452 = vpack.c.b16 %v436, %v434
        %v501 = vunpack.c.l.b16 %v357
        %v502 = vunpack.c.h.b16 %v357
        %v503 = vunpack.c.l.b16 %v358
        %v504 = vunpack.c.h.b16 %v358
        %v505 = vunpack.c.l.b16 %v359
        %v506 = vunpack.c.h.b16 %v359
        %v507 = vunpack.c.l.b16 %v360
        %v508 = vunpack.c.h.b16 %v360
        %v509 = vunpack.c.l.b16 %v361
        %v510 = vunpack.c.h.b16 %v361
        %v511 = vunpack.c.l.b16 %v362
        %v512 = vunpack.c.h.b16 %v362
        %v513 = vunpack.c.l.b16 %v363
        %v514 = vunpack.c.h.b16 %v363
        %v515 = vunpack.c.l.b16 %v364
        %v516 = vunpack.c.h.b16 %v364
        %v517 = vunpack.c.l.b16 %v365
        %v518 = vunpack.c.h.b16 %v365
        %v519 = vunpack.c.l.b16 %v366
        %v520 = vunpack.c.h.b16 %v366
        %v521 = vunpack.c.l.b16 %v367
        %v522 = vunpack.c.h.b16 %v367
        %v523 = vunpack.c.l.b16 %v368
        %v524 = vunpack.c.h.b16 %v368
        %v525 = vunpack.c.l.b16 %v369
        %v526 = vunpack.c.h.b16 %v369
        %v527 = vunpack.c.l.b16 %v370
        %v528 = vunpack.c.h.b16 %v370
        %v529 = vunpack.c.l.b16 %v371
        %v530 = vunpack.c.h.b16 %v371
        %v531 = vunpack.c.l.b16 %v372
        %v532 = vunpack.c.h.b16 %v372
        %v533 = vunpack.c.l.b16 %v373
        %v534 = vunpack.c.h.b16 %v373
        %v535 = vunpack.c.l.b16 %v374
        %v536 = vunpack.c.h.b16 %v374
        %v537 = vunpack.c.l.b16 %v375
        %v538 = vunpack.c.h.b16 %v375
        %v539 = vunpack.c.l.b16 %v376
        %v540 = vunpack.c.h.b16 %v376
        %v541 = vunpack.c.l.b16 %v377
        %v542 = vunpack.c.h.b16 %v377
        %v543 = vunpack.c.l.b16 %v378
        %v544 = vunpack.c.h.b16 %v378
        %v545 = vunpack.c.l.b16 %v379
        %v546 = vunpack.c.h.b16 %v379
        %v547 = vunpack.c.l.b16 %v380
        %v548 = vunpack.c.h.b16 %v380
        %v549 = vunpack.c.l.b16 %v381
        %v550 = vunpack.c.h.b16 %v381
        %v551 = vunpack.c.l.b16 %v382
        %v552 = vunpack.c.h.b16 %v382
        %v553 = vunpack.c.l.b16 %v383
        %v554 = vunpack.c.h.b16 %v383
        %v555 = vunpack.c.l.b16 %v384
        %v556 = vunpack.c.h.b16 %v384
        %v557 = vunpack.c.l.b16 %v385
        %v558 = vunpack.c.h.b16 %v385
        %v559 = vunpack.c.l.b16 %v386
        %v560 = vunpack.c.h.b16 %v386
        %v561 = vunpack.c.l.b16 %v387
        %v562 = vunpack.c.h.b16 %v387
        %v563 = vunpack.c.l.b16 %v388
        %v564 = vunpack.c.h.b16 %v388
        %v565 = vpack.c.b16 %v503, %v501
        %v566 = vpack.c.b16 %v504, %v502
        %v567 = vpack.c.b16 %v507, %v505
        %v568 = vpack.c.b16 %v508, %v506
        %v569 = vpack.c.b16 %v511, %v509
        %v570 = vpack.c.b16 %v512, %v510
        %v571 = vpack.c.b16 %v515, %v513
        %v572 = vpack.c.b16 %v516, %v514
        %v573 = vpack.c.b16 %v519, %v517
        %v574 = vpack.c.b16 %v520, %v518
        %v575 = vpack.c.b16 %v523, %v521
        %v576 = vpack.c.b16 %v524, %v522
        %v577 = vpack.c.b16 %v527, %v525
        %v578 = vpack.c.b16 %v528, %v526
        %v579 = vpack.c.b16 %v531, %v529
        %v580 = vpack.c.b16 %v532, %v530
        %v581 = vpack.c.b16 %v535, %v533
        %v582 = vpack.c.b16 %v536, %v534
        %v583 = vpack.c.b16 %v539, %v537
        %v584 = vpack.c.b16 %v540, %v538
        %v585 = vpack.c.b16 %v543, %v541
        %v586 = vpack.c.b16 %v544, %v542
        %v587 = vpack.c.b16 %v547, %v545
        %v588 = vpack.c.b16 %v548, %v546
        %v589 = vpack.c.b16 %v551, %v549
        %v590 = vpack.c.b16 %v552, %v550
        %v591 = vpack.c.b16 %v555, %v553
        %v592 = vpack.c.b16 %v556, %v554
        %v593 = vpack.c.b16 %v559, %v557
        %v594 = vpack.c.b16 %v560, %v558
        %v595 = vpack.c.b16 %v563, %v561
        %v596 = vpack.c.b16 %v564, %v562
        %629 = vmatpush.bf16.msra.mxu0 %v579
        %630 = vmatpush.bf16.msra.mxu0 %v577
        %631 = vmatpush.bf16.msra.mxu0 %v575
        %632 = vmatpush.bf16.msra.mxu0 %v573
        %633 = vmatpush.bf16.msra.mxu0 %v571
        %634 = vmatpush.bf16.msra.mxu0 %v569
        %635 = vmatpush.bf16.msra.mxu0 %v567
        %636 = vmatpush.bf16.msra.mxu0 %v565
        %637 = vmatmul.bf16.gmra.mxu0 %v437
        %v638 = vpop.f32.mrf.mxu0
        %v639 = vadd.f32 0.0, %v638
        %v640 = vpop.f32.mrf.mxu0
        %v641 = vadd.f32 0.0, %v640
        %642 = vmatmul.bf16.gmra.mxu0 %v439
        %v643 = vpop.f32.mrf.mxu0
        %v644 = vadd.f32 0.0, %v643
        %v645 = vpop.f32.mrf.mxu0
        %v646 = vadd.f32 0.0, %v645
        %647 = vmatmul.bf16.gmra.mxu0 %v441
        %v648 = vpop.f32.mrf.mxu0
        %v649 = vadd.f32 0.0, %v648
        %v650 = vpop.f32.mrf.mxu0
        %v651 = vadd.f32 0.0, %v650
        %652 = vmatmul.bf16.gmra.mxu0 %v443
        %v653 = vpop.f32.mrf.mxu0
        %v654 = vadd.f32 0.0, %v653
        %v655 = vpop.f32.mrf.mxu0
        %v656 = vadd.f32 0.0, %v655
        %657 = vmatmul.bf16.gmra.mxu0 %v445
        %v658 = vpop.f32.mrf.mxu0
        %v659 = vadd.f32 0.0, %v658
        %v660 = vpop.f32.mrf.mxu0
        %v661 = vadd.f32 0.0, %v660
        %662 = vmatmul.bf16.gmra.mxu0 %v447
        %v663 = vpop.f32.mrf.mxu0
        %v664 = vadd.f32 0.0, %v663
        %v665 = vpop.f32.mrf.mxu0
        %v666 = vadd.f32 0.0, %v665
        %667 = vmatmul.bf16.gmra.mxu0 %v449
        %v668 = vpop.f32.mrf.mxu0
        %v669 = vadd.f32 0.0, %v668
        %v670 = vpop.f32.mrf.mxu0
        %v671 = vadd.f32 0.0, %v670
        %672 = vmatmul.bf16.gmra.mxu0 %v451
        %v673 = vpop.f32.mrf.mxu0
        %v674 = vadd.f32 0.0, %v673
        %v675 = vpop.f32.mrf.mxu0
        %v676 = vadd.f32 0.0, %v675
        %677 = vdwg.mxu0
        %678 = vmatpush.bf16.msra.mxu0 %v595
        %679 = vmatpush.bf16.msra.mxu0 %v593
        %680 = vmatpush.bf16.msra.mxu0 %v591
        %681 = vmatpush.bf16.msra.mxu0 %v589
        %682 = vmatpush.bf16.msra.mxu0 %v587
        %683 = vmatpush.bf16.msra.mxu0 %v585
        %684 = vmatpush.bf16.msra.mxu0 %v583
        %685 = vmatpush.bf16.msra.mxu0 %v581
        %686 = vmatmul.bf16.gmra.mxu0 %v438
        %v687 = vpop.f32.mrf.mxu0
        %v688 = vadd.f32 %v639, %v687
        %v689 = vpop.f32.mrf.mxu0
        %v690 = vadd.f32 %v641, %v689
        %691 = vmatmul.bf16.gmra.mxu0 %v440
        %v692 = vpop.f32.mrf.mxu0
        %v693 = vadd.f32 %v644, %v692
        %v694 = vpop.f32.mrf.mxu0
        %v695 = vadd.f32 %v646, %v694
        %696 = vmatmul.bf16.gmra.mxu0 %v442
        %v697 = vpop.f32.mrf.mxu0
        %v698 = vadd.f32 %v649, %v697
        %v699 = vpop.f32.mrf.mxu0
        %v700 = vadd.f32 %v651, %v699
        %701 = vmatmul.bf16.gmra.mxu0 %v444
        %v702 = vpop.f32.mrf.mxu0
        %v703 = vadd.f32 %v654, %v702
        %v704 = vpop.f32.mrf.mxu0
        %v705 = vadd.f32 %v656, %v704
        %706 = vmatmul.bf16.gmra.mxu0 %v446
        %v707 = vpop.f32.mrf.mxu0
        %v708 = vadd.f32 %v659, %v707
        %v709 = vpop.f32.mrf.mxu0
        %v710 = vadd.f32 %v661, %v709
        %711 = vmatmul.bf16.gmra.mxu0 %v448
        %v712 = vpop.f32.mrf.mxu0
        %v713 = vadd.f32 %v664, %v712
        %v714 = vpop.f32.mrf.mxu0
        %v715 = vadd.f32 %v666, %v714
        %716 = vmatmul.bf16.gmra.mxu0 %v450
        %v717 = vpop.f32.mrf.mxu0
        %v718 = vadd.f32 %v669, %v717
        %v719 = vpop.f32.mrf.mxu0
        %v720 = vadd.f32 %v671, %v719
        %721 = vmatmul.bf16.gmra.mxu0 %v452
        %v722 = vpop.f32.mrf.mxu0
        %v723 = vadd.f32 %v674, %v722
        %v724 = vpop.f32.mrf.mxu0
        %v725 = vadd.f32 %v676, %v724
        %726 = vdwg.mxu0
        %727 = vmatpush.bf16.msra.mxu0 %v580
        %728 = vmatpush.bf16.msra.mxu0 %v578
        %729 = vmatpush.bf16.msra.mxu0 %v576
        %730 = vmatpush.bf16.msra.mxu0 %v574
        %731 = vmatpush.bf16.msra.mxu0 %v572
        %732 = vmatpush.bf16.msra.mxu0 %v570
        %733 = vmatpush.bf16.msra.mxu0 %v568
        %734 = vmatpush.bf16.msra.mxu0 %v566
        %735 = vmatmul.bf16.gmra.mxu0 %v437
        %v736 = vpop.f32.mrf.mxu0
        %v737 = vadd.f32 0.0, %v736
        %v738 = vpop.f32.mrf.mxu0
        %v739 = vadd.f32 0.0, %v738
        %740 = vmatmul.bf16.gmra.mxu0 %v439
        %v741 = vpop.f32.mrf.mxu0
        %v742 = vadd.f32 0.0, %v741
        %v743 = vpop.f32.mrf.mxu0
        %v744 = vadd.f32 0.0, %v743
        %745 = vmatmul.bf16.gmra.mxu0 %v441
        %v746 = vpop.f32.mrf.mxu0
        %v747 = vadd.f32 0.0, %v746
        %v748 = vpop.f32.mrf.mxu0
        %v749 = vadd.f32 0.0, %v748
        %750 = vmatmul.bf16.gmra.mxu0 %v443
        %v751 = vpop.f32.mrf.mxu0
        %v752 = vadd.f32 0.0, %v751
        %v753 = vpop.f32.mrf.mxu0
        %v754 = vadd.f32 0.0, %v753
        %755 = vmatmul.bf16.gmra.mxu0 %v445
        %v756 = vpop.f32.mrf.mxu0
        %v757 = vadd.f32 0.0, %v756
        %v758 = vpop.f32.mrf.mxu0
        %v759 = vadd.f32 0.0, %v758
        %760 = vmatmul.bf16.gmra.mxu0 %v447
        %v761 = vpop.f32.mrf.mxu0
        %v762 = vadd.f32 0.0, %v761
        %v763 = vpop.f32.mrf.mxu0
        %v764 = vadd.f32 0.0, %v763
        %765 = vmatmul.bf16.gmra.mxu0 %v449
        %v766 = vpop.f32.mrf.mxu0
        %v767 = vadd.f32 0.0, %v766
        %v768 = vpop.f32.mrf.mxu0
        %v769 = vadd.f32 0.0, %v768
        %770 = vmatmul.bf16.gmra.mxu0 %v451
        %v771 = vpop.f32.mrf.mxu0
        %v772 = vadd.f32 0.0, %v771
        %v773 = vpop.f32.mrf.mxu0
        %v774 = vadd.f32 0.0, %v773
        %775 = vdwg.mxu0
        %776 = vmatpush.bf16.msra.mxu0 %v596
        %777 = vmatpush.bf16.msra.mxu0 %v594
        %778 = vmatpush.bf16.msra.mxu0 %v592
        %779 = vmatpush.bf16.msra.mxu0 %v590
        %780 = vmatpush.bf16.msra.mxu0 %v588
        %781 = vmatpush.bf16.msra.mxu0 %v586
        %782 = vmatpush.bf16.msra.mxu0 %v584
        %783 = vmatpush.bf16.msra.mxu0 %v582
        %784 = vmatmul.bf16.gmra.mxu0 %v438
        %v785 = vpop.f32.mrf.mxu0
        %v786 = vadd.f32 %v737, %v785
        %v787 = vpop.f32.mrf.mxu0
        %v788 = vadd.f32 %v739, %v787
        %789 = vmatmul.bf16.gmra.mxu0 %v440
        %v790 = vpop.f32.mrf.mxu0
        %v791 = vadd.f32 %v742, %v790
        %v792 = vpop.f32.mrf.mxu0
        %v793 = vadd.f32 %v744, %v792
        %794 = vmatmul.bf16.gmra.mxu0 %v442
        %v795 = vpop.f32.mrf.mxu0
        %v796 = vadd.f32 %v747, %v795
        %v797 = vpop.f32.mrf.mxu0
        %v798 = vadd.f32 %v749, %v797
        %799 = vmatmul.bf16.gmra.mxu0 %v444
        %v800 = vpop.f32.mrf.mxu0
        %v801 = vadd.f32 %v752, %v800
        %v802 = vpop.f32.mrf.mxu0
        %v803 = vadd.f32 %v754, %v802
        %804 = vmatmul.bf16.gmra.mxu0 %v446
        %v805 = vpop.f32.mrf.mxu0
        %v806 = vadd.f32 %v757, %v805
        %v807 = vpop.f32.mrf.mxu0
        %v808 = vadd.f32 %v759, %v807
        %809 = vmatmul.bf16.gmra.mxu0 %v448
        %v810 = vpop.f32.mrf.mxu0
        %v811 = vadd.f32 %v762, %v810
        %v812 = vpop.f32.mrf.mxu0
        %v813 = vadd.f32 %v764, %v812
        %814 = vmatmul.bf16.gmra.mxu0 %v450
        %v815 = vpop.f32.mrf.mxu0
        %v816 = vadd.f32 %v767, %v815
        %v817 = vpop.f32.mrf.mxu0
        %v818 = vadd.f32 %v769, %v817
        %819 = vmatmul.bf16.gmra.mxu0 %v452
        %v820 = vpop.f32.mrf.mxu0
        %v821 = vadd.f32 %v772, %v820
        %v822 = vpop.f32.mrf.mxu0
        %v823 = vadd.f32 %v774, %v822
        %824 = vdwg.mxu0
        %v825 = vadd.f32 %v309, %v688
        %v826 = vadd.f32 %v310, %v786
        %v827 = vadd.f32 %v311, %v690
        %v828 = vadd.f32 %v312, %v788
        %v829 = vadd.f32 %v313, %v693
        %v830 = vadd.f32 %v314, %v791
        %v831 = vadd.f32 %v315, %v695
        %v832 = vadd.f32 %v316, %v793
        %v833 = vadd.f32 %v317, %v698
        %v834 = vadd.f32 %v318, %v796
        %v835 = vadd.f32 %v319, %v700
        %v836 = vadd.f32 %v320, %v798
        %v837 = vadd.f32 %v321, %v703
        %v838 = vadd.f32 %v322, %v801
        %v839 = vadd.f32 %v323, %v705
        %v840 = vadd.f32 %v324, %v803
        %v841 = vadd.f32 %v325, %v708
        %v842 = vadd.f32 %v326, %v806
        %v843 = vadd.f32 %v327, %v710
        %v844 = vadd.f32 %v328, %v808
        %v845 = vadd.f32 %v329, %v713
        %v846 = vadd.f32 %v330, %v811
        %v847 = vadd.f32 %v331, %v715
        %v848 = vadd.f32 %v332, %v813
        %v849 = vadd.f32 %v333, %v718
        %v850 = vadd.f32 %v334, %v816
        %v851 = vadd.f32 %v335, %v720
        %v852 = vadd.f32 %v336, %v818
        %v853 = vadd.f32 %v337, %v723
        %v854 = vadd.f32 %v338, %v821
        %v855 = vadd.f32 %v339, %v725
        %v856 = vadd.f32 %v340, %v823
        %857 = vst [vmem:[#allocation2] sm:$0xff] %v825
        %858 = vst [vmem:[#allocation2 + $0x8] sm:$0xff] %v826
        %859 = vst [vmem:[#allocation2 + $0x10] sm:$0xff] %v827
        %860 = vst [vmem:[#allocation2 + $0x18] sm:$0xff] %v828
        %861 = vst [vmem:[#allocation2 + $0x20] sm:$0xff] %v829
        %862 = vst [vmem:[#allocation2 + $0x28] sm:$0xff] %v830
        %863 = vst [vmem:[#allocation2 + $0x30] sm:$0xff] %v831
        %864 = vst [vmem:[#allocation2 + $0x38] sm:$0xff] %v832
        %865 = vst [vmem:[#allocation2 + $0x40] sm:$0xff] %v833
        %866 = vst [vmem:[#allocation2 + $0x48] sm:$0xff] %v834
        %867 = vst [vmem:[#allocation2 + $0x50] sm:$0xff] %v835
        %868 = vst [vmem:[#allocation2 + $0x58] sm:$0xff] %v836
        %869 = vst [vmem:[#allocation2 + $0x60] sm:$0xff] %v837
        %870 = vst [vmem:[#allocation2 + $0x68] sm:$0xff] %v838
        %871 = vst [vmem:[#allocation2 + $0x70] sm:$0xff] %v839
        %872 = vst [vmem:[#allocation2 + $0x78] sm:$0xff] %v840
        %873 = vst [vmem:[#allocation2 + $0x80] sm:$0xff] %v841
        %874 = vst [vmem:[#allocation2 + $0x88] sm:$0xff] %v842
        %875 = vst [vmem:[#allocation2 + $0x90] sm:$0xff] %v843
        %876 = vst [vmem:[#allocation2 + $0x98] sm:$0xff] %v844
        %877 = vst [vmem:[#allocation2 + $0xa0] sm:$0xff] %v845
        %878 = vst [vmem:[#allocation2 + $0xa8] sm:$0xff] %v846
        %879 = vst [vmem:[#allocation2 + $0xb0] sm:$0xff] %v847
        %880 = vst [vmem:[#allocation2 + $0xb8] sm:$0xff] %v848
        %881 = vst [vmem:[#allocation2 + $0xc0] sm:$0xff] %v849
        %882 = vst [vmem:[#allocation2 + $0xc8] sm:$0xff] %v850
        %883 = vst [vmem:[#allocation2 + $0xd0] sm:$0xff] %v851
        %884 = vst [vmem:[#allocation2 + $0xd8] sm:$0xff] %v852
        %885 = vst [vmem:[#allocation2 + $0xe0] sm:$0xff] %v853
        %886 = vst [vmem:[#allocation2 + $0xe8] sm:$0xff] %v854
        %887 = vst [vmem:[#allocation2 + $0xf0] sm:$0xff] %v855
        %888 = vst [vmem:[#allocation2 + $0xf8] sm:$0xff] %v856
        // Predicated region
        $region37: #{self_attention.5} parent=31 // pred_check
          %p889 = pneg %p273
        $region38: #{self_attention.5} parent=31 // pred_check_branch
          %891 = sbr.rel (%p889) target = $region40
        $region39: #{self_attention.5} parent=31 // pred_region
          %v892 = vld [vmem:[#allocation2] sm:$0xff]
          %v893 = vld [vmem:[#allocation2 + $0x8] sm:$0xff]
          %v894 = vld [vmem:[#allocation2 + $0x10] sm:$0xff]
          %v895 = vld [vmem:[#allocation2 + $0x18] sm:$0xff]
          %v896 = vld [vmem:[#allocation2 + $0x20] sm:$0xff]
          %v897 = vld [vmem:[#allocation2 + $0x28] sm:$0xff]
          %v898 = vld [vmem:[#allocation2 + $0x30] sm:$0xff]
          %v899 = vld [vmem:[#allocation2 + $0x38] sm:$0xff]
          %v900 = vld [vmem:[#allocation2 + $0x40] sm:$0xff]
          %v901 = vld [vmem:[#allocation2 + $0x48] sm:$0xff]
          %v902 = vld [vmem:[#allocation2 + $0x50] sm:$0xff]
          %v903 = vld [vmem:[#allocation2 + $0x58] sm:$0xff]
          %v904 = vld [vmem:[#allocation2 + $0x60] sm:$0xff]
          %v905 = vld [vmem:[#allocation2 + $0x68] sm:$0xff]
          %v906 = vld [vmem:[#allocation2 + $0x70] sm:$0xff]
          %v907 = vld [vmem:[#allocation2 + $0x78] sm:$0xff]
          %v908 = vld [vmem:[#allocation2 + $0x80] sm:$0xff]
          %v909 = vld [vmem:[#allocation2 + $0x88] sm:$0xff]
          %v910 = vld [vmem:[#allocation2 + $0x90] sm:$0xff]
          %v911 = vld [vmem:[#allocation2 + $0x98] sm:$0xff]
          %v912 = vld [vmem:[#allocation2 + $0xa0] sm:$0xff]
          %v913 = vld [vmem:[#allocation2 + $0xa8] sm:$0xff]
          %v914 = vld [vmem:[#allocation2 + $0xb0] sm:$0xff]
          %v915 = vld [vmem:[#allocation2 + $0xb8] sm:$0xff]
          %v916 = vld [vmem:[#allocation2 + $0xc0] sm:$0xff]
          %v917 = vld [vmem:[#allocation2 + $0xc8] sm:$0xff]
          %v918 = vld [vmem:[#allocation2 + $0xd0] sm:$0xff]
          %v919 = vld [vmem:[#allocation2 + $0xd8] sm:$0xff]
          %v920 = vld [vmem:[#allocation2 + $0xe0] sm:$0xff]
          %v921 = vld [vmem:[#allocation2 + $0xe8] sm:$0xff]
          %v922 = vld [vmem:[#allocation2 + $0xf0] sm:$0xff]
          %v923 = vld [vmem:[#allocation2 + $0xf8] sm:$0xff]
          %v924 = vld [vmem:[%s269] sm:$0x3]
          %v926 = vperm.slane %v924, 0
          %v927 = vperm.slane %v924, 1
          %v930 = vadd.f32 %v892, %v926
          %v931 = vadd.f32 %v893, %v927
          %v932 = vadd.f32 %v894, %v926
          %v933 = vadd.f32 %v895, %v927
          %v934 = vadd.f32 %v896, %v926
          %v935 = vadd.f32 %v897, %v927
          %v936 = vadd.f32 %v898, %v926
          %v937 = vadd.f32 %v899, %v927
          %v938 = vadd.f32 %v900, %v926
          %v939 = vadd.f32 %v901, %v927
          %v940 = vadd.f32 %v902, %v926
          %v941 = vadd.f32 %v903, %v927
          %v942 = vadd.f32 %v904, %v926
          %v943 = vadd.f32 %v905, %v927
          %v944 = vadd.f32 %v906, %v926
          %v945 = vadd.f32 %v907, %v927
          %v946 = vadd.f32 %v908, %v926
          %v947 = vadd.f32 %v909, %v927
          %v948 = vadd.f32 %v910, %v926
          %v949 = vadd.f32 %v911, %v927
          %v950 = vadd.f32 %v912, %v926
          %v951 = vadd.f32 %v913, %v927
          %v952 = vadd.f32 %v914, %v926
          %v953 = vadd.f32 %v915, %v927
          %v954 = vadd.f32 %v916, %v926
          %v955 = vadd.f32 %v917, %v927
          %v956 = vadd.f32 %v918, %v926
          %v957 = vadd.f32 %v919, %v927
          %v958 = vadd.f32 %v920, %v926
          %v959 = vadd.f32 %v921, %v927
          %v960 = vadd.f32 %v922, %v926
          %v961 = vadd.f32 %v923, %v927
          %962 = vst [vmem:[%s241] sm:$0xff] %v930
          %963 = vst [vmem:[%s241 + $0x8] sm:$0xff] %v931
          %964 = vst [vmem:[%s241 + $0x10] sm:$0xff] %v932
          %965 = vst [vmem:[%s241 + $0x18] sm:$0xff] %v933
          %966 = vst [vmem:[%s241 + $0x20] sm:$0xff] %v934
          %967 = vst [vmem:[%s241 + $0x28] sm:$0xff] %v935
          %968 = vst [vmem:[%s241 + $0x30] sm:$0xff] %v936
          %969 = vst [vmem:[%s241 + $0x38] sm:$0xff] %v937
          %970 = vst [vmem:[%s241 + $0x40] sm:$0xff] %v938
          %971 = vst [vmem:[%s241 + $0x48] sm:$0xff] %v939
          %972 = vst [vmem:[%s241 + $0x50] sm:$0xff] %v940
          %973 = vst [vmem:[%s241 + $0x58] sm:$0xff] %v941
          %974 = vst [vmem:[%s241 + $0x60] sm:$0xff] %v942
          %975 = vst [vmem:[%s241 + $0x68] sm:$0xff] %v943
          %976 = vst [vmem:[%s241 + $0x70] sm:$0xff] %v944
          %977 = vst [vmem:[%s241 + $0x78] sm:$0xff] %v945
          %978 = vst [vmem:[%s241 + $0x80] sm:$0xff] %v946
          %979 = vst [vmem:[%s241 + $0x88] sm:$0xff] %v947
          %980 = vst [vmem:[%s241 + $0x90] sm:$0xff] %v948
          %981 = vst [vmem:[%s241 + $0x98] sm:$0xff] %v949
          %982 = vst [vmem:[%s241 + $0xa0] sm:$0xff] %v950
          %983 = vst [vmem:[%s241 + $0xa8] sm:$0xff] %v951
          %984 = vst [vmem:[%s241 + $0xb0] sm:$0xff] %v952
          %985 = vst [vmem:[%s241 + $0xb8] sm:$0xff] %v953
          %986 = vst [vmem:[%s241 + $0xc0] sm:$0xff] %v954
          %987 = vst [vmem:[%s241 + $0xc8] sm:$0xff] %v955
          %988 = vst [vmem:[%s241 + $0xd0] sm:$0xff] %v956
          %989 = vst [vmem:[%s241 + $0xd8] sm:$0xff] %v957
          %990 = vst [vmem:[%s241 + $0xe0] sm:$0xff] %v958
          %991 = vst [vmem:[%s241 + $0xe8] sm:$0xff] %v959
          %992 = vst [vmem:[%s241 + $0xf0] sm:$0xff] %v960
          %993 = vst [vmem:[%s241 + $0xf8] sm:$0xff] %v961
        $region40: #{self_attention.5} parent=31 // pred_fallthru
          _
        %s994 = sand.u32 %s128, 1
        %s995 = scalar_lea.sflag [#allocation4], %s994
        %s996 = sand.u32 %s128, 1
        %s997 = smul.addr %s996, 256
        %s998 = scalar_lea.vmem [#allocation3], %s997
        // Predicated region
        $region41: #{self_attention.5} parent=31 // pred_check
          %p999 = pneg %p138
        $region42: #{self_attention.5} parent=31 // pred_check_branch
          %1001 = sbr.rel (%p999) target = $region44
        $region43: #{self_attention.5} parent=31 // pred_region
          %s1002 = smul.u32 16, %s22
          %s1003 = smul.u32 2, %s23
          %1005 = vsyncadd %s995, 0
          %s1006 = smul.addr %s1002, 2
          %s1007 = sadd.s32 %s1003, %s1006
          %s1008 = smul.addr %s1007, 8
          %s1009 = scalar_lea.hbm %s3, %s1008
          %s1010 = sshll.u32 %s998, 4
          %s1011 = int_to_ptr.vmem [resolvable:$true] %s1010
          %s1012 = sshll.u32 %s1009, 4
          %s1013 = int_to_ptr.hbm [resolvable:$true] %s1012
          %1018 = dma.vmem_to_hbm [thread:$0]  %s1011, 4096, %s1013, %s995, 256, 256, 16
        $region44: #{self_attention.5} parent=31 // pred_fallthru
          _
      $region32: #{self_attention.5} parent=5 // pred_fallthru
        _
      %p1019 = scmp.le.s32.totalorder 2, %s12
      // Predicated region
      $region45: #{self_attention.5} parent=5 // pred_check
        %p1020 = pneg %p1019
      $region46: #{self_attention.5} parent=5 // pred_check_branch
        %1022 = sbr.rel (%p1020) target = $region48
      $region47: #{self_attention.5} parent=5 // pred_region
        %s1023 = ssub.s32 %s12, 2
        // Predicated region
        $region49: #{self_attention.5} parent=47 // pred_check
          %p1024 = pneg %p144
        $region50: #{self_attention.5} parent=47 // pred_check_branch
          %1026 = sbr.rel (%p1024) target = $region52
        $region51: #{self_attention.5} parent=47 // pred_region
          %s1027 = sand.u32 %s129, 1
          %s1028 = scalar_lea.sflag [#allocation4], %s1027
          %s1029 = sand.u32 %s129, 1
          %s1030 = smul.addr %s1029, 256
          %s1031 = scalar_lea.vmem [#allocation3], %s1030
          %1033 = dma.done %s1028, 4096
        $region52: #{self_attention.5} parent=47 // pred_fallthru
          _
      $region48: #{self_attention.5} parent=5 // pred_fallthru
        _
    $region6: #{self_attention.5} parent=1 // loop_footer
      %s16 = sadd.s32 1, %s12
    $region7: #{self_attention.5} parent=1 // loop_footer_branch
      %11 = sbr.rel target = $region3
    $region8: #{self_attention.5} parent=1 // loop_exit
      _
    %1034 = vsyncpa [#allocation4], 1
    %s1035 = scalar_lea.sflag [#allocation4], 1
    %1036 = vsyncpa %s1035, 1

// kernel: self_attention.4
$region0: #{self_attention.4}
  #allocation0 [shape = 'u32[]', space=smem, size = 0x4, offset = 0x4, fixed_abs, tag = 'smem constant byte address 0x4 - core index']
  #allocation1 [shape = 'u32[72,128]{1,0:T(1,128)}', space=vmem, size = 0x9000, scoped, tag = 'internal scratch']
  %s0 = inlined_call_operand.vmem [shape: bf16[16,128,32], index: 0, kind: input, shape index: {}]
  %s1 = inlined_call_operand.vmem [shape: bf16[16,128,32], index: 1, kind: input, shape index: {}]
  %s2 = inlined_call_operand.vmem [shape: bf16[16,128,32], index: 2, kind: input, shape index: {}]
  %s3 = inlined_call_operand.vmem [shape: bf16[16,128,32], index: 3, kind: output, shape index: {}]
  %s4 = sld [smem:[#allocation0]]
  $region45: #{self_attention.4} parent=0
    _
  %s6 = ssub.s32 1, %s4
  %s7 = scalar_select 0, %s6, %s4
  loop: start=0, step=1, limit=4
  $region2: #{self_attention.4} parent=0 // loop_pre_header
    _
  $region3: #{self_attention.4} parent=0 // loop_header
    %s9 = sphi 0, %s13
    %p10 = scmp.ge.s32.totalorder %s9, 4
    %s19 = sphi 0, %s21
    %s22 = sphi 0, %s19
    %s23 = sphi 0, %s22
    %s39 = sphi 0, %s23
    %s45 = sphi 0, %s47
    %s48 = sphi 0, %s45
    %s49 = sphi 0, %s48
    %s65 = sphi 0, %s49
    %s71 = sphi 0, %s73
    %s74 = sphi 0, %s71
    %s75 = sphi 0, %s74
    %s91 = sphi 0, %s75
    %s97 = sphi 0, %s99
    %s100 = sphi 0, %s97
    %s101 = sphi 0, %s100
    %s117 = sphi 0, %s101
  $region4: #{self_attention.4} parent=0 // loop_header_branch
    %12 = sbr.rel (%p10) target = $region8
  $region5: #{self_attention.4} parent=0 // loop_body
    %s14 = ssub.s32 %s9, 1
    %s15 = ssub.s32 %s9, 2
    %s16 = sadd.s32 %s9, 1
    %s17 = ssub.s32 %s9, %s16
    %p18 = scmp.eq.s32.totalorder %s17, 0
    %s20 = sadd.s32 %s19, 1
    %s21 = scalar_select %p18, %s19, %s20
    %p24 = pneg %p18
    %p25 = scmp.eq.s32.totalorder %s9, 1
    %p26 = por %p24, %p25
    %p27 = scmp.ne.s32.totalorder %s19, %s22
    %p28 = scmp.eq.s32.totalorder %s9, 0
    %p29 = por %p27, %p28
    %p30 = scmp.ne.s32.totalorder %s19, %s22
    %p31 = scmp.eq.s32.totalorder %s14, 1
    %p32 = por %p30, %p31
    %p33 = scmp.ne.s32.totalorder %s22, %s23
    %p34 = scmp.eq.s32.totalorder %s14, 0
    %p35 = por %p33, %p34
    %p36 = scmp.ne.s32.totalorder %s22, %s23
    %p37 = scmp.eq.s32.totalorder %s15, 1
    %p38 = por %p36, %p37
    %p40 = scmp.ne.s32.totalorder %s23, %s39
    %p41 = scmp.eq.s32.totalorder %s15, 0
    %p42 = por %p40, %p41
    %s43 = ssub.s32 %s9, %s16
    %p44 = scmp.eq.s32.totalorder %s43, 0
    %s46 = sadd.s32 %s45, 1
    %s47 = scalar_select %p44, %s45, %s46
    %p50 = pneg %p44
    %p51 = scmp.eq.s32.totalorder %s9, 1
    %p52 = por %p50, %p51
    %p53 = scmp.ne.s32.totalorder %s45, %s48
    %p54 = scmp.eq.s32.totalorder %s9, 0
    %p55 = por %p53, %p54
    %p56 = scmp.ne.s32.totalorder %s45, %s48
    %p57 = scmp.eq.s32.totalorder %s14, 1
    %p58 = por %p56, %p57
    %p59 = scmp.ne.s32.totalorder %s48, %s49
    %p60 = scmp.eq.s32.totalorder %s14, 0
    %p61 = por %p59, %p60
    %p62 = scmp.ne.s32.totalorder %s48, %s49
    %p63 = scmp.eq.s32.totalorder %s15, 1
    %p64 = por %p62, %p63
    %p66 = scmp.ne.s32.totalorder %s49, %s65
    %p67 = scmp.eq.s32.totalorder %s15, 0
    %p68 = por %p66, %p67
    %s69 = ssub.s32 %s9, %s16
    %p70 = scmp.eq.s32.totalorder %s69, 0
    %s72 = sadd.s32 %s71, 1
    %s73 = scalar_select %p70, %s71, %s72
    %p76 = pneg %p70
    %p77 = scmp.eq.s32.totalorder %s9, 1
    %p78 = por %p76, %p77
    %p79 = scmp.ne.s32.totalorder %s71, %s74
    %p80 = scmp.eq.s32.totalorder %s9, 0
    %p81 = por %p79, %p80
    %p82 = scmp.ne.s32.totalorder %s71, %s74
    %p83 = scmp.eq.s32.totalorder %s14, 1
    %p84 = por %p82, %p83
    %p85 = scmp.ne.s32.totalorder %s74, %s75
    %p86 = scmp.eq.s32.totalorder %s14, 0
    %p87 = por %p85, %p86
    %p88 = scmp.ne.s32.totalorder %s74, %s75
    %p89 = scmp.eq.s32.totalorder %s15, 1
    %p90 = por %p88, %p89
    %p92 = scmp.ne.s32.totalorder %s75, %s91
    %p93 = scmp.eq.s32.totalorder %s15, 0
    %p94 = por %p92, %p93
    %s95 = ssub.s32 %s9, %s16
    %p96 = scmp.eq.s32.totalorder %s95, 0
    %s98 = sadd.s32 %s97, 1
    %s99 = scalar_select %p96, %s97, %s98
    %p102 = pneg %p96
    %p103 = scmp.eq.s32.totalorder %s9, 1
    %p104 = por %p102, %p103
    %p105 = scmp.ne.s32.totalorder %s97, %s100
    %p106 = scmp.eq.s32.totalorder %s9, 0
    %p107 = por %p105, %p106
    %p108 = scmp.ne.s32.totalorder %s97, %s100
    %p109 = scmp.eq.s32.totalorder %s14, 1
    %p110 = por %p108, %p109
    %p111 = scmp.ne.s32.totalorder %s100, %s101
    %p112 = scmp.eq.s32.totalorder %s14, 0
    %p113 = por %p111, %p112
    %p114 = scmp.ne.s32.totalorder %s100, %s101
    %p115 = scmp.eq.s32.totalorder %s15, 1
    %p116 = por %p114, %p115
    %p118 = scmp.ne.s32.totalorder %s101, %s117
    %p119 = scmp.eq.s32.totalorder %s15, 0
    %p120 = por %p118, %p119
    %p121 = scmp.le.s32.totalorder 1, %s9
    %p122 = scmp.lt.s32.totalorder %s9, 3
    %p123 = pnand %p121, %p122
    %p124 = pneg %p123
    // Predicated region
    $region9: #{self_attention.4} parent=5 // pred_check
      _
    $region10: #{self_attention.4} parent=5 // pred_check_branch
      %126 = sbr.rel (%p123) target = $region12
    $region11: #{self_attention.4} parent=5 // pred_region
      %s127 = ssub.s32 %s9, 1
    $region12: #{self_attention.4} parent=5 // pred_fallthru
      _
    %p128 = scmp.lt.s32.totalorder %s9, 2
    // Predicated region
    $region13: #{self_attention.4} parent=5 // pred_check
      %p129 = pneg %p128
    $region14: #{self_attention.4} parent=5 // pred_check_branch
      %131 = sbr.rel (%p129) target = $region16
    $region15: #{self_attention.4} parent=5 // pred_region
      // Predicated region
      $region17: #{self_attention.4} parent=15 // pred_check
        %p132 = pneg %p29
      $region18: #{self_attention.4} parent=15 // pred_check_branch
        %134 = sbr.rel (%p132) target = $region20
      $region19: #{self_attention.4} parent=15 // pred_region
        %s135 = smul.u32 8, %s9
        %p136 = scmp.lt.s32.totalorder %s135, 15
        %s137 = scalar_select %p136, %s135, 15
        %s138 = smul.addr %s137, 16
        %s139 = smul.addr %s138, 4
        %s140 = scalar_lea.vmem %s0, %s139
        %s141 = smul.u32 8, %s9
      $region20: #{self_attention.4} parent=15 // pred_fallthru
        _
      // Predicated region
      $region21: #{self_attention.4} parent=15 // pred_check
        %p142 = pneg %p55
      $region22: #{self_attention.4} parent=15 // pred_check_branch
        %144 = sbr.rel (%p142) target = $region24
      $region23: #{self_attention.4} parent=15 // pred_region
        %s145 = smul.u32 8, %s9
        %p146 = scmp.lt.s32.totalorder %s145, 15
        %s147 = scalar_select %p146, %s145, 15
        %s148 = smul.addr %s147, 16
        %s149 = smul.addr %s148, 4
        %s150 = scalar_lea.vmem %s1, %s149
        %s151 = smul.u32 8, %s9
      $region24: #{self_attention.4} parent=15 // pred_fallthru
        _
      // Predicated region
      $region25: #{self_attention.4} parent=15 // pred_check
        %p152 = pneg %p81
      $region26: #{self_attention.4} parent=15 // pred_check_branch
        %154 = sbr.rel (%p152) target = $region28
      $region27: #{self_attention.4} parent=15 // pred_region
        %s155 = smul.u32 8, %s9
        %p156 = scmp.lt.s32.totalorder %s155, 15
        %s157 = scalar_select %p156, %s155, 15
        %s158 = smul.addr %s157, 16
        %s159 = smul.addr %s158, 4
        %s160 = scalar_lea.vmem %s2, %s159
        %s161 = smul.u32 8, %s9
      $region28: #{self_attention.4} parent=15 // pred_fallthru
        _
    $region16: #{self_attention.4} parent=5 // pred_fallthru
      _
    %p162 = scmp.le.s32.totalorder 1, %s9
    %p163 = scmp.lt.s32.totalorder %s9, 3
    %p164 = pnand %p162, %p163
    %p165 = pneg %p164
    // Predicated region
    $region29: #{self_attention.4} parent=5 // pred_check
      _
    $region30: #{self_attention.4} parent=5 // pred_check_branch
      %167 = sbr.rel (%p164) target = $region32
    $region31: #{self_attention.4} parent=5 // pred_region
      %s168 = ssub.s32 %s9, 1
      %s169 = smul.u32 8, %s14
      %p170 = scmp.lt.s32.totalorder %s169, 15
      %s171 = scalar_select %p170, %s169, 15
      %s172 = smul.addr %s171, 16
      %s173 = smul.addr %s172, 4
      %s174 = scalar_lea.vmem %s0, %s173
      %p175 = pneg %p35
      %p176 = pneg %p32
      %s177 = smul.u32 8, %s14
      %p178 = scmp.lt.s32.totalorder %s177, 15
      %s179 = scalar_select %p178, %s177, 15
      %s180 = smul.addr %s179, 16
      %s181 = smul.addr %s180, 4
      %s182 = scalar_lea.vmem %s1, %s181
      %p183 = pneg %p61
      %p184 = pneg %p58
      %s185 = smul.u32 8, %s14
      %p186 = scmp.lt.s32.totalorder %s185, 15
      %s187 = scalar_select %p186, %s185, 15
      %s188 = smul.addr %s187, 16
      %s189 = smul.addr %s188, 4
      %s190 = scalar_lea.vmem %s2, %s189
      %p191 = pneg %p87
      %p192 = pneg %p84
      %p193 = pneg %p113
      %p194 = pneg %p110
      %s195 = smul.u32 8, %s14
      %p196 = scmp.lt.s32.totalorder %s195, 15
      %s197 = scalar_select %p196, %s195, 15
      %s198 = smul.addr %s197, 16
      %s199 = smul.addr %s198, 4
      %s200 = scalar_lea.vmem %s3, %s199
      %s201 = smul.u32 8, %s14
      %p202 = scmp.lt.s32.totalorder %s201, 15
      %s203 = scalar_select %p202, %s201, 15
      %s204 = smul.addr %s203, 16
      %s205 = smul.addr %s204, 4
      %s206 = scalar_lea.vmem %s0, %s205
      %s207 = smul.u32 8, %s14
      %s208 = smul.u32 8, %s14
      %p209 = scmp.lt.s32.totalorder %s208, 15
      %s210 = scalar_select %p209, %s208, 15
      %s211 = smul.addr %s210, 16
      %s212 = smul.addr %s211, 4
      %s213 = scalar_lea.vmem %s1, %s212
      %s214 = smul.u32 8, %s14
      %s215 = smul.u32 8, %s14
      %p216 = scmp.lt.s32.totalorder %s215, 15
      %s217 = scalar_select %p216, %s215, 15
      %s218 = smul.addr %s217, 16
      %s219 = smul.addr %s218, 4
      %s220 = scalar_lea.vmem %s2, %s219
      %s221 = smul.u32 8, %s14
      %s222 = smul.u32 8, %s14
      %p223 = scmp.lt.s32.totalorder %s222, 15
      %s224 = scalar_select %p223, %s222, 15
      %s225 = smul.addr %s224, 16
      %s226 = smul.addr %s225, 4
      %s227 = scalar_lea.vmem %s3, %s226
      %s228 = smul.u32 8, %s14
      %v229 = vld [vmem:[%s206] sm:$0xf]
      %v230 = vld [vmem:[%s206 + $0x4] sm:$0xf]
      %v231 = vld [vmem:[%s206 + $0x8] sm:$0xf]
      %v232 = vld [vmem:[%s206 + $0xc] sm:$0xf]
      %v233 = vld [vmem:[%s206 + $0x10] sm:$0xf]
      %v234 = vld [vmem:[%s206 + $0x14] sm:$0xf]
      %v235 = vld [vmem:[%s206 + $0x18] sm:$0xf]
      %v236 = vld [vmem:[%s206 + $0x1c] sm:$0xf]
      %v237 = vld [vmem:[%s206 + $0x20] sm:$0xf]
      %v238 = vld [vmem:[%s206 + $0x24] sm:$0xf]
      %v239 = vld [vmem:[%s206 + $0x28] sm:$0xf]
      %v240 = vld [vmem:[%s206 + $0x2c] sm:$0xf]
      %v241 = vld [vmem:[%s206 + $0x30] sm:$0xf]
      %v242 = vld [vmem:[%s206 + $0x34] sm:$0xf]
      %v243 = vld [vmem:[%s206 + $0x38] sm:$0xf]
      %v244 = vld [vmem:[%s206 + $0x3c] sm:$0xf]
      %v245 = vld [vmem:[%s206 + $0x40] sm:$0xf]
      %v246 = vld [vmem:[%s206 + $0x44] sm:$0xf]
      %v247 = vld [vmem:[%s206 + $0x48] sm:$0xf]
      %v248 = vld [vmem:[%s206 + $0x4c] sm:$0xf]
      %v249 = vld [vmem:[%s206 + $0x50] sm:$0xf]
      %v250 = vld [vmem:[%s206 + $0x54] sm:$0xf]
      %v251 = vld [vmem:[%s206 + $0x58] sm:$0xf]
      %v252 = vld [vmem:[%s206 + $0x5c] sm:$0xf]
      %v253 = vld [vmem:[%s206 + $0x60] sm:$0xf]
      %v254 = vld [vmem:[%s206 + $0x64] sm:$0xf]
      %v255 = vld [vmem:[%s206 + $0x68] sm:$0xf]
      %v256 = vld [vmem:[%s206 + $0x6c] sm:$0xf]
      %v257 = vld [vmem:[%s206 + $0x70] sm:$0xf]
      %v258 = vld [vmem:[%s206 + $0x74] sm:$0xf]
      %v259 = vld [vmem:[%s206 + $0x78] sm:$0xf]
      %v260 = vld [vmem:[%s206 + $0x7c] sm:$0xf]
      %v261 = vld [vmem:[%s206 + $0x80] sm:$0xf]
      %v262 = vld [vmem:[%s206 + $0x84] sm:$0xf]
      %v263 = vld [vmem:[%s206 + $0x88] sm:$0xf]
      %v264 = vld [vmem:[%s206 + $0x8c] sm:$0xf]
      %v265 = vld [vmem:[%s206 + $0x90] sm:$0xf]
      %v266 = vld [vmem:[%s206 + $0x94] sm:$0xf]
      %v267 = vld [vmem:[%s206 + $0x98] sm:$0xf]
      %v268 = vld [vmem:[%s206 + $0x9c] sm:$0xf]
      %v269 = vld [vmem:[%s206 + $0xa0] sm:$0xf]
      %v270 = vld [vmem:[%s206 + $0xa4] sm:$0xf]
      %v271 = vld [vmem:[%s206 + $0xa8] sm:$0xf]
      %v272 = vld [vmem:[%s206 + $0xac] sm:$0xf]
      %v273 = vld [vmem:[%s206 + $0xb0] sm:$0xf]
      %v274 = vld [vmem:[%s206 + $0xb4] sm:$0xf]
      %v275 = vld [vmem:[%s206 + $0xb8] sm:$0xf]
      %v276 = vld [vmem:[%s206 + $0xbc] sm:$0xf]
      %v277 = vld [vmem:[%s206 + $0xc0] sm:$0xf]
      %v278 = vld [vmem:[%s206 + $0xc4] sm:$0xf]
      %v279 = vld [vmem:[%s206 + $0xc8] sm:$0xf]
      %v280 = vld [vmem:[%s206 + $0xcc] sm:$0xf]
      %v281 = vld [vmem:[%s206 + $0xd0] sm:$0xf]
      %v282 = vld [vmem:[%s206 + $0xd4] sm:$0xf]
      %v283 = vld [vmem:[%s206 + $0xd8] sm:$0xf]
      %v284 = vld [vmem:[%s206 + $0xdc] sm:$0xf]
      %v285 = vld [vmem:[%s206 + $0xe0] sm:$0xf]
      %v286 = vld [vmem:[%s206 + $0xe4] sm:$0xf]
      %v287 = vld [vmem:[%s206 + $0xe8] sm:$0xf]
      %v288 = vld [vmem:[%s206 + $0xec] sm:$0xf]
      %v289 = vld [vmem:[%s206 + $0xf0] sm:$0xf]
      %v290 = vld [vmem:[%s206 + $0xf4] sm:$0xf]
      %v291 = vld [vmem:[%s206 + $0xf8] sm:$0xf]
      %v292 = vld [vmem:[%s206 + $0xfc] sm:$0xf]
      %v293 = vld [vmem:[%s206 + $0x100] sm:$0xf]
      %v294 = vld [vmem:[%s206 + $0x104] sm:$0xf]
      %v295 = vld [vmem:[%s206 + $0x108] sm:$0xf]
      %v296 = vld [vmem:[%s206 + $0x10c] sm:$0xf]
      %v297 = vld [vmem:[%s206 + $0x110] sm:$0xf]
      %v298 = vld [vmem:[%s206 + $0x114] sm:$0xf]
      %v299 = vld [vmem:[%s206 + $0x118] sm:$0xf]
      %v300 = vld [vmem:[%s206 + $0x11c] sm:$0xf]
      %v301 = vld [vmem:[%s206 + $0x120] sm:$0xf]
      %v302 = vld [vmem:[%s206 + $0x124] sm:$0xf]
      %v303 = vld [vmem:[%s206 + $0x128] sm:$0xf]
      %v304 = vld [vmem:[%s206 + $0x12c] sm:$0xf]
      %v305 = vld [vmem:[%s206 + $0x130] sm:$0xf]
      %v306 = vld [vmem:[%s206 + $0x134] sm:$0xf]
      %v307 = vld [vmem:[%s206 + $0x138] sm:$0xf]
      %v308 = vld [vmem:[%s206 + $0x13c] sm:$0xf]
      %v309 = vld [vmem:[%s206 + $0x140] sm:$0xf]
      %v310 = vld [vmem:[%s206 + $0x144] sm:$0xf]
      %v311 = vld [vmem:[%s206 + $0x148] sm:$0xf]
      %v312 = vld [vmem:[%s206 + $0x14c] sm:$0xf]
      %v313 = vld [vmem:[%s206 + $0x150] sm:$0xf]
      %v314 = vld [vmem:[%s206 + $0x154] sm:$0xf]
      %v315 = vld [vmem:[%s206 + $0x158] sm:$0xf]
      %v316 = vld [vmem:[%s206 + $0x15c] sm:$0xf]
      %v317 = vld [vmem:[%s206 + $0x160] sm:$0xf]
      %v318 = vld [vmem:[%s206 + $0x164] sm:$0xf]
      %v319 = vld [vmem:[%s206 + $0x168] sm:$0xf]
      %v320 = vld [vmem:[%s206 + $0x16c] sm:$0xf]
      %v321 = vld [vmem:[%s206 + $0x170] sm:$0xf]
      %v322 = vld [vmem:[%s206 + $0x174] sm:$0xf]
      %v323 = vld [vmem:[%s206 + $0x178] sm:$0xf]
      %v324 = vld [vmem:[%s206 + $0x17c] sm:$0xf]
      %v325 = vld [vmem:[%s206 + $0x180] sm:$0xf]
      %v326 = vld [vmem:[%s206 + $0x184] sm:$0xf]
      %v327 = vld [vmem:[%s206 + $0x188] sm:$0xf]
      %v328 = vld [vmem:[%s206 + $0x18c] sm:$0xf]
      %v329 = vld [vmem:[%s206 + $0x190] sm:$0xf]
      %v330 = vld [vmem:[%s206 + $0x194] sm:$0xf]
      %v331 = vld [vmem:[%s206 + $0x198] sm:$0xf]
      %v332 = vld [vmem:[%s206 + $0x19c] sm:$0xf]
      %v333 = vld [vmem:[%s206 + $0x1a0] sm:$0xf]
      %v334 = vld [vmem:[%s206 + $0x1a4] sm:$0xf]
      %v335 = vld [vmem:[%s206 + $0x1a8] sm:$0xf]
      %v336 = vld [vmem:[%s206 + $0x1ac] sm:$0xf]
      %v337 = vld [vmem:[%s206 + $0x1b0] sm:$0xf]
      %v338 = vld [vmem:[%s206 + $0x1b4] sm:$0xf]
      %v339 = vld [vmem:[%s206 + $0x1b8] sm:$0xf]
      %v340 = vld [vmem:[%s206 + $0x1bc] sm:$0xf]
      %v341 = vld [vmem:[%s206 + $0x1c0] sm:$0xf]
      %v342 = vld [vmem:[%s206 + $0x1c4] sm:$0xf]
      %v343 = vld [vmem:[%s206 + $0x1c8] sm:$0xf]
      %v344 = vld [vmem:[%s206 + $0x1cc] sm:$0xf]
      %v345 = vld [vmem:[%s206 + $0x1d0] sm:$0xf]
      %v346 = vld [vmem:[%s206 + $0x1d4] sm:$0xf]
      %v347 = vld [vmem:[%s206 + $0x1d8] sm:$0xf]
      %v348 = vld [vmem:[%s206 + $0x1dc] sm:$0xf]
      %v349 = vld [vmem:[%s206 + $0x1e0] sm:$0xf]
      %v350 = vld [vmem:[%s206 + $0x1e4] sm:$0xf]
      %v351 = vld [vmem:[%s206 + $0x1e8] sm:$0xf]
      %v352 = vld [vmem:[%s206 + $0x1ec] sm:$0xf]
      %v353 = vld [vmem:[%s206 + $0x1f0] sm:$0xf]
      %v354 = vld [vmem:[%s206 + $0x1f4] sm:$0xf]
      %v355 = vld [vmem:[%s206 + $0x1f8] sm:$0xf]
      %v356 = vld [vmem:[%s206 + $0x1fc] sm:$0xf]
      %v357 = vld [vmem:[%s213] sm:$0xf]
      %v358 = vld [vmem:[%s213 + $0x4] sm:$0xf]
      %v359 = vld [vmem:[%s213 + $0x8] sm:$0xf]
      %v360 = vld [vmem:[%s213 + $0xc] sm:$0xf]
      %v361 = vld [vmem:[%s213 + $0x10] sm:$0xf]
      %v362 = vld [vmem:[%s213 + $0x14] sm:$0xf]
      %v363 = vld [vmem:[%s213 + $0x18] sm:$0xf]
      %v364 = vld [vmem:[%s213 + $0x1c] sm:$0xf]
      %v365 = vld [vmem:[%s213 + $0x20] sm:$0xf]
      %v366 = vld [vmem:[%s213 + $0x24] sm:$0xf]
      %v367 = vld [vmem:[%s213 + $0x28] sm:$0xf]
      %v368 = vld [vmem:[%s213 + $0x2c] sm:$0xf]
      %v369 = vld [vmem:[%s213 + $0x30] sm:$0xf]
      %v370 = vld [vmem:[%s213 + $0x34] sm:$0xf]
      %v371 = vld [vmem:[%s213 + $0x38] sm:$0xf]
      %v372 = vld [vmem:[%s213 + $0x3c] sm:$0xf]
      %v373 = vld [vmem:[%s213 + $0x40] sm:$0xf]
      %v374 = vld [vmem:[%s213 + $0x44] sm:$0xf]
      %v375 = vld [vmem:[%s213 + $0x48] sm:$0xf]
      %v376 = vld [vmem:[%s213 + $0x4c] sm:$0xf]
      %v377 = vld [vmem:[%s213 + $0x50] sm:$0xf]
      %v378 = vld [vmem:[%s213 + $0x54] sm:$0xf]
      %v379 = vld [vmem:[%s213 + $0x58] sm:$0xf]
      %v380 = vld [vmem:[%s213 + $0x5c] sm:$0xf]
      %v381 = vld [vmem:[%s213 + $0x60] sm:$0xf]
      %v382 = vld [vmem:[%s213 + $0x64] sm:$0xf]
      %v383 = vld [vmem:[%s213 + $0x68] sm:$0xf]
      %v384 = vld [vmem:[%s213 + $0x6c] sm:$0xf]
      %v385 = vld [vmem:[%s213 + $0x70] sm:$0xf]
      %v386 = vld [vmem:[%s213 + $0x74] sm:$0xf]
      %v387 = vld [vmem:[%s213 + $0x78] sm:$0xf]
      %v388 = vld [vmem:[%s213 + $0x7c] sm:$0xf]
      %v389 = vld [vmem:[%s213 + $0x80] sm:$0xf]
      %v390 = vld [vmem:[%s213 + $0x84] sm:$0xf]
      %v391 = vld [vmem:[%s213 + $0x88] sm:$0xf]
      %v392 = vld [vmem:[%s213 + $0x8c] sm:$0xf]
      %v393 = vld [vmem:[%s213 + $0x90] sm:$0xf]
      %v394 = vld [vmem:[%s213 + $0x94] sm:$0xf]
      %v395 = vld [vmem:[%s213 + $0x98] sm:$0xf]
      %v396 = vld [vmem:[%s213 + $0x9c] sm:$0xf]
      %v397 = vld [vmem:[%s213 + $0xa0] sm:$0xf]
      %v398 = vld [vmem:[%s213 + $0xa4] sm:$0xf]
      %v399 = vld [vmem:[%s213 + $0xa8] sm:$0xf]
      %v400 = vld [vmem:[%s213 + $0xac] sm:$0xf]
      %v401 = vld [vmem:[%s213 + $0xb0] sm:$0xf]
      %v402 = vld [vmem:[%s213 + $0xb4] sm:$0xf]
      %v403 = vld [vmem:[%s213 + $0xb8] sm:$0xf]
      %v404 = vld [vmem:[%s213 + $0xbc] sm:$0xf]
      %v405 = vld [vmem:[%s213 + $0xc0] sm:$0xf]
      %v406 = vld [vmem:[%s213 + $0xc4] sm:$0xf]
      %v407 = vld [vmem:[%s213 + $0xc8] sm:$0xf]
      %v408 = vld [vmem:[%s213 + $0xcc] sm:$0xf]
      %v409 = vld [vmem:[%s213 + $0xd0] sm:$0xf]
      %v410 = vld [vmem:[%s213 + $0xd4] sm:$0xf]
      %v411 = vld [vmem:[%s213 + $0xd8] sm:$0xf]
      %v412 = vld [vmem:[%s213 + $0xdc] sm:$0xf]
      %v413 = vld [vmem:[%s213 + $0xe0] sm:$0xf]
      %v414 = vld [vmem:[%s213 + $0xe4] sm:$0xf]
      %v415 = vld [vmem:[%s213 + $0xe8] sm:$0xf]
      %v416 = vld [vmem:[%s213 + $0xec] sm:$0xf]
      %v417 = vld [vmem:[%s213 + $0xf0] sm:$0xf]
      %v418 = vld [vmem:[%s213 + $0xf4] sm:$0xf]
      %v419 = vld [vmem:[%s213 + $0xf8] sm:$0xf]
      %v420 = vld [vmem:[%s213 + $0xfc] sm:$0xf]
      %v421 = vld [vmem:[%s213 + $0x100] sm:$0xf]
      %v422 = vld [vmem:[%s213 + $0x104] sm:$0xf]
      %v423 = vld [vmem:[%s213 + $0x108] sm:$0xf]
      %v424 = vld [vmem:[%s213 + $0x10c] sm:$0xf]
      %v425 = vld [vmem:[%s213 + $0x110] sm:$0xf]
      %v426 = vld [vmem:[%s213 + $0x114] sm:$0xf]
      %v427 = vld [vmem:[%s213 + $0x118] sm:$0xf]
      %v428 = vld [vmem:[%s213 + $0x11c] sm:$0xf]
      %v429 = vld [vmem:[%s213 + $0x120] sm:$0xf]
      %v430 = vld [vmem:[%s213 + $0x124] sm:$0xf]
      %v431 = vld [vmem:[%s213 + $0x128] sm:$0xf]
      %v432 = vld [vmem:[%s213 + $0x12c] sm:$0xf]
      %v433 = vld [vmem:[%s213 + $0x130] sm:$0xf]
      %v434 = vld [vmem:[%s213 + $0x134] sm:$0xf]
      %v435 = vld [vmem:[%s213 + $0x138] sm:$0xf]
      %v436 = vld [vmem:[%s213 + $0x13c] sm:$0xf]
      %v437 = vld [vmem:[%s213 + $0x140] sm:$0xf]
      %v438 = vld [vmem:[%s213 + $0x144] sm:$0xf]
      %v439 = vld [vmem:[%s213 + $0x148] sm:$0xf]
      %v440 = vld [vmem:[%s213 + $0x14c] sm:$0xf]
      %v441 = vld [vmem:[%s213 + $0x150] sm:$0xf]
      %v442 = vld [vmem:[%s213 + $0x154] sm:$0xf]
      %v443 = vld [vmem:[%s213 + $0x158] sm:$0xf]
      %v444 = vld [vmem:[%s213 + $0x15c] sm:$0xf]
      %v445 = vld [vmem:[%s213 + $0x160] sm:$0xf]
      %v446 = vld [vmem:[%s213 + $0x164] sm:$0xf]
      %v447 = vld [vmem:[%s213 + $0x168] sm:$0xf]
      %v448 = vld [vmem:[%s213 + $0x16c] sm:$0xf]
      %v449 = vld [vmem:[%s213 + $0x170] sm:$0xf]
      %v450 = vld [vmem:[%s213 + $0x174] sm:$0xf]
      %v451 = vld [vmem:[%s213 + $0x178] sm:$0xf]
      %v452 = vld [vmem:[%s213 + $0x17c] sm:$0xf]
      %v453 = vld [vmem:[%s213 + $0x180] sm:$0xf]
      %v454 = vld [vmem:[%s213 + $0x184] sm:$0xf]
      %v455 = vld [vmem:[%s213 + $0x188] sm:$0xf]
      %v456 = vld [vmem:[%s213 + $0x18c] sm:$0xf]
      %v457 = vld [vmem:[%s213 + $0x190] sm:$0xf]
      %v458 = vld [vmem:[%s213 + $0x194] sm:$0xf]
      %v459 = vld [vmem:[%s213 + $0x198] sm:$0xf]
      %v460 = vld [vmem:[%s213 + $0x19c] sm:$0xf]
      %v461 = vld [vmem:[%s213 + $0x1a0] sm:$0xf]
      %v462 = vld [vmem:[%s213 + $0x1a4] sm:$0xf]
      %v463 = vld [vmem:[%s213 + $0x1a8] sm:$0xf]
      %v464 = vld [vmem:[%s213 + $0x1ac] sm:$0xf]
      %v465 = vld [vmem:[%s213 + $0x1b0] sm:$0xf]
      %v466 = vld [vmem:[%s213 + $0x1b4] sm:$0xf]
      %v467 = vld [vmem:[%s213 + $0x1b8] sm:$0xf]
      %v468 = vld [vmem:[%s213 + $0x1bc] sm:$0xf]
      %v469 = vld [vmem:[%s213 + $0x1c0] sm:$0xf]
      %v470 = vld [vmem:[%s213 + $0x1c4] sm:$0xf]
      %v471 = vld [vmem:[%s213 + $0x1c8] sm:$0xf]
      %v472 = vld [vmem:[%s213 + $0x1cc] sm:$0xf]
      %v473 = vld [vmem:[%s213 + $0x1d0] sm:$0xf]
      %v474 = vld [vmem:[%s213 + $0x1d4] sm:$0xf]
      %v475 = vld [vmem:[%s213 + $0x1d8] sm:$0xf]
      %v476 = vld [vmem:[%s213 + $0x1dc] sm:$0xf]
      %v477 = vld [vmem:[%s213 + $0x1e0] sm:$0xf]
      %v478 = vld [vmem:[%s213 + $0x1e4] sm:$0xf]
      %v479 = vld [vmem:[%s213 + $0x1e8] sm:$0xf]
      %v480 = vld [vmem:[%s213 + $0x1ec] sm:$0xf]
      %v481 = vld [vmem:[%s213 + $0x1f0] sm:$0xf]
      %v482 = vld [vmem:[%s213 + $0x1f4] sm:$0xf]
      %v483 = vld [vmem:[%s213 + $0x1f8] sm:$0xf]
      %v484 = vld [vmem:[%s213 + $0x1fc] sm:$0xf]
      %v485 = vld [vmem:[%s220] sm:$0xf]
      %v486 = vld [vmem:[%s220 + $0x4] sm:$0xf]
      %v487 = vld [vmem:[%s220 + $0x8] sm:$0xf]
      %v488 = vld [vmem:[%s220 + $0xc] sm:$0xf]
      %v489 = vld [vmem:[%s220 + $0x10] sm:$0xf]
      %v490 = vld [vmem:[%s220 + $0x14] sm:$0xf]
      %v491 = vld [vmem:[%s220 + $0x18] sm:$0xf]
      %v492 = vld [vmem:[%s220 + $0x1c] sm:$0xf]
      %v493 = vld [vmem:[%s220 + $0x20] sm:$0xf]
      %v494 = vld [vmem:[%s220 + $0x24] sm:$0xf]
      %v495 = vld [vmem:[%s220 + $0x28] sm:$0xf]
      %v496 = vld [vmem:[%s220 + $0x2c] sm:$0xf]
      %v497 = vld [vmem:[%s220 + $0x30] sm:$0xf]
      %v498 = vld [vmem:[%s220 + $0x34] sm:$0xf]
      %v499 = vld [vmem:[%s220 + $0x38] sm:$0xf]
      %v500 = vld [vmem:[%s220 + $0x3c] sm:$0xf]
      %v501 = vld [vmem:[%s220 + $0x40] sm:$0xf]
      %v502 = vld [vmem:[%s220 + $0x44] sm:$0xf]
      %v503 = vld [vmem:[%s220 + $0x48] sm:$0xf]
      %v504 = vld [vmem:[%s220 + $0x4c] sm:$0xf]
      %v505 = vld [vmem:[%s220 + $0x50] sm:$0xf]
      %v506 = vld [vmem:[%s220 + $0x54] sm:$0xf]
      %v507 = vld [vmem:[%s220 + $0x58] sm:$0xf]
      %v508 = vld [vmem:[%s220 + $0x5c] sm:$0xf]
      %v509 = vld [vmem:[%s220 + $0x60] sm:$0xf]
      %v510 = vld [vmem:[%s220 + $0x64] sm:$0xf]
      %v511 = vld [vmem:[%s220 + $0x68] sm:$0xf]
      %v512 = vld [vmem:[%s220 + $0x6c] sm:$0xf]
      %v513 = vld [vmem:[%s220 + $0x70] sm:$0xf]
      %v514 = vld [vmem:[%s220 + $0x74] sm:$0xf]
      %v515 = vld [vmem:[%s220 + $0x78] sm:$0xf]
      %v516 = vld [vmem:[%s220 + $0x7c] sm:$0xf]
      %v517 = vld [vmem:[%s220 + $0x80] sm:$0xf]
      %v518 = vld [vmem:[%s220 + $0x84] sm:$0xf]
      %v519 = vld [vmem:[%s220 + $0x88] sm:$0xf]
      %v520 = vld [vmem:[%s220 + $0x8c] sm:$0xf]
      %v521 = vld [vmem:[%s220 + $0x90] sm:$0xf]
      %v522 = vld [vmem:[%s220 + $0x94] sm:$0xf]
      %v523 = vld [vmem:[%s220 + $0x98] sm:$0xf]
      %v524 = vld [vmem:[%s220 + $0x9c] sm:$0xf]
      %v525 = vld [vmem:[%s220 + $0xa0] sm:$0xf]
      %v526 = vld [vmem:[%s220 + $0xa4] sm:$0xf]
      %v527 = vld [vmem:[%s220 + $0xa8] sm:$0xf]
      %v528 = vld [vmem:[%s220 + $0xac] sm:$0xf]
      %v529 = vld [vmem:[%s220 + $0xb0] sm:$0xf]
      %v530 = vld [vmem:[%s220 + $0xb4] sm:$0xf]
      %v531 = vld [vmem:[%s220 + $0xb8] sm:$0xf]
      %v532 = vld [vmem:[%s220 + $0xbc] sm:$0xf]
      %v533 = vld [vmem:[%s220 + $0xc0] sm:$0xf]
      %v534 = vld [vmem:[%s220 + $0xc4] sm:$0xf]
      %v535 = vld [vmem:[%s220 + $0xc8] sm:$0xf]
      %v536 = vld [vmem:[%s220 + $0xcc] sm:$0xf]
      %v537 = vld [vmem:[%s220 + $0xd0] sm:$0xf]
      %v538 = vld [vmem:[%s220 + $0xd4] sm:$0xf]
      %v539 = vld [vmem:[%s220 + $0xd8] sm:$0xf]
      %v540 = vld [vmem:[%s220 + $0xdc] sm:$0xf]
      %v541 = vld [vmem:[%s220 + $0xe0] sm:$0xf]
      %v542 = vld [vmem:[%s220 + $0xe4] sm:$0xf]
      %v543 = vld [vmem:[%s220 + $0xe8] sm:$0xf]
      %v544 = vld [vmem:[%s220 + $0xec] sm:$0xf]
      %v545 = vld [vmem:[%s220 + $0xf0] sm:$0xf]
      %v546 = vld [vmem:[%s220 + $0xf4] sm:$0xf]
      %v547 = vld [vmem:[%s220 + $0xf8] sm:$0xf]
      %v548 = vld [vmem:[%s220 + $0xfc] sm:$0xf]
      %v549 = vld [vmem:[%s220 + $0x100] sm:$0xf]
      %v550 = vld [vmem:[%s220 + $0x104] sm:$0xf]
      %v551 = vld [vmem:[%s220 + $0x108] sm:$0xf]
      %v552 = vld [vmem:[%s220 + $0x10c] sm:$0xf]
      %v553 = vld [vmem:[%s220 + $0x110] sm:$0xf]
      %v554 = vld [vmem:[%s220 + $0x114] sm:$0xf]
      %v555 = vld [vmem:[%s220 + $0x118] sm:$0xf]
      %v556 = vld [vmem:[%s220 + $0x11c] sm:$0xf]
      %v557 = vld [vmem:[%s220 + $0x120] sm:$0xf]
      %v558 = vld [vmem:[%s220 + $0x124] sm:$0xf]
      %v559 = vld [vmem:[%s220 + $0x128] sm:$0xf]
      %v560 = vld [vmem:[%s220 + $0x12c] sm:$0xf]
      %v561 = vld [vmem:[%s220 + $0x130] sm:$0xf]
      %v562 = vld [vmem:[%s220 + $0x134] sm:$0xf]
      %v563 = vld [vmem:[%s220 + $0x138] sm:$0xf]
      %v564 = vld [vmem:[%s220 + $0x13c] sm:$0xf]
      %v565 = vld [vmem:[%s220 + $0x140] sm:$0xf]
      %v566 = vld [vmem:[%s220 + $0x144] sm:$0xf]
      %v567 = vld [vmem:[%s220 + $0x148] sm:$0xf]
      %v568 = vld [vmem:[%s220 + $0x14c] sm:$0xf]
      %v569 = vld [vmem:[%s220 + $0x150] sm:$0xf]
      %v570 = vld [vmem:[%s220 + $0x154] sm:$0xf]
      %v571 = vld [vmem:[%s220 + $0x158] sm:$0xf]
      %v572 = vld [vmem:[%s220 + $0x15c] sm:$0xf]
      %v573 = vld [vmem:[%s220 + $0x160] sm:$0xf]
      %v574 = vld [vmem:[%s220 + $0x164] sm:$0xf]
      %v575 = vld [vmem:[%s220 + $0x168] sm:$0xf]
      %v576 = vld [vmem:[%s220 + $0x16c] sm:$0xf]
      %v577 = vld [vmem:[%s220 + $0x170] sm:$0xf]
      %v578 = vld [vmem:[%s220 + $0x174] sm:$0xf]
      %v579 = vld [vmem:[%s220 + $0x178] sm:$0xf]
      %v580 = vld [vmem:[%s220 + $0x17c] sm:$0xf]
      %v581 = vld [vmem:[%s220 + $0x180] sm:$0xf]
      %v582 = vld [vmem:[%s220 + $0x184] sm:$0xf]
      %v583 = vld [vmem:[%s220 + $0x188] sm:$0xf]
      %v584 = vld [vmem:[%s220 + $0x18c] sm:$0xf]
      %v585 = vld [vmem:[%s220 + $0x190] sm:$0xf]
      %v586 = vld [vmem:[%s220 + $0x194] sm:$0xf]
      %v587 = vld [vmem:[%s220 + $0x198] sm:$0xf]
      %v588 = vld [vmem:[%s220 + $0x19c] sm:$0xf]
      %v589 = vld [vmem:[%s220 + $0x1a0] sm:$0xf]
      %v590 = vld [vmem:[%s220 + $0x1a4] sm:$0xf]
      %v591 = vld [vmem:[%s220 + $0x1a8] sm:$0xf]
      %v592 = vld [vmem:[%s220 + $0x1ac] sm:$0xf]
      %v593 = vld [vmem:[%s220 + $0x1b0] sm:$0xf]
      %v594 = vld [vmem:[%s220 + $0x1b4] sm:$0xf]
      %v595 = vld [vmem:[%s220 + $0x1b8] sm:$0xf]
      %v596 = vld [vmem:[%s220 + $0x1bc] sm:$0xf]
      %v597 = vld [vmem:[%s220 + $0x1c0] sm:$0xf]
      %v598 = vld [vmem:[%s220 + $0x1c4] sm:$0xf]
      %v599 = vld [vmem:[%s220 + $0x1c8] sm:$0xf]
      %v600 = vld [vmem:[%s220 + $0x1cc] sm:$0xf]
      %v601 = vld [vmem:[%s220 + $0x1d0] sm:$0xf]
      %v602 = vld [vmem:[%s220 + $0x1d4] sm:$0xf]
      %v603 = vld [vmem:[%s220 + $0x1d8] sm:$0xf]
      %v604 = vld [vmem:[%s220 + $0x1dc] sm:$0xf]
      %v605 = vld [vmem:[%s220 + $0x1e0] sm:$0xf]
      %v606 = vld [vmem:[%s220 + $0x1e4] sm:$0xf]
      %v607 = vld [vmem:[%s220 + $0x1e8] sm:$0xf]
      %v608 = vld [vmem:[%s220 + $0x1ec] sm:$0xf]
      %v609 = vld [vmem:[%s220 + $0x1f0] sm:$0xf]
      %v610 = vld [vmem:[%s220 + $0x1f4] sm:$0xf]
      %v611 = vld [vmem:[%s220 + $0x1f8] sm:$0xf]
      %v612 = vld [vmem:[%s220 + $0x1fc] sm:$0xf]
      %v629 = vunpack.c.l.b16 %v229
      %v630 = vunpack.c.l.b16 %v230
      %v631 = vunpack.c.l.b16 %v231
      %v632 = vunpack.c.l.b16 %v232
      %v633 = vunpack.c.l.b16 %v233
      %v634 = vunpack.c.l.b16 %v234
      %v635 = vunpack.c.l.b16 %v235
      %v636 = vunpack.c.l.b16 %v236
      %v637 = vunpack.c.l.b16 %v237
      %v638 = vunpack.c.l.b16 %v238
      %v639 = vunpack.c.l.b16 %v239
      %v640 = vunpack.c.l.b16 %v240
      %v641 = vunpack.c.l.b16 %v241
      %v642 = vunpack.c.l.b16 %v242
      %v643 = vunpack.c.l.b16 %v243
      %v644 = vunpack.c.l.b16 %v244
      %v645 = vpack.c.b16 %v630, %v629
      %v646 = vpack.c.b16 %v632, %v631
      %v647 = vpack.c.b16 %v634, %v633
      %v648 = vpack.c.b16 %v636, %v635
      %v649 = vpack.c.b16 %v638, %v637
      %v650 = vpack.c.b16 %v640, %v639
      %v651 = vpack.c.b16 %v642, %v641
      %v652 = vpack.c.b16 %v644, %v643
      %v669 = vunpack.c.l.b16 %v357
      %v670 = vunpack.c.l.b16 %v358
      %v671 = vunpack.c.l.b16 %v359
      %v672 = vunpack.c.l.b16 %v360
      %v673 = vunpack.c.l.b16 %v361
      %v674 = vunpack.c.l.b16 %v362
      %v675 = vunpack.c.l.b16 %v363
      %v676 = vunpack.c.l.b16 %v364
      %v677 = vunpack.c.l.b16 %v365
      %v678 = vunpack.c.l.b16 %v366
      %v679 = vunpack.c.l.b16 %v367
      %v680 = vunpack.c.l.b16 %v368
      %v681 = vunpack.c.l.b16 %v369
      %v682 = vunpack.c.l.b16 %v370
      %v683 = vunpack.c.l.b16 %v371
      %v684 = vunpack.c.l.b16 %v372
      %v685 = vpack.c.b16 %v670, %v669
      %v686 = vpack.c.b16 %v672, %v671
      %v687 = vpack.c.b16 %v674, %v673
      %v688 = vpack.c.b16 %v676, %v675
      %v689 = vpack.c.b16 %v678, %v677
      %v690 = vpack.c.b16 %v680, %v679
      %v691 = vpack.c.b16 %v682, %v681
      %v692 = vpack.c.b16 %v684, %v683
      %vm693 = vcmask 261120
      %v695 = vsel %vm693, %v645, 0
      %v698 = vsel %vm693, %v646, 0
      %v701 = vsel %vm693, %v647, 0
      %v704 = vsel %vm693, %v648, 0
      %v707 = vsel %vm693, %v649, 0
      %v710 = vsel %vm693, %v650, 0
      %v713 = vsel %vm693, %v651, 0
      %v716 = vsel %vm693, %v652, 0
      %v719 = vsel %vm693, %v685, 0
      %v722 = vsel %vm693, %v686, 0
      %v725 = vsel %vm693, %v687, 0
      %v728 = vsel %vm693, %v688, 0
      %v731 = vsel %vm693, %v689, 0
      %v734 = vsel %vm693, %v690, 0
      %v737 = vsel %vm693, %v691, 0
      %v740 = vsel %vm693, %v692, 0
      %742 = vmatpush.bf16.xpose.msra.mxu0 %v740
      %743 = vmatpush.bf16.xpose.msra.mxu0 %v737
      %744 = vmatpush.bf16.xpose.msra.mxu0 %v734
      %745 = vmatpush.bf16.xpose.msra.mxu0 %v731
      %746 = vmatpush.bf16.xpose.msra.mxu0 %v728
      %747 = vmatpush.bf16.xpose.msra.mxu0 %v725
      %748 = vmatpush.bf16.xpose.msra.mxu0 %v722
      %749 = vmatpush.bf16.xpose.msra.mxu0 %v719
      %750 = vmatmul.bf16.gmra.mxu0 %v695
      %v751 = vpop.f32.mrf.mxu0
      %v752 = vadd.f32 0.0, %v751
      %v753 = vpop.f32.mrf.mxu0
      %v754 = vadd.f32 0.0, %v753
      %755 = vmatmul.bf16.gmra.mxu0 %v698
      %v756 = vpop.f32.mrf.mxu0
      %v757 = vadd.f32 0.0, %v756
      %v758 = vpop.f32.mrf.mxu0
      %v759 = vadd.f32 0.0, %v758
      %760 = vmatmul.bf16.gmra.mxu0 %v701
      %v761 = vpop.f32.mrf.mxu0
      %v762 = vadd.f32 0.0, %v761
      %v763 = vpop.f32.mrf.mxu0
      %v764 = vadd.f32 0.0, %v763
      %765 = vmatmul.bf16.gmra.mxu0 %v704
      %v766 = vpop.f32.mrf.mxu0
      %v767 = vadd.f32 0.0, %v766
      %v768 = vpop.f32.mrf.mxu0
      %v769 = vadd.f32 0.0, %v768
      %770 = vmatmul.bf16.gmra.mxu0 %v707
      %v771 = vpop.f32.mrf.mxu0
      %v772 = vadd.f32 0.0, %v771
      %v773 = vpop.f32.mrf.mxu0
      %v774 = vadd.f32 0.0, %v773
      %775 = vmatmul.bf16.gmra.mxu0 %v710
      %v776 = vpop.f32.mrf.mxu0
      %v777 = vadd.f32 0.0, %v776
      %v778 = vpop.f32.mrf.mxu0
      %v779 = vadd.f32 0.0, %v778
      %780 = vmatmul.bf16.gmra.mxu0 %v713
      %v781 = vpop.f32.mrf.mxu0
      %v782 = vadd.f32 0.0, %v781
      %v783 = vpop.f32.mrf.mxu0
      %v784 = vadd.f32 0.0, %v783
      %785 = vmatmul.bf16.gmra.mxu0 %v716
      %v786 = vpop.f32.mrf.mxu0
      %v787 = vadd.f32 0.0, %v786
      %v788 = vpop.f32.mrf.mxu0
      %v789 = vadd.f32 0.0, %v788
      %790 = vdwg.mxu0
      %v807 = vunpack.c.l.b16 %v245
      %v808 = vunpack.c.l.b16 %v246
      %v809 = vunpack.c.l.b16 %v247
      %v810 = vunpack.c.l.b16 %v248
      %v811 = vunpack.c.l.b16 %v249
      %v812 = vunpack.c.l.b16 %v250
      %v813 = vunpack.c.l.b16 %v251
      %v814 = vunpack.c.l.b16 %v252
      %v815 = vunpack.c.l.b16 %v253
      %v816 = vunpack.c.l.b16 %v254
      %v817 = vunpack.c.l.b16 %v255
      %v818 = vunpack.c.l.b16 %v256
      %v819 = vunpack.c.l.b16 %v257
      %v820 = vunpack.c.l.b16 %v258
      %v821 = vunpack.c.l.b16 %v259
      %v822 = vunpack.c.l.b16 %v260
      %v823 = vpack.c.b16 %v808, %v807
      %v824 = vpack.c.b16 %v810, %v809
      %v825 = vpack.c.b16 %v812, %v811
      %v826 = vpack.c.b16 %v814, %v813
      %v827 = vpack.c.b16 %v816, %v815
      %v828 = vpack.c.b16 %v818, %v817
      %v829 = vpack.c.b16 %v820, %v819
      %v830 = vpack.c.b16 %v822, %v821
      %v847 = vunpack.c.l.b16 %v373
      %v848 = vunpack.c.l.b16 %v374
      %v849 = vunpack.c.l.b16 %v375
      %v850 = vunpack.c.l.b16 %v376
      %v851 = vunpack.c.l.b16 %v377
      %v852 = vunpack.c.l.b16 %v378
      %v853 = vunpack.c.l.b16 %v379
      %v854 = vunpack.c.l.b16 %v380
      %v855 = vunpack.c.l.b16 %v381
      %v856 = vunpack.c.l.b16 %v382
      %v857 = vunpack.c.l.b16 %v383
      %v858 = vunpack.c.l.b16 %v384
      %v859 = vunpack.c.l.b16 %v385
      %v860 = vunpack.c.l.b16 %v386
      %v861 = vunpack.c.l.b16 %v387
      %v862 = vunpack.c.l.b16 %v388
      %v863 = vpack.c.b16 %v848, %v847
      %v864 = vpack.c.b16 %v850, %v849
      %v865 = vpack.c.b16 %v852, %v851
      %v866 = vpack.c.b16 %v854, %v853
      %v867 = vpack.c.b16 %v856, %v855
      %v868 = vpack.c.b16 %v858, %v857
      %v869 = vpack.c.b16 %v860, %v859
      %v870 = vpack.c.b16 %v862, %v861
      %v872 = vsel %vm693, %v823, 0
      %v875 = vsel %vm693, %v824, 0
      %v878 = vsel %vm693, %v825, 0
      %v881 = vsel %vm693, %v826, 0
      %v884 = vsel %vm693, %v827, 0
      %v887 = vsel %vm693, %v828, 0
      %v890 = vsel %vm693, %v829, 0
      %v893 = vsel %vm693, %v830, 0
      %v896 = vsel %vm693, %v863, 0
      %v899 = vsel %vm693, %v864, 0
      %v902 = vsel %vm693, %v865, 0
      %v905 = vsel %vm693, %v866, 0
      %v908 = vsel %vm693, %v867, 0
      %v911 = vsel %vm693, %v868, 0
      %v914 = vsel %vm693, %v869, 0
      %v917 = vsel %vm693, %v870, 0
      %919 = vmatpush.bf16.xpose.msra.mxu0 %v917
      %920 = vmatpush.bf16.xpose.msra.mxu0 %v914
      %921 = vmatpush.bf16.xpose.msra.mxu0 %v911
      %922 = vmatpush.bf16.xpose.msra.mxu0 %v908
      %923 = vmatpush.bf16.xpose.msra.mxu0 %v905
      %924 = vmatpush.bf16.xpose.msra.mxu0 %v902
      %925 = vmatpush.bf16.xpose.msra.mxu0 %v899
      %926 = vmatpush.bf16.xpose.msra.mxu0 %v896
      %927 = vmatmul.bf16.gmra.mxu0 %v872
      %v928 = vpop.f32.mrf.mxu0
      %v929 = vadd.f32 0.0, %v928
      %v930 = vpop.f32.mrf.mxu0
      %v931 = vadd.f32 0.0, %v930
      %932 = vmatmul.bf16.gmra.mxu0 %v875
      %v933 = vpop.f32.mrf.mxu0
      %v934 = vadd.f32 0.0, %v933
      %v935 = vpop.f32.mrf.mxu0
      %v936 = vadd.f32 0.0, %v935
      %937 = vmatmul.bf16.gmra.mxu0 %v878
      %v938 = vpop.f32.mrf.mxu0
      %v939 = vadd.f32 0.0, %v938
      %v940 = vpop.f32.mrf.mxu0
      %v941 = vadd.f32 0.0, %v940
      %942 = vmatmul.bf16.gmra.mxu0 %v881
      %v943 = vpop.f32.mrf.mxu0
      %v944 = vadd.f32 0.0, %v943
      %v945 = vpop.f32.mrf.mxu0
      %v946 = vadd.f32 0.0, %v945
      %947 = vmatmul.bf16.gmra.mxu0 %v884
      %v948 = vpop.f32.mrf.mxu0
      %v949 = vadd.f32 0.0, %v948
      %v950 = vpop.f32.mrf.mxu0
      %v951 = vadd.f32 0.0, %v950
      %952 = vmatmul.bf16.gmra.mxu0 %v887
      %v953 = vpop.f32.mrf.mxu0
      %v954 = vadd.f32 0.0, %v953
      %v955 = vpop.f32.mrf.mxu0
      %v956 = vadd.f32 0.0, %v955
      %957 = vmatmul.bf16.gmra.mxu0 %v890
      %v958 = vpop.f32.mrf.mxu0
      %v959 = vadd.f32 0.0, %v958
      %v960 = vpop.f32.mrf.mxu0
      %v961 = vadd.f32 0.0, %v960
      %962 = vmatmul.bf16.gmra.mxu0 %v893
      %v963 = vpop.f32.mrf.mxu0
      %v964 = vadd.f32 0.0, %v963
      %v965 = vpop.f32.mrf.mxu0
      %v966 = vadd.f32 0.0, %v965
      %967 = vdwg.mxu0
      %v984 = vunpack.c.l.b16 %v261
      %v985 = vunpack.c.l.b16 %v262
      %v986 = vunpack.c.l.b16 %v263
      %v987 = vunpack.c.l.b16 %v264
      %v988 = vunpack.c.l.b16 %v265
      %v989 = vunpack.c.l.b16 %v266
      %v990 = vunpack.c.l.b16 %v267
      %v991 = vunpack.c.l.b16 %v268
      %v992 = vunpack.c.l.b16 %v269
      %v993 = vunpack.c.l.b16 %v270
      %v994 = vunpack.c.l.b16 %v271
      %v995 = vunpack.c.l.b16 %v272
      %v996 = vunpack.c.l.b16 %v273
      %v997 = vunpack.c.l.b16 %v274
      %v998 = vunpack.c.l.b16 %v275
      %v999 = vunpack.c.l.b16 %v276
      %v1000 = vpack.c.b16 %v985, %v984
      %v1001 = vpack.c.b16 %v987, %v986
      %v1002 = vpack.c.b16 %v989, %v988
      %v1003 = vpack.c.b16 %v991, %v990
      %v1004 = vpack.c.b16 %v993, %v992
      %v1005 = vpack.c.b16 %v995, %v994
      %v1006 = vpack.c.b16 %v997, %v996
      %v1007 = vpack.c.b16 %v999, %v998
      %v1024 = vunpack.c.l.b16 %v389
      %v1025 = vunpack.c.l.b16 %v390
      %v1026 = vunpack.c.l.b16 %v391
      %v1027 = vunpack.c.l.b16 %v392
      %v1028 = vunpack.c.l.b16 %v393
      %v1029 = vunpack.c.l.b16 %v394
      %v1030 = vunpack.c.l.b16 %v395
      %v1031 = vunpack.c.l.b16 %v396
      %v1032 = vunpack.c.l.b16 %v397
      %v1033 = vunpack.c.l.b16 %v398
      %v1034 = vunpack.c.l.b16 %v399
      %v1035 = vunpack.c.l.b16 %v400
      %v1036 = vunpack.c.l.b16 %v401
      %v1037 = vunpack.c.l.b16 %v402
      %v1038 = vunpack.c.l.b16 %v403
      %v1039 = vunpack.c.l.b16 %v404
      %v1040 = vpack.c.b16 %v1025, %v1024
      %v1041 = vpack.c.b16 %v1027, %v1026
      %v1042 = vpack.c.b16 %v1029, %v1028
      %v1043 = vpack.c.b16 %v1031, %v1030
      %v1044 = vpack.c.b16 %v1033, %v1032
      %v1045 = vpack.c.b16 %v1035, %v1034
      %v1046 = vpack.c.b16 %v1037, %v1036
      %v1047 = vpack.c.b16 %v1039, %v1038
      %v1049 = vsel %vm693, %v1000, 0
      %v1052 = vsel %vm693, %v1001, 0
      %v1055 = vsel %vm693, %v1002, 0
      %v1058 = vsel %vm693, %v1003, 0
      %v1061 = vsel %vm693, %v1004, 0
      %v1064 = vsel %vm693, %v1005, 0
      %v1067 = vsel %vm693, %v1006, 0
      %v1070 = vsel %vm693, %v1007, 0
      %v1073 = vsel %vm693, %v1040, 0
      %v1076 = vsel %vm693, %v1041, 0
      %v1079 = vsel %vm693, %v1042, 0
      %v1082 = vsel %vm693, %v1043, 0
      %v1085 = vsel %vm693, %v1044, 0
      %v1088 = vsel %vm693, %v1045, 0
      %v1091 = vsel %vm693, %v1046, 0
      %v1094 = vsel %vm693, %v1047, 0
      %1096 = vmatpush.bf16.xpose.msra.mxu0 %v1094
      %1097 = vmatpush.bf16.xpose.msra.mxu0 %v1091
      %1098 = vmatpush.bf16.xpose.msra.mxu0 %v1088
      %1099 = vmatpush.bf16.xpose.msra.mxu0 %v1085
      %1100 = vmatpush.bf16.xpose.msra.mxu0 %v1082
      %1101 = vmatpush.bf16.xpose.msra.mxu0 %v1079
      %1102 = vmatpush.bf16.xpose.msra.mxu0 %v1076
      %1103 = vmatpush.bf16.xpose.msra.mxu0 %v1073
      %1104 = vmatmul.bf16.gmra.mxu0 %v1049
      %v1105 = vpop.f32.mrf.mxu0
      %v1106 = vadd.f32 0.0, %v1105
      %v1107 = vpop.f32.mrf.mxu0
      %v1108 = vadd.f32 0.0, %v1107
      %1109 = vmatmul.bf16.gmra.mxu0 %v1052
      %v1110 = vpop.f32.mrf.mxu0
      %v1111 = vadd.f32 0.0, %v1110
      %v1112 = vpop.f32.mrf.mxu0
      %v1113 = vadd.f32 0.0, %v1112
      %1114 = vmatmul.bf16.gmra.mxu0 %v1055
      %v1115 = vpop.f32.mrf.mxu0
      %v1116 = vadd.f32 0.0, %v1115
      %v1117 = vpop.f32.mrf.mxu0
      %v1118 = vadd.f32 0.0, %v1117
      %1119 = vmatmul.bf16.gmra.mxu0 %v1058
      %v1120 = vpop.f32.mrf.mxu0
      %v1121 = vadd.f32 0.0, %v1120
      %v1122 = vpop.f32.mrf.mxu0
      %v1123 = vadd.f32 0.0, %v1122
      %1124 = vmatmul.bf16.gmra.mxu0 %v1061
      %v1125 = vpop.f32.mrf.mxu0
      %v1126 = vadd.f32 0.0, %v1125
      %v1127 = vpop.f32.mrf.mxu0
      %v1128 = vadd.f32 0.0, %v1127
      %1129 = vmatmul.bf16.gmra.mxu0 %v1064
      %v1130 = vpop.f32.mrf.mxu0
      %v1131 = vadd.f32 0.0, %v1130
      %v1132 = vpop.f32.mrf.mxu0
      %v1133 = vadd.f32 0.0, %v1132
      %1134 = vmatmul.bf16.gmra.mxu0 %v1067
      %v1135 = vpop.f32.mrf.mxu0
      %v1136 = vadd.f32 0.0, %v1135
      %v1137 = vpop.f32.mrf.mxu0
      %v1138 = vadd.f32 0.0, %v1137
      %1139 = vmatmul.bf16.gmra.mxu0 %v1070
      %v1140 = vpop.f32.mrf.mxu0
      %v1141 = vadd.f32 0.0, %v1140
      %v1142 = vpop.f32.mrf.mxu0
      %v1143 = vadd.f32 0.0, %v1142
      %1144 = vdwg.mxu0
      %v1161 = vunpack.c.l.b16 %v277
      %v1162 = vunpack.c.l.b16 %v278
      %v1163 = vunpack.c.l.b16 %v279
      %v1164 = vunpack.c.l.b16 %v280
      %v1165 = vunpack.c.l.b16 %v281
      %v1166 = vunpack.c.l.b16 %v282
      %v1167 = vunpack.c.l.b16 %v283
      %v1168 = vunpack.c.l.b16 %v284
      %v1169 = vunpack.c.l.b16 %v285
      %v1170 = vunpack.c.l.b16 %v286
      %v1171 = vunpack.c.l.b16 %v287
      %v1172 = vunpack.c.l.b16 %v288
      %v1173 = vunpack.c.l.b16 %v289
      %v1174 = vunpack.c.l.b16 %v290
      %v1175 = vunpack.c.l.b16 %v291
      %v1176 = vunpack.c.l.b16 %v292
      %v1177 = vpack.c.b16 %v1162, %v1161
      %v1178 = vpack.c.b16 %v1164, %v1163
      %v1179 = vpack.c.b16 %v1166, %v1165
      %v1180 = vpack.c.b16 %v1168, %v1167
      %v1181 = vpack.c.b16 %v1170, %v1169
      %v1182 = vpack.c.b16 %v1172, %v1171
      %v1183 = vpack.c.b16 %v1174, %v1173
      %v1184 = vpack.c.b16 %v1176, %v1175
      %v1201 = vunpack.c.l.b16 %v405
      %v1202 = vunpack.c.l.b16 %v406
      %v1203 = vunpack.c.l.b16 %v407
      %v1204 = vunpack.c.l.b16 %v408
      %v1205 = vunpack.c.l.b16 %v409
      %v1206 = vunpack.c.l.b16 %v410
      %v1207 = vunpack.c.l.b16 %v411
      %v1208 = vunpack.c.l.b16 %v412
      %v1209 = vunpack.c.l.b16 %v413
      %v1210 = vunpack.c.l.b16 %v414
      %v1211 = vunpack.c.l.b16 %v415
      %v1212 = vunpack.c.l.b16 %v416
      %v1213 = vunpack.c.l.b16 %v417
      %v1214 = vunpack.c.l.b16 %v418
      %v1215 = vunpack.c.l.b16 %v419
      %v1216 = vunpack.c.l.b16 %v420
      %v1217 = vpack.c.b16 %v1202, %v1201
      %v1218 = vpack.c.b16 %v1204, %v1203
      %v1219 = vpack.c.b16 %v1206, %v1205
      %v1220 = vpack.c.b16 %v1208, %v1207
      %v1221 = vpack.c.b16 %v1210, %v1209
      %v1222 = vpack.c.b16 %v1212, %v1211
      %v1223 = vpack.c.b16 %v1214, %v1213
      %v1224 = vpack.c.b16 %v1216, %v1215
      %v1226 = vsel %vm693, %v1177, 0
      %v1229 = vsel %vm693, %v1178, 0
      %v1232 = vsel %vm693, %v1179, 0
      %v1235 = vsel %vm693, %v1180, 0
      %v1238 = vsel %vm693, %v1181, 0
      %v1241 = vsel %vm693, %v1182, 0
      %v1244 = vsel %vm693, %v1183, 0
      %v1247 = vsel %vm693, %v1184, 0
      %v1250 = vsel %vm693, %v1217, 0
      %v1253 = vsel %vm693, %v1218, 0
      %v1256 = vsel %vm693, %v1219, 0
      %v1259 = vsel %vm693, %v1220, 0
      %v1262 = vsel %vm693, %v1221, 0
      %v1265 = vsel %vm693, %v1222, 0
      %v1268 = vsel %vm693, %v1223, 0
      %v1271 = vsel %vm693, %v1224, 0
      %1273 = vmatpush.bf16.xpose.msra.mxu0 %v1271
      %1274 = vmatpush.bf16.xpose.msra.mxu0 %v1268
      %1275 = vmatpush.bf16.xpose.msra.mxu0 %v1265
      %1276 = vmatpush.bf16.xpose.msra.mxu0 %v1262
      %1277 = vmatpush.bf16.xpose.msra.mxu0 %v1259
      %1278 = vmatpush.bf16.xpose.msra.mxu0 %v1256
      %1279 = vmatpush.bf16.xpose.msra.mxu0 %v1253
      %1280 = vmatpush.bf16.xpose.msra.mxu0 %v1250
      %1281 = vmatmul.bf16.gmra.mxu0 %v1226
      %v1282 = vpop.f32.mrf.mxu0
      %v1283 = vadd.f32 0.0, %v1282
      %v1284 = vpop.f32.mrf.mxu0
      %v1285 = vadd.f32 0.0, %v1284
      %1286 = vmatmul.bf16.gmra.mxu0 %v1229
      %v1287 = vpop.f32.mrf.mxu0
      %v1288 = vadd.f32 0.0, %v1287
      %v1289 = vpop.f32.mrf.mxu0
      %v1290 = vadd.f32 0.0, %v1289
      %1291 = vmatmul.bf16.gmra.mxu0 %v1232
      %v1292 = vpop.f32.mrf.mxu0
      %v1293 = vadd.f32 0.0, %v1292
      %v1294 = vpop.f32.mrf.mxu0
      %v1295 = vadd.f32 0.0, %v1294
      %1296 = vmatmul.bf16.gmra.mxu0 %v1235
      %v1297 = vpop.f32.mrf.mxu0
      %v1298 = vadd.f32 0.0, %v1297
      %v1299 = vpop.f32.mrf.mxu0
      %v1300 = vadd.f32 0.0, %v1299
      %1301 = vmatmul.bf16.gmra.mxu0 %v1238
      %v1302 = vpop.f32.mrf.mxu0
      %v1303 = vadd.f32 0.0, %v1302
      %v1304 = vpop.f32.mrf.mxu0
      %v1305 = vadd.f32 0.0, %v1304
      %1306 = vmatmul.bf16.gmra.mxu0 %v1241
      %v1307 = vpop.f32.mrf.mxu0
      %v1308 = vadd.f32 0.0, %v1307
      %v1309 = vpop.f32.mrf.mxu0
      %v1310 = vadd.f32 0.0, %v1309
      %1311 = vmatmul.bf16.gmra.mxu0 %v1244
      %v1312 = vpop.f32.mrf.mxu0
      %v1313 = vadd.f32 0.0, %v1312
      %v1314 = vpop.f32.mrf.mxu0
      %v1315 = vadd.f32 0.0, %v1314
      %1316 = vmatmul.bf16.gmra.mxu0 %v1247
      %v1317 = vpop.f32.mrf.mxu0
      %v1318 = vadd.f32 0.0, %v1317
      %v1319 = vpop.f32.mrf.mxu0
      %v1320 = vadd.f32 0.0, %v1319
      %1321 = vdwg.mxu0
      %v1338 = vunpack.c.l.b16 %v293
      %v1339 = vunpack.c.l.b16 %v294
      %v1340 = vunpack.c.l.b16 %v295
      %v1341 = vunpack.c.l.b16 %v296
      %v1342 = vunpack.c.l.b16 %v297
      %v1343 = vunpack.c.l.b16 %v298
      %v1344 = vunpack.c.l.b16 %v299
      %v1345 = vunpack.c.l.b16 %v300
      %v1346 = vunpack.c.l.b16 %v301
      %v1347 = vunpack.c.l.b16 %v302
      %v1348 = vunpack.c.l.b16 %v303
      %v1349 = vunpack.c.l.b16 %v304
      %v1350 = vunpack.c.l.b16 %v305
      %v1351 = vunpack.c.l.b16 %v306
      %v1352 = vunpack.c.l.b16 %v307
      %v1353 = vunpack.c.l.b16 %v308
      %v1354 = vpack.c.b16 %v1339, %v1338
      %v1355 = vpack.c.b16 %v1341, %v1340
      %v1356 = vpack.c.b16 %v1343, %v1342
      %v1357 = vpack.c.b16 %v1345, %v1344
      %v1358 = vpack.c.b16 %v1347, %v1346
      %v1359 = vpack.c.b16 %v1349, %v1348
      %v1360 = vpack.c.b16 %v1351, %v1350
      %v1361 = vpack.c.b16 %v1353, %v1352
      %v1378 = vunpack.c.l.b16 %v421
      %v1379 = vunpack.c.l.b16 %v422
      %v1380 = vunpack.c.l.b16 %v423
      %v1381 = vunpack.c.l.b16 %v424
      %v1382 = vunpack.c.l.b16 %v425
      %v1383 = vunpack.c.l.b16 %v426
      %v1384 = vunpack.c.l.b16 %v427
      %v1385 = vunpack.c.l.b16 %v428
      %v1386 = vunpack.c.l.b16 %v429
      %v1387 = vunpack.c.l.b16 %v430
      %v1388 = vunpack.c.l.b16 %v431
      %v1389 = vunpack.c.l.b16 %v432
      %v1390 = vunpack.c.l.b16 %v433
      %v1391 = vunpack.c.l.b16 %v434
      %v1392 = vunpack.c.l.b16 %v435
      %v1393 = vunpack.c.l.b16 %v436
      %v1394 = vpack.c.b16 %v1379, %v1378
      %v1395 = vpack.c.b16 %v1381, %v1380
      %v1396 = vpack.c.b16 %v1383, %v1382
      %v1397 = vpack.c.b16 %v1385, %v1384
      %v1398 = vpack.c.b16 %v1387, %v1386
      %v1399 = vpack.c.b16 %v1389, %v1388
      %v1400 = vpack.c.b16 %v1391, %v1390
      %v1401 = vpack.c.b16 %v1393, %v1392
      %v1403 = vsel %vm693, %v1354, 0
      %v1406 = vsel %vm693, %v1355, 0
      %v1409 = vsel %vm693, %v1356, 0
      %v1412 = vsel %vm693, %v1357, 0
      %v1415 = vsel %vm693, %v1358, 0
      %v1418 = vsel %vm693, %v1359, 0
      %v1421 = vsel %vm693, %v1360, 0
      %v1424 = vsel %vm693, %v1361, 0
      %v1427 = vsel %vm693, %v1394, 0
      %v1430 = vsel %vm693, %v1395, 0
      %v1433 = vsel %vm693, %v1396, 0
      %v1436 = vsel %vm693, %v1397, 0
      %v1439 = vsel %vm693, %v1398, 0
      %v1442 = vsel %vm693, %v1399, 0
      %v1445 = vsel %vm693, %v1400, 0
      %v1448 = vsel %vm693, %v1401, 0
      %1450 = vmatpush.bf16.xpose.msra.mxu0 %v1448
      %1451 = vmatpush.bf16.xpose.msra.mxu0 %v1445
      %1452 = vmatpush.bf16.xpose.msra.mxu0 %v1442
      %1453 = vmatpush.bf16.xpose.msra.mxu0 %v1439
      %1454 = vmatpush.bf16.xpose.msra.mxu0 %v1436
      %1455 = vmatpush.bf16.xpose.msra.mxu0 %v1433
      %1456 = vmatpush.bf16.xpose.msra.mxu0 %v1430
      %1457 = vmatpush.bf16.xpose.msra.mxu0 %v1427
      %1458 = vmatmul.bf16.gmra.mxu0 %v1403
      %v1459 = vpop.f32.mrf.mxu0
      %v1460 = vadd.f32 0.0, %v1459
      %v1461 = vpop.f32.mrf.mxu0
      %v1462 = vadd.f32 0.0, %v1461
      %1463 = vmatmul.bf16.gmra.mxu0 %v1406
      %v1464 = vpop.f32.mrf.mxu0
      %v1465 = vadd.f32 0.0, %v1464
      %v1466 = vpop.f32.mrf.mxu0
      %v1467 = vadd.f32 0.0, %v1466
      %1468 = vmatmul.bf16.gmra.mxu0 %v1409
      %v1469 = vpop.f32.mrf.mxu0
      %v1470 = vadd.f32 0.0, %v1469
      %v1471 = vpop.f32.mrf.mxu0
      %v1472 = vadd.f32 0.0, %v1471
      %1473 = vmatmul.bf16.gmra.mxu0 %v1412
      %v1474 = vpop.f32.mrf.mxu0
      %v1475 = vadd.f32 0.0, %v1474
      %v1476 = vpop.f32.mrf.mxu0
      %v1477 = vadd.f32 0.0, %v1476
      %1478 = vmatmul.bf16.gmra.mxu0 %v1415
      %v1479 = vpop.f32.mrf.mxu0
      %v1480 = vadd.f32 0.0, %v1479
      %v1481 = vpop.f32.mrf.mxu0
      %v1482 = vadd.f32 0.0, %v1481
      %1483 = vmatmul.bf16.gmra.mxu0 %v1418
      %v1484 = vpop.f32.mrf.mxu0
      %v1485 = vadd.f32 0.0, %v1484
      %v1486 = vpop.f32.mrf.mxu0
      %v1487 = vadd.f32 0.0, %v1486
      %1488 = vmatmul.bf16.gmra.mxu0 %v1421
      %v1489 = vpop.f32.mrf.mxu0
      %v1490 = vadd.f32 0.0, %v1489
      %v1491 = vpop.f32.mrf.mxu0
      %v1492 = vadd.f32 0.0, %v1491
      %1493 = vmatmul.bf16.gmra.mxu0 %v1424
      %v1494 = vpop.f32.mrf.mxu0
      %v1495 = vadd.f32 0.0, %v1494
      %v1496 = vpop.f32.mrf.mxu0
      %v1497 = vadd.f32 0.0, %v1496
      %1498 = vdwg.mxu0
      %v1515 = vunpack.c.l.b16 %v309
      %v1516 = vunpack.c.l.b16 %v310
      %v1517 = vunpack.c.l.b16 %v311
      %v1518 = vunpack.c.l.b16 %v312
      %v1519 = vunpack.c.l.b16 %v313
      %v1520 = vunpack.c.l.b16 %v314
      %v1521 = vunpack.c.l.b16 %v315
      %v1522 = vunpack.c.l.b16 %v316
      %v1523 = vunpack.c.l.b16 %v317
      %v1524 = vunpack.c.l.b16 %v318
      %v1525 = vunpack.c.l.b16 %v319
      %v1526 = vunpack.c.l.b16 %v320
      %v1527 = vunpack.c.l.b16 %v321
      %v1528 = vunpack.c.l.b16 %v322
      %v1529 = vunpack.c.l.b16 %v323
      %v1530 = vunpack.c.l.b16 %v324
      %v1531 = vpack.c.b16 %v1516, %v1515
      %v1532 = vpack.c.b16 %v1518, %v1517
      %v1533 = vpack.c.b16 %v1520, %v1519
      %v1534 = vpack.c.b16 %v1522, %v1521
      %v1535 = vpack.c.b16 %v1524, %v1523
      %v1536 = vpack.c.b16 %v1526, %v1525
      %v1537 = vpack.c.b16 %v1528, %v1527
      %v1538 = vpack.c.b16 %v1530, %v1529
      %v1555 = vunpack.c.l.b16 %v437
      %v1556 = vunpack.c.l.b16 %v438
      %v1557 = vunpack.c.l.b16 %v439
      %v1558 = vunpack.c.l.b16 %v440
      %v1559 = vunpack.c.l.b16 %v441
      %v1560 = vunpack.c.l.b16 %v442
      %v1561 = vunpack.c.l.b16 %v443
      %v1562 = vunpack.c.l.b16 %v444
      %v1563 = vunpack.c.l.b16 %v445
      %v1564 = vunpack.c.l.b16 %v446
      %v1565 = vunpack.c.l.b16 %v447
      %v1566 = vunpack.c.l.b16 %v448
      %v1567 = vunpack.c.l.b16 %v449
      %v1568 = vunpack.c.l.b16 %v450
      %v1569 = vunpack.c.l.b16 %v451
      %v1570 = vunpack.c.l.b16 %v452
      %v1571 = vpack.c.b16 %v1556, %v1555
      %v1572 = vpack.c.b16 %v1558, %v1557
      %v1573 = vpack.c.b16 %v1560, %v1559
      %v1574 = vpack.c.b16 %v1562, %v1561
      %v1575 = vpack.c.b16 %v1564, %v1563
      %v1576 = vpack.c.b16 %v1566, %v1565
      %v1577 = vpack.c.b16 %v1568, %v1567
      %v1578 = vpack.c.b16 %v1570, %v1569
      %v1580 = vsel %vm693, %v1531, 0
      %v1583 = vsel %vm693, %v1532, 0
      %v1586 = vsel %vm693, %v1533, 0
      %v1589 = vsel %vm693, %v1534, 0
      %v1592 = vsel %vm693, %v1535, 0
      %v1595 = vsel %vm693, %v1536, 0
      %v1598 = vsel %vm693, %v1537, 0
      %v1601 = vsel %vm693, %v1538, 0
      %v1604 = vsel %vm693, %v1571, 0
      %v1607 = vsel %vm693, %v1572, 0
      %v1610 = vsel %vm693, %v1573, 0
      %v1613 = vsel %vm693, %v1574, 0
      %v1616 = vsel %vm693, %v1575, 0
      %v1619 = vsel %vm693, %v1576, 0
      %v1622 = vsel %vm693, %v1577, 0
      %v1625 = vsel %vm693, %v1578, 0
      %1627 = vmatpush.bf16.xpose.msra.mxu0 %v1625
      %1628 = vmatpush.bf16.xpose.msra.mxu0 %v1622
      %1629 = vmatpush.bf16.xpose.msra.mxu0 %v1619
      %1630 = vmatpush.bf16.xpose.msra.mxu0 %v1616
      %1631 = vmatpush.bf16.xpose.msra.mxu0 %v1613
      %1632 = vmatpush.bf16.xpose.msra.mxu0 %v1610
      %1633 = vmatpush.bf16.xpose.msra.mxu0 %v1607
      %1634 = vmatpush.bf16.xpose.msra.mxu0 %v1604
      %1635 = vmatmul.bf16.gmra.mxu0 %v1580
      %v1636 = vpop.f32.mrf.mxu0
      %v1637 = vadd.f32 0.0, %v1636
      %v1638 = vpop.f32.mrf.mxu0
      %v1639 = vadd.f32 0.0, %v1638
      %1640 = vmatmul.bf16.gmra.mxu0 %v1583
      %v1641 = vpop.f32.mrf.mxu0
      %v1642 = vadd.f32 0.0, %v1641
      %v1643 = vpop.f32.mrf.mxu0
      %v1644 = vadd.f32 0.0, %v1643
      %1645 = vmatmul.bf16.gmra.mxu0 %v1586
      %v1646 = vpop.f32.mrf.mxu0
      %v1647 = vadd.f32 0.0, %v1646
      %v1648 = vpop.f32.mrf.mxu0
      %v1649 = vadd.f32 0.0, %v1648
      %1650 = vmatmul.bf16.gmra.mxu0 %v1589
      %v1651 = vpop.f32.mrf.mxu0
      %v1652 = vadd.f32 0.0, %v1651
      %v1653 = vpop.f32.mrf.mxu0
      %v1654 = vadd.f32 0.0, %v1653
      %1655 = vmatmul.bf16.gmra.mxu0 %v1592
      %v1656 = vpop.f32.mrf.mxu0
      %v1657 = vadd.f32 0.0, %v1656
      %v1658 = vpop.f32.mrf.mxu0
      %v1659 = vadd.f32 0.0, %v1658
      %1660 = vmatmul.bf16.gmra.mxu0 %v1595
      %v1661 = vpop.f32.mrf.mxu0
      %v1662 = vadd.f32 0.0, %v1661
      %v1663 = vpop.f32.mrf.mxu0
      %v1664 = vadd.f32 0.0, %v1663
      %1665 = vmatmul.bf16.gmra.mxu0 %v1598
      %v1666 = vpop.f32.mrf.mxu0
      %v1667 = vadd.f32 0.0, %v1666
      %v1668 = vpop.f32.mrf.mxu0
      %v1669 = vadd.f32 0.0, %v1668
      %1670 = vmatmul.bf16.gmra.mxu0 %v1601
      %v1671 = vpop.f32.mrf.mxu0
      %v1672 = vadd.f32 0.0, %v1671
      %v1673 = vpop.f32.mrf.mxu0
      %v1674 = vadd.f32 0.0, %v1673
      %1675 = vdwg.mxu0
      %v1692 = vunpack.c.l.b16 %v325
      %v1693 = vunpack.c.l.b16 %v326
      %v1694 = vunpack.c.l.b16 %v327
      %v1695 = vunpack.c.l.b16 %v328
      %v1696 = vunpack.c.l.b16 %v329
      %v1697 = vunpack.c.l.b16 %v330
      %v1698 = vunpack.c.l.b16 %v331
      %v1699 = vunpack.c.l.b16 %v332
      %v1700 = vunpack.c.l.b16 %v333
      %v1701 = vunpack.c.l.b16 %v334
      %v1702 = vunpack.c.l.b16 %v335
      %v1703 = vunpack.c.l.b16 %v336
      %v1704 = vunpack.c.l.b16 %v337
      %v1705 = vunpack.c.l.b16 %v338
      %v1706 = vunpack.c.l.b16 %v339
      %v1707 = vunpack.c.l.b16 %v340
      %v1708 = vpack.c.b16 %v1693, %v1692
      %v1709 = vpack.c.b16 %v1695, %v1694
      %v1710 = vpack.c.b16 %v1697, %v1696
      %v1711 = vpack.c.b16 %v1699, %v1698
      %v1712 = vpack.c.b16 %v1701, %v1700
      %v1713 = vpack.c.b16 %v1703, %v1702
      %v1714 = vpack.c.b16 %v1705, %v1704
      %v1715 = vpack.c.b16 %v1707, %v1706
      %v1732 = vunpack.c.l.b16 %v453
      %v1733 = vunpack.c.l.b16 %v454
      %v1734 = vunpack.c.l.b16 %v455
      %v1735 = vunpack.c.l.b16 %v456
      %v1736 = vunpack.c.l.b16 %v457
      %v1737 = vunpack.c.l.b16 %v458
      %v1738 = vunpack.c.l.b16 %v459
      %v1739 = vunpack.c.l.b16 %v460
      %v1740 = vunpack.c.l.b16 %v461
      %v1741 = vunpack.c.l.b16 %v462
      %v1742 = vunpack.c.l.b16 %v463
      %v1743 = vunpack.c.l.b16 %v464
      %v1744 = vunpack.c.l.b16 %v465
      %v1745 = vunpack.c.l.b16 %v466
      %v1746 = vunpack.c.l.b16 %v467
      %v1747 = vunpack.c.l.b16 %v468
      %v1748 = vpack.c.b16 %v1733, %v1732
      %v1749 = vpack.c.b16 %v1735, %v1734
      %v1750 = vpack.c.b16 %v1737, %v1736
      %v1751 = vpack.c.b16 %v1739, %v1738
      %v1752 = vpack.c.b16 %v1741, %v1740
      %v1753 = vpack.c.b16 %v1743, %v1742
      %v1754 = vpack.c.b16 %v1745, %v1744
      %v1755 = vpack.c.b16 %v1747, %v1746
      %v1757 = vsel %vm693, %v1708, 0
      %v1760 = vsel %vm693, %v1709, 0
      %v1763 = vsel %vm693, %v1710, 0
      %v1766 = vsel %vm693, %v1711, 0
      %v1769 = vsel %vm693, %v1712, 0
      %v1772 = vsel %vm693, %v1713, 0
      %v1775 = vsel %vm693, %v1714, 0
      %v1778 = vsel %vm693, %v1715, 0
      %v1781 = vsel %vm693, %v1748, 0
      %v1784 = vsel %vm693, %v1749, 0
      %v1787 = vsel %vm693, %v1750, 0
      %v1790 = vsel %vm693, %v1751, 0
      %v1793 = vsel %vm693, %v1752, 0
      %v1796 = vsel %vm693, %v1753, 0
      %v1799 = vsel %vm693, %v1754, 0
      %v1802 = vsel %vm693, %v1755, 0
      %1804 = vmatpush.bf16.xpose.msra.mxu0 %v1802
      %1805 = vmatpush.bf16.xpose.msra.mxu0 %v1799
      %1806 = vmatpush.bf16.xpose.msra.mxu0 %v1796
      %1807 = vmatpush.bf16.xpose.msra.mxu0 %v1793
      %1808 = vmatpush.bf16.xpose.msra.mxu0 %v1790
      %1809 = vmatpush.bf16.xpose.msra.mxu0 %v1787
      %1810 = vmatpush.bf16.xpose.msra.mxu0 %v1784
      %1811 = vmatpush.bf16.xpose.msra.mxu0 %v1781
      %1812 = vmatmul.bf16.gmra.mxu0 %v1757
      %v1813 = vpop.f32.mrf.mxu0
      %v1814 = vadd.f32 0.0, %v1813
      %v1815 = vpop.f32.mrf.mxu0
      %v1816 = vadd.f32 0.0, %v1815
      %1817 = vmatmul.bf16.gmra.mxu0 %v1760
      %v1818 = vpop.f32.mrf.mxu0
      %v1819 = vadd.f32 0.0, %v1818
      %v1820 = vpop.f32.mrf.mxu0
      %v1821 = vadd.f32 0.0, %v1820
      %1822 = vmatmul.bf16.gmra.mxu0 %v1763
      %v1823 = vpop.f32.mrf.mxu0
      %v1824 = vadd.f32 0.0, %v1823
      %v1825 = vpop.f32.mrf.mxu0
      %v1826 = vadd.f32 0.0, %v1825
      %1827 = vmatmul.bf16.gmra.mxu0 %v1766
      %v1828 = vpop.f32.mrf.mxu0
      %v1829 = vadd.f32 0.0, %v1828
      %v1830 = vpop.f32.mrf.mxu0
      %v1831 = vadd.f32 0.0, %v1830
      %1832 = vmatmul.bf16.gmra.mxu0 %v1769
      %v1833 = vpop.f32.mrf.mxu0
      %v1834 = vadd.f32 0.0, %v1833
      %v1835 = vpop.f32.mrf.mxu0
      %v1836 = vadd.f32 0.0, %v1835
      %1837 = vmatmul.bf16.gmra.mxu0 %v1772
      %v1838 = vpop.f32.mrf.mxu0
      %v1839 = vadd.f32 0.0, %v1838
      %v1840 = vpop.f32.mrf.mxu0
      %v1841 = vadd.f32 0.0, %v1840
      %1842 = vmatmul.bf16.gmra.mxu0 %v1775
      %v1843 = vpop.f32.mrf.mxu0
      %v1844 = vadd.f32 0.0, %v1843
      %v1845 = vpop.f32.mrf.mxu0
      %v1846 = vadd.f32 0.0, %v1845
      %1847 = vmatmul.bf16.gmra.mxu0 %v1778
      %v1848 = vpop.f32.mrf.mxu0
      %v1849 = vadd.f32 0.0, %v1848
      %v1850 = vpop.f32.mrf.mxu0
      %v1851 = vadd.f32 0.0, %v1850
      %1852 = vdwg.mxu0
      %v1869 = vunpack.c.l.b16 %v341
      %v1870 = vunpack.c.l.b16 %v342
      %v1871 = vunpack.c.l.b16 %v343
      %v1872 = vunpack.c.l.b16 %v344
      %v1873 = vunpack.c.l.b16 %v345
      %v1874 = vunpack.c.l.b16 %v346
      %v1875 = vunpack.c.l.b16 %v347
      %v1876 = vunpack.c.l.b16 %v348
      %v1877 = vunpack.c.l.b16 %v349
      %v1878 = vunpack.c.l.b16 %v350
      %v1879 = vunpack.c.l.b16 %v351
      %v1880 = vunpack.c.l.b16 %v352
      %v1881 = vunpack.c.l.b16 %v353
      %v1882 = vunpack.c.l.b16 %v354
      %v1883 = vunpack.c.l.b16 %v355
      %v1884 = vunpack.c.l.b16 %v356
      %v1885 = vpack.c.b16 %v1870, %v1869
      %v1886 = vpack.c.b16 %v1872, %v1871
      %v1887 = vpack.c.b16 %v1874, %v1873
      %v1888 = vpack.c.b16 %v1876, %v1875
      %v1889 = vpack.c.b16 %v1878, %v1877
      %v1890 = vpack.c.b16 %v1880, %v1879
      %v1891 = vpack.c.b16 %v1882, %v1881
      %v1892 = vpack.c.b16 %v1884, %v1883
      %v1909 = vunpack.c.l.b16 %v469
      %v1910 = vunpack.c.l.b16 %v470
      %v1911 = vunpack.c.l.b16 %v471
      %v1912 = vunpack.c.l.b16 %v472
      %v1913 = vunpack.c.l.b16 %v473
      %v1914 = vunpack.c.l.b16 %v474
      %v1915 = vunpack.c.l.b16 %v475
      %v1916 = vunpack.c.l.b16 %v476
      %v1917 = vunpack.c.l.b16 %v477
      %v1918 = vunpack.c.l.b16 %v478
      %v1919 = vunpack.c.l.b16 %v479
      %v1920 = vunpack.c.l.b16 %v480
      %v1921 = vunpack.c.l.b16 %v481
      %v1922 = vunpack.c.l.b16 %v482
      %v1923 = vunpack.c.l.b16 %v483
      %v1924 = vunpack.c.l.b16 %v484
      %v1925 = vpack.c.b16 %v1910, %v1909
      %v1926 = vpack.c.b16 %v1912, %v1911
      %v1927 = vpack.c.b16 %v1914, %v1913
      %v1928 = vpack.c.b16 %v1916, %v1915
      %v1929 = vpack.c.b16 %v1918, %v1917
      %v1930 = vpack.c.b16 %v1920, %v1919
      %v1931 = vpack.c.b16 %v1922, %v1921
      %v1932 = vpack.c.b16 %v1924, %v1923
      %v1934 = vsel %vm693, %v1885, 0
      %v1937 = vsel %vm693, %v1886, 0
      %v1940 = vsel %vm693, %v1887, 0
      %v1943 = vsel %vm693, %v1888, 0
      %v1946 = vsel %vm693, %v1889, 0
      %v1949 = vsel %vm693, %v1890, 0
      %v1952 = vsel %vm693, %v1891, 0
      %v1955 = vsel %vm693, %v1892, 0
      %v1958 = vsel %vm693, %v1925, 0
      %v1961 = vsel %vm693, %v1926, 0
      %v1964 = vsel %vm693, %v1927, 0
      %v1967 = vsel %vm693, %v1928, 0
      %v1970 = vsel %vm693, %v1929, 0
      %v1973 = vsel %vm693, %v1930, 0
      %v1976 = vsel %vm693, %v1931, 0
      %v1979 = vsel %vm693, %v1932, 0
      %1981 = vmatpush.bf16.xpose.msra.mxu0 %v1979
      %1982 = vmatpush.bf16.xpose.msra.mxu0 %v1976
      %1983 = vmatpush.bf16.xpose.msra.mxu0 %v1973
      %1984 = vmatpush.bf16.xpose.msra.mxu0 %v1970
      %1985 = vmatpush.bf16.xpose.msra.mxu0 %v1967
      %1986 = vmatpush.bf16.xpose.msra.mxu0 %v1964
      %1987 = vmatpush.bf16.xpose.msra.mxu0 %v1961
      %1988 = vmatpush.bf16.xpose.msra.mxu0 %v1958
      %1989 = vmatmul.bf16.gmra.mxu0 %v1934
      %v1990 = vpop.f32.mrf.mxu0
      %v1991 = vadd.f32 0.0, %v1990
      %v1992 = vpop.f32.mrf.mxu0
      %v1993 = vadd.f32 0.0, %v1992
      %1994 = vmatmul.bf16.gmra.mxu0 %v1937
      %v1995 = vpop.f32.mrf.mxu0
      %v1996 = vadd.f32 0.0, %v1995
      %v1997 = vpop.f32.mrf.mxu0
      %v1998 = vadd.f32 0.0, %v1997
      %1999 = vmatmul.bf16.gmra.mxu0 %v1940
      %v2000 = vpop.f32.mrf.mxu0
      %v2001 = vadd.f32 0.0, %v2000
      %v2002 = vpop.f32.mrf.mxu0
      %v2003 = vadd.f32 0.0, %v2002
      %2004 = vmatmul.bf16.gmra.mxu0 %v1943
      %v2005 = vpop.f32.mrf.mxu0
      %v2006 = vadd.f32 0.0, %v2005
      %v2007 = vpop.f32.mrf.mxu0
      %v2008 = vadd.f32 0.0, %v2007
      %2009 = vmatmul.bf16.gmra.mxu0 %v1946
      %v2010 = vpop.f32.mrf.mxu0
      %v2011 = vadd.f32 0.0, %v2010
      %v2012 = vpop.f32.mrf.mxu0
      %v2013 = vadd.f32 0.0, %v2012
      %2014 = vmatmul.bf16.gmra.mxu0 %v1949
      %v2015 = vpop.f32.mrf.mxu0
      %v2016 = vadd.f32 0.0, %v2015
      %v2017 = vpop.f32.mrf.mxu0
      %v2018 = vadd.f32 0.0, %v2017
      %2019 = vmatmul.bf16.gmra.mxu0 %v1952
      %v2020 = vpop.f32.mrf.mxu0
      %v2021 = vadd.f32 0.0, %v2020
      %v2022 = vpop.f32.mrf.mxu0
      %v2023 = vadd.f32 0.0, %v2022
      %2024 = vmatmul.bf16.gmra.mxu0 %v1955
      %v2025 = vpop.f32.mrf.mxu0
      %v2026 = vadd.f32 0.0, %v2025
      %v2027 = vpop.f32.mrf.mxu0
      %v2028 = vadd.f32 0.0, %v2027
      %2029 = vdwg.mxu0
      %v2030 = vmul.f32 %v752, 0.17677669
      %v2031 = vmul.f32 %v754, 0.17677669
      %v2032 = vmul.f32 %v757, 0.17677669
      %v2033 = vmul.f32 %v759, 0.17677669
      %v2034 = vmul.f32 %v762, 0.17677669
      %v2035 = vmul.f32 %v764, 0.17677669
      %v2036 = vmul.f32 %v767, 0.17677669
      %v2037 = vmul.f32 %v769, 0.17677669
      %v2038 = vmul.f32 %v772, 0.17677669
      %v2039 = vmul.f32 %v774, 0.17677669
      %v2040 = vmul.f32 %v777, 0.17677669
      %v2041 = vmul.f32 %v779, 0.17677669
      %v2042 = vmul.f32 %v782, 0.17677669
      %v2043 = vmul.f32 %v784, 0.17677669
      %v2044 = vmul.f32 %v787, 0.17677669
      %v2045 = vmul.f32 %v789, 0.17677669
      %v2046 = vmul.f32 %v929, 0.17677669
      %v2047 = vmul.f32 %v931, 0.17677669
      %v2048 = vmul.f32 %v934, 0.17677669
      %v2049 = vmul.f32 %v936, 0.17677669
      %v2050 = vmul.f32 %v939, 0.17677669
      %v2051 = vmul.f32 %v941, 0.17677669
      %v2052 = vmul.f32 %v944, 0.17677669
      %v2053 = vmul.f32 %v946, 0.17677669
      %v2054 = vmul.f32 %v949, 0.17677669
      %v2055 = vmul.f32 %v951, 0.17677669
      %v2056 = vmul.f32 %v954, 0.17677669
      %v2057 = vmul.f32 %v956, 0.17677669
      %v2058 = vmul.f32 %v959, 0.17677669
      %v2059 = vmul.f32 %v961, 0.17677669
      %v2060 = vmul.f32 %v964, 0.17677669
      %v2061 = vmul.f32 %v966, 0.17677669
      %v2062 = vmul.f32 %v1106, 0.17677669
      %v2063 = vmul.f32 %v1108, 0.17677669
      %v2064 = vmul.f32 %v1111, 0.17677669
      %v2065 = vmul.f32 %v1113, 0.17677669
      %v2066 = vmul.f32 %v1116, 0.17677669
      %v2067 = vmul.f32 %v1118, 0.17677669
      %v2068 = vmul.f32 %v1121, 0.17677669
      %v2069 = vmul.f32 %v1123, 0.17677669
      %v2070 = vmul.f32 %v1126, 0.17677669
      %v2071 = vmul.f32 %v1128, 0.17677669
      %v2072 = vmul.f32 %v1131, 0.17677669
      %v2073 = vmul.f32 %v1133, 0.17677669
      %v2074 = vmul.f32 %v1136, 0.17677669
      %v2075 = vmul.f32 %v1138, 0.17677669
      %v2076 = vmul.f32 %v1141, 0.17677669
      %v2077 = vmul.f32 %v1143, 0.17677669
      %v2078 = vmul.f32 %v1283, 0.17677669
      %v2079 = vmul.f32 %v1285, 0.17677669
      %v2080 = vmul.f32 %v1288, 0.17677669
      %v2081 = vmul.f32 %v1290, 0.17677669
      %v2082 = vmul.f32 %v1293, 0.17677669
      %v2083 = vmul.f32 %v1295, 0.17677669
      %v2084 = vmul.f32 %v1298, 0.17677669
      %v2085 = vmul.f32 %v1300, 0.17677669
      %v2086 = vmul.f32 %v1303, 0.17677669
      %v2087 = vmul.f32 %v1305, 0.17677669
      %v2088 = vmul.f32 %v1308, 0.17677669
      %v2089 = vmul.f32 %v1310, 0.17677669
      %v2090 = vmul.f32 %v1313, 0.17677669
      %v2091 = vmul.f32 %v1315, 0.17677669
      %v2092 = vmul.f32 %v1318, 0.17677669
      %v2093 = vmul.f32 %v1320, 0.17677669
      %v2094 = vmul.f32 %v1460, 0.17677669
      %v2095 = vmul.f32 %v1462, 0.17677669
      %v2096 = vmul.f32 %v1465, 0.17677669
      %v2097 = vmul.f32 %v1467, 0.17677669
      %v2098 = vmul.f32 %v1470, 0.17677669
      %v2099 = vmul.f32 %v1472, 0.17677669
      %v2100 = vmul.f32 %v1475, 0.17677669
      %v2101 = vmul.f32 %v1477, 0.17677669
      %v2102 = vmul.f32 %v1480, 0.17677669
      %v2103 = vmul.f32 %v1482, 0.17677669
      %v2104 = vmul.f32 %v1485, 0.17677669
      %v2105 = vmul.f32 %v1487, 0.17677669
      %v2106 = vmul.f32 %v1490, 0.17677669
      %v2107 = vmul.f32 %v1492, 0.17677669
      %v2108 = vmul.f32 %v1495, 0.17677669
      %v2109 = vmul.f32 %v1497, 0.17677669
      %v2110 = vmul.f32 %v1637, 0.17677669
      %v2111 = vmul.f32 %v1639, 0.17677669
      %v2112 = vmul.f32 %v1642, 0.17677669
      %v2113 = vmul.f32 %v1644, 0.17677669
      %v2114 = vmul.f32 %v1647, 0.17677669
      %v2115 = vmul.f32 %v1649, 0.17677669
      %v2116 = vmul.f32 %v1652, 0.17677669
      %v2117 = vmul.f32 %v1654, 0.17677669
      %v2118 = vmul.f32 %v1657, 0.17677669
      %v2119 = vmul.f32 %v1659, 0.17677669
      %v2120 = vmul.f32 %v1662, 0.17677669
      %v2121 = vmul.f32 %v1664, 0.17677669
      %v2122 = vmul.f32 %v1667, 0.17677669
      %v2123 = vmul.f32 %v1669, 0.17677669
      %v2124 = vmul.f32 %v1672, 0.17677669
      %v2125 = vmul.f32 %v1674, 0.17677669
      %v2126 = vmul.f32 %v1814, 0.17677669
      %v2127 = vmul.f32 %v1816, 0.17677669
      %v2128 = vmul.f32 %v1819, 0.17677669
      %v2129 = vmul.f32 %v1821, 0.17677669
      %v2130 = vmul.f32 %v1824, 0.17677669
      %v2131 = vmul.f32 %v1826, 0.17677669
      %v2132 = vmul.f32 %v1829, 0.17677669
      %v2133 = vmul.f32 %v1831, 0.17677669
      %v2134 = vmul.f32 %v1834, 0.17677669
      %v2135 = vmul.f32 %v1836, 0.17677669
      %v2136 = vmul.f32 %v1839, 0.17677669
      %v2137 = vmul.f32 %v1841, 0.17677669
      %v2138 = vmul.f32 %v1844, 0.17677669
      %v2139 = vmul.f32 %v1846, 0.17677669
      %v2140 = vmul.f32 %v1849, 0.17677669
      %v2141 = vmul.f32 %v1851, 0.17677669
      %v2142 = vmul.f32 %v1991, 0.17677669
      %v2143 = vmul.f32 %v1993, 0.17677669
      %v2144 = vmul.f32 %v1996, 0.17677669
      %v2145 = vmul.f32 %v1998, 0.17677669
      %v2146 = vmul.f32 %v2001, 0.17677669
      %v2147 = vmul.f32 %v2003, 0.17677669
      %v2148 = vmul.f32 %v2006, 0.17677669
      %v2149 = vmul.f32 %v2008, 0.17677669
      %v2150 = vmul.f32 %v2011, 0.17677669
      %v2151 = vmul.f32 %v2013, 0.17677669
      %v2152 = vmul.f32 %v2016, 0.17677669
      %v2153 = vmul.f32 %v2018, 0.17677669
      %v2154 = vmul.f32 %v2021, 0.17677669
      %v2155 = vmul.f32 %v2023, 0.17677669
      %v2156 = vmul.f32 %v2026, 0.17677669
      %v2157 = vmul.f32 %v2028, 0.17677669
      %2158 = vmax.xlane.f32.xlu0 %v2030
      %v2159 = vpop.xlane.xlu0 %2158
      %2160 = vmax.xlane.f32.xlu0 %v2031
      %v2161 = vpop.xlane.xlu0 %2160
      %2162 = vmax.xlane.f32.xlu0 %v2032
      %v2163 = vpop.xlane.xlu0 %2162
      %2164 = vmax.xlane.f32.xlu0 %v2033
      %v2165 = vpop.xlane.xlu0 %2164
      %2166 = vmax.xlane.f32.xlu0 %v2034
      %v2167 = vpop.xlane.xlu0 %2166
      %2168 = vmax.xlane.f32.xlu0 %v2035
      %v2169 = vpop.xlane.xlu0 %2168
      %2170 = vmax.xlane.f32.xlu0 %v2036
      %v2171 = vpop.xlane.xlu0 %2170
      %2172 = vmax.xlane.f32.xlu0 %v2037
      %v2173 = vpop.xlane.xlu0 %2172
      %2174 = vmax.xlane.f32.xlu0 %v2038
      %v2175 = vpop.xlane.xlu0 %2174
      %2176 = vmax.xlane.f32.xlu0 %v2039
      %v2177 = vpop.xlane.xlu0 %2176
      %2178 = vmax.xlane.f32.xlu0 %v2040
      %v2179 = vpop.xlane.xlu0 %2178
      %2180 = vmax.xlane.f32.xlu0 %v2041
      %v2181 = vpop.xlane.xlu0 %2180
      %2182 = vmax.xlane.f32.xlu0 %v2042
      %v2183 = vpop.xlane.xlu0 %2182
      %2184 = vmax.xlane.f32.xlu0 %v2043
      %v2185 = vpop.xlane.xlu0 %2184
      %2186 = vmax.xlane.f32.xlu0 %v2044
      %v2187 = vpop.xlane.xlu0 %2186
      %2188 = vmax.xlane.f32.xlu0 %v2045
      %v2189 = vpop.xlane.xlu0 %2188
      %2190 = vmax.xlane.f32.xlu0 %v2046
      %v2191 = vpop.xlane.xlu0 %2190
      %2192 = vmax.xlane.f32.xlu0 %v2047
      %v2193 = vpop.xlane.xlu0 %2192
      %2194 = vmax.xlane.f32.xlu0 %v2048
      %v2195 = vpop.xlane.xlu0 %2194
      %2196 = vmax.xlane.f32.xlu0 %v2049
      %v2197 = vpop.xlane.xlu0 %2196
      %2198 = vmax.xlane.f32.xlu0 %v2050
      %v2199 = vpop.xlane.xlu0 %2198
      %2200 = vmax.xlane.f32.xlu0 %v2051
      %v2201 = vpop.xlane.xlu0 %2200
      %2202 = vmax.xlane.f32.xlu0 %v2052
      %v2203 = vpop.xlane.xlu0 %2202
      %2204 = vmax.xlane.f32.xlu0 %v2053
      %v2205 = vpop.xlane.xlu0 %2204
      %2206 = vmax.xlane.f32.xlu0 %v2054
      %v2207 = vpop.xlane.xlu0 %2206
      %2208 = vmax.xlane.f32.xlu0 %v2055
      %v2209 = vpop.xlane.xlu0 %2208
      %2210 = vmax.xlane.f32.xlu0 %v2056
      %v2211 = vpop.xlane.xlu0 %2210
      %2212 = vmax.xlane.f32.xlu0 %v2057
      %v2213 = vpop.xlane.xlu0 %2212
      %2214 = vmax.xlane.f32.xlu0 %v2058
      %v2215 = vpop.xlane.xlu0 %2214
      %2216 = vmax.xlane.f32.xlu0 %v2059
      %v2217 = vpop.xlane.xlu0 %2216
      %2218 = vmax.xlane.f32.xlu0 %v2060
      %v2219 = vpop.xlane.xlu0 %2218
      %2220 = vmax.xlane.f32.xlu0 %v2061
      %v2221 = vpop.xlane.xlu0 %2220
      %2222 = vmax.xlane.f32.xlu0 %v2062
      %v2223 = vpop.xlane.xlu0 %2222
      %2224 = vmax.xlane.f32.xlu0 %v2063
      %v2225 = vpop.xlane.xlu0 %2224
      %2226 = vmax.xlane.f32.xlu0 %v2064
      %v2227 = vpop.xlane.xlu0 %2226
      %2228 = vmax.xlane.f32.xlu0 %v2065
      %v2229 = vpop.xlane.xlu0 %2228
      %2230 = vmax.xlane.f32.xlu0 %v2066
      %v2231 = vpop.xlane.xlu0 %2230
      %2232 = vmax.xlane.f32.xlu0 %v2067
      %v2233 = vpop.xlane.xlu0 %2232
      %2234 = vmax.xlane.f32.xlu0 %v2068
      %v2235 = vpop.xlane.xlu0 %2234
      %2236 = vmax.xlane.f32.xlu0 %v2069
      %v2237 = vpop.xlane.xlu0 %2236
      %2238 = vmax.xlane.f32.xlu0 %v2070
      %v2239 = vpop.xlane.xlu0 %2238
      %2240 = vmax.xlane.f32.xlu0 %v2071
      %v2241 = vpop.xlane.xlu0 %2240
      %2242 = vmax.xlane.f32.xlu0 %v2072
      %v2243 = vpop.xlane.xlu0 %2242
      %2244 = vmax.xlane.f32.xlu0 %v2073
      %v2245 = vpop.xlane.xlu0 %2244
      %2246 = vmax.xlane.f32.xlu0 %v2074
      %v2247 = vpop.xlane.xlu0 %2246
      %2248 = vmax.xlane.f32.xlu0 %v2075
      %v2249 = vpop.xlane.xlu0 %2248
      %2250 = vmax.xlane.f32.xlu0 %v2076
      %v2251 = vpop.xlane.xlu0 %2250
      %2252 = vmax.xlane.f32.xlu0 %v2077
      %v2253 = vpop.xlane.xlu0 %2252
      %2254 = vmax.xlane.f32.xlu0 %v2078
      %v2255 = vpop.xlane.xlu0 %2254
      %2256 = vmax.xlane.f32.xlu0 %v2079
      %v2257 = vpop.xlane.xlu0 %2256
      %2258 = vmax.xlane.f32.xlu0 %v2080
      %v2259 = vpop.xlane.xlu0 %2258
      %2260 = vmax.xlane.f32.xlu0 %v2081
      %v2261 = vpop.xlane.xlu0 %2260
      %2262 = vmax.xlane.f32.xlu0 %v2082
      %v2263 = vpop.xlane.xlu0 %2262
      %2264 = vmax.xlane.f32.xlu0 %v2083
      %v2265 = vpop.xlane.xlu0 %2264
      %2266 = vmax.xlane.f32.xlu0 %v2084
      %v2267 = vpop.xlane.xlu0 %2266
      %2268 = vmax.xlane.f32.xlu0 %v2085
      %v2269 = vpop.xlane.xlu0 %2268
      %2270 = vmax.xlane.f32.xlu0 %v2086
      %v2271 = vpop.xlane.xlu0 %2270
      %2272 = vmax.xlane.f32.xlu0 %v2087
      %v2273 = vpop.xlane.xlu0 %2272
      %2274 = vmax.xlane.f32.xlu0 %v2088
      %v2275 = vpop.xlane.xlu0 %2274
      %2276 = vmax.xlane.f32.xlu0 %v2089
      %v2277 = vpop.xlane.xlu0 %2276
      %2278 = vmax.xlane.f32.xlu0 %v2090
      %v2279 = vpop.xlane.xlu0 %2278
      %2280 = vmax.xlane.f32.xlu0 %v2091
      %v2281 = vpop.xlane.xlu0 %2280
      %2282 = vmax.xlane.f32.xlu0 %v2092
      %v2283 = vpop.xlane.xlu0 %2282
      %2284 = vmax.xlane.f32.xlu0 %v2093
      %v2285 = vpop.xlane.xlu0 %2284
      %2286 = vmax.xlane.f32.xlu0 %v2094
      %v2287 = vpop.xlane.xlu0 %2286
      %2288 = vmax.xlane.f32.xlu0 %v2095
      %v2289 = vpop.xlane.xlu0 %2288
      %2290 = vmax.xlane.f32.xlu0 %v2096
      %v2291 = vpop.xlane.xlu0 %2290
      %2292 = vmax.xlane.f32.xlu0 %v2097
      %v2293 = vpop.xlane.xlu0 %2292
      %2294 = vmax.xlane.f32.xlu0 %v2098
      %v2295 = vpop.xlane.xlu0 %2294
      %2296 = vmax.xlane.f32.xlu0 %v2099
      %v2297 = vpop.xlane.xlu0 %2296
      %2298 = vmax.xlane.f32.xlu0 %v2100
      %v2299 = vpop.xlane.xlu0 %2298
      %2300 = vmax.xlane.f32.xlu0 %v2101
      %v2301 = vpop.xlane.xlu0 %2300
      %2302 = vmax.xlane.f32.xlu0 %v2102
      %v2303 = vpop.xlane.xlu0 %2302
      %2304 = vmax.xlane.f32.xlu0 %v2103
      %v2305 = vpop.xlane.xlu0 %2304
      %2306 = vmax.xlane.f32.xlu0 %v2104
      %v2307 = vpop.xlane.xlu0 %2306
      %2308 = vmax.xlane.f32.xlu0 %v2105
      %v2309 = vpop.xlane.xlu0 %2308
      %2310 = vmax.xlane.f32.xlu0 %v2106
      %v2311 = vpop.xlane.xlu0 %2310
      %2312 = vmax.xlane.f32.xlu0 %v2107
      %v2313 = vpop.xlane.xlu0 %2312
      %2314 = vmax.xlane.f32.xlu0 %v2108
      %v2315 = vpop.xlane.xlu0 %2314
      %2316 = vmax.xlane.f32.xlu0 %v2109
      %v2317 = vpop.xlane.xlu0 %2316
      %2318 = vmax.xlane.f32.xlu0 %v2110
      %v2319 = vpop.xlane.xlu0 %2318
      %2320 = vmax.xlane.f32.xlu0 %v2111
      %v2321 = vpop.xlane.xlu0 %2320
      %2322 = vmax.xlane.f32.xlu0 %v2112
      %v2323 = vpop.xlane.xlu0 %2322
      %2324 = vmax.xlane.f32.xlu0 %v2113
      %v2325 = vpop.xlane.xlu0 %2324
      %2326 = vmax.xlane.f32.xlu0 %v2114
      %v2327 = vpop.xlane.xlu0 %2326
      %2328 = vmax.xlane.f32.xlu0 %v2115
      %v2329 = vpop.xlane.xlu0 %2328
      %2330 = vmax.xlane.f32.xlu0 %v2116
      %v2331 = vpop.xlane.xlu0 %2330
      %2332 = vmax.xlane.f32.xlu0 %v2117
      %v2333 = vpop.xlane.xlu0 %2332
      %2334 = vmax.xlane.f32.xlu0 %v2118
      %v2335 = vpop.xlane.xlu0 %2334
      %2336 = vmax.xlane.f32.xlu0 %v2119
      %v2337 = vpop.xlane.xlu0 %2336
      %2338 = vmax.xlane.f32.xlu0 %v2120
      %v2339 = vpop.xlane.xlu0 %2338
      %2340 = vmax.xlane.f32.xlu0 %v2121
      %v2341 = vpop.xlane.xlu0 %2340
      %2342 = vmax.xlane.f32.xlu0 %v2122
      %v2343 = vpop.xlane.xlu0 %2342
      %2344 = vmax.xlane.f32.xlu0 %v2123
      %v2345 = vpop.xlane.xlu0 %2344
      %2346 = vmax.xlane.f32.xlu0 %v2124
      %v2347 = vpop.xlane.xlu0 %2346
      %2348 = vmax.xlane.f32.xlu0 %v2125
      %v2349 = vpop.xlane.xlu0 %2348
      %2350 = vmax.xlane.f32.xlu0 %v2126
      %v2351 = vpop.xlane.xlu0 %2350
      %2352 = vmax.xlane.f32.xlu0 %v2127
      %v2353 = vpop.xlane.xlu0 %2352
      %2354 = vmax.xlane.f32.xlu0 %v2128
      %v2355 = vpop.xlane.xlu0 %2354
      %2356 = vmax.xlane.f32.xlu0 %v2129
      %v2357 = vpop.xlane.xlu0 %2356
      %2358 = vmax.xlane.f32.xlu0 %v2130
      %v2359 = vpop.xlane.xlu0 %2358
      %2360 = vmax.xlane.f32.xlu0 %v2131
      %v2361 = vpop.xlane.xlu0 %2360
      %2362 = vmax.xlane.f32.xlu0 %v2132
      %v2363 = vpop.xlane.xlu0 %2362
      %2364 = vmax.xlane.f32.xlu0 %v2133
      %v2365 = vpop.xlane.xlu0 %2364
      %2366 = vmax.xlane.f32.xlu0 %v2134
      %v2367 = vpop.xlane.xlu0 %2366
      %2368 = vmax.xlane.f32.xlu0 %v2135
      %v2369 = vpop.xlane.xlu0 %2368
      %2370 = vmax.xlane.f32.xlu0 %v2136
      %v2371 = vpop.xlane.xlu0 %2370
      %2372 = vmax.xlane.f32.xlu0 %v2137
      %v2373 = vpop.xlane.xlu0 %2372
      %2374 = vmax.xlane.f32.xlu0 %v2138
      %v2375 = vpop.xlane.xlu0 %2374
      %2376 = vmax.xlane.f32.xlu0 %v2139
      %v2377 = vpop.xlane.xlu0 %2376
      %2378 = vmax.xlane.f32.xlu0 %v2140
      %v2379 = vpop.xlane.xlu0 %2378
      %2380 = vmax.xlane.f32.xlu0 %v2141
      %v2381 = vpop.xlane.xlu0 %2380
      %2382 = vmax.xlane.f32.xlu0 %v2142
      %v2383 = vpop.xlane.xlu0 %2382
      %2384 = vmax.xlane.f32.xlu0 %v2143
      %v2385 = vpop.xlane.xlu0 %2384
      %2386 = vmax.xlane.f32.xlu0 %v2144
      %v2387 = vpop.xlane.xlu0 %2386
      %2388 = vmax.xlane.f32.xlu0 %v2145
      %v2389 = vpop.xlane.xlu0 %2388
      %2390 = vmax.xlane.f32.xlu0 %v2146
      %v2391 = vpop.xlane.xlu0 %2390
      %2392 = vmax.xlane.f32.xlu0 %v2147
      %v2393 = vpop.xlane.xlu0 %2392
      %2394 = vmax.xlane.f32.xlu0 %v2148
      %v2395 = vpop.xlane.xlu0 %2394
      %2396 = vmax.xlane.f32.xlu0 %v2149
      %v2397 = vpop.xlane.xlu0 %2396
      %2398 = vmax.xlane.f32.xlu0 %v2150
      %v2399 = vpop.xlane.xlu0 %2398
      %2400 = vmax.xlane.f32.xlu0 %v2151
      %v2401 = vpop.xlane.xlu0 %2400
      %2402 = vmax.xlane.f32.xlu0 %v2152
      %v2403 = vpop.xlane.xlu0 %2402
      %2404 = vmax.xlane.f32.xlu0 %v2153
      %v2405 = vpop.xlane.xlu0 %2404
      %2406 = vmax.xlane.f32.xlu0 %v2154
      %v2407 = vpop.xlane.xlu0 %2406
      %2408 = vmax.xlane.f32.xlu0 %v2155
      %v2409 = vpop.xlane.xlu0 %2408
      %2410 = vmax.xlane.f32.xlu0 %v2156
      %v2411 = vpop.xlane.xlu0 %2410
      %2412 = vmax.xlane.f32.xlu0 %v2157
      %v2413 = vpop.xlane.xlu0 %2412
      %v2414 = vsub.f32 %v2030, %v2159
      %v2415 = vsub.f32 %v2031, %v2161
      %v2416 = vsub.f32 %v2032, %v2163
      %v2417 = vsub.f32 %v2033, %v2165
      %v2418 = vsub.f32 %v2034, %v2167
      %v2419 = vsub.f32 %v2035, %v2169
      %v2420 = vsub.f32 %v2036, %v2171
      %v2421 = vsub.f32 %v2037, %v2173
      %v2422 = vsub.f32 %v2038, %v2175
      %v2423 = vsub.f32 %v2039, %v2177
      %v2424 = vsub.f32 %v2040, %v2179
      %v2425 = vsub.f32 %v2041, %v2181
      %v2426 = vsub.f32 %v2042, %v2183
      %v2427 = vsub.f32 %v2043, %v2185
      %v2428 = vsub.f32 %v2044, %v2187
      %v2429 = vsub.f32 %v2045, %v2189
      %v2430 = vsub.f32 %v2046, %v2191
      %v2431 = vsub.f32 %v2047, %v2193
      %v2432 = vsub.f32 %v2048, %v2195
      %v2433 = vsub.f32 %v2049, %v2197
      %v2434 = vsub.f32 %v2050, %v2199
      %v2435 = vsub.f32 %v2051, %v2201
      %v2436 = vsub.f32 %v2052, %v2203
      %v2437 = vsub.f32 %v2053, %v2205
      %v2438 = vsub.f32 %v2054, %v2207
      %v2439 = vsub.f32 %v2055, %v2209
      %v2440 = vsub.f32 %v2056, %v2211
      %v2441 = vsub.f32 %v2057, %v2213
      %v2442 = vsub.f32 %v2058, %v2215
      %v2443 = vsub.f32 %v2059, %v2217
      %v2444 = vsub.f32 %v2060, %v2219
      %v2445 = vsub.f32 %v2061, %v2221
      %v2446 = vsub.f32 %v2062, %v2223
      %v2447 = vsub.f32 %v2063, %v2225
      %v2448 = vsub.f32 %v2064, %v2227
      %v2449 = vsub.f32 %v2065, %v2229
      %v2450 = vsub.f32 %v2066, %v2231
      %v2451 = vsub.f32 %v2067, %v2233
      %v2452 = vsub.f32 %v2068, %v2235
      %v2453 = vsub.f32 %v2069, %v2237
      %v2454 = vsub.f32 %v2070, %v2239
      %v2455 = vsub.f32 %v2071, %v2241
      %v2456 = vsub.f32 %v2072, %v2243
      %v2457 = vsub.f32 %v2073, %v2245
      %v2458 = vsub.f32 %v2074, %v2247
      %v2459 = vsub.f32 %v2075, %v2249
      %v2460 = vsub.f32 %v2076, %v2251
      %v2461 = vsub.f32 %v2077, %v2253
      %v2462 = vsub.f32 %v2078, %v2255
      %v2463 = vsub.f32 %v2079, %v2257
      %v2464 = vsub.f32 %v2080, %v2259
      %v2465 = vsub.f32 %v2081, %v2261
      %v2466 = vsub.f32 %v2082, %v2263
      %v2467 = vsub.f32 %v2083, %v2265
      %v2468 = vsub.f32 %v2084, %v2267
      %v2469 = vsub.f32 %v2085, %v2269
      %v2470 = vsub.f32 %v2086, %v2271
      %v2471 = vsub.f32 %v2087, %v2273
      %v2472 = vsub.f32 %v2088, %v2275
      %v2473 = vsub.f32 %v2089, %v2277
      %v2474 = vsub.f32 %v2090, %v2279
      %v2475 = vsub.f32 %v2091, %v2281
      %v2476 = vsub.f32 %v2092, %v2283
      %v2477 = vsub.f32 %v2093, %v2285
      %v2478 = vsub.f32 %v2094, %v2287
      %v2479 = vsub.f32 %v2095, %v2289
      %v2480 = vsub.f32 %v2096, %v2291
      %v2481 = vsub.f32 %v2097, %v2293
      %v2482 = vsub.f32 %v2098, %v2295
      %v2483 = vsub.f32 %v2099, %v2297
      %v2484 = vsub.f32 %v2100, %v2299
      %v2485 = vsub.f32 %v2101, %v2301
      %v2486 = vsub.f32 %v2102, %v2303
      %v2487 = vsub.f32 %v2103, %v2305
      %v2488 = vsub.f32 %v2104, %v2307
      %v2489 = vsub.f32 %v2105, %v2309
      %v2490 = vsub.f32 %v2106, %v2311
      %v2491 = vsub.f32 %v2107, %v2313
      %v2492 = vsub.f32 %v2108, %v2315
      %v2493 = vsub.f32 %v2109, %v2317
      %v2494 = vsub.f32 %v2110, %v2319
      %v2495 = vsub.f32 %v2111, %v2321
      %v2496 = vsub.f32 %v2112, %v2323
      %v2497 = vsub.f32 %v2113, %v2325
      %v2498 = vsub.f32 %v2114, %v2327
      %v2499 = vsub.f32 %v2115, %v2329
      %v2500 = vsub.f32 %v2116, %v2331
      %v2501 = vsub.f32 %v2117, %v2333
      %v2502 = vsub.f32 %v2118, %v2335
      %v2503 = vsub.f32 %v2119, %v2337
      %v2504 = vsub.f32 %v2120, %v2339
      %v2505 = vsub.f32 %v2121, %v2341
      %v2506 = vsub.f32 %v2122, %v2343
      %v2507 = vsub.f32 %v2123, %v2345
      %v2508 = vsub.f32 %v2124, %v2347
      %v2509 = vsub.f32 %v2125, %v2349
      %v2510 = vsub.f32 %v2126, %v2351
      %v2511 = vsub.f32 %v2127, %v2353
      %v2512 = vsub.f32 %v2128, %v2355
      %v2513 = vsub.f32 %v2129, %v2357
      %v2514 = vsub.f32 %v2130, %v2359
      %v2515 = vsub.f32 %v2131, %v2361
      %v2516 = vsub.f32 %v2132, %v2363
      %v2517 = vsub.f32 %v2133, %v2365
      %v2518 = vsub.f32 %v2134, %v2367
      %v2519 = vsub.f32 %v2135, %v2369
      %v2520 = vsub.f32 %v2136, %v2371
      %v2521 = vsub.f32 %v2137, %v2373
      %v2522 = vsub.f32 %v2138, %v2375
      %v2523 = vsub.f32 %v2139, %v2377
      %v2524 = vsub.f32 %v2140, %v2379
      %v2525 = vsub.f32 %v2141, %v2381
      %v2526 = vsub.f32 %v2142, %v2383
      %v2527 = vsub.f32 %v2143, %v2385
      %v2528 = vsub.f32 %v2144, %v2387
      %v2529 = vsub.f32 %v2145, %v2389
      %v2530 = vsub.f32 %v2146, %v2391
      %v2531 = vsub.f32 %v2147, %v2393
      %v2532 = vsub.f32 %v2148, %v2395
      %v2533 = vsub.f32 %v2149, %v2397
      %v2534 = vsub.f32 %v2150, %v2399
      %v2535 = vsub.f32 %v2151, %v2401
      %v2536 = vsub.f32 %v2152, %v2403
      %v2537 = vsub.f32 %v2153, %v2405
      %v2538 = vsub.f32 %v2154, %v2407
      %v2539 = vsub.f32 %v2155, %v2409
      %v2540 = vsub.f32 %v2156, %v2411
      %v2541 = vsub.f32 %v2157, %v2413
      %v2542 = vmul.f32 %v2414, 1.442695
      %v2543 = vpow.pop %v2542
      %v2544 = vmul.f32 %v2415, 1.442695
      %v2545 = vpow.pop %v2544
      %v2546 = vmul.f32 %v2416, 1.442695
      %v2547 = vpow.pop %v2546
      %v2548 = vmul.f32 %v2417, 1.442695
      %v2549 = vpow.pop %v2548
      %v2550 = vmul.f32 %v2418, 1.442695
      %v2551 = vpow.pop %v2550
      %v2552 = vmul.f32 %v2419, 1.442695
      %v2553 = vpow.pop %v2552
      %v2554 = vmul.f32 %v2420, 1.442695
      %v2555 = vpow.pop %v2554
      %v2556 = vmul.f32 %v2421, 1.442695
      %v2557 = vpow.pop %v2556
      %v2558 = vmul.f32 %v2422, 1.442695
      %v2559 = vpow.pop %v2558
      %v2560 = vmul.f32 %v2423, 1.442695
      %v2561 = vpow.pop %v2560
      %v2562 = vmul.f32 %v2424, 1.442695
      %v2563 = vpow.pop %v2562
      %v2564 = vmul.f32 %v2425, 1.442695
      %v2565 = vpow.pop %v2564
      %v2566 = vmul.f32 %v2426, 1.442695
      %v2567 = vpow.pop %v2566
      %v2568 = vmul.f32 %v2427, 1.442695
      %v2569 = vpow.pop %v2568
      %v2570 = vmul.f32 %v2428, 1.442695
      %v2571 = vpow.pop %v2570
      %v2572 = vmul.f32 %v2429, 1.442695
      %v2573 = vpow.pop %v2572
      %v2574 = vmul.f32 %v2430, 1.442695
      %v2575 = vpow.pop %v2574
      %v2576 = vmul.f32 %v2431, 1.442695
      %v2577 = vpow.pop %v2576
      %v2578 = vmul.f32 %v2432, 1.442695
      %v2579 = vpow.pop %v2578
      %v2580 = vmul.f32 %v2433, 1.442695
      %v2581 = vpow.pop %v2580
      %v2582 = vmul.f32 %v2434, 1.442695
      %v2583 = vpow.pop %v2582
      %v2584 = vmul.f32 %v2435, 1.442695
      %v2585 = vpow.pop %v2584
      %v2586 = vmul.f32 %v2436, 1.442695
      %v2587 = vpow.pop %v2586
      %v2588 = vmul.f32 %v2437, 1.442695
      %v2589 = vpow.pop %v2588
      %v2590 = vmul.f32 %v2438, 1.442695
      %v2591 = vpow.pop %v2590
      %v2592 = vmul.f32 %v2439, 1.442695
      %v2593 = vpow.pop %v2592
      %v2594 = vmul.f32 %v2440, 1.442695
      %v2595 = vpow.pop %v2594
      %v2596 = vmul.f32 %v2441, 1.442695
      %v2597 = vpow.pop %v2596
      %v2598 = vmul.f32 %v2442, 1.442695
      %v2599 = vpow.pop %v2598
      %v2600 = vmul.f32 %v2443, 1.442695
      %v2601 = vpow.pop %v2600
      %v2602 = vmul.f32 %v2444, 1.442695
      %v2603 = vpow.pop %v2602
      %v2604 = vmul.f32 %v2445, 1.442695
      %v2605 = vpow.pop %v2604
      %v2606 = vmul.f32 %v2446, 1.442695
      %v2607 = vpow.pop %v2606
      %v2608 = vmul.f32 %v2447, 1.442695
      %v2609 = vpow.pop %v2608
      %v2610 = vmul.f32 %v2448, 1.442695
      %v2611 = vpow.pop %v2610
      %v2612 = vmul.f32 %v2449, 1.442695
      %v2613 = vpow.pop %v2612
      %v2614 = vmul.f32 %v2450, 1.442695
      %v2615 = vpow.pop %v2614
      %v2616 = vmul.f32 %v2451, 1.442695
      %v2617 = vpow.pop %v2616
      %v2618 = vmul.f32 %v2452, 1.442695
      %v2619 = vpow.pop %v2618
      %v2620 = vmul.f32 %v2453, 1.442695
      %v2621 = vpow.pop %v2620
      %v2622 = vmul.f32 %v2454, 1.442695
      %v2623 = vpow.pop %v2622
      %v2624 = vmul.f32 %v2455, 1.442695
      %v2625 = vpow.pop %v2624
      %v2626 = vmul.f32 %v2456, 1.442695
      %v2627 = vpow.pop %v2626
      %v2628 = vmul.f32 %v2457, 1.442695
      %v2629 = vpow.pop %v2628
      %v2630 = vmul.f32 %v2458, 1.442695
      %v2631 = vpow.pop %v2630
      %v2632 = vmul.f32 %v2459, 1.442695
      %v2633 = vpow.pop %v2632
      %v2634 = vmul.f32 %v2460, 1.442695
      %v2635 = vpow.pop %v2634
      %v2636 = vmul.f32 %v2461, 1.442695
      %v2637 = vpow.pop %v2636
      %v2638 = vmul.f32 %v2462, 1.442695
      %v2639 = vpow.pop %v2638
      %v2640 = vmul.f32 %v2463, 1.442695
      %v2641 = vpow.pop %v2640
      %v2642 = vmul.f32 %v2464, 1.442695
      %v2643 = vpow.pop %v2642
      %v2644 = vmul.f32 %v2465, 1.442695
      %v2645 = vpow.pop %v2644
      %v2646 = vmul.f32 %v2466, 1.442695
      %v2647 = vpow.pop %v2646
      %v2648 = vmul.f32 %v2467, 1.442695
      %v2649 = vpow.pop %v2648
      %v2650 = vmul.f32 %v2468, 1.442695
      %v2651 = vpow.pop %v2650
      %v2652 = vmul.f32 %v2469, 1.442695
      %v2653 = vpow.pop %v2652
      %v2654 = vmul.f32 %v2470, 1.442695
      %v2655 = vpow.pop %v2654
      %v2656 = vmul.f32 %v2471, 1.442695
      %v2657 = vpow.pop %v2656
      %v2658 = vmul.f32 %v2472, 1.442695
      %v2659 = vpow.pop %v2658
      %v2660 = vmul.f32 %v2473, 1.442695
      %v2661 = vpow.pop %v2660
      %v2662 = vmul.f32 %v2474, 1.442695
      %v2663 = vpow.pop %v2662
      %v2664 = vmul.f32 %v2475, 1.442695
      %v2665 = vpow.pop %v2664
      %v2666 = vmul.f32 %v2476, 1.442695
      %v2667 = vpow.pop %v2666
      %v2668 = vmul.f32 %v2477, 1.442695
      %v2669 = vpow.pop %v2668
      %v2670 = vmul.f32 %v2478, 1.442695
      %v2671 = vpow.pop %v2670
      %v2672 = vmul.f32 %v2479, 1.442695
      %v2673 = vpow.pop %v2672
      %v2674 = vmul.f32 %v2480, 1.442695
      %v2675 = vpow.pop %v2674
      %v2676 = vmul.f32 %v2481, 1.442695
      %v2677 = vpow.pop %v2676
      %v2678 = vmul.f32 %v2482, 1.442695
      %v2679 = vpow.pop %v2678
      %v2680 = vmul.f32 %v2483, 1.442695
      %v2681 = vpow.pop %v2680
      %v2682 = vmul.f32 %v2484, 1.442695
      %v2683 = vpow.pop %v2682
      %v2684 = vmul.f32 %v2485, 1.442695
      %v2685 = vpow.pop %v2684
      %v2686 = vmul.f32 %v2486, 1.442695
      %v2687 = vpow.pop %v2686
      %v2688 = vmul.f32 %v2487, 1.442695
      %v2689 = vpow.pop %v2688
      %v2690 = vmul.f32 %v2488, 1.442695
      %v2691 = vpow.pop %v2690
      %v2692 = vmul.f32 %v2489, 1.442695
      %v2693 = vpow.pop %v2692
      %v2694 = vmul.f32 %v2490, 1.442695
      %v2695 = vpow.pop %v2694
      %v2696 = vmul.f32 %v2491, 1.442695
      %v2697 = vpow.pop %v2696
      %v2698 = vmul.f32 %v2492, 1.442695
      %v2699 = vpow.pop %v2698
      %v2700 = vmul.f32 %v2493, 1.442695
      %v2701 = vpow.pop %v2700
      %v2702 = vmul.f32 %v2494, 1.442695
      %v2703 = vpow.pop %v2702
      %v2704 = vmul.f32 %v2495, 1.442695
      %v2705 = vpow.pop %v2704
      %v2706 = vmul.f32 %v2496, 1.442695
      %v2707 = vpow.pop %v2706
      %v2708 = vmul.f32 %v2497, 1.442695
      %v2709 = vpow.pop %v2708
      %v2710 = vmul.f32 %v2498, 1.442695
      %v2711 = vpow.pop %v2710
      %v2712 = vmul.f32 %v2499, 1.442695
      %v2713 = vpow.pop %v2712
      %v2714 = vmul.f32 %v2500, 1.442695
      %v2715 = vpow.pop %v2714
      %v2716 = vmul.f32 %v2501, 1.442695
      %v2717 = vpow.pop %v2716
      %v2718 = vmul.f32 %v2502, 1.442695
      %v2719 = vpow.pop %v2718
      %v2720 = vmul.f32 %v2503, 1.442695
      %v2721 = vpow.pop %v2720
      %v2722 = vmul.f32 %v2504, 1.442695
      %v2723 = vpow.pop %v2722
      %v2724 = vmul.f32 %v2505, 1.442695
      %v2725 = vpow.pop %v2724
      %v2726 = vmul.f32 %v2506, 1.442695
      %v2727 = vpow.pop %v2726
      %v2728 = vmul.f32 %v2507, 1.442695
      %v2729 = vpow.pop %v2728
      %v2730 = vmul.f32 %v2508, 1.442695
      %v2731 = vpow.pop %v2730
      %v2732 = vmul.f32 %v2509, 1.442695
      %v2733 = vpow.pop %v2732
      %v2734 = vmul.f32 %v2510, 1.442695
      %v2735 = vpow.pop %v2734
      %v2736 = vmul.f32 %v2511, 1.442695
      %v2737 = vpow.pop %v2736
      %v2738 = vmul.f32 %v2512, 1.442695
      %v2739 = vpow.pop %v2738
      %v2740 = vmul.f32 %v2513, 1.442695
      %v2741 = vpow.pop %v2740
      %v2742 = vmul.f32 %v2514, 1.442695
      %v2743 = vpow.pop %v2742
      %v2744 = vmul.f32 %v2515, 1.442695
      %v2745 = vpow.pop %v2744
      %v2746 = vmul.f32 %v2516, 1.442695
      %v2747 = vpow.pop %v2746
      %v2748 = vmul.f32 %v2517, 1.442695
      %v2749 = vpow.pop %v2748
      %v2750 = vmul.f32 %v2518, 1.442695
      %v2751 = vpow.pop %v2750
      %v2752 = vmul.f32 %v2519, 1.442695
      %v2753 = vpow.pop %v2752
      %v2754 = vmul.f32 %v2520, 1.442695
      %v2755 = vpow.pop %v2754
      %v2756 = vmul.f32 %v2521, 1.442695
      %v2757 = vpow.pop %v2756
      %v2758 = vmul.f32 %v2522, 1.442695
      %v2759 = vpow.pop %v2758
      %v2760 = vmul.f32 %v2523, 1.442695
      %v2761 = vpow.pop %v2760
      %v2762 = vmul.f32 %v2524, 1.442695
      %v2763 = vpow.pop %v2762
      %v2764 = vmul.f32 %v2525, 1.442695
      %v2765 = vpow.pop %v2764
      %v2766 = vmul.f32 %v2526, 1.442695
      %v2767 = vpow.pop %v2766
      %v2768 = vmul.f32 %v2527, 1.442695
      %v2769 = vpow.pop %v2768
      %v2770 = vmul.f32 %v2528, 1.442695
      %v2771 = vpow.pop %v2770
      %v2772 = vmul.f32 %v2529, 1.442695
      %v2773 = vpow.pop %v2772
      %v2774 = vmul.f32 %v2530, 1.442695
      %v2775 = vpow.pop %v2774
      %v2776 = vmul.f32 %v2531, 1.442695
      %v2777 = vpow.pop %v2776
      %v2778 = vmul.f32 %v2532, 1.442695
      %v2779 = vpow.pop %v2778
      %v2780 = vmul.f32 %v2533, 1.442695
      %v2781 = vpow.pop %v2780
      %v2782 = vmul.f32 %v2534, 1.442695
      %v2783 = vpow.pop %v2782
      %v2784 = vmul.f32 %v2535, 1.442695
      %v2785 = vpow.pop %v2784
      %v2786 = vmul.f32 %v2536, 1.442695
      %v2787 = vpow.pop %v2786
      %v2788 = vmul.f32 %v2537, 1.442695
      %v2789 = vpow.pop %v2788
      %v2790 = vmul.f32 %v2538, 1.442695
      %v2791 = vpow.pop %v2790
      %v2792 = vmul.f32 %v2539, 1.442695
      %v2793 = vpow.pop %v2792
      %v2794 = vmul.f32 %v2540, 1.442695
      %v2795 = vpow.pop %v2794
      %v2796 = vmul.f32 %v2541, 1.442695
      %v2797 = vpow.pop %v2796
      %2798 = vadd.xlane.f32.xlu0 %v2543
      %v2799 = vpop.xlane.xlu0 %2798
      %2800 = vadd.xlane.f32.xlu0 %v2545
      %v2801 = vpop.xlane.xlu0 %2800
      %2802 = vadd.xlane.f32.xlu0 %v2547
      %v2803 = vpop.xlane.xlu0 %2802
      %2804 = vadd.xlane.f32.xlu0 %v2549
      %v2805 = vpop.xlane.xlu0 %2804
      %2806 = vadd.xlane.f32.xlu0 %v2551
      %v2807 = vpop.xlane.xlu0 %2806
      %2808 = vadd.xlane.f32.xlu0 %v2553
      %v2809 = vpop.xlane.xlu0 %2808
      %2810 = vadd.xlane.f32.xlu0 %v2555
      %v2811 = vpop.xlane.xlu0 %2810
      %2812 = vadd.xlane.f32.xlu0 %v2557
      %v2813 = vpop.xlane.xlu0 %2812
      %2814 = vadd.xlane.f32.xlu0 %v2559
      %v2815 = vpop.xlane.xlu0 %2814
      %2816 = vadd.xlane.f32.xlu0 %v2561
      %v2817 = vpop.xlane.xlu0 %2816
      %2818 = vadd.xlane.f32.xlu0 %v2563
      %v2819 = vpop.xlane.xlu0 %2818
      %2820 = vadd.xlane.f32.xlu0 %v2565
      %v2821 = vpop.xlane.xlu0 %2820
      %2822 = vadd.xlane.f32.xlu0 %v2567
      %v2823 = vpop.xlane.xlu0 %2822
      %2824 = vadd.xlane.f32.xlu0 %v2569
      %v2825 = vpop.xlane.xlu0 %2824
      %2826 = vadd.xlane.f32.xlu0 %v2571
      %v2827 = vpop.xlane.xlu0 %2826
      %2828 = vadd.xlane.f32.xlu0 %v2573
      %v2829 = vpop.xlane.xlu0 %2828
      %2830 = vadd.xlane.f32.xlu0 %v2575
      %v2831 = vpop.xlane.xlu0 %2830
      %2832 = vadd.xlane.f32.xlu0 %v2577
      %v2833 = vpop.xlane.xlu0 %2832
      %2834 = vadd.xlane.f32.xlu0 %v2579
      %v2835 = vpop.xlane.xlu0 %2834
      %2836 = vadd.xlane.f32.xlu0 %v2581
      %v2837 = vpop.xlane.xlu0 %2836
      %2838 = vadd.xlane.f32.xlu0 %v2583
      %v2839 = vpop.xlane.xlu0 %2838
      %2840 = vadd.xlane.f32.xlu0 %v2585
      %v2841 = vpop.xlane.xlu0 %2840
      %2842 = vadd.xlane.f32.xlu0 %v2587
      %v2843 = vpop.xlane.xlu0 %2842
      %2844 = vadd.xlane.f32.xlu0 %v2589
      %v2845 = vpop.xlane.xlu0 %2844
      %2846 = vadd.xlane.f32.xlu0 %v2591
      %v2847 = vpop.xlane.xlu0 %2846
      %2848 = vadd.xlane.f32.xlu0 %v2593
      %v2849 = vpop.xlane.xlu0 %2848
      %2850 = vadd.xlane.f32.xlu0 %v2595
      %v2851 = vpop.xlane.xlu0 %2850
      %2852 = vadd.xlane.f32.xlu0 %v2597
      %v2853 = vpop.xlane.xlu0 %2852
      %2854 = vadd.xlane.f32.xlu0 %v2599
      %v2855 = vpop.xlane.xlu0 %2854
      %2856 = vadd.xlane.f32.xlu0 %v2601
      %v2857 = vpop.xlane.xlu0 %2856
      %2858 = vadd.xlane.f32.xlu0 %v2603
      %v2859 = vpop.xlane.xlu0 %2858
      %2860 = vadd.xlane.f32.xlu0 %v2605
      %v2861 = vpop.xlane.xlu0 %2860
      %2862 = vadd.xlane.f32.xlu0 %v2607
      %v2863 = vpop.xlane.xlu0 %2862
      %2864 = vadd.xlane.f32.xlu0 %v2609
      %v2865 = vpop.xlane.xlu0 %2864
      %2866 = vadd.xlane.f32.xlu0 %v2611
      %v2867 = vpop.xlane.xlu0 %2866
      %2868 = vadd.xlane.f32.xlu0 %v2613
      %v2869 = vpop.xlane.xlu0 %2868
      %2870 = vadd.xlane.f32.xlu0 %v2615
      %v2871 = vpop.xlane.xlu0 %2870
      %2872 = vadd.xlane.f32.xlu0 %v2617
      %v2873 = vpop.xlane.xlu0 %2872
      %2874 = vadd.xlane.f32.xlu0 %v2619
      %v2875 = vpop.xlane.xlu0 %2874
      %2876 = vadd.xlane.f32.xlu0 %v2621
      %v2877 = vpop.xlane.xlu0 %2876
      %2878 = vadd.xlane.f32.xlu0 %v2623
      %v2879 = vpop.xlane.xlu0 %2878
      %2880 = vadd.xlane.f32.xlu0 %v2625
      %v2881 = vpop.xlane.xlu0 %2880
      %2882 = vadd.xlane.f32.xlu0 %v2627
      %v2883 = vpop.xlane.xlu0 %2882
      %2884 = vadd.xlane.f32.xlu0 %v2629
      %v2885 = vpop.xlane.xlu0 %2884
      %2886 = vadd.xlane.f32.xlu0 %v2631
      %v2887 = vpop.xlane.xlu0 %2886
      %2888 = vadd.xlane.f32.xlu0 %v2633
      %v2889 = vpop.xlane.xlu0 %2888
      %2890 = vadd.xlane.f32.xlu0 %v2635
      %v2891 = vpop.xlane.xlu0 %2890
      %2892 = vadd.xlane.f32.xlu0 %v2637
      %v2893 = vpop.xlane.xlu0 %2892
      %2894 = vadd.xlane.f32.xlu0 %v2639
      %v2895 = vpop.xlane.xlu0 %2894
      %2896 = vadd.xlane.f32.xlu0 %v2641
      %v2897 = vpop.xlane.xlu0 %2896
      %2898 = vadd.xlane.f32.xlu0 %v2643
      %v2899 = vpop.xlane.xlu0 %2898
      %2900 = vadd.xlane.f32.xlu0 %v2645
      %v2901 = vpop.xlane.xlu0 %2900
      %2902 = vadd.xlane.f32.xlu0 %v2647
      %v2903 = vpop.xlane.xlu0 %2902
      %2904 = vadd.xlane.f32.xlu0 %v2649
      %v2905 = vpop.xlane.xlu0 %2904
      %2906 = vadd.xlane.f32.xlu0 %v2651
      %v2907 = vpop.xlane.xlu0 %2906
      %2908 = vadd.xlane.f32.xlu0 %v2653
      %v2909 = vpop.xlane.xlu0 %2908
      %2910 = vadd.xlane.f32.xlu0 %v2655
      %v2911 = vpop.xlane.xlu0 %2910
      %2912 = vadd.xlane.f32.xlu0 %v2657
      %v2913 = vpop.xlane.xlu0 %2912
      %2914 = vadd.xlane.f32.xlu0 %v2659
      %v2915 = vpop.xlane.xlu0 %2914
      %2916 = vadd.xlane.f32.xlu0 %v2661
      %v2917 = vpop.xlane.xlu0 %2916
      %2918 = vadd.xlane.f32.xlu0 %v2663
      %v2919 = vpop.xlane.xlu0 %2918
      %2920 = vadd.xlane.f32.xlu0 %v2665
      %v2921 = vpop.xlane.xlu0 %2920
      %2922 = vadd.xlane.f32.xlu0 %v2667
      %v2923 = vpop.xlane.xlu0 %2922
      %2924 = vadd.xlane.f32.xlu0 %v2669
      %v2925 = vpop.xlane.xlu0 %2924
      %2926 = vadd.xlane.f32.xlu0 %v2671
      %v2927 = vpop.xlane.xlu0 %2926
      %2928 = vadd.xlane.f32.xlu0 %v2673
      %v2929 = vpop.xlane.xlu0 %2928
      %2930 = vadd.xlane.f32.xlu0 %v2675
      %v2931 = vpop.xlane.xlu0 %2930
      %2932 = vadd.xlane.f32.xlu0 %v2677
      %v2933 = vpop.xlane.xlu0 %2932
      %2934 = vadd.xlane.f32.xlu0 %v2679
      %v2935 = vpop.xlane.xlu0 %2934
      %2936 = vadd.xlane.f32.xlu0 %v2681
      %v2937 = vpop.xlane.xlu0 %2936
      %2938 = vadd.xlane.f32.xlu0 %v2683
      %v2939 = vpop.xlane.xlu0 %2938
      %2940 = vadd.xlane.f32.xlu0 %v2685
      %v2941 = vpop.xlane.xlu0 %2940
      %2942 = vadd.xlane.f32.xlu0 %v2687
      %v2943 = vpop.xlane.xlu0 %2942
      %2944 = vadd.xlane.f32.xlu0 %v2689
      %v2945 = vpop.xlane.xlu0 %2944
      %2946 = vadd.xlane.f32.xlu0 %v2691
      %v2947 = vpop.xlane.xlu0 %2946
      %2948 = vadd.xlane.f32.xlu0 %v2693
      %v2949 = vpop.xlane.xlu0 %2948
      %2950 = vadd.xlane.f32.xlu0 %v2695
      %v2951 = vpop.xlane.xlu0 %2950
      %2952 = vadd.xlane.f32.xlu0 %v2697
      %v2953 = vpop.xlane.xlu0 %2952
      %2954 = vadd.xlane.f32.xlu0 %v2699
      %v2955 = vpop.xlane.xlu0 %2954
      %2956 = vadd.xlane.f32.xlu0 %v2701
      %v2957 = vpop.xlane.xlu0 %2956
      %2958 = vadd.xlane.f32.xlu0 %v2703
      %v2959 = vpop.xlane.xlu0 %2958
      %2960 = vadd.xlane.f32.xlu0 %v2705
      %v2961 = vpop.xlane.xlu0 %2960
      %2962 = vadd.xlane.f32.xlu0 %v2707
      %v2963 = vpop.xlane.xlu0 %2962
      %2964 = vadd.xlane.f32.xlu0 %v2709
      %v2965 = vpop.xlane.xlu0 %2964
      %2966 = vadd.xlane.f32.xlu0 %v2711
      %v2967 = vpop.xlane.xlu0 %2966
      %2968 = vadd.xlane.f32.xlu0 %v2713
      %v2969 = vpop.xlane.xlu0 %2968
      %2970 = vadd.xlane.f32.xlu0 %v2715
      %v2971 = vpop.xlane.xlu0 %2970
      %2972 = vadd.xlane.f32.xlu0 %v2717
      %v2973 = vpop.xlane.xlu0 %2972
      %2974 = vadd.xlane.f32.xlu0 %v2719
      %v2975 = vpop.xlane.xlu0 %2974
      %2976 = vadd.xlane.f32.xlu0 %v2721
      %v2977 = vpop.xlane.xlu0 %2976
      %2978 = vadd.xlane.f32.xlu0 %v2723
      %v2979 = vpop.xlane.xlu0 %2978
      %2980 = vadd.xlane.f32.xlu0 %v2725
      %v2981 = vpop.xlane.xlu0 %2980
      %2982 = vadd.xlane.f32.xlu0 %v2727
      %v2983 = vpop.xlane.xlu0 %2982
      %2984 = vadd.xlane.f32.xlu0 %v2729
      %v2985 = vpop.xlane.xlu0 %2984
      %2986 = vadd.xlane.f32.xlu0 %v2731
      %v2987 = vpop.xlane.xlu0 %2986
      %2988 = vadd.xlane.f32.xlu0 %v2733
      %v2989 = vpop.xlane.xlu0 %2988
      %2990 = vadd.xlane.f32.xlu0 %v2735
      %v2991 = vpop.xlane.xlu0 %2990
      %2992 = vadd.xlane.f32.xlu0 %v2737
      %v2993 = vpop.xlane.xlu0 %2992
      %2994 = vadd.xlane.f32.xlu0 %v2739
      %v2995 = vpop.xlane.xlu0 %2994
      %2996 = vadd.xlane.f32.xlu0 %v2741
      %v2997 = vpop.xlane.xlu0 %2996
      %2998 = vadd.xlane.f32.xlu0 %v2743
      %v2999 = vpop.xlane.xlu0 %2998
      %3000 = vadd.xlane.f32.xlu0 %v2745
      %v3001 = vpop.xlane.xlu0 %3000
      %3002 = vadd.xlane.f32.xlu0 %v2747
      %v3003 = vpop.xlane.xlu0 %3002
      %3004 = vadd.xlane.f32.xlu0 %v2749
      %v3005 = vpop.xlane.xlu0 %3004
      %3006 = vadd.xlane.f32.xlu0 %v2751
      %v3007 = vpop.xlane.xlu0 %3006
      %3008 = vadd.xlane.f32.xlu0 %v2753
      %v3009 = vpop.xlane.xlu0 %3008
      %3010 = vadd.xlane.f32.xlu0 %v2755
      %v3011 = vpop.xlane.xlu0 %3010
      %3012 = vadd.xlane.f32.xlu0 %v2757
      %v3013 = vpop.xlane.xlu0 %3012
      %3014 = vadd.xlane.f32.xlu0 %v2759
      %v3015 = vpop.xlane.xlu0 %3014
      %3016 = vadd.xlane.f32.xlu0 %v2761
      %v3017 = vpop.xlane.xlu0 %3016
      %3018 = vadd.xlane.f32.xlu0 %v2763
      %v3019 = vpop.xlane.xlu0 %3018
      %3020 = vadd.xlane.f32.xlu0 %v2765
      %v3021 = vpop.xlane.xlu0 %3020
      %3022 = vadd.xlane.f32.xlu0 %v2767
      %v3023 = vpop.xlane.xlu0 %3022
      %3024 = vadd.xlane.f32.xlu0 %v2769
      %v3025 = vpop.xlane.xlu0 %3024
      %3026 = vadd.xlane.f32.xlu0 %v2771
      %v3027 = vpop.xlane.xlu0 %3026
      %3028 = vadd.xlane.f32.xlu0 %v2773
      %v3029 = vpop.xlane.xlu0 %3028
      %3030 = vadd.xlane.f32.xlu0 %v2775
      %v3031 = vpop.xlane.xlu0 %3030
      %3032 = vadd.xlane.f32.xlu0 %v2777
      %v3033 = vpop.xlane.xlu0 %3032
      %3034 = vadd.xlane.f32.xlu0 %v2779
      %v3035 = vpop.xlane.xlu0 %3034
      %3036 = vadd.xlane.f32.xlu0 %v2781
      %v3037 = vpop.xlane.xlu0 %3036
      %3038 = vadd.xlane.f32.xlu0 %v2783
      %v3039 = vpop.xlane.xlu0 %3038
      %3040 = vadd.xlane.f32.xlu0 %v2785
      %v3041 = vpop.xlane.xlu0 %3040
      %3042 = vadd.xlane.f32.xlu0 %v2787
      %v3043 = vpop.xlane.xlu0 %3042
      %3044 = vadd.xlane.f32.xlu0 %v2789
      %v3045 = vpop.xlane.xlu0 %3044
      %3046 = vadd.xlane.f32.xlu0 %v2791
      %v3047 = vpop.xlane.xlu0 %3046
      %3048 = vadd.xlane.f32.xlu0 %v2793
      %v3049 = vpop.xlane.xlu0 %3048
      %3050 = vadd.xlane.f32.xlu0 %v2795
      %v3051 = vpop.xlane.xlu0 %3050
      %3052 = vadd.xlane.f32.xlu0 %v2797
      %v3053 = vpop.xlane.xlu0 %3052
      %v3054 = vrcp.pop %v2799
      %v3055 = vrcp.pop %v2801
      %v3056 = vrcp.pop %v2803
      %v3057 = vrcp.pop %v2805
      %v3058 = vrcp.pop %v2807
      %v3059 = vrcp.pop %v2809
      %v3060 = vrcp.pop %v2811
      %v3061 = vrcp.pop %v2813
      %v3062 = vrcp.pop %v2815
      %v3063 = vrcp.pop %v2817
      %v3064 = vrcp.pop %v2819
      %v3065 = vrcp.pop %v2821
      %v3066 = vrcp.pop %v2823
      %v3067 = vrcp.pop %v2825
      %v3068 = vrcp.pop %v2827
      %v3069 = vrcp.pop %v2829
      %v3070 = vrcp.pop %v2831
      %v3071 = vrcp.pop %v2833
      %v3072 = vrcp.pop %v2835
      %v3073 = vrcp.pop %v2837
      %v3074 = vrcp.pop %v2839
      %v3075 = vrcp.pop %v2841
      %v3076 = vrcp.pop %v2843
      %v3077 = vrcp.pop %v2845
      %v3078 = vrcp.pop %v2847
      %v3079 = vrcp.pop %v2849
      %v3080 = vrcp.pop %v2851
      %v3081 = vrcp.pop %v2853
      %v3082 = vrcp.pop %v2855
      %v3083 = vrcp.pop %v2857
      %v3084 = vrcp.pop %v2859
      %v3085 = vrcp.pop %v2861
      %v3086 = vrcp.pop %v2863
      %v3087 = vrcp.pop %v2865
      %v3088 = vrcp.pop %v2867
      %v3089 = vrcp.pop %v2869
      %v3090 = vrcp.pop %v2871
      %v3091 = vrcp.pop %v2873
      %v3092 = vrcp.pop %v2875
      %v3093 = vrcp.pop %v2877
      %v3094 = vrcp.pop %v2879
      %v3095 = vrcp.pop %v2881
      %v3096 = vrcp.pop %v2883
      %v3097 = vrcp.pop %v2885
      %v3098 = vrcp.pop %v2887
      %v3099 = vrcp.pop %v2889
      %v3100 = vrcp.pop %v2891
      %v3101 = vrcp.pop %v2893
      %v3102 = vrcp.pop %v2895
      %v3103 = vrcp.pop %v2897
      %v3104 = vrcp.pop %v2899
      %v3105 = vrcp.pop %v2901
      %v3106 = vrcp.pop %v2903
      %v3107 = vrcp.pop %v2905
      %v3108 = vrcp.pop %v2907
      %v3109 = vrcp.pop %v2909
      %v3110 = vrcp.pop %v2911
      %v3111 = vrcp.pop %v2913
      %v3112 = vrcp.pop %v2915
      %v3113 = vrcp.pop %v2917
      %v3114 = vrcp.pop %v2919
      %v3115 = vrcp.pop %v2921
      %v3116 = vrcp.pop %v2923
      %v3117 = vrcp.pop %v2925
      %v3118 = vrcp.pop %v2927
      %v3119 = vrcp.pop %v2929
      %v3120 = vrcp.pop %v2931
      %v3121 = vrcp.pop %v2933
      %v3122 = vrcp.pop %v2935
      %v3123 = vrcp.pop %v2937
      %v3124 = vrcp.pop %v2939
      %v3125 = vrcp.pop %v2941
      %v3126 = vrcp.pop %v2943
      %v3127 = vrcp.pop %v2945
      %v3128 = vrcp.pop %v2947
      %v3129 = vrcp.pop %v2949
      %v3130 = vrcp.pop %v2951
      %v3131 = vrcp.pop %v2953
      %v3132 = vrcp.pop %v2955
      %v3133 = vrcp.pop %v2957
      %v3134 = vrcp.pop %v2959
      %v3135 = vrcp.pop %v2961
      %v3136 = vrcp.pop %v2963
      %v3137 = vrcp.pop %v2965
      %v3138 = vrcp.pop %v2967
      %v3139 = vrcp.pop %v2969
      %v3140 = vrcp.pop %v2971
      %v3141 = vrcp.pop %v2973
      %v3142 = vrcp.pop %v2975
      %v3143 = vrcp.pop %v2977
      %v3144 = vrcp.pop %v2979
      %v3145 = vrcp.pop %v2981
      %v3146 = vrcp.pop %v2983
      %v3147 = vrcp.pop %v2985
      %v3148 = vrcp.pop %v2987
      %v3149 = vrcp.pop %v2989
      %v3150 = vrcp.pop %v2991
      %v3151 = vrcp.pop %v2993
      %v3152 = vrcp.pop %v2995
      %v3153 = vrcp.pop %v2997
      %v3154 = vrcp.pop %v2999
      %v3155 = vrcp.pop %v3001
      %v3156 = vrcp.pop %v3003
      %v3157 = vrcp.pop %v3005
      %v3158 = vrcp.pop %v3007
      %v3159 = vrcp.pop %v3009
      %v3160 = vrcp.pop %v3011
      %v3161 = vrcp.pop %v3013
      %v3162 = vrcp.pop %v3015
      %v3163 = vrcp.pop %v3017
      %v3164 = vrcp.pop %v3019
      %v3165 = vrcp.pop %v3021
      %v3166 = vrcp.pop %v3023
      %v3167 = vrcp.pop %v3025
      %v3168 = vrcp.pop %v3027
      %v3169 = vrcp.pop %v3029
      %v3170 = vrcp.pop %v3031
      %v3171 = vrcp.pop %v3033
      %v3172 = vrcp.pop %v3035
      %v3173 = vrcp.pop %v3037
      %v3174 = vrcp.pop %v3039
      %v3175 = vrcp.pop %v3041
      %v3176 = vrcp.pop %v3043
      %v3177 = vrcp.pop %v3045
      %v3178 = vrcp.pop %v3047
      %v3179 = vrcp.pop %v3049
      %v3180 = vrcp.pop %v3051
      %v3181 = vrcp.pop %v3053
      %v3182 = vmul.f32 %v2543, %v3054
      %v3183 = vmul.f32 %v2545, %v3055
      %v3184 = vmul.f32 %v2547, %v3056
      %v3185 = vmul.f32 %v2549, %v3057
      %v3186 = vmul.f32 %v2551, %v3058
      %v3187 = vmul.f32 %v2553, %v3059
      %v3188 = vmul.f32 %v2555, %v3060
      %v3189 = vmul.f32 %v2557, %v3061
      %v3190 = vmul.f32 %v2559, %v3062
      %v3191 = vmul.f32 %v2561, %v3063
      %v3192 = vmul.f32 %v2563, %v3064
      %v3193 = vmul.f32 %v2565, %v3065
      %v3194 = vmul.f32 %v2567, %v3066
      %v3195 = vmul.f32 %v2569, %v3067
      %v3196 = vmul.f32 %v2571, %v3068
      %v3197 = vmul.f32 %v2573, %v3069
      %v3198 = vmul.f32 %v2575, %v3070
      %v3199 = vmul.f32 %v2577, %v3071
      %v3200 = vmul.f32 %v2579, %v3072
      %v3201 = vmul.f32 %v2581, %v3073
      %v3202 = vmul.f32 %v2583, %v3074
      %v3203 = vmul.f32 %v2585, %v3075
      %v3204 = vmul.f32 %v2587, %v3076
      %v3205 = vmul.f32 %v2589, %v3077
      %v3206 = vmul.f32 %v2591, %v3078
      %v3207 = vmul.f32 %v2593, %v3079
      %v3208 = vmul.f32 %v2595, %v3080
      %v3209 = vmul.f32 %v2597, %v3081
      %v3210 = vmul.f32 %v2599, %v3082
      %v3211 = vmul.f32 %v2601, %v3083
      %v3212 = vmul.f32 %v2603, %v3084
      %v3213 = vmul.f32 %v2605, %v3085
      %v3214 = vmul.f32 %v2607, %v3086
      %v3215 = vmul.f32 %v2609, %v3087
      %v3216 = vmul.f32 %v2611, %v3088
      %v3217 = vmul.f32 %v2613, %v3089
      %v3218 = vmul.f32 %v2615, %v3090
      %v3219 = vmul.f32 %v2617, %v3091
      %v3220 = vmul.f32 %v2619, %v3092
      %v3221 = vmul.f32 %v2621, %v3093
      %v3222 = vmul.f32 %v2623, %v3094
      %v3223 = vmul.f32 %v2625, %v3095
      %v3224 = vmul.f32 %v2627, %v3096
      %v3225 = vmul.f32 %v2629, %v3097
      %v3226 = vmul.f32 %v2631, %v3098
      %v3227 = vmul.f32 %v2633, %v3099
      %v3228 = vmul.f32 %v2635, %v3100
      %v3229 = vmul.f32 %v2637, %v3101
      %v3230 = vmul.f32 %v2639, %v3102
      %v3231 = vmul.f32 %v2641, %v3103
      %v3232 = vmul.f32 %v2643, %v3104
      %v3233 = vmul.f32 %v2645, %v3105
      %v3234 = vmul.f32 %v2647, %v3106
      %v3235 = vmul.f32 %v2649, %v3107
      %v3236 = vmul.f32 %v2651, %v3108
      %v3237 = vmul.f32 %v2653, %v3109
      %v3238 = vmul.f32 %v2655, %v3110
      %v3239 = vmul.f32 %v2657, %v3111
      %v3240 = vmul.f32 %v2659, %v3112
      %v3241 = vmul.f32 %v2661, %v3113
      %v3242 = vmul.f32 %v2663, %v3114
      %v3243 = vmul.f32 %v2665, %v3115
      %v3244 = vmul.f32 %v2667, %v3116
      %v3245 = vmul.f32 %v2669, %v3117
      %v3246 = vmul.f32 %v2671, %v3118
      %v3247 = vmul.f32 %v2673, %v3119
      %v3248 = vmul.f32 %v2675, %v3120
      %v3249 = vmul.f32 %v2677, %v3121
      %v3250 = vmul.f32 %v2679, %v3122
      %v3251 = vmul.f32 %v2681, %v3123
      %v3252 = vmul.f32 %v2683, %v3124
      %v3253 = vmul.f32 %v2685, %v3125
      %v3254 = vmul.f32 %v2687, %v3126
      %v3255 = vmul.f32 %v2689, %v3127
      %v3256 = vmul.f32 %v2691, %v3128
      %v3257 = vmul.f32 %v2693, %v3129
      %v3258 = vmul.f32 %v2695, %v3130
      %v3259 = vmul.f32 %v2697, %v3131
      %v3260 = vmul.f32 %v2699, %v3132
      %v3261 = vmul.f32 %v2701, %v3133
      %v3262 = vmul.f32 %v2703, %v3134
      %v3263 = vmul.f32 %v2705, %v3135
      %v3264 = vmul.f32 %v2707, %v3136
      %v3265 = vmul.f32 %v2709, %v3137
      %v3266 = vmul.f32 %v2711, %v3138
      %v3267 = vmul.f32 %v2713, %v3139
      %v3268 = vmul.f32 %v2715, %v3140
      %v3269 = vmul.f32 %v2717, %v3141
      %v3270 = vmul.f32 %v2719, %v3142
      %v3271 = vmul.f32 %v2721, %v3143
      %v3272 = vmul.f32 %v2723, %v3144
      %v3273 = vmul.f32 %v2725, %v3145
      %v3274 = vmul.f32 %v2727, %v3146
      %v3275 = vmul.f32 %v2729, %v3147
      %v3276 = vmul.f32 %v2731, %v3148
      %v3277 = vmul.f32 %v2733, %v3149
      %v3278 = vmul.f32 %v2735, %v3150
      %v3279 = vmul.f32 %v2737, %v3151
      %v3280 = vmul.f32 %v2739, %v3152
      %v3281 = vmul.f32 %v2741, %v3153
      %v3282 = vmul.f32 %v2743, %v3154
      %v3283 = vmul.f32 %v2745, %v3155
      %v3284 = vmul.f32 %v2747, %v3156
      %v3285 = vmul.f32 %v2749, %v3157
      %v3286 = vmul.f32 %v2751, %v3158
      %v3287 = vmul.f32 %v2753, %v3159
      %v3288 = vmul.f32 %v2755, %v3160
      %v3289 = vmul.f32 %v2757, %v3161
      %v3290 = vmul.f32 %v2759, %v3162
      %v3291 = vmul.f32 %v2761, %v3163
      %v3292 = vmul.f32 %v2763, %v3164
      %v3293 = vmul.f32 %v2765, %v3165
      %v3294 = vmul.f32 %v2767, %v3166
      %v3295 = vmul.f32 %v2769, %v3167
      %v3296 = vmul.f32 %v2771, %v3168
      %v3297 = vmul.f32 %v2773, %v3169
      %v3298 = vmul.f32 %v2775, %v3170
      %v3299 = vmul.f32 %v2777, %v3171
      %v3300 = vmul.f32 %v2779, %v3172
      %v3301 = vmul.f32 %v2781, %v3173
      %v3302 = vmul.f32 %v2783, %v3174
      %v3303 = vmul.f32 %v2785, %v3175
      %v3304 = vmul.f32 %v2787, %v3176
      %v3305 = vmul.f32 %v2789, %v3177
      %v3306 = vmul.f32 %v2791, %v3178
      %v3307 = vmul.f32 %v2793, %v3179
      %v3308 = vmul.f32 %v2795, %v3180
      %v3309 = vmul.f32 %v2797, %v3181
      %v3310 = vpack.c.bf16 %v3182, %v3182
      %v3311 = vpack.c.bf16 %v3183, %v3183
      %v3312 = vpack.c.bf16 %v3184, %v3184
      %v3313 = vpack.c.bf16 %v3185, %v3185
      %v3314 = vpack.c.bf16 %v3186, %v3186
      %v3315 = vpack.c.bf16 %v3187, %v3187
      %v3316 = vpack.c.bf16 %v3188, %v3188
      %v3317 = vpack.c.bf16 %v3189, %v3189
      %v3318 = vpack.c.bf16 %v3190, %v3190
      %v3319 = vpack.c.bf16 %v3191, %v3191
      %v3320 = vpack.c.bf16 %v3192, %v3192
      %v3321 = vpack.c.bf16 %v3193, %v3193
      %v3322 = vpack.c.bf16 %v3194, %v3194
      %v3323 = vpack.c.bf16 %v3195, %v3195
      %v3324 = vpack.c.bf16 %v3196, %v3196
      %v3325 = vpack.c.bf16 %v3197, %v3197
      %v3326 = vpack.c.bf16 %v3198, %v3198
      %v3327 = vpack.c.bf16 %v3199, %v3199
      %v3328 = vpack.c.bf16 %v3200, %v3200
      %v3329 = vpack.c.bf16 %v3201, %v3201
      %v3330 = vpack.c.bf16 %v3202, %v3202
      %v3331 = vpack.c.bf16 %v3203, %v3203
      %v3332 = vpack.c.bf16 %v3204, %v3204
      %v3333 = vpack.c.bf16 %v3205, %v3205
      %v3334 = vpack.c.bf16 %v3206, %v3206
      %v3335 = vpack.c.bf16 %v3207, %v3207
      %v3336 = vpack.c.bf16 %v3208, %v3208
      %v3337 = vpack.c.bf16 %v3209, %v3209
      %v3338 = vpack.c.bf16 %v3210, %v3210
      %v3339 = vpack.c.bf16 %v3211, %v3211
      %v3340 = vpack.c.bf16 %v3212, %v3212
      %v3341 = vpack.c.bf16 %v3213, %v3213
      %v3342 = vpack.c.bf16 %v3214, %v3214
      %v3343 = vpack.c.bf16 %v3215, %v3215
      %v3344 = vpack.c.bf16 %v3216, %v3216
      %v3345 = vpack.c.bf16 %v3217, %v3217
      %v3346 = vpack.c.bf16 %v3218, %v3218
      %v3347 = vpack.c.bf16 %v3219, %v3219
      %v3348 = vpack.c.bf16 %v3220, %v3220
      %v3349 = vpack.c.bf16 %v3221, %v3221
      %v3350 = vpack.c.bf16 %v3222, %v3222
      %v3351 = vpack.c.bf16 %v3223, %v3223
      %v3352 = vpack.c.bf16 %v3224, %v3224
      %v3353 = vpack.c.bf16 %v3225, %v3225
      %v3354 = vpack.c.bf16 %v3226, %v3226
      %v3355 = vpack.c.bf16 %v3227, %v3227
      %v3356 = vpack.c.bf16 %v3228, %v3228
      %v3357 = vpack.c.bf16 %v3229, %v3229
      %v3358 = vpack.c.bf16 %v3230, %v3230
      %v3359 = vpack.c.bf16 %v3231, %v3231
      %v3360 = vpack.c.bf16 %v3232, %v3232
      %v3361 = vpack.c.bf16 %v3233, %v3233
      %v3362 = vpack.c.bf16 %v3234, %v3234
      %v3363 = vpack.c.bf16 %v3235, %v3235
      %v3364 = vpack.c.bf16 %v3236, %v3236
      %v3365 = vpack.c.bf16 %v3237, %v3237
      %v3366 = vpack.c.bf16 %v3238, %v3238
      %v3367 = vpack.c.bf16 %v3239, %v3239
      %v3368 = vpack.c.bf16 %v3240, %v3240
      %v3369 = vpack.c.bf16 %v3241, %v3241
      %v3370 = vpack.c.bf16 %v3242, %v3242
      %v3371 = vpack.c.bf16 %v3243, %v3243
      %v3372 = vpack.c.bf16 %v3244, %v3244
      %v3373 = vpack.c.bf16 %v3245, %v3245
      %v3374 = vpack.c.bf16 %v3246, %v3246
      %v3375 = vpack.c.bf16 %v3247, %v3247
      %v3376 = vpack.c.bf16 %v3248, %v3248
      %v3377 = vpack.c.bf16 %v3249, %v3249
      %v3378 = vpack.c.bf16 %v3250, %v3250
      %v3379 = vpack.c.bf16 %v3251, %v3251
      %v3380 = vpack.c.bf16 %v3252, %v3252
      %v3381 = vpack.c.bf16 %v3253, %v3253
      %v3382 = vpack.c.bf16 %v3254, %v3254
      %v3383 = vpack.c.bf16 %v3255, %v3255
      %v3384 = vpack.c.bf16 %v3256, %v3256
      %v3385 = vpack.c.bf16 %v3257, %v3257
      %v3386 = vpack.c.bf16 %v3258, %v3258
      %v3387 = vpack.c.bf16 %v3259, %v3259
      %v3388 = vpack.c.bf16 %v3260, %v3260
      %v3389 = vpack.c.bf16 %v3261, %v3261
      %v3390 = vpack.c.bf16 %v3262, %v3262
      %v3391 = vpack.c.bf16 %v3263, %v3263
      %v3392 = vpack.c.bf16 %v3264, %v3264
      %v3393 = vpack.c.bf16 %v3265, %v3265
      %v3394 = vpack.c.bf16 %v3266, %v3266
      %v3395 = vpack.c.bf16 %v3267, %v3267
      %v3396 = vpack.c.bf16 %v3268, %v3268
      %v3397 = vpack.c.bf16 %v3269, %v3269
      %v3398 = vpack.c.bf16 %v3270, %v3270
      %v3399 = vpack.c.bf16 %v3271, %v3271
      %v3400 = vpack.c.bf16 %v3272, %v3272
      %v3401 = vpack.c.bf16 %v3273, %v3273
      %v3402 = vpack.c.bf16 %v3274, %v3274
      %v3403 = vpack.c.bf16 %v3275, %v3275
      %v3404 = vpack.c.bf16 %v3276, %v3276
      %v3405 = vpack.c.bf16 %v3277, %v3277
      %v3406 = vpack.c.bf16 %v3278, %v3278
      %v3407 = vpack.c.bf16 %v3279, %v3279
      %v3408 = vpack.c.bf16 %v3280, %v3280
      %v3409 = vpack.c.bf16 %v3281, %v3281
      %v3410 = vpack.c.bf16 %v3282, %v3282
      %v3411 = vpack.c.bf16 %v3283, %v3283
      %v3412 = vpack.c.bf16 %v3284, %v3284
      %v3413 = vpack.c.bf16 %v3285, %v3285
      %v3414 = vpack.c.bf16 %v3286, %v3286
      %v3415 = vpack.c.bf16 %v3287, %v3287
      %v3416 = vpack.c.bf16 %v3288, %v3288
      %v3417 = vpack.c.bf16 %v3289, %v3289
      %v3418 = vpack.c.bf16 %v3290, %v3290
      %v3419 = vpack.c.bf16 %v3291, %v3291
      %v3420 = vpack.c.bf16 %v3292, %v3292
      %v3421 = vpack.c.bf16 %v3293, %v3293
      %v3422 = vpack.c.bf16 %v3294, %v3294
      %v3423 = vpack.c.bf16 %v3295, %v3295
      %v3424 = vpack.c.bf16 %v3296, %v3296
      %v3425 = vpack.c.bf16 %v3297, %v3297
      %v3426 = vpack.c.bf16 %v3298, %v3298
      %v3427 = vpack.c.bf16 %v3299, %v3299
      %v3428 = vpack.c.bf16 %v3300, %v3300
      %v3429 = vpack.c.bf16 %v3301, %v3301
      %v3430 = vpack.c.bf16 %v3302, %v3302
      %v3431 = vpack.c.bf16 %v3303, %v3303
      %v3432 = vpack.c.bf16 %v3304, %v3304
      %v3433 = vpack.c.bf16 %v3305, %v3305
      %v3434 = vpack.c.bf16 %v3306, %v3306
      %v3435 = vpack.c.bf16 %v3307, %v3307
      %v3436 = vpack.c.bf16 %v3308, %v3308
      %v3437 = vpack.c.bf16 %v3309, %v3309
      %v3454 = vunpack.c.l.b16 %v3310
      %v3455 = vunpack.c.l.b16 %v3311
      %v3456 = vunpack.c.l.b16 %v3312
      %v3457 = vunpack.c.l.b16 %v3313
      %v3458 = vunpack.c.l.b16 %v3314
      %v3459 = vunpack.c.l.b16 %v3315
      %v3460 = vunpack.c.l.b16 %v3316
      %v3461 = vunpack.c.l.b16 %v3317
      %v3462 = vunpack.c.l.b16 %v3318
      %v3463 = vunpack.c.l.b16 %v3319
      %v3464 = vunpack.c.l.b16 %v3320
      %v3465 = vunpack.c.l.b16 %v3321
      %v3466 = vunpack.c.l.b16 %v3322
      %v3467 = vunpack.c.l.b16 %v3323
      %v3468 = vunpack.c.l.b16 %v3324
      %v3469 = vunpack.c.l.b16 %v3325
      %v3470 = vpack.c.b16 %v3455, %v3454
      %v3471 = vpack.c.b16 %v3457, %v3456
      %v3472 = vpack.c.b16 %v3459, %v3458
      %v3473 = vpack.c.b16 %v3461, %v3460
      %v3474 = vpack.c.b16 %v3463, %v3462
      %v3475 = vpack.c.b16 %v3465, %v3464
      %v3476 = vpack.c.b16 %v3467, %v3466
      %v3477 = vpack.c.b16 %v3469, %v3468
      %v3502 = vunpack.c.l.b16 %v485
      %v3503 = vunpack.c.l.b16 %v486
      %v3504 = vunpack.c.l.b16 %v487
      %v3505 = vunpack.c.l.b16 %v488
      %v3506 = vunpack.c.l.b16 %v489
      %v3507 = vunpack.c.l.b16 %v490
      %v3508 = vunpack.c.l.b16 %v491
      %v3509 = vunpack.c.l.b16 %v492
      %v3510 = vunpack.c.l.b16 %v493
      %v3511 = vunpack.c.l.b16 %v494
      %v3512 = vunpack.c.l.b16 %v495
      %v3513 = vunpack.c.l.b16 %v496
      %v3514 = vunpack.c.l.b16 %v497
      %v3515 = vunpack.c.l.b16 %v498
      %v3516 = vunpack.c.l.b16 %v499
      %v3517 = vunpack.c.l.b16 %v500
      %v3518 = vpack.c.b16 %v3503, %v3502
      %v3519 = vpack.c.b16 %v3505, %v3504
      %v3520 = vpack.c.b16 %v3507, %v3506
      %v3521 = vpack.c.b16 %v3509, %v3508
      %v3522 = vpack.c.b16 %v3511, %v3510
      %v3523 = vpack.c.b16 %v3513, %v3512
      %v3524 = vpack.c.b16 %v3515, %v3514
      %v3525 = vpack.c.b16 %v3517, %v3516
      %3534 = vmatpush.bf16.msra.mxu0 %v3525
      %3535 = vmatpush.bf16.msra.mxu0 %v3524
      %3536 = vmatpush.bf16.msra.mxu0 %v3523
      %3537 = vmatpush.bf16.msra.mxu0 %v3522
      %3538 = vmatpush.bf16.msra.mxu0 %v3521
      %3539 = vmatpush.bf16.msra.mxu0 %v3520
      %3540 = vmatpush.bf16.msra.mxu0 %v3519
      %3541 = vmatpush.bf16.msra.mxu0 %v3518
      %3542 = vmatmul.bf16.gmra.mxu0 %v3470
      %v3543 = vpop.f32.mrf.mxu0
      %v3544 = vadd.f32 0.0, %v3543
      %v3545 = vpop.f32.mrf.mxu0
      %v3546 = vadd.f32 0.0, %v3545
      %3547 = vmatmul.bf16.gmra.mxu0 %v3471
      %v3548 = vpop.f32.mrf.mxu0
      %v3549 = vadd.f32 0.0, %v3548
      %v3550 = vpop.f32.mrf.mxu0
      %v3551 = vadd.f32 0.0, %v3550
      %3552 = vmatmul.bf16.gmra.mxu0 %v3472
      %v3553 = vpop.f32.mrf.mxu0
      %v3554 = vadd.f32 0.0, %v3553
      %v3555 = vpop.f32.mrf.mxu0
      %v3556 = vadd.f32 0.0, %v3555
      %3557 = vmatmul.bf16.gmra.mxu0 %v3473
      %v3558 = vpop.f32.mrf.mxu0
      %v3559 = vadd.f32 0.0, %v3558
      %v3560 = vpop.f32.mrf.mxu0
      %v3561 = vadd.f32 0.0, %v3560
      %3562 = vmatmul.bf16.gmra.mxu0 %v3474
      %v3563 = vpop.f32.mrf.mxu0
      %v3564 = vadd.f32 0.0, %v3563
      %v3565 = vpop.f32.mrf.mxu0
      %v3566 = vadd.f32 0.0, %v3565
      %3567 = vmatmul.bf16.gmra.mxu0 %v3475
      %v3568 = vpop.f32.mrf.mxu0
      %v3569 = vadd.f32 0.0, %v3568
      %v3570 = vpop.f32.mrf.mxu0
      %v3571 = vadd.f32 0.0, %v3570
      %3572 = vmatmul.bf16.gmra.mxu0 %v3476
      %v3573 = vpop.f32.mrf.mxu0
      %v3574 = vadd.f32 0.0, %v3573
      %v3575 = vpop.f32.mrf.mxu0
      %v3576 = vadd.f32 0.0, %v3575
      %3577 = vmatmul.bf16.gmra.mxu0 %v3477
      %v3578 = vpop.f32.mrf.mxu0
      %v3579 = vadd.f32 0.0, %v3578
      %v3580 = vpop.f32.mrf.mxu0
      %v3581 = vadd.f32 0.0, %v3580
      %3582 = vdwg.mxu0
      %v3599 = vunpack.c.l.b16 %v3326
      %v3600 = vunpack.c.l.b16 %v3327
      %v3601 = vunpack.c.l.b16 %v3328
      %v3602 = vunpack.c.l.b16 %v3329
      %v3603 = vunpack.c.l.b16 %v3330
      %v3604 = vunpack.c.l.b16 %v3331
      %v3605 = vunpack.c.l.b16 %v3332
      %v3606 = vunpack.c.l.b16 %v3333
      %v3607 = vunpack.c.l.b16 %v3334
      %v3608 = vunpack.c.l.b16 %v3335
      %v3609 = vunpack.c.l.b16 %v3336
      %v3610 = vunpack.c.l.b16 %v3337
      %v3611 = vunpack.c.l.b16 %v3338
      %v3612 = vunpack.c.l.b16 %v3339
      %v3613 = vunpack.c.l.b16 %v3340
      %v3614 = vunpack.c.l.b16 %v3341
      %v3615 = vpack.c.b16 %v3600, %v3599
      %v3616 = vpack.c.b16 %v3602, %v3601
      %v3617 = vpack.c.b16 %v3604, %v3603
      %v3618 = vpack.c.b16 %v3606, %v3605
      %v3619 = vpack.c.b16 %v3608, %v3607
      %v3620 = vpack.c.b16 %v3610, %v3609
      %v3621 = vpack.c.b16 %v3612, %v3611
      %v3622 = vpack.c.b16 %v3614, %v3613
      %v3647 = vunpack.c.l.b16 %v501
      %v3648 = vunpack.c.l.b16 %v502
      %v3649 = vunpack.c.l.b16 %v503
      %v3650 = vunpack.c.l.b16 %v504
      %v3651 = vunpack.c.l.b16 %v505
      %v3652 = vunpack.c.l.b16 %v506
      %v3653 = vunpack.c.l.b16 %v507
      %v3654 = vunpack.c.l.b16 %v508
      %v3655 = vunpack.c.l.b16 %v509
      %v3656 = vunpack.c.l.b16 %v510
      %v3657 = vunpack.c.l.b16 %v511
      %v3658 = vunpack.c.l.b16 %v512
      %v3659 = vunpack.c.l.b16 %v513
      %v3660 = vunpack.c.l.b16 %v514
      %v3661 = vunpack.c.l.b16 %v515
      %v3662 = vunpack.c.l.b16 %v516
      %v3663 = vpack.c.b16 %v3648, %v3647
      %v3664 = vpack.c.b16 %v3650, %v3649
      %v3665 = vpack.c.b16 %v3652, %v3651
      %v3666 = vpack.c.b16 %v3654, %v3653
      %v3667 = vpack.c.b16 %v3656, %v3655
      %v3668 = vpack.c.b16 %v3658, %v3657
      %v3669 = vpack.c.b16 %v3660, %v3659
      %v3670 = vpack.c.b16 %v3662, %v3661
      %3679 = vmatpush.bf16.msra.mxu0 %v3670
      %3680 = vmatpush.bf16.msra.mxu0 %v3669
      %3681 = vmatpush.bf16.msra.mxu0 %v3668
      %3682 = vmatpush.bf16.msra.mxu0 %v3667
      %3683 = vmatpush.bf16.msra.mxu0 %v3666
      %3684 = vmatpush.bf16.msra.mxu0 %v3665
      %3685 = vmatpush.bf16.msra.mxu0 %v3664
      %3686 = vmatpush.bf16.msra.mxu0 %v3663
      %3687 = vmatmul.bf16.gmra.mxu0 %v3615
      %v3688 = vpop.f32.mrf.mxu0
      %v3689 = vadd.f32 0.0, %v3688
      %v3690 = vpop.f32.mrf.mxu0
      %v3691 = vadd.f32 0.0, %v3690
      %3692 = vmatmul.bf16.gmra.mxu0 %v3616
      %v3693 = vpop.f32.mrf.mxu0
      %v3694 = vadd.f32 0.0, %v3693
      %v3695 = vpop.f32.mrf.mxu0
      %v3696 = vadd.f32 0.0, %v3695
      %3697 = vmatmul.bf16.gmra.mxu0 %v3617
      %v3698 = vpop.f32.mrf.mxu0
      %v3699 = vadd.f32 0.0, %v3698
      %v3700 = vpop.f32.mrf.mxu0
      %v3701 = vadd.f32 0.0, %v3700
      %3702 = vmatmul.bf16.gmra.mxu0 %v3618
      %v3703 = vpop.f32.mrf.mxu0
      %v3704 = vadd.f32 0.0, %v3703
      %v3705 = vpop.f32.mrf.mxu0
      %v3706 = vadd.f32 0.0, %v3705
      %3707 = vmatmul.bf16.gmra.mxu0 %v3619
      %v3708 = vpop.f32.mrf.mxu0
      %v3709 = vadd.f32 0.0, %v3708
      %v3710 = vpop.f32.mrf.mxu0
      %v3711 = vadd.f32 0.0, %v3710
      %3712 = vmatmul.bf16.gmra.mxu0 %v3620
      %v3713 = vpop.f32.mrf.mxu0
      %v3714 = vadd.f32 0.0, %v3713
      %v3715 = vpop.f32.mrf.mxu0
      %v3716 = vadd.f32 0.0, %v3715
      %3717 = vmatmul.bf16.gmra.mxu0 %v3621
      %v3718 = vpop.f32.mrf.mxu0
      %v3719 = vadd.f32 0.0, %v3718
      %v3720 = vpop.f32.mrf.mxu0
      %v3721 = vadd.f32 0.0, %v3720
      %3722 = vmatmul.bf16.gmra.mxu0 %v3622
      %v3723 = vpop.f32.mrf.mxu0
      %v3724 = vadd.f32 0.0, %v3723
      %v3725 = vpop.f32.mrf.mxu0
      %v3726 = vadd.f32 0.0, %v3725
      %3727 = vdwg.mxu0
      %v3744 = vunpack.c.l.b16 %v3342
      %v3745 = vunpack.c.l.b16 %v3343
      %v3746 = vunpack.c.l.b16 %v3344
      %v3747 = vunpack.c.l.b16 %v3345
      %v3748 = vunpack.c.l.b16 %v3346
      %v3749 = vunpack.c.l.b16 %v3347
      %v3750 = vunpack.c.l.b16 %v3348
      %v3751 = vunpack.c.l.b16 %v3349
      %v3752 = vunpack.c.l.b16 %v3350
      %v3753 = vunpack.c.l.b16 %v3351
      %v3754 = vunpack.c.l.b16 %v3352
      %v3755 = vunpack.c.l.b16 %v3353
      %v3756 = vunpack.c.l.b16 %v3354
      %v3757 = vunpack.c.l.b16 %v3355
      %v3758 = vunpack.c.l.b16 %v3356
      %v3759 = vunpack.c.l.b16 %v3357
      %v3760 = vpack.c.b16 %v3745, %v3744
      %v3761 = vpack.c.b16 %v3747, %v3746
      %v3762 = vpack.c.b16 %v3749, %v3748
      %v3763 = vpack.c.b16 %v3751, %v3750
      %v3764 = vpack.c.b16 %v3753, %v3752
      %v3765 = vpack.c.b16 %v3755, %v3754
      %v3766 = vpack.c.b16 %v3757, %v3756
      %v3767 = vpack.c.b16 %v3759, %v3758
      %v3792 = vunpack.c.l.b16 %v517
      %v3793 = vunpack.c.l.b16 %v518
      %v3794 = vunpack.c.l.b16 %v519
      %v3795 = vunpack.c.l.b16 %v520
      %v3796 = vunpack.c.l.b16 %v521
      %v3797 = vunpack.c.l.b16 %v522
      %v3798 = vunpack.c.l.b16 %v523
      %v3799 = vunpack.c.l.b16 %v524
      %v3800 = vunpack.c.l.b16 %v525
      %v3801 = vunpack.c.l.b16 %v526
      %v3802 = vunpack.c.l.b16 %v527
      %v3803 = vunpack.c.l.b16 %v528
      %v3804 = vunpack.c.l.b16 %v529
      %v3805 = vunpack.c.l.b16 %v530
      %v3806 = vunpack.c.l.b16 %v531
      %v3807 = vunpack.c.l.b16 %v532
      %v3808 = vpack.c.b16 %v3793, %v3792
      %v3809 = vpack.c.b16 %v3795, %v3794
      %v3810 = vpack.c.b16 %v3797, %v3796
      %v3811 = vpack.c.b16 %v3799, %v3798
      %v3812 = vpack.c.b16 %v3801, %v3800
      %v3813 = vpack.c.b16 %v3803, %v3802
      %v3814 = vpack.c.b16 %v3805, %v3804
      %v3815 = vpack.c.b16 %v3807, %v3806
      %3824 = vmatpush.bf16.msra.mxu0 %v3815
      %3825 = vmatpush.bf16.msra.mxu0 %v3814
      %3826 = vmatpush.bf16.msra.mxu0 %v3813
      %3827 = vmatpush.bf16.msra.mxu0 %v3812
      %3828 = vmatpush.bf16.msra.mxu0 %v3811
      %3829 = vmatpush.bf16.msra.mxu0 %v3810
      %3830 = vmatpush.bf16.msra.mxu0 %v3809
      %3831 = vmatpush.bf16.msra.mxu0 %v3808
      %3832 = vmatmul.bf16.gmra.mxu0 %v3760
      %v3833 = vpop.f32.mrf.mxu0
      %v3834 = vadd.f32 0.0, %v3833
      %v3835 = vpop.f32.mrf.mxu0
      %v3836 = vadd.f32 0.0, %v3835
      %3837 = vmatmul.bf16.gmra.mxu0 %v3761
      %v3838 = vpop.f32.mrf.mxu0
      %v3839 = vadd.f32 0.0, %v3838
      %v3840 = vpop.f32.mrf.mxu0
      %v3841 = vadd.f32 0.0, %v3840
      %3842 = vmatmul.bf16.gmra.mxu0 %v3762
      %v3843 = vpop.f32.mrf.mxu0
      %v3844 = vadd.f32 0.0, %v3843
      %v3845 = vpop.f32.mrf.mxu0
      %v3846 = vadd.f32 0.0, %v3845
      %3847 = vmatmul.bf16.gmra.mxu0 %v3763
      %v3848 = vpop.f32.mrf.mxu0
      %v3849 = vadd.f32 0.0, %v3848
      %v3850 = vpop.f32.mrf.mxu0
      %v3851 = vadd.f32 0.0, %v3850
      %3852 = vmatmul.bf16.gmra.mxu0 %v3764
      %v3853 = vpop.f32.mrf.mxu0
      %v3854 = vadd.f32 0.0, %v3853
      %v3855 = vpop.f32.mrf.mxu0
      %v3856 = vadd.f32 0.0, %v3855
      %3857 = vmatmul.bf16.gmra.mxu0 %v3765
      %v3858 = vpop.f32.mrf.mxu0
      %v3859 = vadd.f32 0.0, %v3858
      %v3860 = vpop.f32.mrf.mxu0
      %v3861 = vadd.f32 0.0, %v3860
      %3862 = vmatmul.bf16.gmra.mxu0 %v3766
      %v3863 = vpop.f32.mrf.mxu0
      %v3864 = vadd.f32 0.0, %v3863
      %v3865 = vpop.f32.mrf.mxu0
      %v3866 = vadd.f32 0.0, %v3865
      %3867 = vmatmul.bf16.gmra.mxu0 %v3767
      %v3868 = vpop.f32.mrf.mxu0
      %v3869 = vadd.f32 0.0, %v3868
      %v3870 = vpop.f32.mrf.mxu0
      %v3871 = vadd.f32 0.0, %v3870
      %3872 = vdwg.mxu0
      %v3889 = vunpack.c.l.b16 %v3358
      %v3890 = vunpack.c.l.b16 %v3359
      %v3891 = vunpack.c.l.b16 %v3360
      %v3892 = vunpack.c.l.b16 %v3361
      %v3893 = vunpack.c.l.b16 %v3362
      %v3894 = vunpack.c.l.b16 %v3363
      %v3895 = vunpack.c.l.b16 %v3364
      %v3896 = vunpack.c.l.b16 %v3365
      %v3897 = vunpack.c.l.b16 %v3366
      %v3898 = vunpack.c.l.b16 %v3367
      %v3899 = vunpack.c.l.b16 %v3368
      %v3900 = vunpack.c.l.b16 %v3369
      %v3901 = vunpack.c.l.b16 %v3370
      %v3902 = vunpack.c.l.b16 %v3371
      %v3903 = vunpack.c.l.b16 %v3372
      %v3904 = vunpack.c.l.b16 %v3373
      %v3905 = vpack.c.b16 %v3890, %v3889
      %v3906 = vpack.c.b16 %v3892, %v3891
      %v3907 = vpack.c.b16 %v3894, %v3893
      %v3908 = vpack.c.b16 %v3896, %v3895
      %v3909 = vpack.c.b16 %v3898, %v3897
      %v3910 = vpack.c.b16 %v3900, %v3899
      %v3911 = vpack.c.b16 %v3902, %v3901
      %v3912 = vpack.c.b16 %v3904, %v3903
      %v3937 = vunpack.c.l.b16 %v533
      %v3938 = vunpack.c.l.b16 %v534
      %v3939 = vunpack.c.l.b16 %v535
      %v3940 = vunpack.c.l.b16 %v536
      %v3941 = vunpack.c.l.b16 %v537
      %v3942 = vunpack.c.l.b16 %v538
      %v3943 = vunpack.c.l.b16 %v539
      %v3944 = vunpack.c.l.b16 %v540
      %v3945 = vunpack.c.l.b16 %v541
      %v3946 = vunpack.c.l.b16 %v542
      %v3947 = vunpack.c.l.b16 %v543
      %v3948 = vunpack.c.l.b16 %v544
      %v3949 = vunpack.c.l.b16 %v545
      %v3950 = vunpack.c.l.b16 %v546
      %v3951 = vunpack.c.l.b16 %v547
      %v3952 = vunpack.c.l.b16 %v548
      %v3953 = vpack.c.b16 %v3938, %v3937
      %v3954 = vpack.c.b16 %v3940, %v3939
      %v3955 = vpack.c.b16 %v3942, %v3941
      %v3956 = vpack.c.b16 %v3944, %v3943
      %v3957 = vpack.c.b16 %v3946, %v3945
      %v3958 = vpack.c.b16 %v3948, %v3947
      %v3959 = vpack.c.b16 %v3950, %v3949
      %v3960 = vpack.c.b16 %v3952, %v3951
      %3969 = vmatpush.bf16.msra.mxu0 %v3960
      %3970 = vmatpush.bf16.msra.mxu0 %v3959
      %3971 = vmatpush.bf16.msra.mxu0 %v3958
      %3972 = vmatpush.bf16.msra.mxu0 %v3957
      %3973 = vmatpush.bf16.msra.mxu0 %v3956
      %3974 = vmatpush.bf16.msra.mxu0 %v3955
      %3975 = vmatpush.bf16.msra.mxu0 %v3954
      %3976 = vmatpush.bf16.msra.mxu0 %v3953
      %3977 = vmatmul.bf16.gmra.mxu0 %v3905
      %v3978 = vpop.f32.mrf.mxu0
      %v3979 = vadd.f32 0.0, %v3978
      %v3980 = vpop.f32.mrf.mxu0
      %v3981 = vadd.f32 0.0, %v3980
      %3982 = vmatmul.bf16.gmra.mxu0 %v3906
      %v3983 = vpop.f32.mrf.mxu0
      %v3984 = vadd.f32 0.0, %v3983
      %v3985 = vpop.f32.mrf.mxu0
      %v3986 = vadd.f32 0.0, %v3985
      %3987 = vmatmul.bf16.gmra.mxu0 %v3907
      %v3988 = vpop.f32.mrf.mxu0
      %v3989 = vadd.f32 0.0, %v3988
      %v3990 = vpop.f32.mrf.mxu0
      %v3991 = vadd.f32 0.0, %v3990
      %3992 = vmatmul.bf16.gmra.mxu0 %v3908
      %v3993 = vpop.f32.mrf.mxu0
      %v3994 = vadd.f32 0.0, %v3993
      %v3995 = vpop.f32.mrf.mxu0
      %v3996 = vadd.f32 0.0, %v3995
      %3997 = vmatmul.bf16.gmra.mxu0 %v3909
      %v3998 = vpop.f32.mrf.mxu0
      %v3999 = vadd.f32 0.0, %v3998
      %v4000 = vpop.f32.mrf.mxu0
      %v4001 = vadd.f32 0.0, %v4000
      %4002 = vmatmul.bf16.gmra.mxu0 %v3910
      %v4003 = vpop.f32.mrf.mxu0
      %v4004 = vadd.f32 0.0, %v4003
      %v4005 = vpop.f32.mrf.mxu0
      %v4006 = vadd.f32 0.0, %v4005
      %4007 = vmatmul.bf16.gmra.mxu0 %v3911
      %v4008 = vpop.f32.mrf.mxu0
      %v4009 = vadd.f32 0.0, %v4008
      %v4010 = vpop.f32.mrf.mxu0
      %v4011 = vadd.f32 0.0, %v4010
      %4012 = vmatmul.bf16.gmra.mxu0 %v3912
      %v4013 = vpop.f32.mrf.mxu0
      %v4014 = vadd.f32 0.0, %v4013
      %v4015 = vpop.f32.mrf.mxu0
      %v4016 = vadd.f32 0.0, %v4015
      %4017 = vdwg.mxu0
      %v4034 = vunpack.c.l.b16 %v3374
      %v4035 = vunpack.c.l.b16 %v3375
      %v4036 = vunpack.c.l.b16 %v3376
      %v4037 = vunpack.c.l.b16 %v3377
      %v4038 = vunpack.c.l.b16 %v3378
      %v4039 = vunpack.c.l.b16 %v3379
      %v4040 = vunpack.c.l.b16 %v3380
      %v4041 = vunpack.c.l.b16 %v3381
      %v4042 = vunpack.c.l.b16 %v3382
      %v4043 = vunpack.c.l.b16 %v3383
      %v4044 = vunpack.c.l.b16 %v3384
      %v4045 = vunpack.c.l.b16 %v3385
      %v4046 = vunpack.c.l.b16 %v3386
      %v4047 = vunpack.c.l.b16 %v3387
      %v4048 = vunpack.c.l.b16 %v3388
      %v4049 = vunpack.c.l.b16 %v3389
      %v4050 = vpack.c.b16 %v4035, %v4034
      %v4051 = vpack.c.b16 %v4037, %v4036
      %v4052 = vpack.c.b16 %v4039, %v4038
      %v4053 = vpack.c.b16 %v4041, %v4040
      %v4054 = vpack.c.b16 %v4043, %v4042
      %v4055 = vpack.c.b16 %v4045, %v4044
      %v4056 = vpack.c.b16 %v4047, %v4046
      %v4057 = vpack.c.b16 %v4049, %v4048
      %v4082 = vunpack.c.l.b16 %v549
      %v4083 = vunpack.c.l.b16 %v550
      %v4084 = vunpack.c.l.b16 %v551
      %v4085 = vunpack.c.l.b16 %v552
      %v4086 = vunpack.c.l.b16 %v553
      %v4087 = vunpack.c.l.b16 %v554
      %v4088 = vunpack.c.l.b16 %v555
      %v4089 = vunpack.c.l.b16 %v556
      %v4090 = vunpack.c.l.b16 %v557
      %v4091 = vunpack.c.l.b16 %v558
      %v4092 = vunpack.c.l.b16 %v559
      %v4093 = vunpack.c.l.b16 %v560
      %v4094 = vunpack.c.l.b16 %v561
      %v4095 = vunpack.c.l.b16 %v562
      %v4096 = vunpack.c.l.b16 %v563
      %v4097 = vunpack.c.l.b16 %v564
      %v4098 = vpack.c.b16 %v4083, %v4082
      %v4099 = vpack.c.b16 %v4085, %v4084
      %v4100 = vpack.c.b16 %v4087, %v4086
      %v4101 = vpack.c.b16 %v4089, %v4088
      %v4102 = vpack.c.b16 %v4091, %v4090
      %v4103 = vpack.c.b16 %v4093, %v4092
      %v4104 = vpack.c.b16 %v4095, %v4094
      %v4105 = vpack.c.b16 %v4097, %v4096
      %4114 = vmatpush.bf16.msra.mxu0 %v4105
      %4115 = vmatpush.bf16.msra.mxu0 %v4104
      %4116 = vmatpush.bf16.msra.mxu0 %v4103
      %4117 = vmatpush.bf16.msra.mxu0 %v4102
      %4118 = vmatpush.bf16.msra.mxu0 %v4101
      %4119 = vmatpush.bf16.msra.mxu0 %v4100
      %4120 = vmatpush.bf16.msra.mxu0 %v4099
      %4121 = vmatpush.bf16.msra.mxu0 %v4098
      %4122 = vmatmul.bf16.gmra.mxu0 %v4050
      %v4123 = vpop.f32.mrf.mxu0
      %v4124 = vadd.f32 0.0, %v4123
      %v4125 = vpop.f32.mrf.mxu0
      %v4126 = vadd.f32 0.0, %v4125
      %4127 = vmatmul.bf16.gmra.mxu0 %v4051
      %v4128 = vpop.f32.mrf.mxu0
      %v4129 = vadd.f32 0.0, %v4128
      %v4130 = vpop.f32.mrf.mxu0
      %v4131 = vadd.f32 0.0, %v4130
      %4132 = vmatmul.bf16.gmra.mxu0 %v4052
      %v4133 = vpop.f32.mrf.mxu0
      %v4134 = vadd.f32 0.0, %v4133
      %v4135 = vpop.f32.mrf.mxu0
      %v4136 = vadd.f32 0.0, %v4135
      %4137 = vmatmul.bf16.gmra.mxu0 %v4053
      %v4138 = vpop.f32.mrf.mxu0
      %v4139 = vadd.f32 0.0, %v4138
      %v4140 = vpop.f32.mrf.mxu0
      %v4141 = vadd.f32 0.0, %v4140
      %4142 = vmatmul.bf16.gmra.mxu0 %v4054
      %v4143 = vpop.f32.mrf.mxu0
      %v4144 = vadd.f32 0.0, %v4143
      %v4145 = vpop.f32.mrf.mxu0
      %v4146 = vadd.f32 0.0, %v4145
      %4147 = vmatmul.bf16.gmra.mxu0 %v4055
      %v4148 = vpop.f32.mrf.mxu0
      %v4149 = vadd.f32 0.0, %v4148
      %v4150 = vpop.f32.mrf.mxu0
      %v4151 = vadd.f32 0.0, %v4150
      %4152 = vmatmul.bf16.gmra.mxu0 %v4056
      %v4153 = vpop.f32.mrf.mxu0
      %v4154 = vadd.f32 0.0, %v4153
      %v4155 = vpop.f32.mrf.mxu0
      %v4156 = vadd.f32 0.0, %v4155
      %4157 = vmatmul.bf16.gmra.mxu0 %v4057
      %v4158 = vpop.f32.mrf.mxu0
      %v4159 = vadd.f32 0.0, %v4158
      %v4160 = vpop.f32.mrf.mxu0
      %v4161 = vadd.f32 0.0, %v4160
      %4162 = vdwg.mxu0
      %v4179 = vunpack.c.l.b16 %v3390
      %v4180 = vunpack.c.l.b16 %v3391
      %v4181 = vunpack.c.l.b16 %v3392
      %v4182 = vunpack.c.l.b16 %v3393
      %v4183 = vunpack.c.l.b16 %v3394
      %v4184 = vunpack.c.l.b16 %v3395
      %v4185 = vunpack.c.l.b16 %v3396
      %v4186 = vunpack.c.l.b16 %v3397
      %v4187 = vunpack.c.l.b16 %v3398
      %v4188 = vunpack.c.l.b16 %v3399
      %v4189 = vunpack.c.l.b16 %v3400
      %v4190 = vunpack.c.l.b16 %v3401
      %v4191 = vunpack.c.l.b16 %v3402
      %v4192 = vunpack.c.l.b16 %v3403
      %v4193 = vunpack.c.l.b16 %v3404
      %v4194 = vunpack.c.l.b16 %v3405
      %v4195 = vpack.c.b16 %v4180, %v4179
      %v4196 = vpack.c.b16 %v4182, %v4181
      %v4197 = vpack.c.b16 %v4184, %v4183
      %v4198 = vpack.c.b16 %v4186, %v4185
      %v4199 = vpack.c.b16 %v4188, %v4187
      %v4200 = vpack.c.b16 %v4190, %v4189
      %v4201 = vpack.c.b16 %v4192, %v4191
      %v4202 = vpack.c.b16 %v4194, %v4193
      %v4227 = vunpack.c.l.b16 %v565
      %v4228 = vunpack.c.l.b16 %v566
      %v4229 = vunpack.c.l.b16 %v567
      %v4230 = vunpack.c.l.b16 %v568
      %v4231 = vunpack.c.l.b16 %v569
      %v4232 = vunpack.c.l.b16 %v570
      %v4233 = vunpack.c.l.b16 %v571
      %v4234 = vunpack.c.l.b16 %v572
      %v4235 = vunpack.c.l.b16 %v573
      %v4236 = vunpack.c.l.b16 %v574
      %v4237 = vunpack.c.l.b16 %v575
      %v4238 = vunpack.c.l.b16 %v576
      %v4239 = vunpack.c.l.b16 %v577
      %v4240 = vunpack.c.l.b16 %v578
      %v4241 = vunpack.c.l.b16 %v579
      %v4242 = vunpack.c.l.b16 %v580
      %v4243 = vpack.c.b16 %v4228, %v4227
      %v4244 = vpack.c.b16 %v4230, %v4229
      %v4245 = vpack.c.b16 %v4232, %v4231
      %v4246 = vpack.c.b16 %v4234, %v4233
      %v4247 = vpack.c.b16 %v4236, %v4235
      %v4248 = vpack.c.b16 %v4238, %v4237
      %v4249 = vpack.c.b16 %v4240, %v4239
      %v4250 = vpack.c.b16 %v4242, %v4241
      %4259 = vmatpush.bf16.msra.mxu0 %v4250
      %4260 = vmatpush.bf16.msra.mxu0 %v4249
      %4261 = vmatpush.bf16.msra.mxu0 %v4248
      %4262 = vmatpush.bf16.msra.mxu0 %v4247
      %4263 = vmatpush.bf16.msra.mxu0 %v4246
      %4264 = vmatpush.bf16.msra.mxu0 %v4245
      %4265 = vmatpush.bf16.msra.mxu0 %v4244
      %4266 = vmatpush.bf16.msra.mxu0 %v4243
      %4267 = vmatmul.bf16.gmra.mxu0 %v4195
      %v4268 = vpop.f32.mrf.mxu0
      %v4269 = vadd.f32 0.0, %v4268
      %v4270 = vpop.f32.mrf.mxu0
      %v4271 = vadd.f32 0.0, %v4270
      %4272 = vmatmul.bf16.gmra.mxu0 %v4196
      %v4273 = vpop.f32.mrf.mxu0
      %v4274 = vadd.f32 0.0, %v4273
      %v4275 = vpop.f32.mrf.mxu0
      %v4276 = vadd.f32 0.0, %v4275
      %4277 = vmatmul.bf16.gmra.mxu0 %v4197
      %v4278 = vpop.f32.mrf.mxu0
      %v4279 = vadd.f32 0.0, %v4278
      %v4280 = vpop.f32.mrf.mxu0
      %v4281 = vadd.f32 0.0, %v4280
      %4282 = vmatmul.bf16.gmra.mxu0 %v4198
      %v4283 = vpop.f32.mrf.mxu0
      %v4284 = vadd.f32 0.0, %v4283
      %v4285 = vpop.f32.mrf.mxu0
      %v4286 = vadd.f32 0.0, %v4285
      %4287 = vmatmul.bf16.gmra.mxu0 %v4199
      %v4288 = vpop.f32.mrf.mxu0
      %v4289 = vadd.f32 0.0, %v4288
      %v4290 = vpop.f32.mrf.mxu0
      %v4291 = vadd.f32 0.0, %v4290
      %4292 = vmatmul.bf16.gmra.mxu0 %v4200
      %v4293 = vpop.f32.mrf.mxu0
      %v4294 = vadd.f32 0.0, %v4293
      %v4295 = vpop.f32.mrf.mxu0
      %v4296 = vadd.f32 0.0, %v4295
      %4297 = vmatmul.bf16.gmra.mxu0 %v4201
      %v4298 = vpop.f32.mrf.mxu0
      %v4299 = vadd.f32 0.0, %v4298
      %v4300 = vpop.f32.mrf.mxu0
      %v4301 = vadd.f32 0.0, %v4300
      %4302 = vmatmul.bf16.gmra.mxu0 %v4202
      %v4303 = vpop.f32.mrf.mxu0
      %v4304 = vadd.f32 0.0, %v4303
      %v4305 = vpop.f32.mrf.mxu0
      %v4306 = vadd.f32 0.0, %v4305
      %4307 = vdwg.mxu0
      %v4324 = vunpack.c.l.b16 %v3406
      %v4325 = vunpack.c.l.b16 %v3407
      %v4326 = vunpack.c.l.b16 %v3408
      %v4327 = vunpack.c.l.b16 %v3409
      %v4328 = vunpack.c.l.b16 %v3410
      %v4329 = vunpack.c.l.b16 %v3411
      %v4330 = vunpack.c.l.b16 %v3412
      %v4331 = vunpack.c.l.b16 %v3413
      %v4332 = vunpack.c.l.b16 %v3414
      %v4333 = vunpack.c.l.b16 %v3415
      %v4334 = vunpack.c.l.b16 %v3416
      %v4335 = vunpack.c.l.b16 %v3417
      %v4336 = vunpack.c.l.b16 %v3418
      %v4337 = vunpack.c.l.b16 %v3419
      %v4338 = vunpack.c.l.b16 %v3420
      %v4339 = vunpack.c.l.b16 %v3421
      %v4340 = vpack.c.b16 %v4325, %v4324
      %v4341 = vpack.c.b16 %v4327, %v4326
      %v4342 = vpack.c.b16 %v4329, %v4328
      %v4343 = vpack.c.b16 %v4331, %v4330
      %v4344 = vpack.c.b16 %v4333, %v4332
      %v4345 = vpack.c.b16 %v4335, %v4334
      %v4346 = vpack.c.b16 %v4337, %v4336
      %v4347 = vpack.c.b16 %v4339, %v4338
      %v4372 = vunpack.c.l.b16 %v581
      %v4373 = vunpack.c.l.b16 %v582
      %v4374 = vunpack.c.l.b16 %v583
      %v4375 = vunpack.c.l.b16 %v584
      %v4376 = vunpack.c.l.b16 %v585
      %v4377 = vunpack.c.l.b16 %v586
      %v4378 = vunpack.c.l.b16 %v587
      %v4379 = vunpack.c.l.b16 %v588
      %v4380 = vunpack.c.l.b16 %v589
      %v4381 = vunpack.c.l.b16 %v590
      %v4382 = vunpack.c.l.b16 %v591
      %v4383 = vunpack.c.l.b16 %v592
      %v4384 = vunpack.c.l.b16 %v593
      %v4385 = vunpack.c.l.b16 %v594
      %v4386 = vunpack.c.l.b16 %v595
      %v4387 = vunpack.c.l.b16 %v596
      %v4388 = vpack.c.b16 %v4373, %v4372
      %v4389 = vpack.c.b16 %v4375, %v4374
      %v4390 = vpack.c.b16 %v4377, %v4376
      %v4391 = vpack.c.b16 %v4379, %v4378
      %v4392 = vpack.c.b16 %v4381, %v4380
      %v4393 = vpack.c.b16 %v4383, %v4382
      %v4394 = vpack.c.b16 %v4385, %v4384
      %v4395 = vpack.c.b16 %v4387, %v4386
      %4404 = vmatpush.bf16.msra.mxu0 %v4395
      %4405 = vmatpush.bf16.msra.mxu0 %v4394
      %4406 = vmatpush.bf16.msra.mxu0 %v4393
      %4407 = vmatpush.bf16.msra.mxu0 %v4392
      %4408 = vmatpush.bf16.msra.mxu0 %v4391
      %4409 = vmatpush.bf16.msra.mxu0 %v4390
      %4410 = vmatpush.bf16.msra.mxu0 %v4389
      %4411 = vmatpush.bf16.msra.mxu0 %v4388
      %4412 = vmatmul.bf16.gmra.mxu0 %v4340
      %v4413 = vpop.f32.mrf.mxu0
      %v4414 = vadd.f32 0.0, %v4413
      %v4415 = vpop.f32.mrf.mxu0
      %v4416 = vadd.f32 0.0, %v4415
      %4417 = vmatmul.bf16.gmra.mxu0 %v4341
      %v4418 = vpop.f32.mrf.mxu0
      %v4419 = vadd.f32 0.0, %v4418
      %v4420 = vpop.f32.mrf.mxu0
      %v4421 = vadd.f32 0.0, %v4420
      %4422 = vmatmul.bf16.gmra.mxu0 %v4342
      %v4423 = vpop.f32.mrf.mxu0
      %v4424 = vadd.f32 0.0, %v4423
      %v4425 = vpop.f32.mrf.mxu0
      %v4426 = vadd.f32 0.0, %v4425
      %4427 = vmatmul.bf16.gmra.mxu0 %v4343
      %v4428 = vpop.f32.mrf.mxu0
      %v4429 = vadd.f32 0.0, %v4428
      %v4430 = vpop.f32.mrf.mxu0
      %v4431 = vadd.f32 0.0, %v4430
      %4432 = vmatmul.bf16.gmra.mxu0 %v4344
      %v4433 = vpop.f32.mrf.mxu0
      %v4434 = vadd.f32 0.0, %v4433
      %v4435 = vpop.f32.mrf.mxu0
      %v4436 = vadd.f32 0.0, %v4435
      %4437 = vmatmul.bf16.gmra.mxu0 %v4345
      %v4438 = vpop.f32.mrf.mxu0
      %v4439 = vadd.f32 0.0, %v4438
      %v4440 = vpop.f32.mrf.mxu0
      %v4441 = vadd.f32 0.0, %v4440
      %4442 = vmatmul.bf16.gmra.mxu0 %v4346
      %v4443 = vpop.f32.mrf.mxu0
      %v4444 = vadd.f32 0.0, %v4443
      %v4445 = vpop.f32.mrf.mxu0
      %v4446 = vadd.f32 0.0, %v4445
      %4447 = vmatmul.bf16.gmra.mxu0 %v4347
      %v4448 = vpop.f32.mrf.mxu0
      %v4449 = vadd.f32 0.0, %v4448
      %v4450 = vpop.f32.mrf.mxu0
      %v4451 = vadd.f32 0.0, %v4450
      %4452 = vdwg.mxu0
      %v4469 = vunpack.c.l.b16 %v3422
      %v4470 = vunpack.c.l.b16 %v3423
      %v4471 = vunpack.c.l.b16 %v3424
      %v4472 = vunpack.c.l.b16 %v3425
      %v4473 = vunpack.c.l.b16 %v3426
      %v4474 = vunpack.c.l.b16 %v3427
      %v4475 = vunpack.c.l.b16 %v3428
      %v4476 = vunpack.c.l.b16 %v3429
      %v4477 = vunpack.c.l.b16 %v3430
      %v4478 = vunpack.c.l.b16 %v3431
      %v4479 = vunpack.c.l.b16 %v3432
      %v4480 = vunpack.c.l.b16 %v3433
      %v4481 = vunpack.c.l.b16 %v3434
      %v4482 = vunpack.c.l.b16 %v3435
      %v4483 = vunpack.c.l.b16 %v3436
      %v4484 = vunpack.c.l.b16 %v3437
      %v4485 = vpack.c.b16 %v4470, %v4469
      %v4486 = vpack.c.b16 %v4472, %v4471
      %v4487 = vpack.c.b16 %v4474, %v4473
      %v4488 = vpack.c.b16 %v4476, %v4475
      %v4489 = vpack.c.b16 %v4478, %v4477
      %v4490 = vpack.c.b16 %v4480, %v4479
      %v4491 = vpack.c.b16 %v4482, %v4481
      %v4492 = vpack.c.b16 %v4484, %v4483
      %v4517 = vunpack.c.l.b16 %v597
      %v4518 = vunpack.c.l.b16 %v598
      %v4519 = vunpack.c.l.b16 %v599
      %v4520 = vunpack.c.l.b16 %v600
      %v4521 = vunpack.c.l.b16 %v601
      %v4522 = vunpack.c.l.b16 %v602
      %v4523 = vunpack.c.l.b16 %v603
      %v4524 = vunpack.c.l.b16 %v604
      %v4525 = vunpack.c.l.b16 %v605
      %v4526 = vunpack.c.l.b16 %v606
      %v4527 = vunpack.c.l.b16 %v607
      %v4528 = vunpack.c.l.b16 %v608
      %v4529 = vunpack.c.l.b16 %v609
      %v4530 = vunpack.c.l.b16 %v610
      %v4531 = vunpack.c.l.b16 %v611
      %v4532 = vunpack.c.l.b16 %v612
      %v4533 = vpack.c.b16 %v4518, %v4517
      %v4534 = vpack.c.b16 %v4520, %v4519
      %v4535 = vpack.c.b16 %v4522, %v4521
      %v4536 = vpack.c.b16 %v4524, %v4523
      %v4537 = vpack.c.b16 %v4526, %v4525
      %v4538 = vpack.c.b16 %v4528, %v4527
      %v4539 = vpack.c.b16 %v4530, %v4529
      %v4540 = vpack.c.b16 %v4532, %v4531
      %4549 = vmatpush.bf16.msra.mxu0 %v4540
      %4550 = vmatpush.bf16.msra.mxu0 %v4539
      %4551 = vmatpush.bf16.msra.mxu0 %v4538
      %4552 = vmatpush.bf16.msra.mxu0 %v4537
      %4553 = vmatpush.bf16.msra.mxu0 %v4536
      %4554 = vmatpush.bf16.msra.mxu0 %v4535
      %4555 = vmatpush.bf16.msra.mxu0 %v4534
      %4556 = vmatpush.bf16.msra.mxu0 %v4533
      %4557 = vmatmul.bf16.gmra.mxu0 %v4485
      %v4558 = vpop.f32.mrf.mxu0
      %v4559 = vadd.f32 0.0, %v4558
      %v4560 = vpop.f32.mrf.mxu0
      %v4561 = vadd.f32 0.0, %v4560
      %4562 = vmatmul.bf16.gmra.mxu0 %v4486
      %v4563 = vpop.f32.mrf.mxu0
      %v4564 = vadd.f32 0.0, %v4563
      %v4565 = vpop.f32.mrf.mxu0
      %v4566 = vadd.f32 0.0, %v4565
      %4567 = vmatmul.bf16.gmra.mxu0 %v4487
      %v4568 = vpop.f32.mrf.mxu0
      %v4569 = vadd.f32 0.0, %v4568
      %v4570 = vpop.f32.mrf.mxu0
      %v4571 = vadd.f32 0.0, %v4570
      %4572 = vmatmul.bf16.gmra.mxu0 %v4488
      %v4573 = vpop.f32.mrf.mxu0
      %v4574 = vadd.f32 0.0, %v4573
      %v4575 = vpop.f32.mrf.mxu0
      %v4576 = vadd.f32 0.0, %v4575
      %4577 = vmatmul.bf16.gmra.mxu0 %v4489
      %v4578 = vpop.f32.mrf.mxu0
      %v4579 = vadd.f32 0.0, %v4578
      %v4580 = vpop.f32.mrf.mxu0
      %v4581 = vadd.f32 0.0, %v4580
      %4582 = vmatmul.bf16.gmra.mxu0 %v4490
      %v4583 = vpop.f32.mrf.mxu0
      %v4584 = vadd.f32 0.0, %v4583
      %v4585 = vpop.f32.mrf.mxu0
      %v4586 = vadd.f32 0.0, %v4585
      %4587 = vmatmul.bf16.gmra.mxu0 %v4491
      %v4588 = vpop.f32.mrf.mxu0
      %v4589 = vadd.f32 0.0, %v4588
      %v4590 = vpop.f32.mrf.mxu0
      %v4591 = vadd.f32 0.0, %v4590
      %4592 = vmatmul.bf16.gmra.mxu0 %v4492
      %v4593 = vpop.f32.mrf.mxu0
      %v4594 = vadd.f32 0.0, %v4593
      %v4595 = vpop.f32.mrf.mxu0
      %v4596 = vadd.f32 0.0, %v4595
      %4597 = vdwg.mxu0
      %v4598 = vpack.c.bf16 %v3544, %v3544
      %v4599 = vpack.c.bf16 %v3546, %v3546
      %v4600 = vpack.c.bf16 %v3549, %v3549
      %v4601 = vpack.c.bf16 %v3551, %v3551
      %v4602 = vpack.c.bf16 %v3554, %v3554
      %v4603 = vpack.c.bf16 %v3556, %v3556
      %v4604 = vpack.c.bf16 %v3559, %v3559
      %v4605 = vpack.c.bf16 %v3561, %v3561
      %v4606 = vpack.c.bf16 %v3564, %v3564
      %v4607 = vpack.c.bf16 %v3566, %v3566
      %v4608 = vpack.c.bf16 %v3569, %v3569
      %v4609 = vpack.c.bf16 %v3571, %v3571
      %v4610 = vpack.c.bf16 %v3574, %v3574
      %v4611 = vpack.c.bf16 %v3576, %v3576
      %v4612 = vpack.c.bf16 %v3579, %v3579
      %v4613 = vpack.c.bf16 %v3581, %v3581
      %v4614 = vpack.c.bf16 %v3689, %v3689
      %v4615 = vpack.c.bf16 %v3691, %v3691
      %v4616 = vpack.c.bf16 %v3694, %v3694
      %v4617 = vpack.c.bf16 %v3696, %v3696
      %v4618 = vpack.c.bf16 %v3699, %v3699
      %v4619 = vpack.c.bf16 %v3701, %v3701
      %v4620 = vpack.c.bf16 %v3704, %v3704
      %v4621 = vpack.c.bf16 %v3706, %v3706
      %v4622 = vpack.c.bf16 %v3709, %v3709
      %v4623 = vpack.c.bf16 %v3711, %v3711
      %v4624 = vpack.c.bf16 %v3714, %v3714
      %v4625 = vpack.c.bf16 %v3716, %v3716
      %v4626 = vpack.c.bf16 %v3719, %v3719
      %v4627 = vpack.c.bf16 %v3721, %v3721
      %v4628 = vpack.c.bf16 %v3724, %v3724
      %v4629 = vpack.c.bf16 %v3726, %v3726
      %v4630 = vpack.c.bf16 %v3834, %v3834
      %v4631 = vpack.c.bf16 %v3836, %v3836
      %v4632 = vpack.c.bf16 %v3839, %v3839
      %v4633 = vpack.c.bf16 %v3841, %v3841
      %v4634 = vpack.c.bf16 %v3844, %v3844
      %v4635 = vpack.c.bf16 %v3846, %v3846
      %v4636 = vpack.c.bf16 %v3849, %v3849
      %v4637 = vpack.c.bf16 %v3851, %v3851
      %v4638 = vpack.c.bf16 %v3854, %v3854
      %v4639 = vpack.c.bf16 %v3856, %v3856
      %v4640 = vpack.c.bf16 %v3859, %v3859
      %v4641 = vpack.c.bf16 %v3861, %v3861
      %v4642 = vpack.c.bf16 %v3864, %v3864
      %v4643 = vpack.c.bf16 %v3866, %v3866
      %v4644 = vpack.c.bf16 %v3869, %v3869
      %v4645 = vpack.c.bf16 %v3871, %v3871
      %v4646 = vpack.c.bf16 %v3979, %v3979
      %v4647 = vpack.c.bf16 %v3981, %v3981
      %v4648 = vpack.c.bf16 %v3984, %v3984
      %v4649 = vpack.c.bf16 %v3986, %v3986
      %v4650 = vpack.c.bf16 %v3989, %v3989
      %v4651 = vpack.c.bf16 %v3991, %v3991
      %v4652 = vpack.c.bf16 %v3994, %v3994
      %v4653 = vpack.c.bf16 %v3996, %v3996
      %v4654 = vpack.c.bf16 %v3999, %v3999
      %v4655 = vpack.c.bf16 %v4001, %v4001
      %v4656 = vpack.c.bf16 %v4004, %v4004
      %v4657 = vpack.c.bf16 %v4006, %v4006
      %v4658 = vpack.c.bf16 %v4009, %v4009
      %v4659 = vpack.c.bf16 %v4011, %v4011
      %v4660 = vpack.c.bf16 %v4014, %v4014
      %v4661 = vpack.c.bf16 %v4016, %v4016
      %v4662 = vpack.c.bf16 %v4124, %v4124
      %v4663 = vpack.c.bf16 %v4126, %v4126
      %v4664 = vpack.c.bf16 %v4129, %v4129
      %v4665 = vpack.c.bf16 %v4131, %v4131
      %v4666 = vpack.c.bf16 %v4134, %v4134
      %v4667 = vpack.c.bf16 %v4136, %v4136
      %v4668 = vpack.c.bf16 %v4139, %v4139
      %v4669 = vpack.c.bf16 %v4141, %v4141
      %v4670 = vpack.c.bf16 %v4144, %v4144
      %v4671 = vpack.c.bf16 %v4146, %v4146
      %v4672 = vpack.c.bf16 %v4149, %v4149
      %v4673 = vpack.c.bf16 %v4151, %v4151
      %v4674 = vpack.c.bf16 %v4154, %v4154
      %v4675 = vpack.c.bf16 %v4156, %v4156
      %v4676 = vpack.c.bf16 %v4159, %v4159
      %v4677 = vpack.c.bf16 %v4161, %v4161
      %v4678 = vpack.c.bf16 %v4269, %v4269
      %v4679 = vpack.c.bf16 %v4271, %v4271
      %v4680 = vpack.c.bf16 %v4274, %v4274
      %v4681 = vpack.c.bf16 %v4276, %v4276
      %v4682 = vpack.c.bf16 %v4279, %v4279
      %v4683 = vpack.c.bf16 %v4281, %v4281
      %v4684 = vpack.c.bf16 %v4284, %v4284
      %v4685 = vpack.c.bf16 %v4286, %v4286
      %v4686 = vpack.c.bf16 %v4289, %v4289
      %v4687 = vpack.c.bf16 %v4291, %v4291
      %v4688 = vpack.c.bf16 %v4294, %v4294
      %v4689 = vpack.c.bf16 %v4296, %v4296
      %v4690 = vpack.c.bf16 %v4299, %v4299
      %v4691 = vpack.c.bf16 %v4301, %v4301
      %v4692 = vpack.c.bf16 %v4304, %v4304
      %v4693 = vpack.c.bf16 %v4306, %v4306
      %v4694 = vpack.c.bf16 %v4414, %v4414
      %v4695 = vpack.c.bf16 %v4416, %v4416
      %v4696 = vpack.c.bf16 %v4419, %v4419
      %v4697 = vpack.c.bf16 %v4421, %v4421
      %v4698 = vpack.c.bf16 %v4424, %v4424
      %v4699 = vpack.c.bf16 %v4426, %v4426
      %v4700 = vpack.c.bf16 %v4429, %v4429
      %v4701 = vpack.c.bf16 %v4431, %v4431
      %v4702 = vpack.c.bf16 %v4434, %v4434
      %v4703 = vpack.c.bf16 %v4436, %v4436
      %v4704 = vpack.c.bf16 %v4439, %v4439
      %v4705 = vpack.c.bf16 %v4441, %v4441
      %v4706 = vpack.c.bf16 %v4444, %v4444
      %v4707 = vpack.c.bf16 %v4446, %v4446
      %v4708 = vpack.c.bf16 %v4449, %v4449
      %v4709 = vpack.c.bf16 %v4451, %v4451
      %v4710 = vpack.c.bf16 %v4559, %v4559
      %v4711 = vpack.c.bf16 %v4561, %v4561
      %v4712 = vpack.c.bf16 %v4564, %v4564
      %v4713 = vpack.c.bf16 %v4566, %v4566
      %v4714 = vpack.c.bf16 %v4569, %v4569
      %v4715 = vpack.c.bf16 %v4571, %v4571
      %v4716 = vpack.c.bf16 %v4574, %v4574
      %v4717 = vpack.c.bf16 %v4576, %v4576
      %v4718 = vpack.c.bf16 %v4579, %v4579
      %v4719 = vpack.c.bf16 %v4581, %v4581
      %v4720 = vpack.c.bf16 %v4584, %v4584
      %v4721 = vpack.c.bf16 %v4586, %v4586
      %v4722 = vpack.c.bf16 %v4589, %v4589
      %v4723 = vpack.c.bf16 %v4591, %v4591
      %v4724 = vpack.c.bf16 %v4594, %v4594
      %v4725 = vpack.c.bf16 %v4596, %v4596
      %vm4726 = vcmask 257024
      %4727 = vst.msk [vmem:[%s227] sm:$0xf] %vm4726, %v4598
      %4728 = vst.msk [vmem:[%s227 + $0x4] sm:$0xf] %vm4726, %v4599
      %4729 = vst.msk [vmem:[%s227 + $0x8] sm:$0xf] %vm4726, %v4600
      %4730 = vst.msk [vmem:[%s227 + $0xc] sm:$0xf] %vm4726, %v4601
      %4731 = vst.msk [vmem:[%s227 + $0x10] sm:$0xf] %vm4726, %v4602
      %4732 = vst.msk [vmem:[%s227 + $0x14] sm:$0xf] %vm4726, %v4603
      %4733 = vst.msk [vmem:[%s227 + $0x18] sm:$0xf] %vm4726, %v4604
      %4734 = vst.msk [vmem:[%s227 + $0x1c] sm:$0xf] %vm4726, %v4605
      %4735 = vst.msk [vmem:[%s227 + $0x20] sm:$0xf] %vm4726, %v4606
      %4736 = vst.msk [vmem:[%s227 + $0x24] sm:$0xf] %vm4726, %v4607
      %4737 = vst.msk [vmem:[%s227 + $0x28] sm:$0xf] %vm4726, %v4608
      %4738 = vst.msk [vmem:[%s227 + $0x2c] sm:$0xf] %vm4726, %v4609
      %4739 = vst.msk [vmem:[%s227 + $0x30] sm:$0xf] %vm4726, %v4610
      %4740 = vst.msk [vmem:[%s227 + $0x34] sm:$0xf] %vm4726, %v4611
      %4741 = vst.msk [vmem:[%s227 + $0x38] sm:$0xf] %vm4726, %v4612
      %4742 = vst.msk [vmem:[%s227 + $0x3c] sm:$0xf] %vm4726, %v4613
      %4743 = vst.msk [vmem:[%s227 + $0x40] sm:$0xf] %vm4726, %v4614
      %4744 = vst.msk [vmem:[%s227 + $0x44] sm:$0xf] %vm4726, %v4615
      %4745 = vst.msk [vmem:[%s227 + $0x48] sm:$0xf] %vm4726, %v4616
      %4746 = vst.msk [vmem:[%s227 + $0x4c] sm:$0xf] %vm4726, %v4617
      %4747 = vst.msk [vmem:[%s227 + $0x50] sm:$0xf] %vm4726, %v4618
      %4748 = vst.msk [vmem:[%s227 + $0x54] sm:$0xf] %vm4726, %v4619
      %4749 = vst.msk [vmem:[%s227 + $0x58] sm:$0xf] %vm4726, %v4620
      %4750 = vst.msk [vmem:[%s227 + $0x5c] sm:$0xf] %vm4726, %v4621
      %4751 = vst.msk [vmem:[%s227 + $0x60] sm:$0xf] %vm4726, %v4622
      %4752 = vst.msk [vmem:[%s227 + $0x64] sm:$0xf] %vm4726, %v4623
      %4753 = vst.msk [vmem:[%s227 + $0x68] sm:$0xf] %vm4726, %v4624
      %4754 = vst.msk [vmem:[%s227 + $0x6c] sm:$0xf] %vm4726, %v4625
      %4755 = vst.msk [vmem:[%s227 + $0x70] sm:$0xf] %vm4726, %v4626
      %4756 = vst.msk [vmem:[%s227 + $0x74] sm:$0xf] %vm4726, %v4627
      %4757 = vst.msk [vmem:[%s227 + $0x78] sm:$0xf] %vm4726, %v4628
      %4758 = vst.msk [vmem:[%s227 + $0x7c] sm:$0xf] %vm4726, %v4629
      %4759 = vst.msk [vmem:[%s227 + $0x80] sm:$0xf] %vm4726, %v4630
      %4760 = vst.msk [vmem:[%s227 + $0x84] sm:$0xf] %vm4726, %v4631
      %4761 = vst.msk [vmem:[%s227 + $0x88] sm:$0xf] %vm4726, %v4632
      %4762 = vst.msk [vmem:[%s227 + $0x8c] sm:$0xf] %vm4726, %v4633
      %4763 = vst.msk [vmem:[%s227 + $0x90] sm:$0xf] %vm4726, %v4634
      %4764 = vst.msk [vmem:[%s227 + $0x94] sm:$0xf] %vm4726, %v4635
      %4765 = vst.msk [vmem:[%s227 + $0x98] sm:$0xf] %vm4726, %v4636
      %4766 = vst.msk [vmem:[%s227 + $0x9c] sm:$0xf] %vm4726, %v4637
      %4767 = vst.msk [vmem:[%s227 + $0xa0] sm:$0xf] %vm4726, %v4638
      %4768 = vst.msk [vmem:[%s227 + $0xa4] sm:$0xf] %vm4726, %v4639
      %4769 = vst.msk [vmem:[%s227 + $0xa8] sm:$0xf] %vm4726, %v4640
      %4770 = vst.msk [vmem:[%s227 + $0xac] sm:$0xf] %vm4726, %v4641
      %4771 = vst.msk [vmem:[%s227 + $0xb0] sm:$0xf] %vm4726, %v4642
      %4772 = vst.msk [vmem:[%s227 + $0xb4] sm:$0xf] %vm4726, %v4643
      %4773 = vst.msk [vmem:[%s227 + $0xb8] sm:$0xf] %vm4726, %v4644
      %4774 = vst.msk [vmem:[%s227 + $0xbc] sm:$0xf] %vm4726, %v4645
      %4775 = vst.msk [vmem:[%s227 + $0xc0] sm:$0xf] %vm4726, %v4646
      %4776 = vst.msk [vmem:[%s227 + $0xc4] sm:$0xf] %vm4726, %v4647
      %4777 = vst.msk [vmem:[%s227 + $0xc8] sm:$0xf] %vm4726, %v4648
      %4778 = vst.msk [vmem:[%s227 + $0xcc] sm:$0xf] %vm4726, %v4649
      %4779 = vst.msk [vmem:[%s227 + $0xd0] sm:$0xf] %vm4726, %v4650
      %4780 = vst.msk [vmem:[%s227 + $0xd4] sm:$0xf] %vm4726, %v4651
      %4781 = vst.msk [vmem:[%s227 + $0xd8] sm:$0xf] %vm4726, %v4652
      %4782 = vst.msk [vmem:[%s227 + $0xdc] sm:$0xf] %vm4726, %v4653
      %4783 = vst.msk [vmem:[%s227 + $0xe0] sm:$0xf] %vm4726, %v4654
      %4784 = vst.msk [vmem:[%s227 + $0xe4] sm:$0xf] %vm4726, %v4655
      %4785 = vst.msk [vmem:[%s227 + $0xe8] sm:$0xf] %vm4726, %v4656
      %4786 = vst.msk [vmem:[%s227 + $0xec] sm:$0xf] %vm4726, %v4657
      %4787 = vst.msk [vmem:[%s227 + $0xf0] sm:$0xf] %vm4726, %v4658
      %4788 = vst.msk [vmem:[%s227 + $0xf4] sm:$0xf] %vm4726, %v4659
      %4789 = vst.msk [vmem:[%s227 + $0xf8] sm:$0xf] %vm4726, %v4660
      %4790 = vst.msk [vmem:[%s227 + $0xfc] sm:$0xf] %vm4726, %v4661
      %4791 = vst.msk [vmem:[%s227 + $0x100] sm:$0xf] %vm4726, %v4662
      %4792 = vst.msk [vmem:[%s227 + $0x104] sm:$0xf] %vm4726, %v4663
      %4793 = vst.msk [vmem:[%s227 + $0x108] sm:$0xf] %vm4726, %v4664
      %4794 = vst.msk [vmem:[%s227 + $0x10c] sm:$0xf] %vm4726, %v4665
      %4795 = vst.msk [vmem:[%s227 + $0x110] sm:$0xf] %vm4726, %v4666
      %4796 = vst.msk [vmem:[%s227 + $0x114] sm:$0xf] %vm4726, %v4667
      %4797 = vst.msk [vmem:[%s227 + $0x118] sm:$0xf] %vm4726, %v4668
      %4798 = vst.msk [vmem:[%s227 + $0x11c] sm:$0xf] %vm4726, %v4669
      %4799 = vst.msk [vmem:[%s227 + $0x120] sm:$0xf] %vm4726, %v4670
      %4800 = vst.msk [vmem:[%s227 + $0x124] sm:$0xf] %vm4726, %v4671
      %4801 = vst.msk [vmem:[%s227 + $0x128] sm:$0xf] %vm4726, %v4672
      %4802 = vst.msk [vmem:[%s227 + $0x12c] sm:$0xf] %vm4726, %v4673
      %4803 = vst.msk [vmem:[%s227 + $0x130] sm:$0xf] %vm4726, %v4674
      %4804 = vst.msk [vmem:[%s227 + $0x134] sm:$0xf] %vm4726, %v4675
      %4805 = vst.msk [vmem:[%s227 + $0x138] sm:$0xf] %vm4726, %v4676
      %4806 = vst.msk [vmem:[%s227 + $0x13c] sm:$0xf] %vm4726, %v4677
      %4807 = vst.msk [vmem:[%s227 + $0x140] sm:$0xf] %vm4726, %v4678
      %4808 = vst.msk [vmem:[%s227 + $0x144] sm:$0xf] %vm4726, %v4679
      %4809 = vst.msk [vmem:[%s227 + $0x148] sm:$0xf] %vm4726, %v4680
      %4810 = vst.msk [vmem:[%s227 + $0x14c] sm:$0xf] %vm4726, %v4681
      %4811 = vst.msk [vmem:[%s227 + $0x150] sm:$0xf] %vm4726, %v4682
      %4812 = vst.msk [vmem:[%s227 + $0x154] sm:$0xf] %vm4726, %v4683
      %4813 = vst.msk [vmem:[%s227 + $0x158] sm:$0xf] %vm4726, %v4684
      %4814 = vst.msk [vmem:[%s227 + $0x15c] sm:$0xf] %vm4726, %v4685
      %4815 = vst.msk [vmem:[%s227 + $0x160] sm:$0xf] %vm4726, %v4686
      %4816 = vst.msk [vmem:[%s227 + $0x164] sm:$0xf] %vm4726, %v4687
      %4817 = vst.msk [vmem:[%s227 + $0x168] sm:$0xf] %vm4726, %v4688
      %4818 = vst.msk [vmem:[%s227 + $0x16c] sm:$0xf] %vm4726, %v4689
      %4819 = vst.msk [vmem:[%s227 + $0x170] sm:$0xf] %vm4726, %v4690
      %4820 = vst.msk [vmem:[%s227 + $0x174] sm:$0xf] %vm4726, %v4691
      %4821 = vst.msk [vmem:[%s227 + $0x178] sm:$0xf] %vm4726, %v4692
      %4822 = vst.msk [vmem:[%s227 + $0x17c] sm:$0xf] %vm4726, %v4693
      %4823 = vst.msk [vmem:[%s227 + $0x180] sm:$0xf] %vm4726, %v4694
      %4824 = vst.msk [vmem:[%s227 + $0x184] sm:$0xf] %vm4726, %v4695
      %4825 = vst.msk [vmem:[%s227 + $0x188] sm:$0xf] %vm4726, %v4696
      %4826 = vst.msk [vmem:[%s227 + $0x18c] sm:$0xf] %vm4726, %v4697
      %4827 = vst.msk [vmem:[%s227 + $0x190] sm:$0xf] %vm4726, %v4698
      %4828 = vst.msk [vmem:[%s227 + $0x194] sm:$0xf] %vm4726, %v4699
      %4829 = vst.msk [vmem:[%s227 + $0x198] sm:$0xf] %vm4726, %v4700
      %4830 = vst.msk [vmem:[%s227 + $0x19c] sm:$0xf] %vm4726, %v4701
      %4831 = vst.msk [vmem:[%s227 + $0x1a0] sm:$0xf] %vm4726, %v4702
      %4832 = vst.msk [vmem:[%s227 + $0x1a4] sm:$0xf] %vm4726, %v4703
      %4833 = vst.msk [vmem:[%s227 + $0x1a8] sm:$0xf] %vm4726, %v4704
      %4834 = vst.msk [vmem:[%s227 + $0x1ac] sm:$0xf] %vm4726, %v4705
      %4835 = vst.msk [vmem:[%s227 + $0x1b0] sm:$0xf] %vm4726, %v4706
      %4836 = vst.msk [vmem:[%s227 + $0x1b4] sm:$0xf] %vm4726, %v4707
      %4837 = vst.msk [vmem:[%s227 + $0x1b8] sm:$0xf] %vm4726, %v4708
      %4838 = vst.msk [vmem:[%s227 + $0x1bc] sm:$0xf] %vm4726, %v4709
      %4839 = vst.msk [vmem:[%s227 + $0x1c0] sm:$0xf] %vm4726, %v4710
      %4840 = vst.msk [vmem:[%s227 + $0x1c4] sm:$0xf] %vm4726, %v4711
      %4841 = vst.msk [vmem:[%s227 + $0x1c8] sm:$0xf] %vm4726, %v4712
      %4842 = vst.msk [vmem:[%s227 + $0x1cc] sm:$0xf] %vm4726, %v4713
      %4843 = vst.msk [vmem:[%s227 + $0x1d0] sm:$0xf] %vm4726, %v4714
      %4844 = vst.msk [vmem:[%s227 + $0x1d4] sm:$0xf] %vm4726, %v4715
      %4845 = vst.msk [vmem:[%s227 + $0x1d8] sm:$0xf] %vm4726, %v4716
      %4846 = vst.msk [vmem:[%s227 + $0x1dc] sm:$0xf] %vm4726, %v4717
      %4847 = vst.msk [vmem:[%s227 + $0x1e0] sm:$0xf] %vm4726, %v4718
      %4848 = vst.msk [vmem:[%s227 + $0x1e4] sm:$0xf] %vm4726, %v4719
      %4849 = vst.msk [vmem:[%s227 + $0x1e8] sm:$0xf] %vm4726, %v4720
      %4850 = vst.msk [vmem:[%s227 + $0x1ec] sm:$0xf] %vm4726, %v4721
      %4851 = vst.msk [vmem:[%s227 + $0x1f0] sm:$0xf] %vm4726, %v4722
      %4852 = vst.msk [vmem:[%s227 + $0x1f4] sm:$0xf] %vm4726, %v4723
      %4853 = vst.msk [vmem:[%s227 + $0x1f8] sm:$0xf] %vm4726, %v4724
      %4854 = vst.msk [vmem:[%s227 + $0x1fc] sm:$0xf] %vm4726, %v4725
      %s4855 = smul.u32 8, %s14
      %p4856 = scmp.lt.s32.totalorder %s4855, 15
      %s4857 = scalar_select %p4856, %s4855, 15
      %s4858 = smul.addr %s4857, 16
      %s4859 = smul.addr %s4858, 4
      %s4860 = scalar_lea.vmem %s3, %s4859
      // Predicated region
      $region33: #{self_attention.4} parent=31 // pred_check
        %p4861 = pneg %p110
      $region34: #{self_attention.4} parent=31 // pred_check_branch
        %4863 = sbr.rel (%p4861) target = $region36
      $region35: #{self_attention.4} parent=31 // pred_region
        %s4864 = smul.u32 8, %s14
      $region36: #{self_attention.4} parent=31 // pred_fallthru
        _
    $region32: #{self_attention.4} parent=5 // pred_fallthru
      _
    %p4865 = scmp.le.s32.totalorder 2, %s9
    // Predicated region
    $region37: #{self_attention.4} parent=5 // pred_check
      %p4866 = pneg %p4865
    $region38: #{self_attention.4} parent=5 // pred_check_branch
      %4868 = sbr.rel (%p4866) target = $region40
    $region39: #{self_attention.4} parent=5 // pred_region
      %s4869 = ssub.s32 %s9, 2
      // Predicated region
      $region41: #{self_attention.4} parent=39 // pred_check
        %p4870 = pneg %p116
      $region42: #{self_attention.4} parent=39 // pred_check_branch
        %4872 = sbr.rel (%p4870) target = $region44
      $region43: #{self_attention.4} parent=39 // pred_region
        %s4873 = smul.u32 8, %s15
        %p4874 = scmp.lt.s32.totalorder %s4873, 15
        %s4875 = scalar_select %p4874, %s4873, 15
        %s4876 = smul.addr %s4875, 16
        %s4877 = smul.addr %s4876, 4
        %s4878 = scalar_lea.vmem %s3, %s4877
      $region44: #{self_attention.4} parent=39 // pred_fallthru
        _
    $region40: #{self_attention.4} parent=5 // pred_fallthru
      _
  $region6: #{self_attention.4} parent=0 // loop_footer
    %s13 = sadd.s32 1, %s9
  $region7: #{self_attention.4} parent=0 // loop_footer_branch
    %8 = sbr.rel target = $region3
  $region8: #{self_attention.4} parent=0 // loop_exit
    _

</llo_original>
